<compile_context>
chip_gen: v7x
topology: tpu7x:2x2x1
jax: 0.10.0
libtpu: 0.0.40
codegen_flags: <defaults>
</compile_context>

<pallas_src>
import functools

import jax
import jax.numpy as jnp
from jax.experimental import pallas as pl
from jax.experimental.pallas import tpu as pltpu

NEG_SLOPE = 0.2
BN_EPS = 1e-5


def _lrelu(y):
    return jnp.where(y >= 0, y, NEG_SLOPE * y)


# ----------------------------- Pallas kernels ------------------------------

def _conv_lrelu_kernel(a_ref, w_ref, b_ref, o_ref):
    """Lane-packed conv matmul + bias + LeakyReLU (layer 1, no BatchNorm)."""
    y = jnp.dot(a_ref[...], w_ref[...], preferred_element_type=jnp.float32)
    y = y + b_ref[...]
    o_ref[...] = _lrelu(y).astype(o_ref.dtype)


def conv_lrelu(patches, w, b, *, tm=256, out_dtype=jnp.bfloat16):
    Mp, Kp = patches.shape
    Cp = w.shape[1]
    assert Mp % tm == 0 and w.shape[0] == Kp and b.shape == (1, Cp)
    return pl.pallas_call(
        _conv_lrelu_kernel,
        out_shape=jax.ShapeDtypeStruct((Mp, Cp), out_dtype),
        grid_spec=pltpu.PrefetchScalarGridSpec(
            num_scalar_prefetch=0,
            grid=(Mp // tm,),
            in_specs=[
                pl.BlockSpec((tm, Kp), lambda i: (i, 0)),
                pl.BlockSpec((Kp, Cp), lambda i: (0, 0)),
                pl.BlockSpec((1, Cp), lambda i: (0, 0)),
            ],
            out_specs=pl.BlockSpec((tm, Cp), lambda i: (i, 0)),
        ),
        compiler_params=pltpu.CompilerParams(dimension_semantics=("parallel",)),
    )(patches, w, b)


def _conv_bn_lrelu_kernel(a_ref, w_ref, b_ref, g_ref, be_ref, o_ref,
                          act_ref, sum_ref, sq_ref, *, packs, m_total, chunk):
    """Conv matmul + bias, train-mode BatchNorm (batch stats) + LReLU, fused.

    Pre-BN activations are staged in a VMEM scratch across grid steps; channel
    sum / sum-of-squares accumulate in (1, C) scratches.  The last grid step
    folds the packed halves (lane roll), computes scale/shift and writes the
    normalized, activated output chunk-by-chunk (bounded register pressure).
    """
    step = pl.program_id(0)
    tm = a_ref.shape[0]

    @pl.when(step == 0)
    def _():
        sum_ref[...] = jnp.zeros_like(sum_ref)
        sq_ref[...] = jnp.zeros_like(sq_ref)

    y = jnp.dot(a_ref[...], w_ref[...], preferred_element_type=jnp.float32)
    y = y + b_ref[...]
    sum_ref[...] += jnp.sum(y, axis=0, keepdims=True)
    sq_ref[...] += jnp.sum(y * y, axis=0, keepdims=True)
    act_ref[pl.ds(pl.multiple_of(step * tm, tm), tm), :] = y

    @pl.when(step == pl.num_programs(0) - 1)
    def _():
        s, sq = sum_ref[...], sq_ref[...]
        if packs > 1:
            # Fold the packed halves so every lane carries the full per-channel
            # statistic, already replicated in the packed (tiled) layout.
            half = s.shape[1] // packs
            s = s + pltpu.roll(s, shift=half, axis=1)
            sq = sq + pltpu.roll(sq, shift=half, axis=1)
        mean = s / m_total
        var = sq / m_total - mean * mean          # biased var (PyTorch train mode)
        scale = g_ref[...] * jax.lax.rsqrt(var + BN_EPS)
        shift = be_ref[...] - mean * scale

        @pl.loop(0, act_ref.shape[0] // chunk)
        def _(c):
            r = pl.ds(pl.multiple_of(c * chunk, chunk), chunk)
            z = act_ref[r, :] * scale + shift
            o_ref[r, :] = _lrelu(z).astype(o_ref.dtype)


def conv_bn_lrelu(patches, w, b, g, be, *, packs, tm=256, chunk=128,
                  out_dtype=jnp.bfloat16):
    Mp, Kp = patches.shape
    Cp = w.shape[1]
    assert packs in (1, 2)
    assert Mp % tm == 0 and Mp % chunk == 0 and w.shape[0] == Kp
    kernel = functools.partial(_conv_bn_lrelu_kernel,
                               packs=packs, m_total=Mp * packs, chunk=chunk)
    return pl.pallas_call(
        kernel,
        out_shape=jax.ShapeDtypeStruct((Mp, Cp), out_dtype),
        grid_spec=pltpu.PrefetchScalarGridSpec(
            num_scalar_prefetch=0,
            grid=(Mp // tm,),
            in_specs=[
                pl.BlockSpec((tm, Kp), lambda i: (i, 0)),
                pl.BlockSpec((Kp, Cp), lambda i: (0, 0)),
                pl.BlockSpec((1, Cp), lambda i: (0, 0)),
                pl.BlockSpec((1, Cp), lambda i: (0, 0)),
                pl.BlockSpec((1, Cp), lambda i: (0, 0)),
            ],
            # Full-array output block, resident across the (reduction) grid;
            # written once at the last step.
            out_specs=pl.BlockSpec((Mp, Cp), lambda i: (0, 0)),
            scratch_shapes=[
                pltpu.VMEM((Mp, Cp), jnp.float32),   # pre-BN activations
                pltpu.VMEM((1, Cp), jnp.float32),    # channel sums
                pltpu.VMEM((1, Cp), jnp.float32),    # channel sum of squares
            ],
        ),
        compiler_params=pltpu.CompilerParams(dimension_semantics=("arbitrary",)),
    )(patches, w, b, g, be)


def _conv_bn_lrelu_head_kernel(a_ref, w_ref, b_ref, g_ref, be_ref, wl_ref,
                               bl_ref, o_ref, act_ref, sum_ref, sq_ref,
                               *, m_total, rows_per_image, chunk):
    """Conv3 + BatchNorm + LReLU + Flatten + Linear + Sigmoid, fully fused.

    The layer-3 activation lives only in VMEM scratch; the kernel emits the
    (N, 1) sigmoid logits directly.  The linear weight arrives already permuted
    to (h*w, c) order so no activation transpose is needed.
    """
    step = pl.program_id(0)
    tm = a_ref.shape[0]

    @pl.when(step == 0)
    def _():
        sum_ref[...] = jnp.zeros_like(sum_ref)
        sq_ref[...] = jnp.zeros_like(sq_ref)

    y = jnp.dot(a_ref[...], w_ref[...], preferred_element_type=jnp.float32)
    y = y + b_ref[...]
    sum_ref[...] += jnp.sum(y, axis=0, keepdims=True)
    sq_ref[...] += jnp.sum(y * y, axis=0, keepdims=True)
    act_ref[pl.ds(pl.multiple_of(step * tm, tm), tm), :] = y

    @pl.when(step == pl.num_programs(0) - 1)
    def _():
        mean = sum_ref[...] / m_total
        var = sq_ref[...] / m_total - mean * mean
        scale = g_ref[...] * jax.lax.rsqrt(var + BN_EPS)
        shift = be_ref[...] - mean * scale

        n_images = act_ref.shape[0] // rows_per_image
        n_chunks = rows_per_image // chunk
        for n in range(n_images):            # static: batch known at trace time
            part = jnp.zeros((1, act_ref.shape[1]), jnp.float32)
            for c in range(n_chunks):        # static: small chunk count
                r0 = n * rows_per_image + c * chunk
                z = act_ref[r0:r0 + chunk, :] * scale + shift
                a = _lrelu(z)
                part = part + jnp.sum(a * wl_ref[c * chunk:(c + 1) * chunk, :],
                                      axis=0, keepdims=True)
            logit = jnp.sum(part, axis=1, keepdims=True) + bl_ref[...]   # (1, 1)
            o_ref[n:n + 1, :] = pl.reciprocal(1.0 + jnp.exp(-logit), approx=True)


def conv_bn_lrelu_head(patches, w, b, g, be, wl, bl, *, n_images, chunk=128):
    M, K = patches.shape
    C = w.shape[1]
    assert M % n_images == 0 and w.shape[0] == K
    R = M // n_images                        # output rows (h*w) per image
    assert R % chunk == 0 and wl.shape == (R, C) and bl.shape == (1, 1)
    kernel = functools.partial(_conv_bn_lrelu_head_kernel,
                               m_total=M, rows_per_image=R, chunk=chunk)
    return pl.pallas_call(
        kernel,
        out_shape=jax.ShapeDtypeStruct((n_images, 1), jnp.float32),
        grid_spec=pltpu.PrefetchScalarGridSpec(
            num_scalar_prefetch=0,
            grid=(n_images,),
            in_specs=[
                pl.BlockSpec((R, K), lambda i: (i, 0)),
                pl.BlockSpec((K, C), lambda i: (0, 0)),
                pl.BlockSpec((1, C), lambda i: (0, 0)),
                pl.BlockSpec((1, C), lambda i: (0, 0)),
                pl.BlockSpec((1, C), lambda i: (0, 0)),
                pl.BlockSpec((R, C), lambda i: (0, 0)),   # linear weight, (h*w, c)
                pl.BlockSpec((1, 1), lambda i: (0, 0)),   # linear bias
            ],
            out_specs=pl.BlockSpec((n_images, 1), lambda i: (0, 0)),
            scratch_shapes=[
                pltpu.VMEM((M, C), jnp.float32),   # layer-3 activations (VMEM only)
                pltpu.VMEM((1, C), jnp.float32),
                pltpu.VMEM((1, C), jnp.float32),
            ],
        ),
        compiler_params=pltpu.CompilerParams(dimension_semantics=("arbitrary",)),
    )(patches, w, b, g, be, wl, bl)


# ------------------------------- JAX glue -----------------------------------

def im2col(x, kh=4, kw=4, stride=2, pad=1):
    # x: NHWC -> patches [N*OH*OW, kh*kw*Cin], patch feature order (kh, kw, cin)
    N, H, W, C = x.shape
    OH = (H + 2 * pad - kh) // stride + 1
    OW = (W + 2 * pad - kw) // stride + 1
    xp = jnp.pad(x, ((0, 0), (pad, pad), (pad, pad), (0, 0)))
    cols = []
    for i in range(kh):
        for j in range(kw):
            cols.append(xp[:, i:i + stride * OH:stride,
                           j:j + stride * OW:stride, :])
    patches = jnp.stack(cols, axis=3)          # [N, OH, OW, kh*kw, C]
    return patches.reshape(N * OH * OW, kh * kw * C), OH, OW


def discriminator_x_forward(x_nchw, kp):
    """Forward pass.  x_nchw: [N, 1, 128, 128] (PyTorch NCHW convention)."""
    N = x_nchw.shape[0]
    x = jnp.transpose(x_nchw, (0, 2, 3, 1))                  # NHWC

    # Layer 1: Conv(1->32,k4,s2,p1) + LReLU.  K=16 is tiny, so pack 8 patches
    # per 128-lane row against a block-diagonal weight (lane-dense in/out).
    p1, oh1, ow1 = im2col(x)                                 # [N*64*64, 16] f32
    m1 = p1.shape[0]
    y1 = conv_lrelu(p1.reshape(m1 // 8, 8 * 16), kp["W1"], kp["b1"])
    x1 = y1.reshape(N, oh1, ow1, 32)                         # bf16

    # Layer 2: Conv(32->64) + BatchNorm + LReLU fused; 2 patches per row.
    p2, oh2, ow2 = im2col(x1)                                # [N*32*32, 512] bf16
    m2 = p2.shape[0]
    y2 = conv_bn_lrelu(p2.reshape(m2 // 2, 2 * 512), kp["W2"], kp["b2"],
                       kp["g2"], kp["be2"], packs=2)
    x2 = y2.reshape(N, oh2, ow2, 64)                         # bf16

    # Layer 3 + head: Conv(64->128)+BN+LReLU + Flatten + Linear + Sigmoid.
    p3, _, _ = im2col(x2)                                    # [N*16*16, 1024] bf16
    return conv_bn_lrelu_head(p3, kp["W3"], kp["b3"], kp["g3"], kp["be3"],
                              kp["wl"], kp["bl"], n_images=N)


def init_params(key):
    """Parameters in PyTorch layouts (Conv2d OIHW, Linear [out, in])."""
    ks = jax.random.split(key, 8)

    def uconv(k, co, ci):
        bound = 1.0 / (ci * 16) ** 0.5
        return jax.random.uniform(k, (co, ci, 4, 4), jnp.float32, -bound, bound)

    def ubias(k, co, fan_in):
        bound = 1.0 / fan_in ** 0.5
        return jax.random.uniform(k, (co,), jnp.float32, -bound, bound)

    lin_in = 128 * 16 * 16
    lb = 1.0 / lin_in ** 0.5
    return {
        "w1": uconv(ks[0], 32, 1),   "b1": ubias(ks[1], 32, 16),
        "w2": uconv(ks[2], 64, 32),  "b2": ubias(ks[3], 64, 512),
        "g2": jnp.ones((64,), jnp.float32), "be2": jnp.zeros((64,), jnp.float32),
        "w3": uconv(ks[4], 128, 64), "b3": ubias(ks[5], 128, 1024),
        "g3": jnp.ones((128,), jnp.float32), "be3": jnp.zeros((128,), jnp.float32),
        "wl": jax.random.uniform(ks[6], (1, lin_in), jnp.float32, -lb, lb),
        "bl": jax.random.uniform(ks[7], (1,), jnp.float32, -lb, lb),
    }


def prepare_params(p):
    """PyTorch layouts -> kernel layouts (done once, outside the forward)."""
    def conv_matrix(w_oihw):                       # OIHW -> [kh*kw*ci, co]
        co = w_oihw.shape[0]
        return jnp.transpose(w_oihw, (2, 3, 1, 0)).reshape(-1, co)

    wm1 = conv_matrix(p["w1"])                     # (16, 32)
    wm2 = conv_matrix(p["w2"])                     # (512, 64)
    wm3 = conv_matrix(p["w3"])                     # (1024, 128)
    # nn.Flatten on NCHW flattens as (c, h, w); fold that permutation into the
    # Linear weight so the activation never needs a transpose before the head.
    wl = jnp.transpose(p["wl"].reshape(128, 16, 16), (1, 2, 0)).reshape(256, 128)
    return {
        "W1": jnp.kron(jnp.eye(8, dtype=jnp.float32), wm1),     # (128, 256) block-diag
        "b1": jnp.tile(p["b1"], 8).reshape(1, 256),
        "W2": jnp.kron(jnp.eye(2, dtype=jnp.float32), wm2).astype(jnp.bfloat16),
        "b2": jnp.tile(p["b2"], 2).reshape(1, 128),
        "g2": jnp.tile(p["g2"], 2).reshape(1, 128),
        "be2": jnp.tile(p["be2"], 2).reshape(1, 128),
        "W3": wm3.astype(jnp.bfloat16),                          # (1024, 128)
        "b3": p["b3"].reshape(1, 128),
        "g3": p["g3"].reshape(1, 128),
        "be3": p["be3"].reshape(1, 128),
        "wl": wl.astype(jnp.float32),                            # (256, 128)
        "bl": p["bl"].reshape(1, 1),
    }


if __name__ == "__main__":
    key = jax.random.PRNGKey(0)
    kx, kparam = jax.random.split(key)
    # 128x128 input is required by the Linear(128*16*16, 1) layer; batch=2.
    x = jax.random.normal(kx, (2, 1, 128, 128), jnp.float32)
    params = prepare_params(init_params(kparam))

    fwd = jax.jit(discriminator_x_forward)
    out = jax.block_until_ready(fwd(x, params))
    assert out.shape == (2, 1) and out.dtype == jnp.float32
    assert bool(jnp.all(jnp.isfinite(out)))
    assert bool(jnp.all((out >= 0.0) & (out <= 1.0)))
    print("KERNEL_OK")
</pallas_src>

<mosaic_0001>
module attributes {stable_mosaic.version = 11 : i64} {
  func.func @_conv_lrelu_kernel(%arg0: i32, %arg1: memref<256x128xf32, #tpu.memory_space<vmem>>, %arg2: memref<128x256xf32, #tpu.memory_space<vmem>>, %arg3: memref<1x256xf32, #tpu.memory_space<vmem>>, %arg4: memref<256x256xbf16, #tpu.memory_space<vmem>>) attributes {dimension_semantics = [#tpu.dimension_semantics<parallel>], iteration_bounds = array<i64: 4>, scalar_prefetch = 0 : i64, scratch_operands = 0 : i64, tpu.core_type = #tpu.core_type<tc>, window_params = [{transform_indices = @transform_0, window_bounds = array<i64: 256, 128>}, {pipeline_mode = #tpu.pipeline_mode<synchronous>, transform_indices = @transform_1, window_bounds = array<i64: 128, 256>}, {pipeline_mode = #tpu.pipeline_mode<synchronous>, transform_indices = @transform_2, window_bounds = array<i64: 1, 256>}, {transform_indices = @transform_3, window_bounds = array<i64: 256, 256>}]} {
    %c0 = arith.constant 0 : index
    %c0_0 = arith.constant 0 : index
    %0 = vector.load %arg1[%c0, %c0_0] : memref<256x128xf32, #tpu.memory_space<vmem>>, vector<256x128xf32>
    %c0_1 = arith.constant 0 : index
    %c0_2 = arith.constant 0 : index
    %1 = vector.load %arg2[%c0_1, %c0_2] : memref<128x256xf32, #tpu.memory_space<vmem>>, vector<128x256xf32>
    %cst = arith.constant dense<0.000000e+00> : vector<256x256xf32>
    %2 = tpu.matmul %0, %1, %cst {dimension_numbers = #tpu.dot_dimension_numbers<[1], [0], [0], [1], [0, 0, 1, 1], [], []>} : vector<256x128xf32>, vector<128x256xf32>, vector<256x256xf32> -> vector<256x256xf32>
    %c0_3 = arith.constant 0 : index
    %c0_4 = arith.constant 0 : index
    %3 = vector.load %arg3[%c0_3, %c0_4] : memref<1x256xf32, #tpu.memory_space<vmem>>, vector<1x256xf32>
    %4 = vector.broadcast %3 : vector<1x256xf32> to vector<256x256xf32>
    %5 = arith.addf %2, %4 : vector<256x256xf32>
    %cst_5 = arith.constant 0.000000e+00 : f32
    %6 = vector.broadcast %cst_5 : f32 to vector<256x256xf32>
    %7 = arith.cmpf oge, %5, %6 : vector<256x256xf32>
    %cst_6 = arith.constant 2.000000e-01 : f32
    %8 = vector.broadcast %cst_6 : f32 to vector<256x256xf32>
    %9 = arith.mulf %8, %5 : vector<256x256xf32>
    %10 = arith.select %7, %5, %9 : vector<256x256xi1>, vector<256x256xf32>
    %11 = arith.truncf %10 : vector<256x256xf32> to vector<256x256xbf16>
    %c0_7 = arith.constant 0 : index
    %c0_8 = arith.constant 0 : index
    %12 = vector.load %arg4[%c0_7, %c0_8] : memref<256x256xbf16, #tpu.memory_space<vmem>>, vector<256x256xbf16>
    tpu.vector_store %arg4[%c0_7, %c0_8], %11 {strides = array<i32>} : memref<256x256xbf16, #tpu.memory_space<vmem>>, vector<256x256xbf16>,
    return
  }
  func.func @transform_0(%arg0: i32) -> (i32, i32) {
    %c0_i32 = arith.constant 0 : i32
    %c0_i32_0 = arith.constant 0 : i32
    return %arg0, %c0_i32 : i32, i32
  }
  func.func @transform_1(%arg0: i32) -> (i32, i32) {
    %c0_i32 = arith.constant 0 : i32
    %c0_i32_0 = arith.constant 0 : i32
    %c0_i32_1 = arith.constant 0 : i32
    return %c0_i32, %c0_i32_0 : i32, i32
  }
  func.func @transform_2(%arg0: i32) -> (i32, i32) {
    %c0_i32 = arith.constant 0 : i32
    %c0_i32_0 = arith.constant 0 : i32
    %c0_i32_1 = arith.constant 0 : i32
    return %c0_i32, %c0_i32_0 : i32, i32
  }
  func.func @transform_3(%arg0: i32) -> (i32, i32) {
    %c0_i32 = arith.constant 0 : i32
    %c0_i32_0 = arith.constant 0 : i32
    return %arg0, %c0_i32 : i32, i32
  }
}

module attributes {stable_mosaic.version = 11 : i64} {
  func.func @_conv_bn_lrelu_kernel(%arg0: i32, %arg1: memref<256x1024xbf16, #tpu.memory_space<vmem>>, %arg2: memref<1024x128xbf16, #tpu.memory_space<vmem>>, %arg3: memref<1x128xf32, #tpu.memory_space<vmem>>, %arg4: memref<1x128xf32, #tpu.memory_space<vmem>>, %arg5: memref<1x128xf32, #tpu.memory_space<vmem>>, %arg6: memref<1024x128xbf16, #tpu.memory_space<vmem>>, %arg7: memref<1024x128xf32, #tpu.memory_space<vmem>>, %arg8: memref<1x128xf32, #tpu.memory_space<vmem>>, %arg9: memref<1x128xf32, #tpu.memory_space<vmem>>) attributes {dimension_semantics = [#tpu.dimension_semantics<arbitrary>], iteration_bounds = array<i64: 4>, scalar_prefetch = 0 : i64, scratch_operands = 3 : i64, tpu.core_type = #tpu.core_type<tc>, window_params = [{transform_indices = @transform_0, window_bounds = array<i64: 256, 1024>}, {pipeline_mode = #tpu.pipeline_mode<synchronous>, transform_indices = @transform_1, window_bounds = array<i64: 1024, 128>}, {pipeline_mode = #tpu.pipeline_mode<synchronous>, transform_indices = @transform_2, window_bounds = array<i64: 1, 128>}, {pipeline_mode = #tpu.pipeline_mode<synchronous>, transform_indices = @transform_3, window_bounds = array<i64: 1, 128>}, {pipeline_mode = #tpu.pipeline_mode<synchronous>, transform_indices = @transform_4, window_bounds = array<i64: 1, 128>}, {pipeline_mode = #tpu.pipeline_mode<synchronous>, transform_indices = @transform_5, window_bounds = array<i64: 1024, 128>}]} {
    %c0_i32 = arith.constant 0 : i32
    %0 = arith.cmpi eq, %arg0, %c0_i32 : i32
    %1 = arith.extui %0 : i1 to i32
    %c0_i32_0 = arith.constant 0 : i32
    %2 = arith.cmpi ne, %1, %c0_i32_0 : i32
    scf.if %2 {
      %cst_18 = arith.constant 0.000000e+00 : f32
      %27 = vector.broadcast %cst_18 : f32 to vector<1x128xf32>
      %c0_19 = arith.constant 0 : index
      %c0_20 = arith.constant 0 : index
      %28 = vector.load %arg8[%c0_19, %c0_20] : memref<1x128xf32, #tpu.memory_space<vmem>>, vector<1x128xf32>
      tpu.vector_store %arg8[%c0_19, %c0_20], %27 {strides = array<i32>} : memref<1x128xf32, #tpu.memory_space<vmem>>, vector<1x128xf32>,
      %cst_21 = arith.constant 0.000000e+00 : f32
      %29 = vector.broadcast %cst_21 : f32 to vector<1x128xf32>
      %c0_22 = arith.constant 0 : index
      %c0_23 = arith.constant 0 : index
      %30 = vector.load %arg9[%c0_22, %c0_23] : memref<1x128xf32, #tpu.memory_space<vmem>>, vector<1x128xf32>
      tpu.vector_store %arg9[%c0_22, %c0_23], %29 {strides = array<i32>} : memref<1x128xf32, #tpu.memory_space<vmem>>, vector<1x128xf32>,
    } else {
    }
    %c0 = arith.constant 0 : index
    %c0_1 = arith.constant 0 : index
    %3 = vector.load %arg1[%c0, %c0_1] : memref<256x1024xbf16, #tpu.memory_space<vmem>>, vector<256x1024xbf16>
    %c0_2 = arith.constant 0 : index
    %c0_3 = arith.constant 0 : index
    %4 = vector.load %arg2[%c0_2, %c0_3] : memref<1024x128xbf16, #tpu.memory_space<vmem>>, vector<1024x128xbf16>
    %cst = arith.constant dense<0.000000e+00> : vector<256x128xf32>
    %5 = tpu.matmul %3, %4, %cst {dimension_numbers = #tpu.dot_dimension_numbers<[1], [0], [0], [1], [0, 0, 1, 1], [], []>} : vector<256x1024xbf16>, vector<1024x128xbf16>, vector<256x128xf32> -> vector<256x128xf32>
    %c0_4 = arith.constant 0 : index
    %c0_5 = arith.constant 0 : index
    %6 = vector.load %arg3[%c0_4, %c0_5] : memref<1x128xf32, #tpu.memory_space<vmem>>, vector<1x128xf32>
    %7 = vector.broadcast %6 : vector<1x128xf32> to vector<256x128xf32>
    %8 = arith.addf %5, %7 : vector<256x128xf32>
    %c0_6 = arith.constant 0 : index
    %c0_7 = arith.constant 0 : index
    %9 = vector.load %arg8[%c0_6, %c0_7] : memref<1x128xf32, #tpu.memory_space<vmem>>, vector<1x128xf32>
    %cst_8 = arith.constant dense<0.000000e+00> : vector<128xf32>
    %10 = vector.multi_reduction <add>, %8, %cst_8 [0] : vector<256x128xf32> to vector<128xf32>
    %11 = vector.shape_cast %10 : vector<128xf32> to vector<1x128xf32>
    %12 = arith.addf %9, %11 : vector<1x128xf32>
    %c0_9 = arith.constant 0 : index
    %c0_10 = arith.constant 0 : index
    %13 = vector.load %arg8[%c0_9, %c0_10] : memref<1x128xf32, #tpu.memory_space<vmem>>, vector<1x128xf32>
    tpu.vector_store %arg8[%c0_9, %c0_10], %12 {strides = array<i32>} : memref<1x128xf32, #tpu.memory_space<vmem>>, vector<1x128xf32>,
    %c0_11 = arith.constant 0 : index
    %c0_12 = arith.constant 0 : index
    %14 = vector.load %arg9[%c0_11, %c0_12] : memref<1x128xf32, #tpu.memory_space<vmem>>, vector<1x128xf32>
    %15 = arith.mulf %8, %8 : vector<256x128xf32>
    %cst_13 = arith.constant dense<0.000000e+00> : vector<128xf32>
    %16 = vector.multi_reduction <add>, %15, %cst_13 [0] : vector<256x128xf32> to vector<128xf32>
    %17 = vector.shape_cast %16 : vector<128xf32> to vector<1x128xf32>
    %18 = arith.addf %14, %17 : vector<1x128xf32>
    %c0_14 = arith.constant 0 : index
    %c0_15 = arith.constant 0 : index
    %19 = vector.load %arg9[%c0_14, %c0_15] : memref<1x128xf32, #tpu.memory_space<vmem>>, vector<1x128xf32>
    tpu.vector_store %arg9[%c0_14, %c0_15], %18 {strides = array<i32>} : memref<1x128xf32, #tpu.memory_space<vmem>>, vector<1x128xf32>,
    %c256_i32 = arith.constant 256 : i32
    %20 = arith.muli %arg0, %c256_i32 : i32
    %21 = tpu.assume_multiple %20, 256 : i32
    %22 = arith.index_cast %21 : i32 to index
    %c0_16 = arith.constant 0 : index
    %23 = vector.load %arg7[%22, %c0_16] : memref<1024x128xf32, #tpu.memory_space<vmem>>, vector<256x128xf32>
    tpu.vector_store %arg7[%22, %c0_16], %8 {strides = array<i32>} : memref<1024x128xf32, #tpu.memory_space<vmem>>, vector<256x128xf32>,
    %c3_i32 = arith.constant 3 : i32
    %24 = arith.cmpi eq, %arg0, %c3_i32 : i32
    %25 = arith.extui %24 : i1 to i32
    %c0_i32_17 = arith.constant 0 : i32
    %26 = arith.cmpi ne, %25, %c0_i32_17 : i32
    scf.if %26 {
      %c0_18 = arith.constant 0 : index
      %c0_19 = arith.constant 0 : index
      %27 = vector.load %arg8[%c0_18, %c0_19] : memref<1x128xf32, #tpu.memory_space<vmem>>, vector<1x128xf32>
      %c0_20 = arith.constant 0 : index
      %c0_21 = arith.constant 0 : index
      %28 = vector.load %arg9[%c0_20, %c0_21] : memref<1x128xf32, #tpu.memory_space<vmem>>, vector<1x128xf32>
      %c64_i32 = arith.constant 64 : i32
      %29 = tpu.dynamic_rotate %27 by %c64_i32 dim 1 : vector<1x128xf32>, i32 -> vector<1x128xf32>
      %30 = arith.addf %27, %29 : vector<1x128xf32>
      %c64_i32_22 = arith.constant 64 : i32
      %31 = tpu.dynamic_rotate %28 by %c64_i32_22 dim 1 : vector<1x128xf32>, i32 -> vector<1x128xf32>
      %32 = arith.addf %28, %31 : vector<1x128xf32>
      %cst_23 = arith.constant 2.048000e+03 : f32
      %33 = vector.broadcast %cst_23 : f32 to vector<1x128xf32>
      %34 = arith.divf %30, %33 : vector<1x128xf32>
      %cst_24 = arith.constant 2.048000e+03 : f32
      %35 = vector.broadcast %cst_24 : f32 to vector<1x128xf32>
      %36 = arith.divf %32, %35 : vector<1x128xf32>
      %37 = arith.mulf %34, %34 : vector<1x128xf32>
      %38 = arith.subf %36, %37 : vector<1x128xf32>
      %c0_25 = arith.constant 0 : index
      %c0_26 = arith.constant 0 : index
      %39 = vector.load %arg4[%c0_25, %c0_26] : memref<1x128xf32, #tpu.memory_space<vmem>>, vector<1x128xf32>
      %cst_27 = arith.constant 9.99999974E-6 : f32
      %40 = vector.broadcast %cst_27 : f32 to vector<1x128xf32>
      %41 = arith.addf %38, %40 : vector<1x128xf32>
      %42 = math.rsqrt %41 : vector<1x128xf32>
      %43 = arith.mulf %39, %42 : vector<1x128xf32>
      %c0_28 = arith.constant 0 : index
      %c0_29 = arith.constant 0 : index
      %44 = vector.load %arg5[%c0_28, %c0_29] : memref<1x128xf32, #tpu.memory_space<vmem>>, vector<1x128xf32>
      %45 = arith.mulf %34, %43 : vector<1x128xf32>
      %46 = arith.subf %44, %45 : vector<1x128xf32>
      %c0_i32_30 = arith.constant 0 : i32
      %c8_i32 = arith.constant 8 : i32
      %47 = arith.addi %c0_i32_30, %c8_i32 : i32
      %c1_i32 = arith.constant 1 : i32
      scf.for %arg10 = %c0_i32_30 to %47 step %c1_i32  : i32 {
        %c1_i32_32 = arith.constant 1 : i32
        %48 = arith.muli %arg10, %c1_i32_32 : i32
        %c0_i32_33 = arith.constant 0 : i32
        %49 = arith.addi %c0_i32_33, %48 : i32
        %c128_i32 = arith.constant 128 : i32
        %50 = arith.muli %49, %c128_i32 : i32
        %51 = tpu.assume_multiple %50, 128 : i32
        %52 = arith.index_cast %51 : i32 to index
        %c0_34 = arith.constant 0 : index
        %53 = vector.load %arg7[%52, %c0_34] : memref<1024x128xf32, #tpu.memory_space<vmem>>, vector<128x128xf32>
        %54 = vector.broadcast %43 : vector<1x128xf32> to vector<128x128xf32>
        %55 = arith.mulf %53, %54 : vector<128x128xf32>
        %56 = vector.broadcast %46 : vector<1x128xf32> to vector<128x128xf32>
        %57 = arith.addf %55, %56 : vector<128x128xf32>
        %cst_35 = arith.constant 0.000000e+00 : f32
        %58 = vector.broadcast %cst_35 : f32 to vector<128x128xf32>
        %59 = arith.cmpf oge, %57, %58 : vector<128x128xf32>
        %cst_36 = arith.constant 2.000000e-01 : f32
        %60 = vector.broadcast %cst_36 : f32 to vector<128x128xf32>
        %61 = arith.mulf %60, %57 : vector<128x128xf32>
        %62 = arith.select %59, %57, %61 : vector<128x128xi1>, vector<128x128xf32>
        %63 = arith.truncf %62 : vector<128x128xf32> to vector<128x128xbf16>
        %64 = arith.index_cast %51 : i32 to index
        %c0_37 = arith.constant 0 : index
        %65 = vector.load %arg6[%64, %c0_37] : memref<1024x128xbf16, #tpu.memory_space<vmem>>, vector<128x128xbf16>
        tpu.vector_store %arg6[%64, %c0_37], %63 {strides = array<i32>} : memref<1024x128xbf16, #tpu.memory_space<vmem>>, vector<128x128xbf16>,
      }
      %c8_i32_31 = arith.constant 8 : i32
    } else {
    }
    return
  }
  func.func @transform_0(%arg0: i32) -> (i32, i32) {
    %c0_i32 = arith.constant 0 : i32
    %c0_i32_0 = arith.constant 0 : i32
    return %arg0, %c0_i32 : i32, i32
  }
  func.func @transform_1(%arg0: i32) -> (i32, i32) {
    %c0_i32 = arith.constant 0 : i32
    %c0_i32_0 = arith.constant 0 : i32
    %c0_i32_1 = arith.constant 0 : i32
    return %c0_i32, %c0_i32_0 : i32, i32
  }
  func.func @transform_2(%arg0: i32) -> (i32, i32) {
    %c0_i32 = arith.constant 0 : i32
    %c0_i32_0 = arith.constant 0 : i32
    %c0_i32_1 = arith.constant 0 : i32
    return %c0_i32, %c0_i32_0 : i32, i32
  }
  func.func @transform_3(%arg0: i32) -> (i32, i32) {
    %c0_i32 = arith.constant 0 : i32
    %c0_i32_0 = arith.constant 0 : i32
    %c0_i32_1 = arith.constant 0 : i32
    return %c0_i32, %c0_i32_0 : i32, i32
  }
  func.func @transform_4(%arg0: i32) -> (i32, i32) {
    %c0_i32 = arith.constant 0 : i32
    %c0_i32_0 = arith.constant 0 : i32
    %c0_i32_1 = arith.constant 0 : i32
    return %c0_i32, %c0_i32_0 : i32, i32
  }
  func.func @transform_5(%arg0: i32) -> (i32, i32) {
    %c0_i32 = arith.constant 0 : i32
    %c0_i32_0 = arith.constant 0 : i32
    %c0_i32_1 = arith.constant 0 : i32
    return %c0_i32, %c0_i32_0 : i32, i32
  }
}

module attributes {stable_mosaic.version = 11 : i64} {
  func.func @_conv_bn_lrelu_head_kernel(%arg0: i32, %arg1: memref<256x1024xbf16, #tpu.memory_space<vmem>>, %arg2: memref<1024x128xbf16, #tpu.memory_space<vmem>>, %arg3: memref<1x128xf32, #tpu.memory_space<vmem>>, %arg4: memref<1x128xf32, #tpu.memory_space<vmem>>, %arg5: memref<1x128xf32, #tpu.memory_space<vmem>>, %arg6: memref<256x128xf32, #tpu.memory_space<vmem>>, %arg7: memref<1x1xf32, #tpu.memory_space<vmem>>, %arg8: memref<2x1xf32, #tpu.memory_space<vmem>>, %arg9: memref<512x128xf32, #tpu.memory_space<vmem>>, %arg10: memref<1x128xf32, #tpu.memory_space<vmem>>, %arg11: memref<1x128xf32, #tpu.memory_space<vmem>>) attributes {dimension_semantics = [#tpu.dimension_semantics<arbitrary>], iteration_bounds = array<i64: 2>, scalar_prefetch = 0 : i64, scratch_operands = 3 : i64, tpu.core_type = #tpu.core_type<tc>, window_params = [{transform_indices = @transform_0, window_bounds = array<i64: 256, 1024>}, {pipeline_mode = #tpu.pipeline_mode<synchronous>, transform_indices = @transform_1, window_bounds = array<i64: 1024, 128>}, {pipeline_mode = #tpu.pipeline_mode<synchronous>, transform_indices = @transform_2, window_bounds = array<i64: 1, 128>}, {pipeline_mode = #tpu.pipeline_mode<synchronous>, transform_indices = @transform_3, window_bounds = array<i64: 1, 128>}, {pipeline_mode = #tpu.pipeline_mode<synchronous>, transform_indices = @transform_4, window_bounds = array<i64: 1, 128>}, {pipeline_mode = #tpu.pipeline_mode<synchronous>, transform_indices = @transform_5, window_bounds = array<i64: 256, 128>}, {pipeline_mode = #tpu.pipeline_mode<synchronous>, transform_indices = @transform_6, window_bounds = array<i64: 1, 1>}, {pipeline_mode = #tpu.pipeline_mode<synchronous>, transform_indices = @transform_7, window_bounds = array<i64: 2, 1>}]} {
    %c0_i32 = arith.constant 0 : i32
    %0 = arith.cmpi eq, %arg0, %c0_i32 : i32
    %1 = arith.extui %0 : i1 to i32
    %c0_i32_0 = arith.constant 0 : i32
    %2 = arith.cmpi ne, %1, %c0_i32_0 : i32
    scf.if %2 {
      %cst_18 = arith.constant 0.000000e+00 : f32
      %27 = vector.broadcast %cst_18 : f32 to vector<1x128xf32>
      %c0_19 = arith.constant 0 : index
      %c0_20 = arith.constant 0 : index
      %28 = vector.load %arg10[%c0_19, %c0_20] : memref<1x128xf32, #tpu.memory_space<vmem>>, vector<1x128xf32>
      tpu.vector_store %arg10[%c0_19, %c0_20], %27 {strides = array<i32>} : memref<1x128xf32, #tpu.memory_space<vmem>>, vector<1x128xf32>,
      %cst_21 = arith.constant 0.000000e+00 : f32
      %29 = vector.broadcast %cst_21 : f32 to vector<1x128xf32>
      %c0_22 = arith.constant 0 : index
      %c0_23 = arith.constant 0 : index
      %30 = vector.load %arg11[%c0_22, %c0_23] : memref<1x128xf32, #tpu.memory_space<vmem>>, vector<1x128xf32>
      tpu.vector_store %arg11[%c0_22, %c0_23], %29 {strides = array<i32>} : memref<1x128xf32, #tpu.memory_space<vmem>>, vector<1x128xf32>,
    } else {
    }
    %c0 = arith.constant 0 : index
    %c0_1 = arith.constant 0 : index
    %3 = vector.load %arg1[%c0, %c0_1] : memref<256x1024xbf16, #tpu.memory_space<vmem>>, vector<256x1024xbf16>
    %c0_2 = arith.constant 0 : index
    %c0_3 = arith.constant 0 : index
    %4 = vector.load %arg2[%c0_2, %c0_3] : memref<1024x128xbf16, #tpu.memory_space<vmem>>, vector<1024x128xbf16>
    %cst = arith.constant dense<0.000000e+00> : vector<256x128xf32>
    %5 = tpu.matmul %3, %4, %cst {dimension_numbers = #tpu.dot_dimension_numbers<[1], [0], [0], [1], [0, 0, 1, 1], [], []>} : vector<256x1024xbf16>, vector<1024x128xbf16>, vector<256x128xf32> -> vector<256x128xf32>
    %c0_4 = arith.constant 0 : index
    %c0_5 = arith.constant 0 : index
    %6 = vector.load %arg3[%c0_4, %c0_5] : memref<1x128xf32, #tpu.memory_space<vmem>>, vector<1x128xf32>
    %7 = vector.broadcast %6 : vector<1x128xf32> to vector<256x128xf32>
    %8 = arith.addf %5, %7 : vector<256x128xf32>
    %c0_6 = arith.constant 0 : index
    %c0_7 = arith.constant 0 : index
    %9 = vector.load %arg10[%c0_6, %c0_7] : memref<1x128xf32, #tpu.memory_space<vmem>>, vector<1x128xf32>
    %cst_8 = arith.constant dense<0.000000e+00> : vector<128xf32>
    %10 = vector.multi_reduction <add>, %8, %cst_8 [0] : vector<256x128xf32> to vector<128xf32>
    %11 = vector.shape_cast %10 : vector<128xf32> to vector<1x128xf32>
    %12 = arith.addf %9, %11 : vector<1x128xf32>
    %c0_9 = arith.constant 0 : index
    %c0_10 = arith.constant 0 : index
    %13 = vector.load %arg10[%c0_9, %c0_10] : memref<1x128xf32, #tpu.memory_space<vmem>>, vector<1x128xf32>
    tpu.vector_store %arg10[%c0_9, %c0_10], %12 {strides = array<i32>} : memref<1x128xf32, #tpu.memory_space<vmem>>, vector<1x128xf32>,
    %c0_11 = arith.constant 0 : index
    %c0_12 = arith.constant 0 : index
    %14 = vector.load %arg11[%c0_11, %c0_12] : memref<1x128xf32, #tpu.memory_space<vmem>>, vector<1x128xf32>
    %15 = arith.mulf %8, %8 : vector<256x128xf32>
    %cst_13 = arith.constant dense<0.000000e+00> : vector<128xf32>
    %16 = vector.multi_reduction <add>, %15, %cst_13 [0] : vector<256x128xf32> to vector<128xf32>
    %17 = vector.shape_cast %16 : vector<128xf32> to vector<1x128xf32>
    %18 = arith.addf %14, %17 : vector<1x128xf32>
    %c0_14 = arith.constant 0 : index
    %c0_15 = arith.constant 0 : index
    %19 = vector.load %arg11[%c0_14, %c0_15] : memref<1x128xf32, #tpu.memory_space<vmem>>, vector<1x128xf32>
    tpu.vector_store %arg11[%c0_14, %c0_15], %18 {strides = array<i32>} : memref<1x128xf32, #tpu.memory_space<vmem>>, vector<1x128xf32>,
    %c256_i32 = arith.constant 256 : i32
    %20 = arith.muli %arg0, %c256_i32 : i32
    %21 = tpu.assume_multiple %20, 256 : i32
    %22 = arith.index_cast %21 : i32 to index
    %c0_16 = arith.constant 0 : index
    %23 = vector.load %arg9[%22, %c0_16] : memref<512x128xf32, #tpu.memory_space<vmem>>, vector<256x128xf32>
    tpu.vector_store %arg9[%22, %c0_16], %8 {strides = array<i32>} : memref<512x128xf32, #tpu.memory_space<vmem>>, vector<256x128xf32>,
    %c1_i32 = arith.constant 1 : i32
    %24 = arith.cmpi eq, %arg0, %c1_i32 : i32
    %25 = arith.extui %24 : i1 to i32
    %c0_i32_17 = arith.constant 0 : i32
    %26 = arith.cmpi ne, %25, %c0_i32_17 : i32
    scf.if %26 {
      %c0_18 = arith.constant 0 : index
      %c0_19 = arith.constant 0 : index
      %27 = vector.load %arg10[%c0_18, %c0_19] : memref<1x128xf32, #tpu.memory_space<vmem>>, vector<1x128xf32>
      %cst_20 = arith.constant 5.120000e+02 : f32
      %28 = vector.broadcast %cst_20 : f32 to vector<1x128xf32>
      %29 = arith.divf %27, %28 : vector<1x128xf32>
      %c0_21 = arith.constant 0 : index
      %c0_22 = arith.constant 0 : index
      %30 = vector.load %arg11[%c0_21, %c0_22] : memref<1x128xf32, #tpu.memory_space<vmem>>, vector<1x128xf32>
      %cst_23 = arith.constant 5.120000e+02 : f32
      %31 = vector.broadcast %cst_23 : f32 to vector<1x128xf32>
      %32 = arith.divf %30, %31 : vector<1x128xf32>
      %33 = arith.mulf %29, %29 : vector<1x128xf32>
      %34 = arith.subf %32, %33 : vector<1x128xf32>
      %c0_24 = arith.constant 0 : index
      %c0_25 = arith.constant 0 : index
      %35 = vector.load %arg4[%c0_24, %c0_25] : memref<1x128xf32, #tpu.memory_space<vmem>>, vector<1x128xf32>
      %cst_26 = arith.constant 9.99999974E-6 : f32
      %36 = vector.broadcast %cst_26 : f32 to vector<1x128xf32>
      %37 = arith.addf %34, %36 : vector<1x128xf32>
      %38 = math.rsqrt %37 : vector<1x128xf32>
      %39 = arith.mulf %35, %38 : vector<1x128xf32>
      %c0_27 = arith.constant 0 : index
      %c0_28 = arith.constant 0 : index
      %40 = vector.load %arg5[%c0_27, %c0_28] : memref<1x128xf32, #tpu.memory_space<vmem>>, vector<1x128xf32>
      %41 = arith.mulf %29, %39 : vector<1x128xf32>
      %42 = arith.subf %40, %41 : vector<1x128xf32>
      %cst_29 = arith.constant 0.000000e+00 : f32
      %43 = vector.broadcast %cst_29 : f32 to vector<1x128xf32>
      %c0_30 = arith.constant 0 : index
      %c0_31 = arith.constant 0 : index
      %44 = vector.load %arg9[%c0_30, %c0_31] : memref<512x128xf32, #tpu.memory_space<vmem>>, vector<128x128xf32>
      %45 = vector.broadcast %39 : vector<1x128xf32> to vector<128x128xf32>
      %46 = arith.mulf %44, %45 : vector<128x128xf32>
      %47 = vector.broadcast %42 : vector<1x128xf32> to vector<128x128xf32>
      %48 = arith.addf %46, %47 : vector<128x128xf32>
      %cst_32 = arith.constant 0.000000e+00 : f32
      %49 = vector.broadcast %cst_32 : f32 to vector<128x128xf32>
      %50 = arith.cmpf oge, %48, %49 : vector<128x128xf32>
      %cst_33 = arith.constant 2.000000e-01 : f32
      %51 = vector.broadcast %cst_33 : f32 to vector<128x128xf32>
      %52 = arith.mulf %51, %48 : vector<128x128xf32>
      %53 = arith.select %50, %48, %52 : vector<128x128xi1>, vector<128x128xf32>
      %c0_34 = arith.constant 0 : index
      %c0_35 = arith.constant 0 : index
      %54 = vector.load %arg6[%c0_34, %c0_35] : memref<256x128xf32, #tpu.memory_space<vmem>>, vector<128x128xf32>
      %55 = arith.mulf %53, %54 : vector<128x128xf32>
      %cst_36 = arith.constant dense<0.000000e+00> : vector<128xf32>
      %56 = vector.multi_reduction <add>, %55, %cst_36 [0] : vector<128x128xf32> to vector<128xf32>
      %57 = vector.shape_cast %56 : vector<128xf32> to vector<1x128xf32>
      %58 = arith.addf %43, %57 : vector<1x128xf32>
      %c128 = arith.constant 128 : index
      %c0_37 = arith.constant 0 : index
      %59 = vector.load %arg9[%c128, %c0_37] : memref<512x128xf32, #tpu.memory_space<vmem>>, vector<128x128xf32>
      %60 = vector.broadcast %39 : vector<1x128xf32> to vector<128x128xf32>
      %61 = arith.mulf %59, %60 : vector<128x128xf32>
      %62 = vector.broadcast %42 : vector<1x128xf32> to vector<128x128xf32>
      %63 = arith.addf %61, %62 : vector<128x128xf32>
      %cst_38 = arith.constant 0.000000e+00 : f32
      %64 = vector.broadcast %cst_38 : f32 to vector<128x128xf32>
      %65 = arith.cmpf oge, %63, %64 : vector<128x128xf32>
      %cst_39 = arith.constant 2.000000e-01 : f32
      %66 = vector.broadcast %cst_39 : f32 to vector<128x128xf32>
      %67 = arith.mulf %66, %63 : vector<128x128xf32>
      %68 = arith.select %65, %63, %67 : vector<128x128xi1>, vector<128x128xf32>
      %c128_40 = arith.constant 128 : index
      %c0_41 = arith.constant 0 : index
      %69 = vector.load %arg6[%c128_40, %c0_41] : memref<256x128xf32, #tpu.memory_space<vmem>>, vector<128x128xf32>
      %70 = arith.mulf %68, %69 : vector<128x128xf32>
      %cst_42 = arith.constant dense<0.000000e+00> : vector<128xf32>
      %71 = vector.multi_reduction <add>, %70, %cst_42 [0] : vector<128x128xf32> to vector<128xf32>
      %72 = vector.shape_cast %71 : vector<128xf32> to vector<1x128xf32>
      %73 = arith.addf %58, %72 : vector<1x128xf32>
      %cst_43 = arith.constant dense<0.000000e+00> : vector<1xf32>
      %74 = vector.multi_reduction <add>, %73, %cst_43 [1] : vector<1x128xf32> to vector<1xf32>
      %75 = vector.shape_cast %74 : vector<1xf32> to vector<1x1xf32>
      %c0_44 = arith.constant 0 : index
      %c0_45 = arith.constant 0 : index
      %76 = vector.load %arg7[%c0_44, %c0_45] : memref<1x1xf32, #tpu.memory_space<vmem>>, vector<1x1xf32>
      %77 = arith.addf %75, %76 : vector<1x1xf32>
      %cst_46 = arith.constant 0.000000e+00 : f32
      %78 = vector.broadcast %cst_46 : f32 to vector<1x1xf32>
      %79 = arith.subf %78, %77 : vector<1x1xf32>
      %80 = math.exp %79 : vector<1x1xf32>
      %cst_47 = arith.constant 1.000000e+00 : f32
      %81 = vector.broadcast %cst_47 : f32 to vector<1x1xf32>
      %82 = arith.addf %81, %80 : vector<1x1xf32>
      %83 = tpu.reciprocal %82 {approx = true} : vector<1x1xf32> -> vector<1x1xf32>
      %c0_48 = arith.constant 0 : index
      %c0_49 = arith.constant 0 : index
      %84 = vector.load %arg8[%c0_48, %c0_49] : memref<2x1xf32, #tpu.memory_space<vmem>>, vector<1x1xf32>
      tpu.vector_store %arg8[%c0_48, %c0_49], %83 {strides = array<i32>} : memref<2x1xf32, #tpu.memory_space<vmem>>, vector<1x1xf32>,
      %cst_50 = arith.constant 0.000000e+00 : f32
      %85 = vector.broadcast %cst_50 : f32 to vector<1x128xf32>
      %c256 = arith.constant 256 : index
      %c0_51 = arith.constant 0 : index
      %86 = vector.load %arg9[%c256, %c0_51] : memref<512x128xf32, #tpu.memory_space<vmem>>, vector<128x128xf32>
      %87 = vector.broadcast %39 : vector<1x128xf32> to vector<128x128xf32>
      %88 = arith.mulf %86, %87 : vector<128x128xf32>
      %89 = vector.broadcast %42 : vector<1x128xf32> to vector<128x128xf32>
      %90 = arith.addf %88, %89 : vector<128x128xf32>
      %cst_52 = arith.constant 0.000000e+00 : f32
      %91 = vector.broadcast %cst_52 : f32 to vector<128x128xf32>
      %92 = arith.cmpf oge, %90, %91 : vector<128x128xf32>
      %cst_53 = arith.constant 2.000000e-01 : f32
      %93 = vector.broadcast %cst_53 : f32 to vector<128x128xf32>
      %94 = arith.mulf %93, %90 : vector<128x128xf32>
      %95 = arith.select %92, %90, %94 : vector<128x128xi1>, vector<128x128xf32>
      %c0_54 = arith.constant 0 : index
      %c0_55 = arith.constant 0 : index
      %96 = vector.load %arg6[%c0_54, %c0_55] : memref<256x128xf32, #tpu.memory_space<vmem>>, vector<128x128xf32>
      %97 = arith.mulf %95, %96 : vector<128x128xf32>
      %cst_56 = arith.constant dense<0.000000e+00> : vector<128xf32>
      %98 = vector.multi_reduction <add>, %97, %cst_56 [0] : vector<128x128xf32> to vector<128xf32>
      %99 = vector.shape_cast %98 : vector<128xf32> to vector<1x128xf32>
      %100 = arith.addf %85, %99 : vector<1x128xf32>
      %c384 = arith.constant 384 : index
      %c0_57 = arith.constant 0 : index
      %101 = vector.load %arg9[%c384, %c0_57] : memref<512x128xf32, #tpu.memory_space<vmem>>, vector<128x128xf32>
      %102 = vector.broadcast %39 : vector<1x128xf32> to vector<128x128xf32>
      %103 = arith.mulf %101, %102 : vector<128x128xf32>
      %104 = vector.broadcast %42 : vector<1x128xf32> to vector<128x128xf32>
      %105 = arith.addf %103, %104 : vector<128x128xf32>
      %cst_58 = arith.constant 0.000000e+00 : f32
      %106 = vector.broadcast %cst_58 : f32 to vector<128x128xf32>
      %107 = arith.cmpf oge, %105, %106 : vector<128x128xf32>
      %cst_59 = arith.constant 2.000000e-01 : f32
      %108 = vector.broadcast %cst_59 : f32 to vector<128x128xf32>
      %109 = arith.mulf %108, %105 : vector<128x128xf32>
      %110 = arith.select %107, %105, %109 : vector<128x128xi1>, vector<128x128xf32>
      %c128_60 = arith.constant 128 : index
      %c0_61 = arith.constant 0 : index
      %111 = vector.load %arg6[%c128_60, %c0_61] : memref<256x128xf32, #tpu.memory_space<vmem>>, vector<128x128xf32>
      %112 = arith.mulf %110, %111 : vector<128x128xf32>
      %cst_62 = arith.constant dense<0.000000e+00> : vector<128xf32>
      %113 = vector.multi_reduction <add>, %112, %cst_62 [0] : vector<128x128xf32> to vector<128xf32>
      %114 = vector.shape_cast %113 : vector<128xf32> to vector<1x128xf32>
      %115 = arith.addf %100, %114 : vector<1x128xf32>
      %cst_63 = arith.constant dense<0.000000e+00> : vector<1xf32>
      %116 = vector.multi_reduction <add>, %115, %cst_63 [1] : vector<1x128xf32> to vector<1xf32>
      %117 = vector.shape_cast %116 : vector<1xf32> to vector<1x1xf32>
      %c0_64 = arith.constant 0 : index
      %c0_65 = arith.constant 0 : index
      %118 = vector.load %arg7[%c0_64, %c0_65] : memref<1x1xf32, #tpu.memory_space<vmem>>, vector<1x1xf32>
      %119 = arith.addf %117, %118 : vector<1x1xf32>
      %cst_66 = arith.constant 0.000000e+00 : f32
      %120 = vector.broadcast %cst_66 : f32 to vector<1x1xf32>
      %121 = arith.subf %120, %119 : vector<1x1xf32>
      %122 = math.exp %121 : vector<1x1xf32>
      %cst_67 = arith.constant 1.000000e+00 : f32
      %123 = vector.broadcast %cst_67 : f32 to vector<1x1xf32>
      %124 = arith.addf %123, %122 : vector<1x1xf32>
      %125 = tpu.reciprocal %124 {approx = true} : vector<1x1xf32> -> vector<1x1xf32>
      %c1 = arith.constant 1 : index
      %c0_68 = arith.constant 0 : index
      %126 = vector.load %arg8[%c1, %c0_68] : memref<2x1xf32, #tpu.memory_space<vmem>>, vector<1x1xf32>
      tpu.vector_store %arg8[%c1, %c0_68], %125 {strides = array<i32>} : memref<2x1xf32, #tpu.memory_space<vmem>>, vector<1x1xf32>,
    } else {
    }
    return
  }
  func.func @transform_0(%arg0: i32) -> (i32, i32) {
    %c0_i32 = arith.constant 0 : i32
    %c0_i32_0 = arith.constant 0 : i32
    return %arg0, %c0_i32 : i32, i32
  }
  func.func @transform_1(%arg0: i32) -> (i32, i32) {
    %c0_i32 = arith.constant 0 : i32
    %c0_i32_0 = arith.constant 0 : i32
    %c0_i32_1 = arith.constant 0 : i32
    return %c0_i32, %c0_i32_0 : i32, i32
  }
  func.func @transform_2(%arg0: i32) -> (i32, i32) {
    %c0_i32 = arith.constant 0 : i32
    %c0_i32_0 = arith.constant 0 : i32
    %c0_i32_1 = arith.constant 0 : i32
    return %c0_i32, %c0_i32_0 : i32, i32
  }
  func.func @transform_3(%arg0: i32) -> (i32, i32) {
    %c0_i32 = arith.constant 0 : i32
    %c0_i32_0 = arith.constant 0 : i32
    %c0_i32_1 = arith.constant 0 : i32
    return %c0_i32, %c0_i32_0 : i32, i32
  }
  func.func @transform_4(%arg0: i32) -> (i32, i32) {
    %c0_i32 = arith.constant 0 : i32
    %c0_i32_0 = arith.constant 0 : i32
    %c0_i32_1 = arith.constant 0 : i32
    return %c0_i32, %c0_i32_0 : i32, i32
  }
  func.func @transform_5(%arg0: i32) -> (i32, i32) {
    %c0_i32 = arith.constant 0 : i32
    %c0_i32_0 = arith.constant 0 : i32
    %c0_i32_1 = arith.constant 0 : i32
    return %c0_i32, %c0_i32_0 : i32, i32
  }
  func.func @transform_6(%arg0: i32) -> (i32, i32) {
    %c0_i32 = arith.constant 0 : i32
    %c0_i32_0 = arith.constant 0 : i32
    %c0_i32_1 = arith.constant 0 : i32
    return %c0_i32, %c0_i32_0 : i32, i32
  }
  func.func @transform_7(%arg0: i32) -> (i32, i32) {
    %c0_i32 = arith.constant 0 : i32
    %c0_i32_0 = arith.constant 0 : i32
    %c0_i32_1 = arith.constant 0 : i32
    return %c0_i32, %c0_i32_0 : i32, i32
  }
}

</mosaic_0001>

<llo_original>
// kernel: discriminator_x_forward.3
$region0: #{discriminator_x_forward.3}
  #allocation0 [shape = 'u32[]', space=smem, size = 0x4, offset = 0x4, fixed_abs, tag = 'smem constant byte address 0x4 - core index']
  #allocation1 [shape = 'u32[144,128]{1,0:T(1,128)}', space=vmem, size = 0x12000, scoped, tag = 'internal scratch']
  %s0 = inlined_call_operand.vmem [shape: f32[1024,128], index: 0, kind: input, shape index: {}]
  %s1 = inlined_call_operand.vmem [shape: f32[128,256], index: 1, kind: input, shape index: {}]
  %s2 = inlined_call_operand.vmem [shape: f32[1,256], index: 2, kind: input, shape index: {}]
  %s3 = inlined_call_operand.vmem [shape: bf16[1024,256], index: 3, kind: output, shape index: {}]
  %s4 = sld [smem:[#allocation0]]
  $region45: #{discriminator_x_forward.3} parent=0
    _
  %s6 = ssub.s32 1, %s4
  %s7 = scalar_select 0, %s6, %s4
  loop: start=0, step=1, limit=6
  $region2: #{discriminator_x_forward.3} parent=0 // loop_pre_header
    _
  $region3: #{discriminator_x_forward.3} parent=0 // loop_header
    %s9 = sphi 0, %s13
    %p10 = scmp.ge.s32.totalorder %s9, 6
    %s19 = sphi 0, %s21
    %s22 = sphi 0, %s19
    %s23 = sphi 0, %s22
    %s39 = sphi 0, %s23
    %s43 = sphi 0, %s43
    %s45 = sphi 0, %s43
    %s46 = sphi 0, %s45
    %s60 = sphi 0, %s46
    %s64 = sphi 0, %s64
    %s66 = sphi 0, %s64
    %s67 = sphi 0, %s66
    %s81 = sphi 0, %s67
    %s87 = sphi 0, %s89
    %s90 = sphi 0, %s87
    %s91 = sphi 0, %s90
    %s107 = sphi 0, %s91
  $region4: #{discriminator_x_forward.3} parent=0 // loop_header_branch
    %12 = sbr.rel (%p10) target = $region8
  $region5: #{discriminator_x_forward.3} parent=0 // loop_body
    %s14 = ssub.s32 %s9, 1
    %s15 = ssub.s32 %s9, 2
    %s16 = sadd.s32 %s9, 1
    %s17 = ssub.s32 %s9, %s16
    %p18 = scmp.eq.s32.totalorder %s17, 0
    %s20 = sadd.s32 %s19, 1
    %s21 = scalar_select %p18, %s19, %s20
    %p24 = pneg %p18
    %p25 = scmp.eq.s32.totalorder %s9, 3
    %p26 = por %p24, %p25
    %p27 = scmp.ne.s32.totalorder %s19, %s22
    %p28 = scmp.eq.s32.totalorder %s9, 0
    %p29 = por %p27, %p28
    %p30 = scmp.ne.s32.totalorder %s19, %s22
    %p31 = scmp.eq.s32.totalorder %s14, 3
    %p32 = por %p30, %p31
    %p33 = scmp.ne.s32.totalorder %s22, %s23
    %p34 = scmp.eq.s32.totalorder %s14, 0
    %p35 = por %p33, %p34
    %p36 = scmp.ne.s32.totalorder %s22, %s23
    %p37 = scmp.eq.s32.totalorder %s15, 3
    %p38 = por %p36, %p37
    %p40 = scmp.ne.s32.totalorder %s23, %s39
    %p41 = scmp.eq.s32.totalorder %s15, 0
    %p42 = por %p40, %p41
    %s44 = sadd.s32 %s43, 1
    %p47 = scmp.eq.s32.totalorder %s9, 3
    %p48 = scmp.ne.s32.totalorder %s43, %s45
    %p49 = scmp.eq.s32.totalorder %s9, 0
    %p50 = por %p48, %p49
    %p51 = scmp.ne.s32.totalorder %s43, %s45
    %p52 = scmp.eq.s32.totalorder %s14, 3
    %p53 = por %p51, %p52
    %p54 = scmp.ne.s32.totalorder %s45, %s46
    %p55 = scmp.eq.s32.totalorder %s14, 0
    %p56 = por %p54, %p55
    %p57 = scmp.ne.s32.totalorder %s45, %s46
    %p58 = scmp.eq.s32.totalorder %s15, 3
    %p59 = por %p57, %p58
    %p61 = scmp.ne.s32.totalorder %s46, %s60
    %p62 = scmp.eq.s32.totalorder %s15, 0
    %p63 = por %p61, %p62
    %s65 = sadd.s32 %s64, 1
    %p68 = scmp.eq.s32.totalorder %s9, 3
    %p69 = scmp.ne.s32.totalorder %s64, %s66
    %p70 = scmp.eq.s32.totalorder %s9, 0
    %p71 = por %p69, %p70
    %p72 = scmp.ne.s32.totalorder %s64, %s66
    %p73 = scmp.eq.s32.totalorder %s14, 3
    %p74 = por %p72, %p73
    %p75 = scmp.ne.s32.totalorder %s66, %s67
    %p76 = scmp.eq.s32.totalorder %s14, 0
    %p77 = por %p75, %p76
    %p78 = scmp.ne.s32.totalorder %s66, %s67
    %p79 = scmp.eq.s32.totalorder %s15, 3
    %p80 = por %p78, %p79
    %p82 = scmp.ne.s32.totalorder %s67, %s81
    %p83 = scmp.eq.s32.totalorder %s15, 0
    %p84 = por %p82, %p83
    %s85 = ssub.s32 %s9, %s16
    %p86 = scmp.eq.s32.totalorder %s85, 0
    %s88 = sadd.s32 %s87, 1
    %s89 = scalar_select %p86, %s87, %s88
    %p92 = pneg %p86
    %p93 = scmp.eq.s32.totalorder %s9, 3
    %p94 = por %p92, %p93
    %p95 = scmp.ne.s32.totalorder %s87, %s90
    %p96 = scmp.eq.s32.totalorder %s9, 0
    %p97 = por %p95, %p96
    %p98 = scmp.ne.s32.totalorder %s87, %s90
    %p99 = scmp.eq.s32.totalorder %s14, 3
    %p100 = por %p98, %p99
    %p101 = scmp.ne.s32.totalorder %s90, %s91
    %p102 = scmp.eq.s32.totalorder %s14, 0
    %p103 = por %p101, %p102
    %p104 = scmp.ne.s32.totalorder %s90, %s91
    %p105 = scmp.eq.s32.totalorder %s15, 3
    %p106 = por %p104, %p105
    %p108 = scmp.ne.s32.totalorder %s91, %s107
    %p109 = scmp.eq.s32.totalorder %s15, 0
    %p110 = por %p108, %p109
    %p111 = scmp.le.s32.totalorder 1, %s9
    %p112 = scmp.lt.s32.totalorder %s9, 5
    %p113 = pnand %p111, %p112
    %p114 = pneg %p113
    // Predicated region
    $region9: #{discriminator_x_forward.3} parent=5 // pred_check
      _
    $region10: #{discriminator_x_forward.3} parent=5 // pred_check_branch
      %116 = sbr.rel (%p113) target = $region12
    $region11: #{discriminator_x_forward.3} parent=5 // pred_region
      %s117 = ssub.s32 %s9, 1
      // Predicated region
      $region13: #{discriminator_x_forward.3} parent=11 // pred_check
        %p118 = pneg %p56
      $region14: #{discriminator_x_forward.3} parent=11 // pred_check_branch
        %120 = sbr.rel (%p118) target = $region16
      $region15: #{discriminator_x_forward.3} parent=11 // pred_region
        _
      $region16: #{discriminator_x_forward.3} parent=11 // pred_fallthru
        _
      // Predicated region
      $region17: #{discriminator_x_forward.3} parent=11 // pred_check
        %p121 = pneg %p77
      $region18: #{discriminator_x_forward.3} parent=11 // pred_check_branch
        %123 = sbr.rel (%p121) target = $region20
      $region19: #{discriminator_x_forward.3} parent=11 // pred_region
        _
      $region20: #{discriminator_x_forward.3} parent=11 // pred_fallthru
        _
    $region12: #{discriminator_x_forward.3} parent=5 // pred_fallthru
      _
    %p124 = scmp.lt.s32.totalorder %s9, 4
    // Predicated region
    $region21: #{discriminator_x_forward.3} parent=5 // pred_check
      %p125 = pneg %p124
    $region22: #{discriminator_x_forward.3} parent=5 // pred_check_branch
      %127 = sbr.rel (%p125) target = $region24
    $region23: #{discriminator_x_forward.3} parent=5 // pred_region
      // Predicated region
      $region25: #{discriminator_x_forward.3} parent=23 // pred_check
        %p128 = pneg %p29
      $region26: #{discriminator_x_forward.3} parent=23 // pred_check_branch
        %130 = sbr.rel (%p128) target = $region28
      $region27: #{discriminator_x_forward.3} parent=23 // pred_region
        %s131 = smul.u32 32, %s9
        %p132 = scmp.lt.s32.totalorder %s131, 127
        %s133 = scalar_select %p132, %s131, 127
        %s134 = smul.addr %s133, 8
        %s135 = scalar_lea.vmem %s0, %s134
        %s136 = smul.u32 32, %s9
      $region28: #{discriminator_x_forward.3} parent=23 // pred_fallthru
        _
    $region24: #{discriminator_x_forward.3} parent=5 // pred_fallthru
      _
    %p137 = scmp.le.s32.totalorder 1, %s9
    %p138 = scmp.lt.s32.totalorder %s9, 5
    %p139 = pnand %p137, %p138
    %p140 = pneg %p139
    // Predicated region
    $region29: #{discriminator_x_forward.3} parent=5 // pred_check
      _
    $region30: #{discriminator_x_forward.3} parent=5 // pred_check_branch
      %142 = sbr.rel (%p139) target = $region32
    $region31: #{discriminator_x_forward.3} parent=5 // pred_region
      %s143 = ssub.s32 %s9, 1
      %s144 = smul.u32 32, %s14
      %p145 = scmp.lt.s32.totalorder %s144, 127
      %s146 = scalar_select %p145, %s144, 127
      %s147 = smul.addr %s146, 8
      %s148 = scalar_lea.vmem %s0, %s147
      %p149 = pneg %p35
      %p150 = pneg %p32
      %p151 = pneg %p56
      %p152 = pneg %p53
      %p153 = pneg %p77
      %p154 = pneg %p74
      %p155 = pneg %p103
      %p156 = pneg %p100
      %s157 = smul.u32 32, %s14
      %p158 = scmp.lt.s32.totalorder %s157, 127
      %s159 = scalar_select %p158, %s157, 127
      %s160 = smul.addr %s159, 2
      %s161 = smul.addr %s160, 4
      %s162 = scalar_lea.vmem %s3, %s161
      %s163 = smul.u32 32, %s14
      %p164 = scmp.lt.s32.totalorder %s163, 127
      %s165 = scalar_select %p164, %s163, 127
      %s166 = smul.addr %s165, 8
      %s167 = scalar_lea.vmem %s0, %s166
      %s168 = smul.u32 32, %s14
      %s169 = smul.u32 32, %s14
      %p170 = scmp.lt.s32.totalorder %s169, 127
      %s171 = scalar_select %p170, %s169, 127
      %s172 = smul.addr %s171, 2
      %s173 = smul.addr %s172, 4
      %s174 = scalar_lea.vmem %s3, %s173
      %s175 = smul.u32 32, %s14
      %v176 = vld [vmem:[%s167] sm:$0xff]
      %v177 = vld [vmem:[%s167 + $0x8] sm:$0xff]
      %v178 = vld [vmem:[%s167 + $0x10] sm:$0xff]
      %v179 = vld [vmem:[%s167 + $0x18] sm:$0xff]
      %v180 = vld [vmem:[%s167 + $0x20] sm:$0xff]
      %v181 = vld [vmem:[%s167 + $0x28] sm:$0xff]
      %v182 = vld [vmem:[%s167 + $0x30] sm:$0xff]
      %v183 = vld [vmem:[%s167 + $0x38] sm:$0xff]
      %v184 = vld [vmem:[%s167 + $0x40] sm:$0xff]
      %v185 = vld [vmem:[%s167 + $0x48] sm:$0xff]
      %v186 = vld [vmem:[%s167 + $0x50] sm:$0xff]
      %v187 = vld [vmem:[%s167 + $0x58] sm:$0xff]
      %v188 = vld [vmem:[%s167 + $0x60] sm:$0xff]
      %v189 = vld [vmem:[%s167 + $0x68] sm:$0xff]
      %v190 = vld [vmem:[%s167 + $0x70] sm:$0xff]
      %v191 = vld [vmem:[%s167 + $0x78] sm:$0xff]
      %v192 = vld [vmem:[%s167 + $0x80] sm:$0xff]
      %v193 = vld [vmem:[%s167 + $0x88] sm:$0xff]
      %v194 = vld [vmem:[%s167 + $0x90] sm:$0xff]
      %v195 = vld [vmem:[%s167 + $0x98] sm:$0xff]
      %v196 = vld [vmem:[%s167 + $0xa0] sm:$0xff]
      %v197 = vld [vmem:[%s167 + $0xa8] sm:$0xff]
      %v198 = vld [vmem:[%s167 + $0xb0] sm:$0xff]
      %v199 = vld [vmem:[%s167 + $0xb8] sm:$0xff]
      %v200 = vld [vmem:[%s167 + $0xc0] sm:$0xff]
      %v201 = vld [vmem:[%s167 + $0xc8] sm:$0xff]
      %v202 = vld [vmem:[%s167 + $0xd0] sm:$0xff]
      %v203 = vld [vmem:[%s167 + $0xd8] sm:$0xff]
      %v204 = vld [vmem:[%s167 + $0xe0] sm:$0xff]
      %v205 = vld [vmem:[%s167 + $0xe8] sm:$0xff]
      %v206 = vld [vmem:[%s167 + $0xf0] sm:$0xff]
      %v207 = vld [vmem:[%s167 + $0xf8] sm:$0xff]
      %v208 = vld [vmem:[%s1] sm:$0xff]
      %v209 = vld [vmem:[%s1 + $0x8] sm:$0xff]
      %v210 = vld [vmem:[%s1 + $0x10] sm:$0xff]
      %v211 = vld [vmem:[%s1 + $0x18] sm:$0xff]
      %v212 = vld [vmem:[%s1 + $0x20] sm:$0xff]
      %v213 = vld [vmem:[%s1 + $0x28] sm:$0xff]
      %v214 = vld [vmem:[%s1 + $0x30] sm:$0xff]
      %v215 = vld [vmem:[%s1 + $0x38] sm:$0xff]
      %v216 = vld [vmem:[%s1 + $0x40] sm:$0xff]
      %v217 = vld [vmem:[%s1 + $0x48] sm:$0xff]
      %v218 = vld [vmem:[%s1 + $0x50] sm:$0xff]
      %v219 = vld [vmem:[%s1 + $0x58] sm:$0xff]
      %v220 = vld [vmem:[%s1 + $0x60] sm:$0xff]
      %v221 = vld [vmem:[%s1 + $0x68] sm:$0xff]
      %v222 = vld [vmem:[%s1 + $0x70] sm:$0xff]
      %v223 = vld [vmem:[%s1 + $0x78] sm:$0xff]
      %v224 = vld [vmem:[%s1 + $0x80] sm:$0xff]
      %v225 = vld [vmem:[%s1 + $0x88] sm:$0xff]
      %v226 = vld [vmem:[%s1 + $0x90] sm:$0xff]
      %v227 = vld [vmem:[%s1 + $0x98] sm:$0xff]
      %v228 = vld [vmem:[%s1 + $0xa0] sm:$0xff]
      %v229 = vld [vmem:[%s1 + $0xa8] sm:$0xff]
      %v230 = vld [vmem:[%s1 + $0xb0] sm:$0xff]
      %v231 = vld [vmem:[%s1 + $0xb8] sm:$0xff]
      %v232 = vld [vmem:[%s1 + $0xc0] sm:$0xff]
      %v233 = vld [vmem:[%s1 + $0xc8] sm:$0xff]
      %v234 = vld [vmem:[%s1 + $0xd0] sm:$0xff]
      %v235 = vld [vmem:[%s1 + $0xd8] sm:$0xff]
      %v236 = vld [vmem:[%s1 + $0xe0] sm:$0xff]
      %v237 = vld [vmem:[%s1 + $0xe8] sm:$0xff]
      %v238 = vld [vmem:[%s1 + $0xf0] sm:$0xff]
      %v239 = vld [vmem:[%s1 + $0xf8] sm:$0xff]
      %v240 = vld [vmem:[%s2] sm:$0x3]
      %v242 = vlaneseq
      %v243 = vshrl.u32 %v242, 7
      %v244 = vsub.s32 0, %v243
      %v245 = vrot.slane %v240, %v244
      %v246 = vlaneseq
      %v247 = vshrl.u32 %v246, 7
      %v248 = vsub.s32 1, %v247
      %v249 = vrot.slane %v240, %v248
      %252 = vmatprep.subr.mxu0 %v209
      %253 = vmatpush1.msra.mxu0 %v208
      %254 = vmatprep.subr.mxu0 %v211
      %255 = vmatpush1.msra.mxu0 %v210
      %256 = vmatprep.subr.mxu0 %v213
      %257 = vmatpush1.msra.mxu0 %v212
      %258 = vmatprep.subr.mxu0 %v215
      %259 = vmatpush1.msra.mxu0 %v214
      %260 = vmatprep.subr.mxu0 %v217
      %261 = vmatpush1.msra.mxu0 %v216
      %262 = vmatprep.subr.mxu0 %v219
      %263 = vmatpush1.msra.mxu0 %v218
      %264 = vmatprep.subr.mxu0 %v221
      %265 = vmatpush1.msra.mxu0 %v220
      %266 = vmatprep.subr.mxu0 %v223
      %267 = vmatpush1.msra.mxu0 %v222
      %268 = vmatprep.subr.mxu0 %v225
      %269 = vmatpush1.msra.mxu0 %v224
      %270 = vmatprep.subr.mxu0 %v227
      %271 = vmatpush1.msra.mxu0 %v226
      %272 = vmatprep.subr.mxu0 %v229
      %273 = vmatpush1.msra.mxu0 %v228
      %274 = vmatprep.subr.mxu0 %v231
      %275 = vmatpush1.msra.mxu0 %v230
      %276 = vmatprep.subr.mxu0 %v233
      %277 = vmatpush1.msra.mxu0 %v232
      %278 = vmatprep.subr.mxu0 %v235
      %279 = vmatpush1.msra.mxu0 %v234
      %280 = vmatprep.subr.mxu0 %v237
      %281 = vmatpush1.msra.mxu0 %v236
      %282 = vmatprep.subr.mxu0 %v239
      %283 = vmatpush1.msra.mxu0 %v238
      %284 = vmatprep.subr.mxu0 0.0
      %285 = vmatpush1.msra.mxu0 0.0
      %286 = vmatprep.subr.mxu0 0.0
      %287 = vmatpush1.msra.mxu0 0.0
      %288 = vmatprep.subr.mxu0 0.0
      %289 = vmatpush1.msra.mxu0 0.0
      %290 = vmatprep.subr.mxu0 0.0
      %291 = vmatpush1.msra.mxu0 0.0
      %292 = vmatprep.subr.mxu0 0.0
      %293 = vmatpush1.msra.mxu0 0.0
      %294 = vmatprep.subr.mxu0 0.0
      %295 = vmatpush1.msra.mxu0 0.0
      %296 = vmatprep.subr.mxu0 0.0
      %297 = vmatpush1.msra.mxu0 0.0
      %298 = vmatprep.subr.mxu0 0.0
      %299 = vmatpush1.msra.mxu0 0.0
      %300 = vmatprep.subr.mxu0 0.0
      %301 = vmatpush1.msra.mxu0 0.0
      %302 = vmatprep.subr.mxu0 0.0
      %303 = vmatpush1.msra.mxu0 0.0
      %304 = vmatprep.subr.mxu0 0.0
      %305 = vmatpush1.msra.mxu0 0.0
      %306 = vmatprep.subr.mxu0 0.0
      %307 = vmatpush1.msra.mxu0 0.0
      %308 = vmatprep.subr.mxu0 0.0
      %309 = vmatpush1.msra.mxu0 0.0
      %310 = vmatprep.subr.mxu0 0.0
      %311 = vmatpush1.msra.mxu0 0.0
      %312 = vmatprep.subr.mxu0 0.0
      %313 = vmatpush1.msra.mxu0 0.0
      %314 = vmatprep.subr.mxu0 0.0
      %315 = vmatpush1.msra.mxu0 0.0
      %316 = vmatprep.mubr.f32.mxu0 0.0
      %317 = vmatmul.mubr.f32.gmra.mrb[0].mxu0 %v176
      %v318 = vpop.f32.mrb[0].mxu0
      %v319 = vadd.f32 %v245, %v318
      %v320 = vpop.f32.mrb[0].mxu0
      %v321 = vadd.f32 %v249, %v320
      %322 = vmatprep.mubr.f32.mxu0 0.0
      %323 = vmatmul.mubr.f32.gmra.mrb[0].mxu0 %v177
      %v324 = vpop.f32.mrb[0].mxu0
      %v325 = vadd.f32 %v245, %v324
      %v326 = vpop.f32.mrb[0].mxu0
      %v327 = vadd.f32 %v249, %v326
      %328 = vmatprep.mubr.f32.mxu0 0.0
      %329 = vmatmul.mubr.f32.gmra.mrb[0].mxu0 %v178
      %v330 = vpop.f32.mrb[0].mxu0
      %v331 = vadd.f32 %v245, %v330
      %v332 = vpop.f32.mrb[0].mxu0
      %v333 = vadd.f32 %v249, %v332
      %334 = vmatprep.mubr.f32.mxu0 0.0
      %335 = vmatmul.mubr.f32.gmra.mrb[0].mxu0 %v179
      %v336 = vpop.f32.mrb[0].mxu0
      %v337 = vadd.f32 %v245, %v336
      %v338 = vpop.f32.mrb[0].mxu0
      %v339 = vadd.f32 %v249, %v338
      %340 = vmatprep.mubr.f32.mxu0 0.0
      %341 = vmatmul.mubr.f32.gmra.mrb[0].mxu0 %v180
      %v342 = vpop.f32.mrb[0].mxu0
      %v343 = vadd.f32 %v245, %v342
      %v344 = vpop.f32.mrb[0].mxu0
      %v345 = vadd.f32 %v249, %v344
      %346 = vmatprep.mubr.f32.mxu0 0.0
      %347 = vmatmul.mubr.f32.gmra.mrb[0].mxu0 %v181
      %v348 = vpop.f32.mrb[0].mxu0
      %v349 = vadd.f32 %v245, %v348
      %v350 = vpop.f32.mrb[0].mxu0
      %v351 = vadd.f32 %v249, %v350
      %352 = vmatprep.mubr.f32.mxu0 0.0
      %353 = vmatmul.mubr.f32.gmra.mrb[0].mxu0 %v182
      %v354 = vpop.f32.mrb[0].mxu0
      %v355 = vadd.f32 %v245, %v354
      %v356 = vpop.f32.mrb[0].mxu0
      %v357 = vadd.f32 %v249, %v356
      %358 = vmatprep.mubr.f32.mxu0 0.0
      %359 = vmatmul.mubr.f32.gmra.mrb[0].mxu0 %v183
      %v360 = vpop.f32.mrb[0].mxu0
      %v361 = vadd.f32 %v245, %v360
      %v362 = vpop.f32.mrb[0].mxu0
      %v363 = vadd.f32 %v249, %v362
      %364 = vmatprep.mubr.f32.mxu0 0.0
      %365 = vmatmul.mubr.f32.gmra.mrb[0].mxu0 %v184
      %v366 = vpop.f32.mrb[0].mxu0
      %v367 = vadd.f32 %v245, %v366
      %v368 = vpop.f32.mrb[0].mxu0
      %v369 = vadd.f32 %v249, %v368
      %370 = vmatprep.mubr.f32.mxu0 0.0
      %371 = vmatmul.mubr.f32.gmra.mrb[0].mxu0 %v185
      %v372 = vpop.f32.mrb[0].mxu0
      %v373 = vadd.f32 %v245, %v372
      %v374 = vpop.f32.mrb[0].mxu0
      %v375 = vadd.f32 %v249, %v374
      %376 = vmatprep.mubr.f32.mxu0 0.0
      %377 = vmatmul.mubr.f32.gmra.mrb[0].mxu0 %v186
      %v378 = vpop.f32.mrb[0].mxu0
      %v379 = vadd.f32 %v245, %v378
      %v380 = vpop.f32.mrb[0].mxu0
      %v381 = vadd.f32 %v249, %v380
      %382 = vmatprep.mubr.f32.mxu0 0.0
      %383 = vmatmul.mubr.f32.gmra.mrb[0].mxu0 %v187
      %v384 = vpop.f32.mrb[0].mxu0
      %v385 = vadd.f32 %v245, %v384
      %v386 = vpop.f32.mrb[0].mxu0
      %v387 = vadd.f32 %v249, %v386
      %388 = vmatprep.mubr.f32.mxu0 0.0
      %389 = vmatmul.mubr.f32.gmra.mrb[0].mxu0 %v188
      %v390 = vpop.f32.mrb[0].mxu0
      %v391 = vadd.f32 %v245, %v390
      %v392 = vpop.f32.mrb[0].mxu0
      %v393 = vadd.f32 %v249, %v392
      %394 = vmatprep.mubr.f32.mxu0 0.0
      %395 = vmatmul.mubr.f32.gmra.mrb[0].mxu0 %v189
      %v396 = vpop.f32.mrb[0].mxu0
      %v397 = vadd.f32 %v245, %v396
      %v398 = vpop.f32.mrb[0].mxu0
      %v399 = vadd.f32 %v249, %v398
      %400 = vmatprep.mubr.f32.mxu0 0.0
      %401 = vmatmul.mubr.f32.gmra.mrb[0].mxu0 %v190
      %v402 = vpop.f32.mrb[0].mxu0
      %v403 = vadd.f32 %v245, %v402
      %v404 = vpop.f32.mrb[0].mxu0
      %v405 = vadd.f32 %v249, %v404
      %406 = vmatprep.mubr.f32.mxu0 0.0
      %407 = vmatmul.mubr.f32.gmra.mrb[0].mxu0 %v191
      %v408 = vpop.f32.mrb[0].mxu0
      %v409 = vadd.f32 %v245, %v408
      %v410 = vpop.f32.mrb[0].mxu0
      %v411 = vadd.f32 %v249, %v410
      %412 = vmatprep.mubr.f32.mxu0 0.0
      %413 = vmatmul.mubr.f32.gmra.mrb[0].mxu0 %v192
      %v414 = vpop.f32.mrb[0].mxu0
      %v415 = vadd.f32 %v245, %v414
      %v416 = vpop.f32.mrb[0].mxu0
      %v417 = vadd.f32 %v249, %v416
      %418 = vmatprep.mubr.f32.mxu0 0.0
      %419 = vmatmul.mubr.f32.gmra.mrb[0].mxu0 %v193
      %v420 = vpop.f32.mrb[0].mxu0
      %v421 = vadd.f32 %v245, %v420
      %v422 = vpop.f32.mrb[0].mxu0
      %v423 = vadd.f32 %v249, %v422
      %424 = vmatprep.mubr.f32.mxu0 0.0
      %425 = vmatmul.mubr.f32.gmra.mrb[0].mxu0 %v194
      %v426 = vpop.f32.mrb[0].mxu0
      %v427 = vadd.f32 %v245, %v426
      %v428 = vpop.f32.mrb[0].mxu0
      %v429 = vadd.f32 %v249, %v428
      %430 = vmatprep.mubr.f32.mxu0 0.0
      %431 = vmatmul.mubr.f32.gmra.mrb[0].mxu0 %v195
      %v432 = vpop.f32.mrb[0].mxu0
      %v433 = vadd.f32 %v245, %v432
      %v434 = vpop.f32.mrb[0].mxu0
      %v435 = vadd.f32 %v249, %v434
      %436 = vmatprep.mubr.f32.mxu0 0.0
      %437 = vmatmul.mubr.f32.gmra.mrb[0].mxu0 %v196
      %v438 = vpop.f32.mrb[0].mxu0
      %v439 = vadd.f32 %v245, %v438
      %v440 = vpop.f32.mrb[0].mxu0
      %v441 = vadd.f32 %v249, %v440
      %442 = vmatprep.mubr.f32.mxu0 0.0
      %443 = vmatmul.mubr.f32.gmra.mrb[0].mxu0 %v197
      %v444 = vpop.f32.mrb[0].mxu0
      %v445 = vadd.f32 %v245, %v444
      %v446 = vpop.f32.mrb[0].mxu0
      %v447 = vadd.f32 %v249, %v446
      %448 = vmatprep.mubr.f32.mxu0 0.0
      %449 = vmatmul.mubr.f32.gmra.mrb[0].mxu0 %v198
      %v450 = vpop.f32.mrb[0].mxu0
      %v451 = vadd.f32 %v245, %v450
      %v452 = vpop.f32.mrb[0].mxu0
      %v453 = vadd.f32 %v249, %v452
      %454 = vmatprep.mubr.f32.mxu0 0.0
      %455 = vmatmul.mubr.f32.gmra.mrb[0].mxu0 %v199
      %v456 = vpop.f32.mrb[0].mxu0
      %v457 = vadd.f32 %v245, %v456
      %v458 = vpop.f32.mrb[0].mxu0
      %v459 = vadd.f32 %v249, %v458
      %460 = vmatprep.mubr.f32.mxu0 0.0
      %461 = vmatmul.mubr.f32.gmra.mrb[0].mxu0 %v200
      %v462 = vpop.f32.mrb[0].mxu0
      %v463 = vadd.f32 %v245, %v462
      %v464 = vpop.f32.mrb[0].mxu0
      %v465 = vadd.f32 %v249, %v464
      %466 = vmatprep.mubr.f32.mxu0 0.0
      %467 = vmatmul.mubr.f32.gmra.mrb[0].mxu0 %v201
      %v468 = vpop.f32.mrb[0].mxu0
      %v469 = vadd.f32 %v245, %v468
      %v470 = vpop.f32.mrb[0].mxu0
      %v471 = vadd.f32 %v249, %v470
      %472 = vmatprep.mubr.f32.mxu0 0.0
      %473 = vmatmul.mubr.f32.gmra.mrb[0].mxu0 %v202
      %v474 = vpop.f32.mrb[0].mxu0
      %v475 = vadd.f32 %v245, %v474
      %v476 = vpop.f32.mrb[0].mxu0
      %v477 = vadd.f32 %v249, %v476
      %478 = vmatprep.mubr.f32.mxu0 0.0
      %479 = vmatmul.mubr.f32.gmra.mrb[0].mxu0 %v203
      %v480 = vpop.f32.mrb[0].mxu0
      %v481 = vadd.f32 %v245, %v480
      %v482 = vpop.f32.mrb[0].mxu0
      %v483 = vadd.f32 %v249, %v482
      %484 = vmatprep.mubr.f32.mxu0 0.0
      %485 = vmatmul.mubr.f32.gmra.mrb[0].mxu0 %v204
      %v486 = vpop.f32.mrb[0].mxu0
      %v487 = vadd.f32 %v245, %v486
      %v488 = vpop.f32.mrb[0].mxu0
      %v489 = vadd.f32 %v249, %v488
      %490 = vmatprep.mubr.f32.mxu0 0.0
      %491 = vmatmul.mubr.f32.gmra.mrb[0].mxu0 %v205
      %v492 = vpop.f32.mrb[0].mxu0
      %v493 = vadd.f32 %v245, %v492
      %v494 = vpop.f32.mrb[0].mxu0
      %v495 = vadd.f32 %v249, %v494
      %496 = vmatprep.mubr.f32.mxu0 0.0
      %497 = vmatmul.mubr.f32.gmra.mrb[0].mxu0 %v206
      %v498 = vpop.f32.mrb[0].mxu0
      %v499 = vadd.f32 %v245, %v498
      %v500 = vpop.f32.mrb[0].mxu0
      %v501 = vadd.f32 %v249, %v500
      %502 = vmatprep.mubr.f32.mxu0 0.0
      %503 = vmatmul.mubr.f32.gmra.mrb[0].mxu0 %v207
      %v504 = vpop.f32.mrb[0].mxu0
      %v505 = vadd.f32 %v245, %v504
      %v506 = vpop.f32.mrb[0].mxu0
      %v507 = vadd.f32 %v249, %v506
      %508 = vdwg.mxu0
      %vm509 = vcmp.ge.f32.partialorder %v319, 0.0
      %vm510 = vcmp.ge.f32.partialorder %v321, 0.0
      %vm511 = vcmp.ge.f32.partialorder %v325, 0.0
      %vm512 = vcmp.ge.f32.partialorder %v327, 0.0
      %vm513 = vcmp.ge.f32.partialorder %v331, 0.0
      %vm514 = vcmp.ge.f32.partialorder %v333, 0.0
      %vm515 = vcmp.ge.f32.partialorder %v337, 0.0
      %vm516 = vcmp.ge.f32.partialorder %v339, 0.0
      %vm517 = vcmp.ge.f32.partialorder %v343, 0.0
      %vm518 = vcmp.ge.f32.partialorder %v345, 0.0
      %vm519 = vcmp.ge.f32.partialorder %v349, 0.0
      %vm520 = vcmp.ge.f32.partialorder %v351, 0.0
      %vm521 = vcmp.ge.f32.partialorder %v355, 0.0
      %vm522 = vcmp.ge.f32.partialorder %v357, 0.0
      %vm523 = vcmp.ge.f32.partialorder %v361, 0.0
      %vm524 = vcmp.ge.f32.partialorder %v363, 0.0
      %vm525 = vcmp.ge.f32.partialorder %v367, 0.0
      %vm526 = vcmp.ge.f32.partialorder %v369, 0.0
      %vm527 = vcmp.ge.f32.partialorder %v373, 0.0
      %vm528 = vcmp.ge.f32.partialorder %v375, 0.0
      %vm529 = vcmp.ge.f32.partialorder %v379, 0.0
      %vm530 = vcmp.ge.f32.partialorder %v381, 0.0
      %vm531 = vcmp.ge.f32.partialorder %v385, 0.0
      %vm532 = vcmp.ge.f32.partialorder %v387, 0.0
      %vm533 = vcmp.ge.f32.partialorder %v391, 0.0
      %vm534 = vcmp.ge.f32.partialorder %v393, 0.0
      %vm535 = vcmp.ge.f32.partialorder %v397, 0.0
      %vm536 = vcmp.ge.f32.partialorder %v399, 0.0
      %vm537 = vcmp.ge.f32.partialorder %v403, 0.0
      %vm538 = vcmp.ge.f32.partialorder %v405, 0.0
      %vm539 = vcmp.ge.f32.partialorder %v409, 0.0
      %vm540 = vcmp.ge.f32.partialorder %v411, 0.0
      %vm541 = vcmp.ge.f32.partialorder %v415, 0.0
      %vm542 = vcmp.ge.f32.partialorder %v417, 0.0
      %vm543 = vcmp.ge.f32.partialorder %v421, 0.0
      %vm544 = vcmp.ge.f32.partialorder %v423, 0.0
      %vm545 = vcmp.ge.f32.partialorder %v427, 0.0
      %vm546 = vcmp.ge.f32.partialorder %v429, 0.0
      %vm547 = vcmp.ge.f32.partialorder %v433, 0.0
      %vm548 = vcmp.ge.f32.partialorder %v435, 0.0
      %vm549 = vcmp.ge.f32.partialorder %v439, 0.0
      %vm550 = vcmp.ge.f32.partialorder %v441, 0.0
      %vm551 = vcmp.ge.f32.partialorder %v445, 0.0
      %vm552 = vcmp.ge.f32.partialorder %v447, 0.0
      %vm553 = vcmp.ge.f32.partialorder %v451, 0.0
      %vm554 = vcmp.ge.f32.partialorder %v453, 0.0
      %vm555 = vcmp.ge.f32.partialorder %v457, 0.0
      %vm556 = vcmp.ge.f32.partialorder %v459, 0.0
      %vm557 = vcmp.ge.f32.partialorder %v463, 0.0
      %vm558 = vcmp.ge.f32.partialorder %v465, 0.0
      %vm559 = vcmp.ge.f32.partialorder %v469, 0.0
      %vm560 = vcmp.ge.f32.partialorder %v471, 0.0
      %vm561 = vcmp.ge.f32.partialorder %v475, 0.0
      %vm562 = vcmp.ge.f32.partialorder %v477, 0.0
      %vm563 = vcmp.ge.f32.partialorder %v481, 0.0
      %vm564 = vcmp.ge.f32.partialorder %v483, 0.0
      %vm565 = vcmp.ge.f32.partialorder %v487, 0.0
      %vm566 = vcmp.ge.f32.partialorder %v489, 0.0
      %vm567 = vcmp.ge.f32.partialorder %v493, 0.0
      %vm568 = vcmp.ge.f32.partialorder %v495, 0.0
      %vm569 = vcmp.ge.f32.partialorder %v499, 0.0
      %vm570 = vcmp.ge.f32.partialorder %v501, 0.0
      %vm571 = vcmp.ge.f32.partialorder %v505, 0.0
      %vm572 = vcmp.ge.f32.partialorder %v507, 0.0
      %v573 = vmul.f32 %v319, 0.2
      %v574 = vmul.f32 %v321, 0.2
      %v575 = vmul.f32 %v325, 0.2
      %v576 = vmul.f32 %v327, 0.2
      %v577 = vmul.f32 %v331, 0.2
      %v578 = vmul.f32 %v333, 0.2
      %v579 = vmul.f32 %v337, 0.2
      %v580 = vmul.f32 %v339, 0.2
      %v581 = vmul.f32 %v343, 0.2
      %v582 = vmul.f32 %v345, 0.2
      %v583 = vmul.f32 %v349, 0.2
      %v584 = vmul.f32 %v351, 0.2
      %v585 = vmul.f32 %v355, 0.2
      %v586 = vmul.f32 %v357, 0.2
      %v587 = vmul.f32 %v361, 0.2
      %v588 = vmul.f32 %v363, 0.2
      %v589 = vmul.f32 %v367, 0.2
      %v590 = vmul.f32 %v369, 0.2
      %v591 = vmul.f32 %v373, 0.2
      %v592 = vmul.f32 %v375, 0.2
      %v593 = vmul.f32 %v379, 0.2
      %v594 = vmul.f32 %v381, 0.2
      %v595 = vmul.f32 %v385, 0.2
      %v596 = vmul.f32 %v387, 0.2
      %v597 = vmul.f32 %v391, 0.2
      %v598 = vmul.f32 %v393, 0.2
      %v599 = vmul.f32 %v397, 0.2
      %v600 = vmul.f32 %v399, 0.2
      %v601 = vmul.f32 %v403, 0.2
      %v602 = vmul.f32 %v405, 0.2
      %v603 = vmul.f32 %v409, 0.2
      %v604 = vmul.f32 %v411, 0.2
      %v605 = vmul.f32 %v415, 0.2
      %v606 = vmul.f32 %v417, 0.2
      %v607 = vmul.f32 %v421, 0.2
      %v608 = vmul.f32 %v423, 0.2
      %v609 = vmul.f32 %v427, 0.2
      %v610 = vmul.f32 %v429, 0.2
      %v611 = vmul.f32 %v433, 0.2
      %v612 = vmul.f32 %v435, 0.2
      %v613 = vmul.f32 %v439, 0.2
      %v614 = vmul.f32 %v441, 0.2
      %v615 = vmul.f32 %v445, 0.2
      %v616 = vmul.f32 %v447, 0.2
      %v617 = vmul.f32 %v451, 0.2
      %v618 = vmul.f32 %v453, 0.2
      %v619 = vmul.f32 %v457, 0.2
      %v620 = vmul.f32 %v459, 0.2
      %v621 = vmul.f32 %v463, 0.2
      %v622 = vmul.f32 %v465, 0.2
      %v623 = vmul.f32 %v469, 0.2
      %v624 = vmul.f32 %v471, 0.2
      %v625 = vmul.f32 %v475, 0.2
      %v626 = vmul.f32 %v477, 0.2
      %v627 = vmul.f32 %v481, 0.2
      %v628 = vmul.f32 %v483, 0.2
      %v629 = vmul.f32 %v487, 0.2
      %v630 = vmul.f32 %v489, 0.2
      %v631 = vmul.f32 %v493, 0.2
      %v632 = vmul.f32 %v495, 0.2
      %v633 = vmul.f32 %v499, 0.2
      %v634 = vmul.f32 %v501, 0.2
      %v635 = vmul.f32 %v505, 0.2
      %v636 = vmul.f32 %v507, 0.2
      %v637 = vsel %vm509, %v319, %v573
      %v638 = vsel %vm510, %v321, %v574
      %v639 = vsel %vm511, %v325, %v575
      %v640 = vsel %vm512, %v327, %v576
      %v641 = vsel %vm513, %v331, %v577
      %v642 = vsel %vm514, %v333, %v578
      %v643 = vsel %vm515, %v337, %v579
      %v644 = vsel %vm516, %v339, %v580
      %v645 = vsel %vm517, %v343, %v581
      %v646 = vsel %vm518, %v345, %v582
      %v647 = vsel %vm519, %v349, %v583
      %v648 = vsel %vm520, %v351, %v584
      %v649 = vsel %vm521, %v355, %v585
      %v650 = vsel %vm522, %v357, %v586
      %v651 = vsel %vm523, %v361, %v587
      %v652 = vsel %vm524, %v363, %v588
      %v653 = vsel %vm525, %v367, %v589
      %v654 = vsel %vm526, %v369, %v590
      %v655 = vsel %vm527, %v373, %v591
      %v656 = vsel %vm528, %v375, %v592
      %v657 = vsel %vm529, %v379, %v593
      %v658 = vsel %vm530, %v381, %v594
      %v659 = vsel %vm531, %v385, %v595
      %v660 = vsel %vm532, %v387, %v596
      %v661 = vsel %vm533, %v391, %v597
      %v662 = vsel %vm534, %v393, %v598
      %v663 = vsel %vm535, %v397, %v599
      %v664 = vsel %vm536, %v399, %v600
      %v665 = vsel %vm537, %v403, %v601
      %v666 = vsel %vm538, %v405, %v602
      %v667 = vsel %vm539, %v409, %v603
      %v668 = vsel %vm540, %v411, %v604
      %v669 = vsel %vm541, %v415, %v605
      %v670 = vsel %vm542, %v417, %v606
      %v671 = vsel %vm543, %v421, %v607
      %v672 = vsel %vm544, %v423, %v608
      %v673 = vsel %vm545, %v427, %v609
      %v674 = vsel %vm546, %v429, %v610
      %v675 = vsel %vm547, %v433, %v611
      %v676 = vsel %vm548, %v435, %v612
      %v677 = vsel %vm549, %v439, %v613
      %v678 = vsel %vm550, %v441, %v614
      %v679 = vsel %vm551, %v445, %v615
      %v680 = vsel %vm552, %v447, %v616
      %v681 = vsel %vm553, %v451, %v617
      %v682 = vsel %vm554, %v453, %v618
      %v683 = vsel %vm555, %v457, %v619
      %v684 = vsel %vm556, %v459, %v620
      %v685 = vsel %vm557, %v463, %v621
      %v686 = vsel %vm558, %v465, %v622
      %v687 = vsel %vm559, %v469, %v623
      %v688 = vsel %vm560, %v471, %v624
      %v689 = vsel %vm561, %v475, %v625
      %v690 = vsel %vm562, %v477, %v626
      %v691 = vsel %vm563, %v481, %v627
      %v692 = vsel %vm564, %v483, %v628
      %v693 = vsel %vm565, %v487, %v629
      %v694 = vsel %vm566, %v489, %v630
      %v695 = vsel %vm567, %v493, %v631
      %v696 = vsel %vm568, %v495, %v632
      %v697 = vsel %vm569, %v499, %v633
      %v698 = vsel %vm570, %v501, %v634
      %v699 = vsel %vm571, %v505, %v635
      %v700 = vsel %vm572, %v507, %v636
      %v701 = vpack.c.bf16 %v639, %v637
      %v702 = vpack.c.bf16 %v640, %v638
      %v703 = vpack.c.bf16 %v643, %v641
      %v704 = vpack.c.bf16 %v644, %v642
      %v705 = vpack.c.bf16 %v647, %v645
      %v706 = vpack.c.bf16 %v648, %v646
      %v707 = vpack.c.bf16 %v651, %v649
      %v708 = vpack.c.bf16 %v652, %v650
      %v709 = vpack.c.bf16 %v655, %v653
      %v710 = vpack.c.bf16 %v656, %v654
      %v711 = vpack.c.bf16 %v659, %v657
      %v712 = vpack.c.bf16 %v660, %v658
      %v713 = vpack.c.bf16 %v663, %v661
      %v714 = vpack.c.bf16 %v664, %v662
      %v715 = vpack.c.bf16 %v667, %v665
      %v716 = vpack.c.bf16 %v668, %v666
      %v717 = vpack.c.bf16 %v671, %v669
      %v718 = vpack.c.bf16 %v672, %v670
      %v719 = vpack.c.bf16 %v675, %v673
      %v720 = vpack.c.bf16 %v676, %v674
      %v721 = vpack.c.bf16 %v679, %v677
      %v722 = vpack.c.bf16 %v680, %v678
      %v723 = vpack.c.bf16 %v683, %v681
      %v724 = vpack.c.bf16 %v684, %v682
      %v725 = vpack.c.bf16 %v687, %v685
      %v726 = vpack.c.bf16 %v688, %v686
      %v727 = vpack.c.bf16 %v691, %v689
      %v728 = vpack.c.bf16 %v692, %v690
      %v729 = vpack.c.bf16 %v695, %v693
      %v730 = vpack.c.bf16 %v696, %v694
      %v731 = vpack.c.bf16 %v699, %v697
      %v732 = vpack.c.bf16 %v700, %v698
      %v765 = vunpack.c.l.b16 %v701
      %v766 = vunpack.c.l.b16 %v702
      %v767 = vunpack.c.h.b16 %v701
      %v768 = vunpack.c.h.b16 %v702
      %v769 = vunpack.c.l.b16 %v703
      %v770 = vunpack.c.l.b16 %v704
      %v771 = vunpack.c.h.b16 %v703
      %v772 = vunpack.c.h.b16 %v704
      %v773 = vunpack.c.l.b16 %v705
      %v774 = vunpack.c.l.b16 %v706
      %v775 = vunpack.c.h.b16 %v705
      %v776 = vunpack.c.h.b16 %v706
      %v777 = vunpack.c.l.b16 %v707
      %v778 = vunpack.c.l.b16 %v708
      %v779 = vunpack.c.h.b16 %v707
      %v780 = vunpack.c.h.b16 %v708
      %v781 = vunpack.c.l.b16 %v709
      %v782 = vunpack.c.l.b16 %v710
      %v783 = vunpack.c.h.b16 %v709
      %v784 = vunpack.c.h.b16 %v710
      %v785 = vunpack.c.l.b16 %v711
      %v786 = vunpack.c.l.b16 %v712
      %v787 = vunpack.c.h.b16 %v711
      %v788 = vunpack.c.h.b16 %v712
      %v789 = vunpack.c.l.b16 %v713
      %v790 = vunpack.c.l.b16 %v714
      %v791 = vunpack.c.h.b16 %v713
      %v792 = vunpack.c.h.b16 %v714
      %v793 = vunpack.c.l.b16 %v715
      %v794 = vunpack.c.l.b16 %v716
      %v795 = vunpack.c.h.b16 %v715
      %v796 = vunpack.c.h.b16 %v716
      %v797 = vunpack.c.l.b16 %v717
      %v798 = vunpack.c.l.b16 %v718
      %v799 = vunpack.c.h.b16 %v717
      %v800 = vunpack.c.h.b16 %v718
      %v801 = vunpack.c.l.b16 %v719
      %v802 = vunpack.c.l.b16 %v720
      %v803 = vunpack.c.h.b16 %v719
      %v804 = vunpack.c.h.b16 %v720
      %v805 = vunpack.c.l.b16 %v721
      %v806 = vunpack.c.l.b16 %v722
      %v807 = vunpack.c.h.b16 %v721
      %v808 = vunpack.c.h.b16 %v722
      %v809 = vunpack.c.l.b16 %v723
      %v810 = vunpack.c.l.b16 %v724
      %v811 = vunpack.c.h.b16 %v723
      %v812 = vunpack.c.h.b16 %v724
      %v813 = vunpack.c.l.b16 %v725
      %v814 = vunpack.c.l.b16 %v726
      %v815 = vunpack.c.h.b16 %v725
      %v816 = vunpack.c.h.b16 %v726
      %v817 = vunpack.c.l.b16 %v727
      %v818 = vunpack.c.l.b16 %v728
      %v819 = vunpack.c.h.b16 %v727
      %v820 = vunpack.c.h.b16 %v728
      %v821 = vunpack.c.l.b16 %v729
      %v822 = vunpack.c.l.b16 %v730
      %v823 = vunpack.c.h.b16 %v729
      %v824 = vunpack.c.h.b16 %v730
      %v825 = vunpack.c.l.b16 %v731
      %v826 = vunpack.c.l.b16 %v732
      %v827 = vunpack.c.h.b16 %v731
      %v828 = vunpack.c.h.b16 %v732
      %v829 = vpack.c.b16 %v766, %v765
      %v830 = vpack.c.b16 %v768, %v767
      %v831 = vpack.c.b16 %v770, %v769
      %v832 = vpack.c.b16 %v772, %v771
      %v833 = vpack.c.b16 %v774, %v773
      %v834 = vpack.c.b16 %v776, %v775
      %v835 = vpack.c.b16 %v778, %v777
      %v836 = vpack.c.b16 %v780, %v779
      %v837 = vpack.c.b16 %v782, %v781
      %v838 = vpack.c.b16 %v784, %v783
      %v839 = vpack.c.b16 %v786, %v785
      %v840 = vpack.c.b16 %v788, %v787
      %v841 = vpack.c.b16 %v790, %v789
      %v842 = vpack.c.b16 %v792, %v791
      %v843 = vpack.c.b16 %v794, %v793
      %v844 = vpack.c.b16 %v796, %v795
      %v845 = vpack.c.b16 %v798, %v797
      %v846 = vpack.c.b16 %v800, %v799
      %v847 = vpack.c.b16 %v802, %v801
      %v848 = vpack.c.b16 %v804, %v803
      %v849 = vpack.c.b16 %v806, %v805
      %v850 = vpack.c.b16 %v808, %v807
      %v851 = vpack.c.b16 %v810, %v809
      %v852 = vpack.c.b16 %v812, %v811
      %v853 = vpack.c.b16 %v814, %v813
      %v854 = vpack.c.b16 %v816, %v815
      %v855 = vpack.c.b16 %v818, %v817
      %v856 = vpack.c.b16 %v820, %v819
      %v857 = vpack.c.b16 %v822, %v821
      %v858 = vpack.c.b16 %v824, %v823
      %v859 = vpack.c.b16 %v826, %v825
      %v860 = vpack.c.b16 %v828, %v827
      %893 = vst [vmem:[%s174] sm:$0xff] %v829
      %894 = vst [vmem:[%s174 + $0x8] sm:$0xff] %v830
      %895 = vst [vmem:[%s174 + $0x10] sm:$0xff] %v831
      %896 = vst [vmem:[%s174 + $0x18] sm:$0xff] %v832
      %897 = vst [vmem:[%s174 + $0x20] sm:$0xff] %v833
      %898 = vst [vmem:[%s174 + $0x28] sm:$0xff] %v834
      %899 = vst [vmem:[%s174 + $0x30] sm:$0xff] %v835
      %900 = vst [vmem:[%s174 + $0x38] sm:$0xff] %v836
      %901 = vst [vmem:[%s174 + $0x40] sm:$0xff] %v837
      %902 = vst [vmem:[%s174 + $0x48] sm:$0xff] %v838
      %903 = vst [vmem:[%s174 + $0x50] sm:$0xff] %v839
      %904 = vst [vmem:[%s174 + $0x58] sm:$0xff] %v840
      %905 = vst [vmem:[%s174 + $0x60] sm:$0xff] %v841
      %906 = vst [vmem:[%s174 + $0x68] sm:$0xff] %v842
      %907 = vst [vmem:[%s174 + $0x70] sm:$0xff] %v843
      %908 = vst [vmem:[%s174 + $0x78] sm:$0xff] %v844
      %909 = vst [vmem:[%s174 + $0x80] sm:$0xff] %v845
      %910 = vst [vmem:[%s174 + $0x88] sm:$0xff] %v846
      %911 = vst [vmem:[%s174 + $0x90] sm:$0xff] %v847
      %912 = vst [vmem:[%s174 + $0x98] sm:$0xff] %v848
      %913 = vst [vmem:[%s174 + $0xa0] sm:$0xff] %v849
      %914 = vst [vmem:[%s174 + $0xa8] sm:$0xff] %v850
      %915 = vst [vmem:[%s174 + $0xb0] sm:$0xff] %v851
      %916 = vst [vmem:[%s174 + $0xb8] sm:$0xff] %v852
      %917 = vst [vmem:[%s174 + $0xc0] sm:$0xff] %v853
      %918 = vst [vmem:[%s174 + $0xc8] sm:$0xff] %v854
      %919 = vst [vmem:[%s174 + $0xd0] sm:$0xff] %v855
      %920 = vst [vmem:[%s174 + $0xd8] sm:$0xff] %v856
      %921 = vst [vmem:[%s174 + $0xe0] sm:$0xff] %v857
      %922 = vst [vmem:[%s174 + $0xe8] sm:$0xff] %v858
      %923 = vst [vmem:[%s174 + $0xf0] sm:$0xff] %v859
      %924 = vst [vmem:[%s174 + $0xf8] sm:$0xff] %v860
      %s925 = smul.u32 32, %s14
      %p926 = scmp.lt.s32.totalorder %s925, 127
      %s927 = scalar_select %p926, %s925, 127
      %s928 = smul.addr %s927, 2
      %s929 = smul.addr %s928, 4
      %s930 = scalar_lea.vmem %s3, %s929
      // Predicated region
      $region33: #{discriminator_x_forward.3} parent=31 // pred_check
        %p931 = pneg %p100
      $region34: #{discriminator_x_forward.3} parent=31 // pred_check_branch
        %933 = sbr.rel (%p931) target = $region36
      $region35: #{discriminator_x_forward.3} parent=31 // pred_region
        %s934 = smul.u32 32, %s14
      $region36: #{discriminator_x_forward.3} parent=31 // pred_fallthru
        _
    $region32: #{discriminator_x_forward.3} parent=5 // pred_fallthru
      _
    %p935 = scmp.le.s32.totalorder 2, %s9
    // Predicated region
    $region37: #{discriminator_x_forward.3} parent=5 // pred_check
      %p936 = pneg %p935
    $region38: #{discriminator_x_forward.3} parent=5 // pred_check_branch
      %938 = sbr.rel (%p936) target = $region40
    $region39: #{discriminator_x_forward.3} parent=5 // pred_region
      %s939 = ssub.s32 %s9, 2
      // Predicated region
      $region41: #{discriminator_x_forward.3} parent=39 // pred_check
        %p940 = pneg %p106
      $region42: #{discriminator_x_forward.3} parent=39 // pred_check_branch
        %942 = sbr.rel (%p940) target = $region44
      $region43: #{discriminator_x_forward.3} parent=39 // pred_region
        %s943 = smul.u32 32, %s15
        %p944 = scmp.lt.s32.totalorder %s943, 127
        %s945 = scalar_select %p944, %s943, 127
        %s946 = smul.addr %s945, 2
        %s947 = smul.addr %s946, 4
        %s948 = scalar_lea.vmem %s3, %s947
      $region44: #{discriminator_x_forward.3} parent=39 // pred_fallthru
        _
    $region40: #{discriminator_x_forward.3} parent=5 // pred_fallthru
      _
  $region6: #{discriminator_x_forward.3} parent=0 // loop_footer
    %s13 = sadd.s32 1, %s9
  $region7: #{discriminator_x_forward.3} parent=0 // loop_footer_branch
    %8 = sbr.rel target = $region3
  $region8: #{discriminator_x_forward.3} parent=0 // loop_exit
    _

// kernel: discriminator_x_forward.4
$region0: #{discriminator_x_forward.4}
  #allocation0 [shape = 'u32[]', space=smem, size = 0x4, offset = 0x4, fixed_abs, tag = 'smem constant byte address 0x4 - core index']
  #allocation1 [shape = 'u32[144,128]{1,0:T(1,128)}', space=vmem, size = 0x12000, scoped, tag = 'internal scratch']
  #allocation2 [shape = 'f32[1024,128]{1,0:T(8,128)}', space=vmem, size = 0x80000, scoped, tag = 'scratch operand']
  #allocation3 [shape = 'f32[1,128]{1,0:T(1,128)}', space=vmem, size = 0x200, scoped, tag = 'scratch operand']
  #allocation4 [shape = 'f32[1,128]{1,0:T(1,128)}', space=vmem, size = 0x200, scoped, tag = 'scratch operand']
  %s0 = inlined_call_operand.vmem [shape: bf16[1024,1024], index: 0, kind: input, shape index: {}]
  %s1 = inlined_call_operand.vmem [shape: bf16[1024,128], index: 1, kind: input, shape index: {}]
  %s2 = inlined_call_operand.vmem [shape: f32[1,128], index: 2, kind: input, shape index: {}]
  %s3 = inlined_call_operand.vmem [shape: f32[1,128], index: 3, kind: input, shape index: {}]
  %s4 = inlined_call_operand.vmem [shape: f32[1,128], index: 4, kind: input, shape index: {}]
  %s5 = inlined_call_operand.vmem [shape: bf16[1024,128], index: 5, kind: output, shape index: {}]
  %s6 = sld [smem:[#allocation0]]
  $region68: #{discriminator_x_forward.4} parent=0
    _
  %s8 = ssub.s32 1, %s6
  %s9 = scalar_select 0, %s8, %s6
  loop: start=0, step=1, limit=6
  $region2: #{discriminator_x_forward.4} parent=0 // loop_pre_header
    _
  $region3: #{discriminator_x_forward.4} parent=0 // loop_header
    %s11 = sphi 0, %s15
    %p12 = scmp.ge.s32.totalorder %s11, 6
    %s21 = sphi 0, %s23
    %s24 = sphi 0, %s21
    %s25 = sphi 0, %s24
    %s41 = sphi 0, %s25
    %s45 = sphi 0, %s45
    %s47 = sphi 0, %s45
    %s48 = sphi 0, %s47
    %s62 = sphi 0, %s48
    %s66 = sphi 0, %s66
    %s68 = sphi 0, %s66
    %s69 = sphi 0, %s68
    %s83 = sphi 0, %s69
    %s87 = sphi 0, %s87
    %s89 = sphi 0, %s87
    %s90 = sphi 0, %s89
    %s104 = sphi 0, %s90
    %s108 = sphi 0, %s108
    %s110 = sphi 0, %s108
    %s111 = sphi 0, %s110
    %s125 = sphi 0, %s111
    %s129 = sphi 0, %s129
    %s131 = sphi 0, %s129
    %s132 = sphi 0, %s131
    %s146 = sphi 0, %s132
  $region4: #{discriminator_x_forward.4} parent=0 // loop_header_branch
    %14 = sbr.rel (%p12) target = $region8
  $region5: #{discriminator_x_forward.4} parent=0 // loop_body
    %s16 = ssub.s32 %s11, 1
    %s17 = ssub.s32 %s11, 2
    %s18 = sadd.s32 %s11, 1
    %s19 = ssub.s32 %s11, %s18
    %p20 = scmp.eq.s32.totalorder %s19, 0
    %s22 = sadd.s32 %s21, 1
    %s23 = scalar_select %p20, %s21, %s22
    %p26 = pneg %p20
    %p27 = scmp.eq.s32.totalorder %s11, 3
    %p28 = por %p26, %p27
    %p29 = scmp.ne.s32.totalorder %s21, %s24
    %p30 = scmp.eq.s32.totalorder %s11, 0
    %p31 = por %p29, %p30
    %p32 = scmp.ne.s32.totalorder %s21, %s24
    %p33 = scmp.eq.s32.totalorder %s16, 3
    %p34 = por %p32, %p33
    %p35 = scmp.ne.s32.totalorder %s24, %s25
    %p36 = scmp.eq.s32.totalorder %s16, 0
    %p37 = por %p35, %p36
    %p38 = scmp.ne.s32.totalorder %s24, %s25
    %p39 = scmp.eq.s32.totalorder %s17, 3
    %p40 = por %p38, %p39
    %p42 = scmp.ne.s32.totalorder %s25, %s41
    %p43 = scmp.eq.s32.totalorder %s17, 0
    %p44 = por %p42, %p43
    %s46 = sadd.s32 %s45, 1
    %p49 = scmp.eq.s32.totalorder %s11, 3
    %p50 = scmp.ne.s32.totalorder %s45, %s47
    %p51 = scmp.eq.s32.totalorder %s11, 0
    %p52 = por %p50, %p51
    %p53 = scmp.ne.s32.totalorder %s45, %s47
    %p54 = scmp.eq.s32.totalorder %s16, 3
    %p55 = por %p53, %p54
    %p56 = scmp.ne.s32.totalorder %s47, %s48
    %p57 = scmp.eq.s32.totalorder %s16, 0
    %p58 = por %p56, %p57
    %p59 = scmp.ne.s32.totalorder %s47, %s48
    %p60 = scmp.eq.s32.totalorder %s17, 3
    %p61 = por %p59, %p60
    %p63 = scmp.ne.s32.totalorder %s48, %s62
    %p64 = scmp.eq.s32.totalorder %s17, 0
    %p65 = por %p63, %p64
    %s67 = sadd.s32 %s66, 1
    %p70 = scmp.eq.s32.totalorder %s11, 3
    %p71 = scmp.ne.s32.totalorder %s66, %s68
    %p72 = scmp.eq.s32.totalorder %s11, 0
    %p73 = por %p71, %p72
    %p74 = scmp.ne.s32.totalorder %s66, %s68
    %p75 = scmp.eq.s32.totalorder %s16, 3
    %p76 = por %p74, %p75
    %p77 = scmp.ne.s32.totalorder %s68, %s69
    %p78 = scmp.eq.s32.totalorder %s16, 0
    %p79 = por %p77, %p78
    %p80 = scmp.ne.s32.totalorder %s68, %s69
    %p81 = scmp.eq.s32.totalorder %s17, 3
    %p82 = por %p80, %p81
    %p84 = scmp.ne.s32.totalorder %s69, %s83
    %p85 = scmp.eq.s32.totalorder %s17, 0
    %p86 = por %p84, %p85
    %s88 = sadd.s32 %s87, 1
    %p91 = scmp.eq.s32.totalorder %s11, 3
    %p92 = scmp.ne.s32.totalorder %s87, %s89
    %p93 = scmp.eq.s32.totalorder %s11, 0
    %p94 = por %p92, %p93
    %p95 = scmp.ne.s32.totalorder %s87, %s89
    %p96 = scmp.eq.s32.totalorder %s16, 3
    %p97 = por %p95, %p96
    %p98 = scmp.ne.s32.totalorder %s89, %s90
    %p99 = scmp.eq.s32.totalorder %s16, 0
    %p100 = por %p98, %p99
    %p101 = scmp.ne.s32.totalorder %s89, %s90
    %p102 = scmp.eq.s32.totalorder %s17, 3
    %p103 = por %p101, %p102
    %p105 = scmp.ne.s32.totalorder %s90, %s104
    %p106 = scmp.eq.s32.totalorder %s17, 0
    %p107 = por %p105, %p106
    %s109 = sadd.s32 %s108, 1
    %p112 = scmp.eq.s32.totalorder %s11, 3
    %p113 = scmp.ne.s32.totalorder %s108, %s110
    %p114 = scmp.eq.s32.totalorder %s11, 0
    %p115 = por %p113, %p114
    %p116 = scmp.ne.s32.totalorder %s108, %s110
    %p117 = scmp.eq.s32.totalorder %s16, 3
    %p118 = por %p116, %p117
    %p119 = scmp.ne.s32.totalorder %s110, %s111
    %p120 = scmp.eq.s32.totalorder %s16, 0
    %p121 = por %p119, %p120
    %p122 = scmp.ne.s32.totalorder %s110, %s111
    %p123 = scmp.eq.s32.totalorder %s17, 3
    %p124 = por %p122, %p123
    %p126 = scmp.ne.s32.totalorder %s111, %s125
    %p127 = scmp.eq.s32.totalorder %s17, 0
    %p128 = por %p126, %p127
    %s130 = sadd.s32 %s129, 1
    %p133 = scmp.eq.s32.totalorder %s11, 3
    %p134 = scmp.ne.s32.totalorder %s129, %s131
    %p135 = scmp.eq.s32.totalorder %s11, 0
    %p136 = por %p134, %p135
    %p137 = scmp.ne.s32.totalorder %s129, %s131
    %p138 = scmp.eq.s32.totalorder %s16, 3
    %p139 = por %p137, %p138
    %p140 = scmp.ne.s32.totalorder %s131, %s132
    %p141 = scmp.eq.s32.totalorder %s16, 0
    %p142 = por %p140, %p141
    %p143 = scmp.ne.s32.totalorder %s131, %s132
    %p144 = scmp.eq.s32.totalorder %s17, 3
    %p145 = por %p143, %p144
    %p147 = scmp.ne.s32.totalorder %s132, %s146
    %p148 = scmp.eq.s32.totalorder %s17, 0
    %p149 = por %p147, %p148
    %p150 = scmp.le.s32.totalorder 1, %s11
    %p151 = scmp.lt.s32.totalorder %s11, 5
    %p152 = pnand %p150, %p151
    %p153 = pneg %p152
    // Predicated region
    $region9: #{discriminator_x_forward.4} parent=5 // pred_check
      _
    $region10: #{discriminator_x_forward.4} parent=5 // pred_check_branch
      %155 = sbr.rel (%p152) target = $region12
    $region11: #{discriminator_x_forward.4} parent=5 // pred_region
      %s156 = ssub.s32 %s11, 1
      // Predicated region
      $region13: #{discriminator_x_forward.4} parent=11 // pred_check
        %p157 = pneg %p58
      $region14: #{discriminator_x_forward.4} parent=11 // pred_check_branch
        %159 = sbr.rel (%p157) target = $region16
      $region15: #{discriminator_x_forward.4} parent=11 // pred_region
        _
      $region16: #{discriminator_x_forward.4} parent=11 // pred_fallthru
        _
      // Predicated region
      $region17: #{discriminator_x_forward.4} parent=11 // pred_check
        %p160 = pneg %p79
      $region18: #{discriminator_x_forward.4} parent=11 // pred_check_branch
        %162 = sbr.rel (%p160) target = $region20
      $region19: #{discriminator_x_forward.4} parent=11 // pred_region
        _
      $region20: #{discriminator_x_forward.4} parent=11 // pred_fallthru
        _
      // Predicated region
      $region21: #{discriminator_x_forward.4} parent=11 // pred_check
        %p163 = pneg %p100
      $region22: #{discriminator_x_forward.4} parent=11 // pred_check_branch
        %165 = sbr.rel (%p163) target = $region24
      $region23: #{discriminator_x_forward.4} parent=11 // pred_region
        _
      $region24: #{discriminator_x_forward.4} parent=11 // pred_fallthru
        _
      // Predicated region
      $region25: #{discriminator_x_forward.4} parent=11 // pred_check
        %p166 = pneg %p121
      $region26: #{discriminator_x_forward.4} parent=11 // pred_check_branch
        %168 = sbr.rel (%p166) target = $region28
      $region27: #{discriminator_x_forward.4} parent=11 // pred_region
        _
      $region28: #{discriminator_x_forward.4} parent=11 // pred_fallthru
        _
    $region12: #{discriminator_x_forward.4} parent=5 // pred_fallthru
      _
    %p169 = scmp.lt.s32.totalorder %s11, 4
    // Predicated region
    $region29: #{discriminator_x_forward.4} parent=5 // pred_check
      %p170 = pneg %p169
    $region30: #{discriminator_x_forward.4} parent=5 // pred_check_branch
      %172 = sbr.rel (%p170) target = $region32
    $region31: #{discriminator_x_forward.4} parent=5 // pred_region
      // Predicated region
      $region33: #{discriminator_x_forward.4} parent=31 // pred_check
        %p173 = pneg %p31
      $region34: #{discriminator_x_forward.4} parent=31 // pred_check_branch
        %175 = sbr.rel (%p173) target = $region36
      $region35: #{discriminator_x_forward.4} parent=31 // pred_region
        %s176 = smul.u32 32, %s11
        %p177 = scmp.lt.s32.totalorder %s176, 127
        %s178 = scalar_select %p177, %s176, 127
        %s179 = smul.addr %s178, 8
        %s180 = smul.addr %s179, 4
        %s181 = scalar_lea.vmem %s0, %s180
        %s182 = smul.u32 32, %s11
      $region36: #{discriminator_x_forward.4} parent=31 // pred_fallthru
        _
    $region32: #{discriminator_x_forward.4} parent=5 // pred_fallthru
      _
    %p183 = scmp.le.s32.totalorder 1, %s11
    %p184 = scmp.lt.s32.totalorder %s11, 5
    %p185 = pnand %p183, %p184
    %p186 = pneg %p185
    // Predicated region
    $region37: #{discriminator_x_forward.4} parent=5 // pred_check
      _
    $region38: #{discriminator_x_forward.4} parent=5 // pred_check_branch
      %188 = sbr.rel (%p185) target = $region40
    $region39: #{discriminator_x_forward.4} parent=5 // pred_region
      %s189 = ssub.s32 %s11, 1
      %s190 = smul.u32 32, %s16
      %p191 = scmp.lt.s32.totalorder %s190, 127
      %s192 = scalar_select %p191, %s190, 127
      %s193 = smul.addr %s192, 8
      %s194 = smul.addr %s193, 4
      %s195 = scalar_lea.vmem %s0, %s194
      %p196 = pneg %p37
      %p197 = pneg %p34
      %p198 = pneg %p58
      %p199 = pneg %p55
      %p200 = pneg %p79
      %p201 = pneg %p76
      %p202 = pneg %p100
      %p203 = pneg %p97
      %p204 = pneg %p121
      %p205 = pneg %p118
      %p206 = pneg %p142
      %p207 = pneg %p139
      %s208 = smul.u32 32, %s16
      %p209 = scmp.lt.s32.totalorder %s208, 127
      %s210 = scalar_select %p209, %s208, 127
      %s211 = smul.addr %s210, 8
      %s212 = smul.addr %s211, 4
      %s213 = scalar_lea.vmem %s0, %s212
      %s214 = smul.u32 32, %s16
      %p216 = scmp.eq.s32.totalorder %s16, 0
      // Predicated region
      $region41: #{discriminator_x_forward.4} parent=39 // pred_check
        %p217 = pneg %p216
      $region42: #{discriminator_x_forward.4} parent=39 // pred_check_branch
        %219 = sbr.rel (%p217) target = $region44
      $region43: #{discriminator_x_forward.4} parent=39 // pred_region
        %220 = vst [vmem:[#allocation3] sm:$0x1] 0.0
        %221 = vst [vmem:[#allocation4] sm:$0x1] 0.0
      $region44: #{discriminator_x_forward.4} parent=39 // pred_fallthru
        _
      %v222 = vld [vmem:[%s213] sm:$0xff]
      %v223 = vld [vmem:[%s213 + $0x8] sm:$0xff]
      %v224 = vld [vmem:[%s213 + $0x10] sm:$0xff]
      %v225 = vld [vmem:[%s213 + $0x18] sm:$0xff]
      %v226 = vld [vmem:[%s213 + $0x20] sm:$0xff]
      %v227 = vld [vmem:[%s213 + $0x28] sm:$0xff]
      %v228 = vld [vmem:[%s213 + $0x30] sm:$0xff]
      %v229 = vld [vmem:[%s213 + $0x38] sm:$0xff]
      %v230 = vld [vmem:[%s213 + $0x40] sm:$0xff]
      %v231 = vld [vmem:[%s213 + $0x48] sm:$0xff]
      %v232 = vld [vmem:[%s213 + $0x50] sm:$0xff]
      %v233 = vld [vmem:[%s213 + $0x58] sm:$0xff]
      %v234 = vld [vmem:[%s213 + $0x60] sm:$0xff]
      %v235 = vld [vmem:[%s213 + $0x68] sm:$0xff]
      %v236 = vld [vmem:[%s213 + $0x70] sm:$0xff]
      %v237 = vld [vmem:[%s213 + $0x78] sm:$0xff]
      %v238 = vld [vmem:[%s213 + $0x80] sm:$0xff]
      %v239 = vld [vmem:[%s213 + $0x88] sm:$0xff]
      %v240 = vld [vmem:[%s213 + $0x90] sm:$0xff]
      %v241 = vld [vmem:[%s213 + $0x98] sm:$0xff]
      %v242 = vld [vmem:[%s213 + $0xa0] sm:$0xff]
      %v243 = vld [vmem:[%s213 + $0xa8] sm:$0xff]
      %v244 = vld [vmem:[%s213 + $0xb0] sm:$0xff]
      %v245 = vld [vmem:[%s213 + $0xb8] sm:$0xff]
      %v246 = vld [vmem:[%s213 + $0xc0] sm:$0xff]
      %v247 = vld [vmem:[%s213 + $0xc8] sm:$0xff]
      %v248 = vld [vmem:[%s213 + $0xd0] sm:$0xff]
      %v249 = vld [vmem:[%s213 + $0xd8] sm:$0xff]
      %v250 = vld [vmem:[%s213 + $0xe0] sm:$0xff]
      %v251 = vld [vmem:[%s213 + $0xe8] sm:$0xff]
      %v252 = vld [vmem:[%s213 + $0xf0] sm:$0xff]
      %v253 = vld [vmem:[%s213 + $0xf8] sm:$0xff]
      %v254 = vld [vmem:[%s213 + $0x100] sm:$0xff]
      %v255 = vld [vmem:[%s213 + $0x108] sm:$0xff]
      %v256 = vld [vmem:[%s213 + $0x110] sm:$0xff]
      %v257 = vld [vmem:[%s213 + $0x118] sm:$0xff]
      %v258 = vld [vmem:[%s213 + $0x120] sm:$0xff]
      %v259 = vld [vmem:[%s213 + $0x128] sm:$0xff]
      %v260 = vld [vmem:[%s213 + $0x130] sm:$0xff]
      %v261 = vld [vmem:[%s213 + $0x138] sm:$0xff]
      %v262 = vld [vmem:[%s213 + $0x140] sm:$0xff]
      %v263 = vld [vmem:[%s213 + $0x148] sm:$0xff]
      %v264 = vld [vmem:[%s213 + $0x150] sm:$0xff]
      %v265 = vld [vmem:[%s213 + $0x158] sm:$0xff]
      %v266 = vld [vmem:[%s213 + $0x160] sm:$0xff]
      %v267 = vld [vmem:[%s213 + $0x168] sm:$0xff]
      %v268 = vld [vmem:[%s213 + $0x170] sm:$0xff]
      %v269 = vld [vmem:[%s213 + $0x178] sm:$0xff]
      %v270 = vld [vmem:[%s213 + $0x180] sm:$0xff]
      %v271 = vld [vmem:[%s213 + $0x188] sm:$0xff]
      %v272 = vld [vmem:[%s213 + $0x190] sm:$0xff]
      %v273 = vld [vmem:[%s213 + $0x198] sm:$0xff]
      %v274 = vld [vmem:[%s213 + $0x1a0] sm:$0xff]
      %v275 = vld [vmem:[%s213 + $0x1a8] sm:$0xff]
      %v276 = vld [vmem:[%s213 + $0x1b0] sm:$0xff]
      %v277 = vld [vmem:[%s213 + $0x1b8] sm:$0xff]
      %v278 = vld [vmem:[%s213 + $0x1c0] sm:$0xff]
      %v279 = vld [vmem:[%s213 + $0x1c8] sm:$0xff]
      %v280 = vld [vmem:[%s213 + $0x1d0] sm:$0xff]
      %v281 = vld [vmem:[%s213 + $0x1d8] sm:$0xff]
      %v282 = vld [vmem:[%s213 + $0x1e0] sm:$0xff]
      %v283 = vld [vmem:[%s213 + $0x1e8] sm:$0xff]
      %v284 = vld [vmem:[%s213 + $0x1f0] sm:$0xff]
      %v285 = vld [vmem:[%s213 + $0x1f8] sm:$0xff]
      %v286 = vld [vmem:[%s213 + $0x200] sm:$0xff]
      %v287 = vld [vmem:[%s213 + $0x208] sm:$0xff]
      %v288 = vld [vmem:[%s213 + $0x210] sm:$0xff]
      %v289 = vld [vmem:[%s213 + $0x218] sm:$0xff]
      %v290 = vld [vmem:[%s213 + $0x220] sm:$0xff]
      %v291 = vld [vmem:[%s213 + $0x228] sm:$0xff]
      %v292 = vld [vmem:[%s213 + $0x230] sm:$0xff]
      %v293 = vld [vmem:[%s213 + $0x238] sm:$0xff]
      %v294 = vld [vmem:[%s213 + $0x240] sm:$0xff]
      %v295 = vld [vmem:[%s213 + $0x248] sm:$0xff]
      %v296 = vld [vmem:[%s213 + $0x250] sm:$0xff]
      %v297 = vld [vmem:[%s213 + $0x258] sm:$0xff]
      %v298 = vld [vmem:[%s213 + $0x260] sm:$0xff]
      %v299 = vld [vmem:[%s213 + $0x268] sm:$0xff]
      %v300 = vld [vmem:[%s213 + $0x270] sm:$0xff]
      %v301 = vld [vmem:[%s213 + $0x278] sm:$0xff]
      %v302 = vld [vmem:[%s213 + $0x280] sm:$0xff]
      %v303 = vld [vmem:[%s213 + $0x288] sm:$0xff]
      %v304 = vld [vmem:[%s213 + $0x290] sm:$0xff]
      %v305 = vld [vmem:[%s213 + $0x298] sm:$0xff]
      %v306 = vld [vmem:[%s213 + $0x2a0] sm:$0xff]
      %v307 = vld [vmem:[%s213 + $0x2a8] sm:$0xff]
      %v308 = vld [vmem:[%s213 + $0x2b0] sm:$0xff]
      %v309 = vld [vmem:[%s213 + $0x2b8] sm:$0xff]
      %v310 = vld [vmem:[%s213 + $0x2c0] sm:$0xff]
      %v311 = vld [vmem:[%s213 + $0x2c8] sm:$0xff]
      %v312 = vld [vmem:[%s213 + $0x2d0] sm:$0xff]
      %v313 = vld [vmem:[%s213 + $0x2d8] sm:$0xff]
      %v314 = vld [vmem:[%s213 + $0x2e0] sm:$0xff]
      %v315 = vld [vmem:[%s213 + $0x2e8] sm:$0xff]
      %v316 = vld [vmem:[%s213 + $0x2f0] sm:$0xff]
      %v317 = vld [vmem:[%s213 + $0x2f8] sm:$0xff]
      %v318 = vld [vmem:[%s213 + $0x300] sm:$0xff]
      %v319 = vld [vmem:[%s213 + $0x308] sm:$0xff]
      %v320 = vld [vmem:[%s213 + $0x310] sm:$0xff]
      %v321 = vld [vmem:[%s213 + $0x318] sm:$0xff]
      %v322 = vld [vmem:[%s213 + $0x320] sm:$0xff]
      %v323 = vld [vmem:[%s213 + $0x328] sm:$0xff]
      %v324 = vld [vmem:[%s213 + $0x330] sm:$0xff]
      %v325 = vld [vmem:[%s213 + $0x338] sm:$0xff]
      %v326 = vld [vmem:[%s213 + $0x340] sm:$0xff]
      %v327 = vld [vmem:[%s213 + $0x348] sm:$0xff]
      %v328 = vld [vmem:[%s213 + $0x350] sm:$0xff]
      %v329 = vld [vmem:[%s213 + $0x358] sm:$0xff]
      %v330 = vld [vmem:[%s213 + $0x360] sm:$0xff]
      %v331 = vld [vmem:[%s213 + $0x368] sm:$0xff]
      %v332 = vld [vmem:[%s213 + $0x370] sm:$0xff]
      %v333 = vld [vmem:[%s213 + $0x378] sm:$0xff]
      %v334 = vld [vmem:[%s213 + $0x380] sm:$0xff]
      %v335 = vld [vmem:[%s213 + $0x388] sm:$0xff]
      %v336 = vld [vmem:[%s213 + $0x390] sm:$0xff]
      %v337 = vld [vmem:[%s213 + $0x398] sm:$0xff]
      %v338 = vld [vmem:[%s213 + $0x3a0] sm:$0xff]
      %v339 = vld [vmem:[%s213 + $0x3a8] sm:$0xff]
      %v340 = vld [vmem:[%s213 + $0x3b0] sm:$0xff]
      %v341 = vld [vmem:[%s213 + $0x3b8] sm:$0xff]
      %v342 = vld [vmem:[%s213 + $0x3c0] sm:$0xff]
      %v343 = vld [vmem:[%s213 + $0x3c8] sm:$0xff]
      %v344 = vld [vmem:[%s213 + $0x3d0] sm:$0xff]
      %v345 = vld [vmem:[%s213 + $0x3d8] sm:$0xff]
      %v346 = vld [vmem:[%s213 + $0x3e0] sm:$0xff]
      %v347 = vld [vmem:[%s213 + $0x3e8] sm:$0xff]
      %v348 = vld [vmem:[%s213 + $0x3f0] sm:$0xff]
      %v349 = vld [vmem:[%s213 + $0x3f8] sm:$0xff]
      %v350 = vld [vmem:[%s1] sm:$0xf]
      %v351 = vld [vmem:[%s1 + $0x4] sm:$0xf]
      %v352 = vld [vmem:[%s1 + $0x8] sm:$0xf]
      %v353 = vld [vmem:[%s1 + $0xc] sm:$0xf]
      %v354 = vld [vmem:[%s1 + $0x10] sm:$0xf]
      %v355 = vld [vmem:[%s1 + $0x14] sm:$0xf]
      %v356 = vld [vmem:[%s1 + $0x18] sm:$0xf]
      %v357 = vld [vmem:[%s1 + $0x1c] sm:$0xf]
      %v358 = vld [vmem:[%s1 + $0x20] sm:$0xf]
      %v359 = vld [vmem:[%s1 + $0x24] sm:$0xf]
      %v360 = vld [vmem:[%s1 + $0x28] sm:$0xf]
      %v361 = vld [vmem:[%s1 + $0x2c] sm:$0xf]
      %v362 = vld [vmem:[%s1 + $0x30] sm:$0xf]
      %v363 = vld [vmem:[%s1 + $0x34] sm:$0xf]
      %v364 = vld [vmem:[%s1 + $0x38] sm:$0xf]
      %v365 = vld [vmem:[%s1 + $0x3c] sm:$0xf]
      %v366 = vld [vmem:[%s1 + $0x40] sm:$0xf]
      %v367 = vld [vmem:[%s1 + $0x44] sm:$0xf]
      %v368 = vld [vmem:[%s1 + $0x48] sm:$0xf]
      %v369 = vld [vmem:[%s1 + $0x4c] sm:$0xf]
      %v370 = vld [vmem:[%s1 + $0x50] sm:$0xf]
      %v371 = vld [vmem:[%s1 + $0x54] sm:$0xf]
      %v372 = vld [vmem:[%s1 + $0x58] sm:$0xf]
      %v373 = vld [vmem:[%s1 + $0x5c] sm:$0xf]
      %v374 = vld [vmem:[%s1 + $0x60] sm:$0xf]
      %v375 = vld [vmem:[%s1 + $0x64] sm:$0xf]
      %v376 = vld [vmem:[%s1 + $0x68] sm:$0xf]
      %v377 = vld [vmem:[%s1 + $0x6c] sm:$0xf]
      %v378 = vld [vmem:[%s1 + $0x70] sm:$0xf]
      %v379 = vld [vmem:[%s1 + $0x74] sm:$0xf]
      %v380 = vld [vmem:[%s1 + $0x78] sm:$0xf]
      %v381 = vld [vmem:[%s1 + $0x7c] sm:$0xf]
      %v382 = vld [vmem:[%s1 + $0x80] sm:$0xf]
      %v383 = vld [vmem:[%s1 + $0x84] sm:$0xf]
      %v384 = vld [vmem:[%s1 + $0x88] sm:$0xf]
      %v385 = vld [vmem:[%s1 + $0x8c] sm:$0xf]
      %v386 = vld [vmem:[%s1 + $0x90] sm:$0xf]
      %v387 = vld [vmem:[%s1 + $0x94] sm:$0xf]
      %v388 = vld [vmem:[%s1 + $0x98] sm:$0xf]
      %v389 = vld [vmem:[%s1 + $0x9c] sm:$0xf]
      %v390 = vld [vmem:[%s1 + $0xa0] sm:$0xf]
      %v391 = vld [vmem:[%s1 + $0xa4] sm:$0xf]
      %v392 = vld [vmem:[%s1 + $0xa8] sm:$0xf]
      %v393 = vld [vmem:[%s1 + $0xac] sm:$0xf]
      %v394 = vld [vmem:[%s1 + $0xb0] sm:$0xf]
      %v395 = vld [vmem:[%s1 + $0xb4] sm:$0xf]
      %v396 = vld [vmem:[%s1 + $0xb8] sm:$0xf]
      %v397 = vld [vmem:[%s1 + $0xbc] sm:$0xf]
      %v398 = vld [vmem:[%s1 + $0xc0] sm:$0xf]
      %v399 = vld [vmem:[%s1 + $0xc4] sm:$0xf]
      %v400 = vld [vmem:[%s1 + $0xc8] sm:$0xf]
      %v401 = vld [vmem:[%s1 + $0xcc] sm:$0xf]
      %v402 = vld [vmem:[%s1 + $0xd0] sm:$0xf]
      %v403 = vld [vmem:[%s1 + $0xd4] sm:$0xf]
      %v404 = vld [vmem:[%s1 + $0xd8] sm:$0xf]
      %v405 = vld [vmem:[%s1 + $0xdc] sm:$0xf]
      %v406 = vld [vmem:[%s1 + $0xe0] sm:$0xf]
      %v407 = vld [vmem:[%s1 + $0xe4] sm:$0xf]
      %v408 = vld [vmem:[%s1 + $0xe8] sm:$0xf]
      %v409 = vld [vmem:[%s1 + $0xec] sm:$0xf]
      %v410 = vld [vmem:[%s1 + $0xf0] sm:$0xf]
      %v411 = vld [vmem:[%s1 + $0xf4] sm:$0xf]
      %v412 = vld [vmem:[%s1 + $0xf8] sm:$0xf]
      %v413 = vld [vmem:[%s1 + $0xfc] sm:$0xf]
      %v414 = vld [vmem:[%s1 + $0x100] sm:$0xf]
      %v415 = vld [vmem:[%s1 + $0x104] sm:$0xf]
      %v416 = vld [vmem:[%s1 + $0x108] sm:$0xf]
      %v417 = vld [vmem:[%s1 + $0x10c] sm:$0xf]
      %v418 = vld [vmem:[%s1 + $0x110] sm:$0xf]
      %v419 = vld [vmem:[%s1 + $0x114] sm:$0xf]
      %v420 = vld [vmem:[%s1 + $0x118] sm:$0xf]
      %v421 = vld [vmem:[%s1 + $0x11c] sm:$0xf]
      %v422 = vld [vmem:[%s1 + $0x120] sm:$0xf]
      %v423 = vld [vmem:[%s1 + $0x124] sm:$0xf]
      %v424 = vld [vmem:[%s1 + $0x128] sm:$0xf]
      %v425 = vld [vmem:[%s1 + $0x12c] sm:$0xf]
      %v426 = vld [vmem:[%s1 + $0x130] sm:$0xf]
      %v427 = vld [vmem:[%s1 + $0x134] sm:$0xf]
      %v428 = vld [vmem:[%s1 + $0x138] sm:$0xf]
      %v429 = vld [vmem:[%s1 + $0x13c] sm:$0xf]
      %v430 = vld [vmem:[%s1 + $0x140] sm:$0xf]
      %v431 = vld [vmem:[%s1 + $0x144] sm:$0xf]
      %v432 = vld [vmem:[%s1 + $0x148] sm:$0xf]
      %v433 = vld [vmem:[%s1 + $0x14c] sm:$0xf]
      %v434 = vld [vmem:[%s1 + $0x150] sm:$0xf]
      %v435 = vld [vmem:[%s1 + $0x154] sm:$0xf]
      %v436 = vld [vmem:[%s1 + $0x158] sm:$0xf]
      %v437 = vld [vmem:[%s1 + $0x15c] sm:$0xf]
      %v438 = vld [vmem:[%s1 + $0x160] sm:$0xf]
      %v439 = vld [vmem:[%s1 + $0x164] sm:$0xf]
      %v440 = vld [vmem:[%s1 + $0x168] sm:$0xf]
      %v441 = vld [vmem:[%s1 + $0x16c] sm:$0xf]
      %v442 = vld [vmem:[%s1 + $0x170] sm:$0xf]
      %v443 = vld [vmem:[%s1 + $0x174] sm:$0xf]
      %v444 = vld [vmem:[%s1 + $0x178] sm:$0xf]
      %v445 = vld [vmem:[%s1 + $0x17c] sm:$0xf]
      %v446 = vld [vmem:[%s1 + $0x180] sm:$0xf]
      %v447 = vld [vmem:[%s1 + $0x184] sm:$0xf]
      %v448 = vld [vmem:[%s1 + $0x188] sm:$0xf]
      %v449 = vld [vmem:[%s1 + $0x18c] sm:$0xf]
      %v450 = vld [vmem:[%s1 + $0x190] sm:$0xf]
      %v451 = vld [vmem:[%s1 + $0x194] sm:$0xf]
      %v452 = vld [vmem:[%s1 + $0x198] sm:$0xf]
      %v453 = vld [vmem:[%s1 + $0x19c] sm:$0xf]
      %v454 = vld [vmem:[%s1 + $0x1a0] sm:$0xf]
      %v455 = vld [vmem:[%s1 + $0x1a4] sm:$0xf]
      %v456 = vld [vmem:[%s1 + $0x1a8] sm:$0xf]
      %v457 = vld [vmem:[%s1 + $0x1ac] sm:$0xf]
      %v458 = vld [vmem:[%s1 + $0x1b0] sm:$0xf]
      %v459 = vld [vmem:[%s1 + $0x1b4] sm:$0xf]
      %v460 = vld [vmem:[%s1 + $0x1b8] sm:$0xf]
      %v461 = vld [vmem:[%s1 + $0x1bc] sm:$0xf]
      %v462 = vld [vmem:[%s1 + $0x1c0] sm:$0xf]
      %v463 = vld [vmem:[%s1 + $0x1c4] sm:$0xf]
      %v464 = vld [vmem:[%s1 + $0x1c8] sm:$0xf]
      %v465 = vld [vmem:[%s1 + $0x1cc] sm:$0xf]
      %v466 = vld [vmem:[%s1 + $0x1d0] sm:$0xf]
      %v467 = vld [vmem:[%s1 + $0x1d4] sm:$0xf]
      %v468 = vld [vmem:[%s1 + $0x1d8] sm:$0xf]
      %v469 = vld [vmem:[%s1 + $0x1dc] sm:$0xf]
      %v470 = vld [vmem:[%s1 + $0x1e0] sm:$0xf]
      %v471 = vld [vmem:[%s1 + $0x1e4] sm:$0xf]
      %v472 = vld [vmem:[%s1 + $0x1e8] sm:$0xf]
      %v473 = vld [vmem:[%s1 + $0x1ec] sm:$0xf]
      %v474 = vld [vmem:[%s1 + $0x1f0] sm:$0xf]
      %v475 = vld [vmem:[%s1 + $0x1f4] sm:$0xf]
      %v476 = vld [vmem:[%s1 + $0x1f8] sm:$0xf]
      %v477 = vld [vmem:[%s1 + $0x1fc] sm:$0xf]
      %v478 = vld [vmem:[%s2] sm:$0x1]
      %v480 = vlaneseq
      %v481 = vshrl.u32 %v480, 7
      %v482 = vsub.s32 0, %v481
      %v483 = vrot.slane %v478, %v482
      %v613 = vunpack.c.l.b16 %v222
      %v614 = vunpack.c.h.b16 %v222
      %v615 = vunpack.c.l.b16 %v223
      %v616 = vunpack.c.h.b16 %v223
      %v617 = vunpack.c.l.b16 %v224
      %v618 = vunpack.c.h.b16 %v224
      %v619 = vunpack.c.l.b16 %v225
      %v620 = vunpack.c.h.b16 %v225
      %v621 = vunpack.c.l.b16 %v226
      %v622 = vunpack.c.h.b16 %v226
      %v623 = vunpack.c.l.b16 %v227
      %v624 = vunpack.c.h.b16 %v227
      %v625 = vunpack.c.l.b16 %v228
      %v626 = vunpack.c.h.b16 %v228
      %v627 = vunpack.c.l.b16 %v229
      %v628 = vunpack.c.h.b16 %v229
      %v629 = vunpack.c.l.b16 %v230
      %v630 = vunpack.c.h.b16 %v230
      %v631 = vunpack.c.l.b16 %v231
      %v632 = vunpack.c.h.b16 %v231
      %v633 = vunpack.c.l.b16 %v232
      %v634 = vunpack.c.h.b16 %v232
      %v635 = vunpack.c.l.b16 %v233
      %v636 = vunpack.c.h.b16 %v233
      %v637 = vunpack.c.l.b16 %v234
      %v638 = vunpack.c.h.b16 %v234
      %v639 = vunpack.c.l.b16 %v235
      %v640 = vunpack.c.h.b16 %v235
      %v641 = vunpack.c.l.b16 %v236
      %v642 = vunpack.c.h.b16 %v236
      %v643 = vunpack.c.l.b16 %v237
      %v644 = vunpack.c.h.b16 %v237
      %v645 = vunpack.c.l.b16 %v238
      %v646 = vunpack.c.h.b16 %v238
      %v647 = vunpack.c.l.b16 %v239
      %v648 = vunpack.c.h.b16 %v239
      %v649 = vunpack.c.l.b16 %v240
      %v650 = vunpack.c.h.b16 %v240
      %v651 = vunpack.c.l.b16 %v241
      %v652 = vunpack.c.h.b16 %v241
      %v653 = vunpack.c.l.b16 %v242
      %v654 = vunpack.c.h.b16 %v242
      %v655 = vunpack.c.l.b16 %v243
      %v656 = vunpack.c.h.b16 %v243
      %v657 = vunpack.c.l.b16 %v244
      %v658 = vunpack.c.h.b16 %v244
      %v659 = vunpack.c.l.b16 %v245
      %v660 = vunpack.c.h.b16 %v245
      %v661 = vunpack.c.l.b16 %v246
      %v662 = vunpack.c.h.b16 %v246
      %v663 = vunpack.c.l.b16 %v247
      %v664 = vunpack.c.h.b16 %v247
      %v665 = vunpack.c.l.b16 %v248
      %v666 = vunpack.c.h.b16 %v248
      %v667 = vunpack.c.l.b16 %v249
      %v668 = vunpack.c.h.b16 %v249
      %v669 = vunpack.c.l.b16 %v250
      %v670 = vunpack.c.h.b16 %v250
      %v671 = vunpack.c.l.b16 %v251
      %v672 = vunpack.c.h.b16 %v251
      %v673 = vunpack.c.l.b16 %v252
      %v674 = vunpack.c.h.b16 %v252
      %v675 = vunpack.c.l.b16 %v253
      %v676 = vunpack.c.h.b16 %v253
      %v677 = vunpack.c.l.b16 %v254
      %v678 = vunpack.c.h.b16 %v254
      %v679 = vunpack.c.l.b16 %v255
      %v680 = vunpack.c.h.b16 %v255
      %v681 = vunpack.c.l.b16 %v256
      %v682 = vunpack.c.h.b16 %v256
      %v683 = vunpack.c.l.b16 %v257
      %v684 = vunpack.c.h.b16 %v257
      %v685 = vunpack.c.l.b16 %v258
      %v686 = vunpack.c.h.b16 %v258
      %v687 = vunpack.c.l.b16 %v259
      %v688 = vunpack.c.h.b16 %v259
      %v689 = vunpack.c.l.b16 %v260
      %v690 = vunpack.c.h.b16 %v260
      %v691 = vunpack.c.l.b16 %v261
      %v692 = vunpack.c.h.b16 %v261
      %v693 = vunpack.c.l.b16 %v262
      %v694 = vunpack.c.h.b16 %v262
      %v695 = vunpack.c.l.b16 %v263
      %v696 = vunpack.c.h.b16 %v263
      %v697 = vunpack.c.l.b16 %v264
      %v698 = vunpack.c.h.b16 %v264
      %v699 = vunpack.c.l.b16 %v265
      %v700 = vunpack.c.h.b16 %v265
      %v701 = vunpack.c.l.b16 %v266
      %v702 = vunpack.c.h.b16 %v266
      %v703 = vunpack.c.l.b16 %v267
      %v704 = vunpack.c.h.b16 %v267
      %v705 = vunpack.c.l.b16 %v268
      %v706 = vunpack.c.h.b16 %v268
      %v707 = vunpack.c.l.b16 %v269
      %v708 = vunpack.c.h.b16 %v269
      %v709 = vunpack.c.l.b16 %v270
      %v710 = vunpack.c.h.b16 %v270
      %v711 = vunpack.c.l.b16 %v271
      %v712 = vunpack.c.h.b16 %v271
      %v713 = vunpack.c.l.b16 %v272
      %v714 = vunpack.c.h.b16 %v272
      %v715 = vunpack.c.l.b16 %v273
      %v716 = vunpack.c.h.b16 %v273
      %v717 = vunpack.c.l.b16 %v274
      %v718 = vunpack.c.h.b16 %v274
      %v719 = vunpack.c.l.b16 %v275
      %v720 = vunpack.c.h.b16 %v275
      %v721 = vunpack.c.l.b16 %v276
      %v722 = vunpack.c.h.b16 %v276
      %v723 = vunpack.c.l.b16 %v277
      %v724 = vunpack.c.h.b16 %v277
      %v725 = vunpack.c.l.b16 %v278
      %v726 = vunpack.c.h.b16 %v278
      %v727 = vunpack.c.l.b16 %v279
      %v728 = vunpack.c.h.b16 %v279
      %v729 = vunpack.c.l.b16 %v280
      %v730 = vunpack.c.h.b16 %v280
      %v731 = vunpack.c.l.b16 %v281
      %v732 = vunpack.c.h.b16 %v281
      %v733 = vunpack.c.l.b16 %v282
      %v734 = vunpack.c.h.b16 %v282
      %v735 = vunpack.c.l.b16 %v283
      %v736 = vunpack.c.h.b16 %v283
      %v737 = vunpack.c.l.b16 %v284
      %v738 = vunpack.c.h.b16 %v284
      %v739 = vunpack.c.l.b16 %v285
      %v740 = vunpack.c.h.b16 %v285
      %v741 = vunpack.c.l.b16 %v286
      %v742 = vunpack.c.h.b16 %v286
      %v743 = vunpack.c.l.b16 %v287
      %v744 = vunpack.c.h.b16 %v287
      %v745 = vunpack.c.l.b16 %v288
      %v746 = vunpack.c.h.b16 %v288
      %v747 = vunpack.c.l.b16 %v289
      %v748 = vunpack.c.h.b16 %v289
      %v749 = vunpack.c.l.b16 %v290
      %v750 = vunpack.c.h.b16 %v290
      %v751 = vunpack.c.l.b16 %v291
      %v752 = vunpack.c.h.b16 %v291
      %v753 = vunpack.c.l.b16 %v292
      %v754 = vunpack.c.h.b16 %v292
      %v755 = vunpack.c.l.b16 %v293
      %v756 = vunpack.c.h.b16 %v293
      %v757 = vunpack.c.l.b16 %v294
      %v758 = vunpack.c.h.b16 %v294
      %v759 = vunpack.c.l.b16 %v295
      %v760 = vunpack.c.h.b16 %v295
      %v761 = vunpack.c.l.b16 %v296
      %v762 = vunpack.c.h.b16 %v296
      %v763 = vunpack.c.l.b16 %v297
      %v764 = vunpack.c.h.b16 %v297
      %v765 = vunpack.c.l.b16 %v298
      %v766 = vunpack.c.h.b16 %v298
      %v767 = vunpack.c.l.b16 %v299
      %v768 = vunpack.c.h.b16 %v299
      %v769 = vunpack.c.l.b16 %v300
      %v770 = vunpack.c.h.b16 %v300
      %v771 = vunpack.c.l.b16 %v301
      %v772 = vunpack.c.h.b16 %v301
      %v773 = vunpack.c.l.b16 %v302
      %v774 = vunpack.c.h.b16 %v302
      %v775 = vunpack.c.l.b16 %v303
      %v776 = vunpack.c.h.b16 %v303
      %v777 = vunpack.c.l.b16 %v304
      %v778 = vunpack.c.h.b16 %v304
      %v779 = vunpack.c.l.b16 %v305
      %v780 = vunpack.c.h.b16 %v305
      %v781 = vunpack.c.l.b16 %v306
      %v782 = vunpack.c.h.b16 %v306
      %v783 = vunpack.c.l.b16 %v307
      %v784 = vunpack.c.h.b16 %v307
      %v785 = vunpack.c.l.b16 %v308
      %v786 = vunpack.c.h.b16 %v308
      %v787 = vunpack.c.l.b16 %v309
      %v788 = vunpack.c.h.b16 %v309
      %v789 = vunpack.c.l.b16 %v310
      %v790 = vunpack.c.h.b16 %v310
      %v791 = vunpack.c.l.b16 %v311
      %v792 = vunpack.c.h.b16 %v311
      %v793 = vunpack.c.l.b16 %v312
      %v794 = vunpack.c.h.b16 %v312
      %v795 = vunpack.c.l.b16 %v313
      %v796 = vunpack.c.h.b16 %v313
      %v797 = vunpack.c.l.b16 %v314
      %v798 = vunpack.c.h.b16 %v314
      %v799 = vunpack.c.l.b16 %v315
      %v800 = vunpack.c.h.b16 %v315
      %v801 = vunpack.c.l.b16 %v316
      %v802 = vunpack.c.h.b16 %v316
      %v803 = vunpack.c.l.b16 %v317
      %v804 = vunpack.c.h.b16 %v317
      %v805 = vunpack.c.l.b16 %v318
      %v806 = vunpack.c.h.b16 %v318
      %v807 = vunpack.c.l.b16 %v319
      %v808 = vunpack.c.h.b16 %v319
      %v809 = vunpack.c.l.b16 %v320
      %v810 = vunpack.c.h.b16 %v320
      %v811 = vunpack.c.l.b16 %v321
      %v812 = vunpack.c.h.b16 %v321
      %v813 = vunpack.c.l.b16 %v322
      %v814 = vunpack.c.h.b16 %v322
      %v815 = vunpack.c.l.b16 %v323
      %v816 = vunpack.c.h.b16 %v323
      %v817 = vunpack.c.l.b16 %v324
      %v818 = vunpack.c.h.b16 %v324
      %v819 = vunpack.c.l.b16 %v325
      %v820 = vunpack.c.h.b16 %v325
      %v821 = vunpack.c.l.b16 %v326
      %v822 = vunpack.c.h.b16 %v326
      %v823 = vunpack.c.l.b16 %v327
      %v824 = vunpack.c.h.b16 %v327
      %v825 = vunpack.c.l.b16 %v328
      %v826 = vunpack.c.h.b16 %v328
      %v827 = vunpack.c.l.b16 %v329
      %v828 = vunpack.c.h.b16 %v329
      %v829 = vunpack.c.l.b16 %v330
      %v830 = vunpack.c.h.b16 %v330
      %v831 = vunpack.c.l.b16 %v331
      %v832 = vunpack.c.h.b16 %v331
      %v833 = vunpack.c.l.b16 %v332
      %v834 = vunpack.c.h.b16 %v332
      %v835 = vunpack.c.l.b16 %v333
      %v836 = vunpack.c.h.b16 %v333
      %v837 = vunpack.c.l.b16 %v334
      %v838 = vunpack.c.h.b16 %v334
      %v839 = vunpack.c.l.b16 %v335
      %v840 = vunpack.c.h.b16 %v335
      %v841 = vunpack.c.l.b16 %v336
      %v842 = vunpack.c.h.b16 %v336
      %v843 = vunpack.c.l.b16 %v337
      %v844 = vunpack.c.h.b16 %v337
      %v845 = vunpack.c.l.b16 %v338
      %v846 = vunpack.c.h.b16 %v338
      %v847 = vunpack.c.l.b16 %v339
      %v848 = vunpack.c.h.b16 %v339
      %v849 = vunpack.c.l.b16 %v340
      %v850 = vunpack.c.h.b16 %v340
      %v851 = vunpack.c.l.b16 %v341
      %v852 = vunpack.c.h.b16 %v341
      %v853 = vunpack.c.l.b16 %v342
      %v854 = vunpack.c.h.b16 %v342
      %v855 = vunpack.c.l.b16 %v343
      %v856 = vunpack.c.h.b16 %v343
      %v857 = vunpack.c.l.b16 %v344
      %v858 = vunpack.c.h.b16 %v344
      %v859 = vunpack.c.l.b16 %v345
      %v860 = vunpack.c.h.b16 %v345
      %v861 = vunpack.c.l.b16 %v346
      %v862 = vunpack.c.h.b16 %v346
      %v863 = vunpack.c.l.b16 %v347
      %v864 = vunpack.c.h.b16 %v347
      %v865 = vunpack.c.l.b16 %v348
      %v866 = vunpack.c.h.b16 %v348
      %v867 = vunpack.c.l.b16 %v349
      %v868 = vunpack.c.h.b16 %v349
      %v869 = vpack.c.b16 %v621, %v613
      %v870 = vpack.c.b16 %v622, %v614
      %v871 = vpack.c.b16 %v623, %v615
      %v872 = vpack.c.b16 %v624, %v616
      %v873 = vpack.c.b16 %v625, %v617
      %v874 = vpack.c.b16 %v626, %v618
      %v875 = vpack.c.b16 %v627, %v619
      %v876 = vpack.c.b16 %v628, %v620
      %v877 = vpack.c.b16 %v637, %v629
      %v878 = vpack.c.b16 %v638, %v630
      %v879 = vpack.c.b16 %v639, %v631
      %v880 = vpack.c.b16 %v640, %v632
      %v881 = vpack.c.b16 %v641, %v633
      %v882 = vpack.c.b16 %v642, %v634
      %v883 = vpack.c.b16 %v643, %v635
      %v884 = vpack.c.b16 %v644, %v636
      %v885 = vpack.c.b16 %v653, %v645
      %v886 = vpack.c.b16 %v654, %v646
      %v887 = vpack.c.b16 %v655, %v647
      %v888 = vpack.c.b16 %v656, %v648
      %v889 = vpack.c.b16 %v657, %v649
      %v890 = vpack.c.b16 %v658, %v650
      %v891 = vpack.c.b16 %v659, %v651
      %v892 = vpack.c.b16 %v660, %v652
      %v893 = vpack.c.b16 %v669, %v661
      %v894 = vpack.c.b16 %v670, %v662
      %v895 = vpack.c.b16 %v671, %v663
      %v896 = vpack.c.b16 %v672, %v664
      %v897 = vpack.c.b16 %v673, %v665
      %v898 = vpack.c.b16 %v674, %v666
      %v899 = vpack.c.b16 %v675, %v667
      %v900 = vpack.c.b16 %v676, %v668
      %v901 = vpack.c.b16 %v685, %v677
      %v902 = vpack.c.b16 %v686, %v678
      %v903 = vpack.c.b16 %v687, %v679
      %v904 = vpack.c.b16 %v688, %v680
      %v905 = vpack.c.b16 %v689, %v681
      %v906 = vpack.c.b16 %v690, %v682
      %v907 = vpack.c.b16 %v691, %v683
      %v908 = vpack.c.b16 %v692, %v684
      %v909 = vpack.c.b16 %v701, %v693
      %v910 = vpack.c.b16 %v702, %v694
      %v911 = vpack.c.b16 %v703, %v695
      %v912 = vpack.c.b16 %v704, %v696
      %v913 = vpack.c.b16 %v705, %v697
      %v914 = vpack.c.b16 %v706, %v698
      %v915 = vpack.c.b16 %v707, %v699
      %v916 = vpack.c.b16 %v708, %v700
      %v917 = vpack.c.b16 %v717, %v709
      %v918 = vpack.c.b16 %v718, %v710
      %v919 = vpack.c.b16 %v719, %v711
      %v920 = vpack.c.b16 %v720, %v712
      %v921 = vpack.c.b16 %v721, %v713
      %v922 = vpack.c.b16 %v722, %v714
      %v923 = vpack.c.b16 %v723, %v715
      %v924 = vpack.c.b16 %v724, %v716
      %v925 = vpack.c.b16 %v733, %v725
      %v926 = vpack.c.b16 %v734, %v726
      %v927 = vpack.c.b16 %v735, %v727
      %v928 = vpack.c.b16 %v736, %v728
      %v929 = vpack.c.b16 %v737, %v729
      %v930 = vpack.c.b16 %v738, %v730
      %v931 = vpack.c.b16 %v739, %v731
      %v932 = vpack.c.b16 %v740, %v732
      %v933 = vpack.c.b16 %v749, %v741
      %v934 = vpack.c.b16 %v750, %v742
      %v935 = vpack.c.b16 %v751, %v743
      %v936 = vpack.c.b16 %v752, %v744
      %v937 = vpack.c.b16 %v753, %v745
      %v938 = vpack.c.b16 %v754, %v746
      %v939 = vpack.c.b16 %v755, %v747
      %v940 = vpack.c.b16 %v756, %v748
      %v941 = vpack.c.b16 %v765, %v757
      %v942 = vpack.c.b16 %v766, %v758
      %v943 = vpack.c.b16 %v767, %v759
      %v944 = vpack.c.b16 %v768, %v760
      %v945 = vpack.c.b16 %v769, %v761
      %v946 = vpack.c.b16 %v770, %v762
      %v947 = vpack.c.b16 %v771, %v763
      %v948 = vpack.c.b16 %v772, %v764
      %v949 = vpack.c.b16 %v781, %v773
      %v950 = vpack.c.b16 %v782, %v774
      %v951 = vpack.c.b16 %v783, %v775
      %v952 = vpack.c.b16 %v784, %v776
      %v953 = vpack.c.b16 %v785, %v777
      %v954 = vpack.c.b16 %v786, %v778
      %v955 = vpack.c.b16 %v787, %v779
      %v956 = vpack.c.b16 %v788, %v780
      %v957 = vpack.c.b16 %v797, %v789
      %v958 = vpack.c.b16 %v798, %v790
      %v959 = vpack.c.b16 %v799, %v791
      %v960 = vpack.c.b16 %v800, %v792
      %v961 = vpack.c.b16 %v801, %v793
      %v962 = vpack.c.b16 %v802, %v794
      %v963 = vpack.c.b16 %v803, %v795
      %v964 = vpack.c.b16 %v804, %v796
      %v965 = vpack.c.b16 %v813, %v805
      %v966 = vpack.c.b16 %v814, %v806
      %v967 = vpack.c.b16 %v815, %v807
      %v968 = vpack.c.b16 %v816, %v808
      %v969 = vpack.c.b16 %v817, %v809
      %v970 = vpack.c.b16 %v818, %v810
      %v971 = vpack.c.b16 %v819, %v811
      %v972 = vpack.c.b16 %v820, %v812
      %v973 = vpack.c.b16 %v829, %v821
      %v974 = vpack.c.b16 %v830, %v822
      %v975 = vpack.c.b16 %v831, %v823
      %v976 = vpack.c.b16 %v832, %v824
      %v977 = vpack.c.b16 %v833, %v825
      %v978 = vpack.c.b16 %v834, %v826
      %v979 = vpack.c.b16 %v835, %v827
      %v980 = vpack.c.b16 %v836, %v828
      %v981 = vpack.c.b16 %v845, %v837
      %v982 = vpack.c.b16 %v846, %v838
      %v983 = vpack.c.b16 %v847, %v839
      %v984 = vpack.c.b16 %v848, %v840
      %v985 = vpack.c.b16 %v849, %v841
      %v986 = vpack.c.b16 %v850, %v842
      %v987 = vpack.c.b16 %v851, %v843
      %v988 = vpack.c.b16 %v852, %v844
      %v989 = vpack.c.b16 %v861, %v853
      %v990 = vpack.c.b16 %v862, %v854
      %v991 = vpack.c.b16 %v863, %v855
      %v992 = vpack.c.b16 %v864, %v856
      %v993 = vpack.c.b16 %v865, %v857
      %v994 = vpack.c.b16 %v866, %v858
      %v995 = vpack.c.b16 %v867, %v859
      %v996 = vpack.c.b16 %v868, %v860
      %v1253 = vunpack.c.l.b16 %v350
      %v1254 = vunpack.c.l.b16 %v351
      %v1255 = vunpack.c.l.b16 %v352
      %v1256 = vunpack.c.l.b16 %v353
      %v1257 = vunpack.c.l.b16 %v354
      %v1258 = vunpack.c.l.b16 %v355
      %v1259 = vunpack.c.l.b16 %v356
      %v1260 = vunpack.c.l.b16 %v357
      %v1261 = vunpack.c.l.b16 %v358
      %v1262 = vunpack.c.l.b16 %v359
      %v1263 = vunpack.c.l.b16 %v360
      %v1264 = vunpack.c.l.b16 %v361
      %v1265 = vunpack.c.l.b16 %v362
      %v1266 = vunpack.c.l.b16 %v363
      %v1267 = vunpack.c.l.b16 %v364
      %v1268 = vunpack.c.l.b16 %v365
      %v1269 = vunpack.c.l.b16 %v366
      %v1270 = vunpack.c.l.b16 %v367
      %v1271 = vunpack.c.l.b16 %v368
      %v1272 = vunpack.c.l.b16 %v369
      %v1273 = vunpack.c.l.b16 %v370
      %v1274 = vunpack.c.l.b16 %v371
      %v1275 = vunpack.c.l.b16 %v372
      %v1276 = vunpack.c.l.b16 %v373
      %v1277 = vunpack.c.l.b16 %v374
      %v1278 = vunpack.c.l.b16 %v375
      %v1279 = vunpack.c.l.b16 %v376
      %v1280 = vunpack.c.l.b16 %v377
      %v1281 = vunpack.c.l.b16 %v378
      %v1282 = vunpack.c.l.b16 %v379
      %v1283 = vunpack.c.l.b16 %v380
      %v1284 = vunpack.c.l.b16 %v381
      %v1285 = vunpack.c.l.b16 %v382
      %v1286 = vunpack.c.l.b16 %v383
      %v1287 = vunpack.c.l.b16 %v384
      %v1288 = vunpack.c.l.b16 %v385
      %v1289 = vunpack.c.l.b16 %v386
      %v1290 = vunpack.c.l.b16 %v387
      %v1291 = vunpack.c.l.b16 %v388
      %v1292 = vunpack.c.l.b16 %v389
      %v1293 = vunpack.c.l.b16 %v390
      %v1294 = vunpack.c.l.b16 %v391
      %v1295 = vunpack.c.l.b16 %v392
      %v1296 = vunpack.c.l.b16 %v393
      %v1297 = vunpack.c.l.b16 %v394
      %v1298 = vunpack.c.l.b16 %v395
      %v1299 = vunpack.c.l.b16 %v396
      %v1300 = vunpack.c.l.b16 %v397
      %v1301 = vunpack.c.l.b16 %v398
      %v1302 = vunpack.c.l.b16 %v399
      %v1303 = vunpack.c.l.b16 %v400
      %v1304 = vunpack.c.l.b16 %v401
      %v1305 = vunpack.c.l.b16 %v402
      %v1306 = vunpack.c.l.b16 %v403
      %v1307 = vunpack.c.l.b16 %v404
      %v1308 = vunpack.c.l.b16 %v405
      %v1309 = vunpack.c.l.b16 %v406
      %v1310 = vunpack.c.l.b16 %v407
      %v1311 = vunpack.c.l.b16 %v408
      %v1312 = vunpack.c.l.b16 %v409
      %v1313 = vunpack.c.l.b16 %v410
      %v1314 = vunpack.c.l.b16 %v411
      %v1315 = vunpack.c.l.b16 %v412
      %v1316 = vunpack.c.l.b16 %v413
      %v1317 = vunpack.c.l.b16 %v414
      %v1318 = vunpack.c.l.b16 %v415
      %v1319 = vunpack.c.l.b16 %v416
      %v1320 = vunpack.c.l.b16 %v417
      %v1321 = vunpack.c.l.b16 %v418
      %v1322 = vunpack.c.l.b16 %v419
      %v1323 = vunpack.c.l.b16 %v420
      %v1324 = vunpack.c.l.b16 %v421
      %v1325 = vunpack.c.l.b16 %v422
      %v1326 = vunpack.c.l.b16 %v423
      %v1327 = vunpack.c.l.b16 %v424
      %v1328 = vunpack.c.l.b16 %v425
      %v1329 = vunpack.c.l.b16 %v426
      %v1330 = vunpack.c.l.b16 %v427
      %v1331 = vunpack.c.l.b16 %v428
      %v1332 = vunpack.c.l.b16 %v429
      %v1333 = vunpack.c.l.b16 %v430
      %v1334 = vunpack.c.l.b16 %v431
      %v1335 = vunpack.c.l.b16 %v432
      %v1336 = vunpack.c.l.b16 %v433
      %v1337 = vunpack.c.l.b16 %v434
      %v1338 = vunpack.c.l.b16 %v435
      %v1339 = vunpack.c.l.b16 %v436
      %v1340 = vunpack.c.l.b16 %v437
      %v1341 = vunpack.c.l.b16 %v438
      %v1342 = vunpack.c.l.b16 %v439
      %v1343 = vunpack.c.l.b16 %v440
      %v1344 = vunpack.c.l.b16 %v441
      %v1345 = vunpack.c.l.b16 %v442
      %v1346 = vunpack.c.l.b16 %v443
      %v1347 = vunpack.c.l.b16 %v444
      %v1348 = vunpack.c.l.b16 %v445
      %v1349 = vunpack.c.l.b16 %v446
      %v1350 = vunpack.c.l.b16 %v447
      %v1351 = vunpack.c.l.b16 %v448
      %v1352 = vunpack.c.l.b16 %v449
      %v1353 = vunpack.c.l.b16 %v450
      %v1354 = vunpack.c.l.b16 %v451
      %v1355 = vunpack.c.l.b16 %v452
      %v1356 = vunpack.c.l.b16 %v453
      %v1357 = vunpack.c.l.b16 %v454
      %v1358 = vunpack.c.l.b16 %v455
      %v1359 = vunpack.c.l.b16 %v456
      %v1360 = vunpack.c.l.b16 %v457
      %v1361 = vunpack.c.l.b16 %v458
      %v1362 = vunpack.c.l.b16 %v459
      %v1363 = vunpack.c.l.b16 %v460
      %v1364 = vunpack.c.l.b16 %v461
      %v1365 = vunpack.c.l.b16 %v462
      %v1366 = vunpack.c.l.b16 %v463
      %v1367 = vunpack.c.l.b16 %v464
      %v1368 = vunpack.c.l.b16 %v465
      %v1369 = vunpack.c.l.b16 %v466
      %v1370 = vunpack.c.l.b16 %v467
      %v1371 = vunpack.c.l.b16 %v468
      %v1372 = vunpack.c.l.b16 %v469
      %v1373 = vunpack.c.l.b16 %v470
      %v1374 = vunpack.c.l.b16 %v471
      %v1375 = vunpack.c.l.b16 %v472
      %v1376 = vunpack.c.l.b16 %v473
      %v1377 = vunpack.c.l.b16 %v474
      %v1378 = vunpack.c.l.b16 %v475
      %v1379 = vunpack.c.l.b16 %v476
      %v1380 = vunpack.c.l.b16 %v477
      %v1381 = vpack.c.b16 %v1254, %v1253
      %v1382 = vpack.c.b16 %v1256, %v1255
      %v1383 = vpack.c.b16 %v1258, %v1257
      %v1384 = vpack.c.b16 %v1260, %v1259
      %v1385 = vpack.c.b16 %v1262, %v1261
      %v1386 = vpack.c.b16 %v1264, %v1263
      %v1387 = vpack.c.b16 %v1266, %v1265
      %v1388 = vpack.c.b16 %v1268, %v1267
      %v1389 = vpack.c.b16 %v1270, %v1269
      %v1390 = vpack.c.b16 %v1272, %v1271
      %v1391 = vpack.c.b16 %v1274, %v1273
      %v1392 = vpack.c.b16 %v1276, %v1275
      %v1393 = vpack.c.b16 %v1278, %v1277
      %v1394 = vpack.c.b16 %v1280, %v1279
      %v1395 = vpack.c.b16 %v1282, %v1281
      %v1396 = vpack.c.b16 %v1284, %v1283
      %v1397 = vpack.c.b16 %v1286, %v1285
      %v1398 = vpack.c.b16 %v1288, %v1287
      %v1399 = vpack.c.b16 %v1290, %v1289
      %v1400 = vpack.c.b16 %v1292, %v1291
      %v1401 = vpack.c.b16 %v1294, %v1293
      %v1402 = vpack.c.b16 %v1296, %v1295
      %v1403 = vpack.c.b16 %v1298, %v1297
      %v1404 = vpack.c.b16 %v1300, %v1299
      %v1405 = vpack.c.b16 %v1302, %v1301
      %v1406 = vpack.c.b16 %v1304, %v1303
      %v1407 = vpack.c.b16 %v1306, %v1305
      %v1408 = vpack.c.b16 %v1308, %v1307
      %v1409 = vpack.c.b16 %v1310, %v1309
      %v1410 = vpack.c.b16 %v1312, %v1311
      %v1411 = vpack.c.b16 %v1314, %v1313
      %v1412 = vpack.c.b16 %v1316, %v1315
      %v1413 = vpack.c.b16 %v1318, %v1317
      %v1414 = vpack.c.b16 %v1320, %v1319
      %v1415 = vpack.c.b16 %v1322, %v1321
      %v1416 = vpack.c.b16 %v1324, %v1323
      %v1417 = vpack.c.b16 %v1326, %v1325
      %v1418 = vpack.c.b16 %v1328, %v1327
      %v1419 = vpack.c.b16 %v1330, %v1329
      %v1420 = vpack.c.b16 %v1332, %v1331
      %v1421 = vpack.c.b16 %v1334, %v1333
      %v1422 = vpack.c.b16 %v1336, %v1335
      %v1423 = vpack.c.b16 %v1338, %v1337
      %v1424 = vpack.c.b16 %v1340, %v1339
      %v1425 = vpack.c.b16 %v1342, %v1341
      %v1426 = vpack.c.b16 %v1344, %v1343
      %v1427 = vpack.c.b16 %v1346, %v1345
      %v1428 = vpack.c.b16 %v1348, %v1347
      %v1429 = vpack.c.b16 %v1350, %v1349
      %v1430 = vpack.c.b16 %v1352, %v1351
      %v1431 = vpack.c.b16 %v1354, %v1353
      %v1432 = vpack.c.b16 %v1356, %v1355
      %v1433 = vpack.c.b16 %v1358, %v1357
      %v1434 = vpack.c.b16 %v1360, %v1359
      %v1435 = vpack.c.b16 %v1362, %v1361
      %v1436 = vpack.c.b16 %v1364, %v1363
      %v1437 = vpack.c.b16 %v1366, %v1365
      %v1438 = vpack.c.b16 %v1368, %v1367
      %v1439 = vpack.c.b16 %v1370, %v1369
      %v1440 = vpack.c.b16 %v1372, %v1371
      %v1441 = vpack.c.b16 %v1374, %v1373
      %v1442 = vpack.c.b16 %v1376, %v1375
      %v1443 = vpack.c.b16 %v1378, %v1377
      %v1444 = vpack.c.b16 %v1380, %v1379
      %1509 = vmatprep.subr.bf16.mxu0 0
      %1510 = vmatpush1.bf16.msra.mxu0 %v1381
      %1511 = vmatprep.subr.bf16.mxu0 0
      %1512 = vmatpush1.bf16.msra.mxu0 %v1382
      %1513 = vmatprep.subr.bf16.mxu0 0
      %1514 = vmatpush1.bf16.msra.mxu0 %v1383
      %1515 = vmatprep.subr.bf16.mxu0 0
      %1516 = vmatpush1.bf16.msra.mxu0 %v1384
      %1517 = vmatprep.subr.bf16.mxu0 0
      %1518 = vmatpush1.bf16.msra.mxu0 %v1385
      %1519 = vmatprep.subr.bf16.mxu0 0
      %1520 = vmatpush1.bf16.msra.mxu0 %v1386
      %1521 = vmatprep.subr.bf16.mxu0 0
      %1522 = vmatpush1.bf16.msra.mxu0 %v1387
      %1523 = vmatprep.subr.bf16.mxu0 0
      %1524 = vmatpush1.bf16.msra.mxu0 %v1388
      %1525 = vmatprep.subr.bf16.mxu0 0
      %1526 = vmatpush1.bf16.msra.mxu0 %v1389
      %1527 = vmatprep.subr.bf16.mxu0 0
      %1528 = vmatpush1.bf16.msra.mxu0 %v1390
      %1529 = vmatprep.subr.bf16.mxu0 0
      %1530 = vmatpush1.bf16.msra.mxu0 %v1391
      %1531 = vmatprep.subr.bf16.mxu0 0
      %1532 = vmatpush1.bf16.msra.mxu0 %v1392
      %1533 = vmatprep.subr.bf16.mxu0 0
      %1534 = vmatpush1.bf16.msra.mxu0 %v1393
      %1535 = vmatprep.subr.bf16.mxu0 0
      %1536 = vmatpush1.bf16.msra.mxu0 %v1394
      %1537 = vmatprep.subr.bf16.mxu0 0
      %1538 = vmatpush1.bf16.msra.mxu0 %v1395
      %1539 = vmatprep.subr.bf16.mxu0 0
      %1540 = vmatpush1.bf16.msra.mxu0 %v1396
      %1541 = vmatprep.mubr.bf16.mxu0 %v870
      %1542 = vmatmul.mubr.bf16.gmra.mrb[0].mxu0 %v869
      %v1543 = vpop.f32.mrb[0].mxu0
      %v1544 = vadd.f32 %v483, %v1543
      %v1545 = vpop.f32.mrb[0].mxu0
      %v1546 = vpop.f32.mrb[0].mxu0
      %v1547 = vadd.f32 %v483, %v1546
      %v1548 = vpop.f32.mrb[0].mxu0
      %1549 = vmatprep.mubr.bf16.mxu0 %v878
      %1550 = vmatmul.mubr.bf16.gmra.mrb[0].mxu0 %v877
      %v1551 = vpop.f32.mrb[0].mxu0
      %v1552 = vadd.f32 %v483, %v1551
      %v1553 = vpop.f32.mrb[0].mxu0
      %v1554 = vpop.f32.mrb[0].mxu0
      %v1555 = vadd.f32 %v483, %v1554
      %v1556 = vpop.f32.mrb[0].mxu0
      %1557 = vmatprep.mubr.bf16.mxu0 %v886
      %1558 = vmatmul.mubr.bf16.gmra.mrb[0].mxu0 %v885
      %v1559 = vpop.f32.mrb[0].mxu0
      %v1560 = vadd.f32 %v483, %v1559
      %v1561 = vpop.f32.mrb[0].mxu0
      %v1562 = vpop.f32.mrb[0].mxu0
      %v1563 = vadd.f32 %v483, %v1562
      %v1564 = vpop.f32.mrb[0].mxu0
      %1565 = vmatprep.mubr.bf16.mxu0 %v894
      %1566 = vmatmul.mubr.bf16.gmra.mrb[0].mxu0 %v893
      %v1567 = vpop.f32.mrb[0].mxu0
      %v1568 = vadd.f32 %v483, %v1567
      %v1569 = vpop.f32.mrb[0].mxu0
      %v1570 = vpop.f32.mrb[0].mxu0
      %v1571 = vadd.f32 %v483, %v1570
      %v1572 = vpop.f32.mrb[0].mxu0
      %1573 = vmatprep.mubr.bf16.mxu0 %v902
      %1574 = vmatmul.mubr.bf16.gmra.mrb[0].mxu0 %v901
      %v1575 = vpop.f32.mrb[0].mxu0
      %v1576 = vadd.f32 %v483, %v1575
      %v1577 = vpop.f32.mrb[0].mxu0
      %v1578 = vpop.f32.mrb[0].mxu0
      %v1579 = vadd.f32 %v483, %v1578
      %v1580 = vpop.f32.mrb[0].mxu0
      %1581 = vmatprep.mubr.bf16.mxu0 %v910
      %1582 = vmatmul.mubr.bf16.gmra.mrb[0].mxu0 %v909
      %v1583 = vpop.f32.mrb[0].mxu0
      %v1584 = vadd.f32 %v483, %v1583
      %v1585 = vpop.f32.mrb[0].mxu0
      %v1586 = vpop.f32.mrb[0].mxu0
      %v1587 = vadd.f32 %v483, %v1586
      %v1588 = vpop.f32.mrb[0].mxu0
      %1589 = vmatprep.mubr.bf16.mxu0 %v918
      %1590 = vmatmul.mubr.bf16.gmra.mrb[0].mxu0 %v917
      %v1591 = vpop.f32.mrb[0].mxu0
      %v1592 = vadd.f32 %v483, %v1591
      %v1593 = vpop.f32.mrb[0].mxu0
      %v1594 = vpop.f32.mrb[0].mxu0
      %v1595 = vadd.f32 %v483, %v1594
      %v1596 = vpop.f32.mrb[0].mxu0
      %1597 = vmatprep.mubr.bf16.mxu0 %v926
      %1598 = vmatmul.mubr.bf16.gmra.mrb[0].mxu0 %v925
      %v1599 = vpop.f32.mrb[0].mxu0
      %v1600 = vadd.f32 %v483, %v1599
      %v1601 = vpop.f32.mrb[0].mxu0
      %v1602 = vpop.f32.mrb[0].mxu0
      %v1603 = vadd.f32 %v483, %v1602
      %v1604 = vpop.f32.mrb[0].mxu0
      %1605 = vmatprep.mubr.bf16.mxu0 %v934
      %1606 = vmatmul.mubr.bf16.gmra.mrb[0].mxu0 %v933
      %v1607 = vpop.f32.mrb[0].mxu0
      %v1608 = vadd.f32 %v483, %v1607
      %v1609 = vpop.f32.mrb[0].mxu0
      %v1610 = vpop.f32.mrb[0].mxu0
      %v1611 = vadd.f32 %v483, %v1610
      %v1612 = vpop.f32.mrb[0].mxu0
      %1613 = vmatprep.mubr.bf16.mxu0 %v942
      %1614 = vmatmul.mubr.bf16.gmra.mrb[0].mxu0 %v941
      %v1615 = vpop.f32.mrb[0].mxu0
      %v1616 = vadd.f32 %v483, %v1615
      %v1617 = vpop.f32.mrb[0].mxu0
      %v1618 = vpop.f32.mrb[0].mxu0
      %v1619 = vadd.f32 %v483, %v1618
      %v1620 = vpop.f32.mrb[0].mxu0
      %1621 = vmatprep.mubr.bf16.mxu0 %v950
      %1622 = vmatmul.mubr.bf16.gmra.mrb[0].mxu0 %v949
      %v1623 = vpop.f32.mrb[0].mxu0
      %v1624 = vadd.f32 %v483, %v1623
      %v1625 = vpop.f32.mrb[0].mxu0
      %v1626 = vpop.f32.mrb[0].mxu0
      %v1627 = vadd.f32 %v483, %v1626
      %v1628 = vpop.f32.mrb[0].mxu0
      %1629 = vmatprep.mubr.bf16.mxu0 %v958
      %1630 = vmatmul.mubr.bf16.gmra.mrb[0].mxu0 %v957
      %v1631 = vpop.f32.mrb[0].mxu0
      %v1632 = vadd.f32 %v483, %v1631
      %v1633 = vpop.f32.mrb[0].mxu0
      %v1634 = vpop.f32.mrb[0].mxu0
      %v1635 = vadd.f32 %v483, %v1634
      %v1636 = vpop.f32.mrb[0].mxu0
      %1637 = vmatprep.mubr.bf16.mxu0 %v966
      %1638 = vmatmul.mubr.bf16.gmra.mrb[0].mxu0 %v965
      %v1639 = vpop.f32.mrb[0].mxu0
      %v1640 = vadd.f32 %v483, %v1639
      %v1641 = vpop.f32.mrb[0].mxu0
      %v1642 = vpop.f32.mrb[0].mxu0
      %v1643 = vadd.f32 %v483, %v1642
      %v1644 = vpop.f32.mrb[0].mxu0
      %1645 = vmatprep.mubr.bf16.mxu0 %v974
      %1646 = vmatmul.mubr.bf16.gmra.mrb[0].mxu0 %v973
      %v1647 = vpop.f32.mrb[0].mxu0
      %v1648 = vadd.f32 %v483, %v1647
      %v1649 = vpop.f32.mrb[0].mxu0
      %v1650 = vpop.f32.mrb[0].mxu0
      %v1651 = vadd.f32 %v483, %v1650
      %v1652 = vpop.f32.mrb[0].mxu0
      %1653 = vmatprep.mubr.bf16.mxu0 %v982
      %1654 = vmatmul.mubr.bf16.gmra.mrb[0].mxu0 %v981
      %v1655 = vpop.f32.mrb[0].mxu0
      %v1656 = vadd.f32 %v483, %v1655
      %v1657 = vpop.f32.mrb[0].mxu0
      %v1658 = vpop.f32.mrb[0].mxu0
      %v1659 = vadd.f32 %v483, %v1658
      %v1660 = vpop.f32.mrb[0].mxu0
      %1661 = vmatprep.mubr.bf16.mxu0 %v990
      %1662 = vmatmul.mubr.bf16.gmra.mrb[0].mxu0 %v989
      %v1663 = vpop.f32.mrb[0].mxu0
      %v1664 = vadd.f32 %v483, %v1663
      %v1665 = vpop.f32.mrb[0].mxu0
      %v1666 = vpop.f32.mrb[0].mxu0
      %v1667 = vadd.f32 %v483, %v1666
      %v1668 = vpop.f32.mrb[0].mxu0
      %1669 = vdwg.mxu0
      %1670 = vmatprep.subr.bf16.mxu0 0
      %1671 = vmatpush1.bf16.msra.mxu0 %v1397
      %1672 = vmatprep.subr.bf16.mxu0 0
      %1673 = vmatpush1.bf16.msra.mxu0 %v1398
      %1674 = vmatprep.subr.bf16.mxu0 0
      %1675 = vmatpush1.bf16.msra.mxu0 %v1399
      %1676 = vmatprep.subr.bf16.mxu0 0
      %1677 = vmatpush1.bf16.msra.mxu0 %v1400
      %1678 = vmatprep.subr.bf16.mxu0 0
      %1679 = vmatpush1.bf16.msra.mxu0 %v1401
      %1680 = vmatprep.subr.bf16.mxu0 0
      %1681 = vmatpush1.bf16.msra.mxu0 %v1402
      %1682 = vmatprep.subr.bf16.mxu0 0
      %1683 = vmatpush1.bf16.msra.mxu0 %v1403
      %1684 = vmatprep.subr.bf16.mxu0 0
      %1685 = vmatpush1.bf16.msra.mxu0 %v1404
      %1686 = vmatprep.subr.bf16.mxu0 0
      %1687 = vmatpush1.bf16.msra.mxu0 %v1405
      %1688 = vmatprep.subr.bf16.mxu0 0
      %1689 = vmatpush1.bf16.msra.mxu0 %v1406
      %1690 = vmatprep.subr.bf16.mxu0 0
      %1691 = vmatpush1.bf16.msra.mxu0 %v1407
      %1692 = vmatprep.subr.bf16.mxu0 0
      %1693 = vmatpush1.bf16.msra.mxu0 %v1408
      %1694 = vmatprep.subr.bf16.mxu0 0
      %1695 = vmatpush1.bf16.msra.mxu0 %v1409
      %1696 = vmatprep.subr.bf16.mxu0 0
      %1697 = vmatpush1.bf16.msra.mxu0 %v1410
      %1698 = vmatprep.subr.bf16.mxu0 0
      %1699 = vmatpush1.bf16.msra.mxu0 %v1411
      %1700 = vmatprep.subr.bf16.mxu0 0
      %1701 = vmatpush1.bf16.msra.mxu0 %v1412
      %1702 = vmatprep.mubr.bf16.mxu0 %v872
      %1703 = vmatmul.mubr.bf16.gmra.mrb[0].mxu0 %v871
      %v1704 = vpop.f32.mrb[0].mxu0
      %v1705 = vadd.f32 %v1544, %v1704
      %v1706 = vpop.f32.mrb[0].mxu0
      %v1707 = vpop.f32.mrb[0].mxu0
      %v1708 = vadd.f32 %v1547, %v1707
      %v1709 = vpop.f32.mrb[0].mxu0
      %1710 = vmatprep.mubr.bf16.mxu0 %v880
      %1711 = vmatmul.mubr.bf16.gmra.mrb[0].mxu0 %v879
      %v1712 = vpop.f32.mrb[0].mxu0
      %v1713 = vadd.f32 %v1552, %v1712
      %v1714 = vpop.f32.mrb[0].mxu0
      %v1715 = vpop.f32.mrb[0].mxu0
      %v1716 = vadd.f32 %v1555, %v1715
      %v1717 = vpop.f32.mrb[0].mxu0
      %1718 = vmatprep.mubr.bf16.mxu0 %v888
      %1719 = vmatmul.mubr.bf16.gmra.mrb[0].mxu0 %v887
      %v1720 = vpop.f32.mrb[0].mxu0
      %v1721 = vadd.f32 %v1560, %v1720
      %v1722 = vpop.f32.mrb[0].mxu0
      %v1723 = vpop.f32.mrb[0].mxu0
      %v1724 = vadd.f32 %v1563, %v1723
      %v1725 = vpop.f32.mrb[0].mxu0
      %1726 = vmatprep.mubr.bf16.mxu0 %v896
      %1727 = vmatmul.mubr.bf16.gmra.mrb[0].mxu0 %v895
      %v1728 = vpop.f32.mrb[0].mxu0
      %v1729 = vadd.f32 %v1568, %v1728
      %v1730 = vpop.f32.mrb[0].mxu0
      %v1731 = vpop.f32.mrb[0].mxu0
      %v1732 = vadd.f32 %v1571, %v1731
      %v1733 = vpop.f32.mrb[0].mxu0
      %1734 = vmatprep.mubr.bf16.mxu0 %v904
      %1735 = vmatmul.mubr.bf16.gmra.mrb[0].mxu0 %v903
      %v1736 = vpop.f32.mrb[0].mxu0
      %v1737 = vadd.f32 %v1576, %v1736
      %v1738 = vpop.f32.mrb[0].mxu0
      %v1739 = vpop.f32.mrb[0].mxu0
      %v1740 = vadd.f32 %v1579, %v1739
      %v1741 = vpop.f32.mrb[0].mxu0
      %1742 = vmatprep.mubr.bf16.mxu0 %v912
      %1743 = vmatmul.mubr.bf16.gmra.mrb[0].mxu0 %v911
      %v1744 = vpop.f32.mrb[0].mxu0
      %v1745 = vadd.f32 %v1584, %v1744
      %v1746 = vpop.f32.mrb[0].mxu0
      %v1747 = vpop.f32.mrb[0].mxu0
      %v1748 = vadd.f32 %v1587, %v1747
      %v1749 = vpop.f32.mrb[0].mxu0
      %1750 = vmatprep.mubr.bf16.mxu0 %v920
      %1751 = vmatmul.mubr.bf16.gmra.mrb[0].mxu0 %v919
      %v1752 = vpop.f32.mrb[0].mxu0
      %v1753 = vadd.f32 %v1592, %v1752
      %v1754 = vpop.f32.mrb[0].mxu0
      %v1755 = vpop.f32.mrb[0].mxu0
      %v1756 = vadd.f32 %v1595, %v1755
      %v1757 = vpop.f32.mrb[0].mxu0
      %1758 = vmatprep.mubr.bf16.mxu0 %v928
      %1759 = vmatmul.mubr.bf16.gmra.mrb[0].mxu0 %v927
      %v1760 = vpop.f32.mrb[0].mxu0
      %v1761 = vadd.f32 %v1600, %v1760
      %v1762 = vpop.f32.mrb[0].mxu0
      %v1763 = vpop.f32.mrb[0].mxu0
      %v1764 = vadd.f32 %v1603, %v1763
      %v1765 = vpop.f32.mrb[0].mxu0
      %1766 = vmatprep.mubr.bf16.mxu0 %v936
      %1767 = vmatmul.mubr.bf16.gmra.mrb[0].mxu0 %v935
      %v1768 = vpop.f32.mrb[0].mxu0
      %v1769 = vadd.f32 %v1608, %v1768
      %v1770 = vpop.f32.mrb[0].mxu0
      %v1771 = vpop.f32.mrb[0].mxu0
      %v1772 = vadd.f32 %v1611, %v1771
      %v1773 = vpop.f32.mrb[0].mxu0
      %1774 = vmatprep.mubr.bf16.mxu0 %v944
      %1775 = vmatmul.mubr.bf16.gmra.mrb[0].mxu0 %v943
      %v1776 = vpop.f32.mrb[0].mxu0
      %v1777 = vadd.f32 %v1616, %v1776
      %v1778 = vpop.f32.mrb[0].mxu0
      %v1779 = vpop.f32.mrb[0].mxu0
      %v1780 = vadd.f32 %v1619, %v1779
      %v1781 = vpop.f32.mrb[0].mxu0
      %1782 = vmatprep.mubr.bf16.mxu0 %v952
      %1783 = vmatmul.mubr.bf16.gmra.mrb[0].mxu0 %v951
      %v1784 = vpop.f32.mrb[0].mxu0
      %v1785 = vadd.f32 %v1624, %v1784
      %v1786 = vpop.f32.mrb[0].mxu0
      %v1787 = vpop.f32.mrb[0].mxu0
      %v1788 = vadd.f32 %v1627, %v1787
      %v1789 = vpop.f32.mrb[0].mxu0
      %1790 = vmatprep.mubr.bf16.mxu0 %v960
      %1791 = vmatmul.mubr.bf16.gmra.mrb[0].mxu0 %v959
      %v1792 = vpop.f32.mrb[0].mxu0
      %v1793 = vadd.f32 %v1632, %v1792
      %v1794 = vpop.f32.mrb[0].mxu0
      %v1795 = vpop.f32.mrb[0].mxu0
      %v1796 = vadd.f32 %v1635, %v1795
      %v1797 = vpop.f32.mrb[0].mxu0
      %1798 = vmatprep.mubr.bf16.mxu0 %v968
      %1799 = vmatmul.mubr.bf16.gmra.mrb[0].mxu0 %v967
      %v1800 = vpop.f32.mrb[0].mxu0
      %v1801 = vadd.f32 %v1640, %v1800
      %v1802 = vpop.f32.mrb[0].mxu0
      %v1803 = vpop.f32.mrb[0].mxu0
      %v1804 = vadd.f32 %v1643, %v1803
      %v1805 = vpop.f32.mrb[0].mxu0
      %1806 = vmatprep.mubr.bf16.mxu0 %v976
      %1807 = vmatmul.mubr.bf16.gmra.mrb[0].mxu0 %v975
      %v1808 = vpop.f32.mrb[0].mxu0
      %v1809 = vadd.f32 %v1648, %v1808
      %v1810 = vpop.f32.mrb[0].mxu0
      %v1811 = vpop.f32.mrb[0].mxu0
      %v1812 = vadd.f32 %v1651, %v1811
      %v1813 = vpop.f32.mrb[0].mxu0
      %1814 = vmatprep.mubr.bf16.mxu0 %v984
      %1815 = vmatmul.mubr.bf16.gmra.mrb[0].mxu0 %v983
      %v1816 = vpop.f32.mrb[0].mxu0
      %v1817 = vadd.f32 %v1656, %v1816
      %v1818 = vpop.f32.mrb[0].mxu0
      %v1819 = vpop.f32.mrb[0].mxu0
      %v1820 = vadd.f32 %v1659, %v1819
      %v1821 = vpop.f32.mrb[0].mxu0
      %1822 = vmatprep.mubr.bf16.mxu0 %v992
      %1823 = vmatmul.mubr.bf16.gmra.mrb[0].mxu0 %v991
      %v1824 = vpop.f32.mrb[0].mxu0
      %v1825 = vadd.f32 %v1664, %v1824
      %v1826 = vpop.f32.mrb[0].mxu0
      %v1827 = vpop.f32.mrb[0].mxu0
      %v1828 = vadd.f32 %v1667, %v1827
      %v1829 = vpop.f32.mrb[0].mxu0
      %1830 = vdwg.mxu0
      %1831 = vmatprep.subr.bf16.mxu0 0
      %1832 = vmatpush1.bf16.msra.mxu0 %v1413
      %1833 = vmatprep.subr.bf16.mxu0 0
      %1834 = vmatpush1.bf16.msra.mxu0 %v1414
      %1835 = vmatprep.subr.bf16.mxu0 0
      %1836 = vmatpush1.bf16.msra.mxu0 %v1415
      %1837 = vmatprep.subr.bf16.mxu0 0
      %1838 = vmatpush1.bf16.msra.mxu0 %v1416
      %1839 = vmatprep.subr.bf16.mxu0 0
      %1840 = vmatpush1.bf16.msra.mxu0 %v1417
      %1841 = vmatprep.subr.bf16.mxu0 0
      %1842 = vmatpush1.bf16.msra.mxu0 %v1418
      %1843 = vmatprep.subr.bf16.mxu0 0
      %1844 = vmatpush1.bf16.msra.mxu0 %v1419
      %1845 = vmatprep.subr.bf16.mxu0 0
      %1846 = vmatpush1.bf16.msra.mxu0 %v1420
      %1847 = vmatprep.subr.bf16.mxu0 0
      %1848 = vmatpush1.bf16.msra.mxu0 %v1421
      %1849 = vmatprep.subr.bf16.mxu0 0
      %1850 = vmatpush1.bf16.msra.mxu0 %v1422
      %1851 = vmatprep.subr.bf16.mxu0 0
      %1852 = vmatpush1.bf16.msra.mxu0 %v1423
      %1853 = vmatprep.subr.bf16.mxu0 0
      %1854 = vmatpush1.bf16.msra.mxu0 %v1424
      %1855 = vmatprep.subr.bf16.mxu0 0
      %1856 = vmatpush1.bf16.msra.mxu0 %v1425
      %1857 = vmatprep.subr.bf16.mxu0 0
      %1858 = vmatpush1.bf16.msra.mxu0 %v1426
      %1859 = vmatprep.subr.bf16.mxu0 0
      %1860 = vmatpush1.bf16.msra.mxu0 %v1427
      %1861 = vmatprep.subr.bf16.mxu0 0
      %1862 = vmatpush1.bf16.msra.mxu0 %v1428
      %1863 = vmatprep.mubr.bf16.mxu0 %v874
      %1864 = vmatmul.mubr.bf16.gmra.mrb[0].mxu0 %v873
      %v1865 = vpop.f32.mrb[0].mxu0
      %v1866 = vadd.f32 %v1705, %v1865
      %v1867 = vpop.f32.mrb[0].mxu0
      %v1868 = vpop.f32.mrb[0].mxu0
      %v1869 = vadd.f32 %v1708, %v1868
      %v1870 = vpop.f32.mrb[0].mxu0
      %1871 = vmatprep.mubr.bf16.mxu0 %v882
      %1872 = vmatmul.mubr.bf16.gmra.mrb[0].mxu0 %v881
      %v1873 = vpop.f32.mrb[0].mxu0
      %v1874 = vadd.f32 %v1713, %v1873
      %v1875 = vpop.f32.mrb[0].mxu0
      %v1876 = vpop.f32.mrb[0].mxu0
      %v1877 = vadd.f32 %v1716, %v1876
      %v1878 = vpop.f32.mrb[0].mxu0
      %1879 = vmatprep.mubr.bf16.mxu0 %v890
      %1880 = vmatmul.mubr.bf16.gmra.mrb[0].mxu0 %v889
      %v1881 = vpop.f32.mrb[0].mxu0
      %v1882 = vadd.f32 %v1721, %v1881
      %v1883 = vpop.f32.mrb[0].mxu0
      %v1884 = vpop.f32.mrb[0].mxu0
      %v1885 = vadd.f32 %v1724, %v1884
      %v1886 = vpop.f32.mrb[0].mxu0
      %1887 = vmatprep.mubr.bf16.mxu0 %v898
      %1888 = vmatmul.mubr.bf16.gmra.mrb[0].mxu0 %v897
      %v1889 = vpop.f32.mrb[0].mxu0
      %v1890 = vadd.f32 %v1729, %v1889
      %v1891 = vpop.f32.mrb[0].mxu0
      %v1892 = vpop.f32.mrb[0].mxu0
      %v1893 = vadd.f32 %v1732, %v1892
      %v1894 = vpop.f32.mrb[0].mxu0
      %1895 = vmatprep.mubr.bf16.mxu0 %v906
      %1896 = vmatmul.mubr.bf16.gmra.mrb[0].mxu0 %v905
      %v1897 = vpop.f32.mrb[0].mxu0
      %v1898 = vadd.f32 %v1737, %v1897
      %v1899 = vpop.f32.mrb[0].mxu0
      %v1900 = vpop.f32.mrb[0].mxu0
      %v1901 = vadd.f32 %v1740, %v1900
      %v1902 = vpop.f32.mrb[0].mxu0
      %1903 = vmatprep.mubr.bf16.mxu0 %v914
      %1904 = vmatmul.mubr.bf16.gmra.mrb[0].mxu0 %v913
      %v1905 = vpop.f32.mrb[0].mxu0
      %v1906 = vadd.f32 %v1745, %v1905
      %v1907 = vpop.f32.mrb[0].mxu0
      %v1908 = vpop.f32.mrb[0].mxu0
      %v1909 = vadd.f32 %v1748, %v1908
      %v1910 = vpop.f32.mrb[0].mxu0
      %1911 = vmatprep.mubr.bf16.mxu0 %v922
      %1912 = vmatmul.mubr.bf16.gmra.mrb[0].mxu0 %v921
      %v1913 = vpop.f32.mrb[0].mxu0
      %v1914 = vadd.f32 %v1753, %v1913
      %v1915 = vpop.f32.mrb[0].mxu0
      %v1916 = vpop.f32.mrb[0].mxu0
      %v1917 = vadd.f32 %v1756, %v1916
      %v1918 = vpop.f32.mrb[0].mxu0
      %1919 = vmatprep.mubr.bf16.mxu0 %v930
      %1920 = vmatmul.mubr.bf16.gmra.mrb[0].mxu0 %v929
      %v1921 = vpop.f32.mrb[0].mxu0
      %v1922 = vadd.f32 %v1761, %v1921
      %v1923 = vpop.f32.mrb[0].mxu0
      %v1924 = vpop.f32.mrb[0].mxu0
      %v1925 = vadd.f32 %v1764, %v1924
      %v1926 = vpop.f32.mrb[0].mxu0
      %1927 = vmatprep.mubr.bf16.mxu0 %v938
      %1928 = vmatmul.mubr.bf16.gmra.mrb[0].mxu0 %v937
      %v1929 = vpop.f32.mrb[0].mxu0
      %v1930 = vadd.f32 %v1769, %v1929
      %v1931 = vpop.f32.mrb[0].mxu0
      %v1932 = vpop.f32.mrb[0].mxu0
      %v1933 = vadd.f32 %v1772, %v1932
      %v1934 = vpop.f32.mrb[0].mxu0
      %1935 = vmatprep.mubr.bf16.mxu0 %v946
      %1936 = vmatmul.mubr.bf16.gmra.mrb[0].mxu0 %v945
      %v1937 = vpop.f32.mrb[0].mxu0
      %v1938 = vadd.f32 %v1777, %v1937
      %v1939 = vpop.f32.mrb[0].mxu0
      %v1940 = vpop.f32.mrb[0].mxu0
      %v1941 = vadd.f32 %v1780, %v1940
      %v1942 = vpop.f32.mrb[0].mxu0
      %1943 = vmatprep.mubr.bf16.mxu0 %v954
      %1944 = vmatmul.mubr.bf16.gmra.mrb[0].mxu0 %v953
      %v1945 = vpop.f32.mrb[0].mxu0
      %v1946 = vadd.f32 %v1785, %v1945
      %v1947 = vpop.f32.mrb[0].mxu0
      %v1948 = vpop.f32.mrb[0].mxu0
      %v1949 = vadd.f32 %v1788, %v1948
      %v1950 = vpop.f32.mrb[0].mxu0
      %1951 = vmatprep.mubr.bf16.mxu0 %v962
      %1952 = vmatmul.mubr.bf16.gmra.mrb[0].mxu0 %v961
      %v1953 = vpop.f32.mrb[0].mxu0
      %v1954 = vadd.f32 %v1793, %v1953
      %v1955 = vpop.f32.mrb[0].mxu0
      %v1956 = vpop.f32.mrb[0].mxu0
      %v1957 = vadd.f32 %v1796, %v1956
      %v1958 = vpop.f32.mrb[0].mxu0
      %1959 = vmatprep.mubr.bf16.mxu0 %v970
      %1960 = vmatmul.mubr.bf16.gmra.mrb[0].mxu0 %v969
      %v1961 = vpop.f32.mrb[0].mxu0
      %v1962 = vadd.f32 %v1801, %v1961
      %v1963 = vpop.f32.mrb[0].mxu0
      %v1964 = vpop.f32.mrb[0].mxu0
      %v1965 = vadd.f32 %v1804, %v1964
      %v1966 = vpop.f32.mrb[0].mxu0
      %1967 = vmatprep.mubr.bf16.mxu0 %v978
      %1968 = vmatmul.mubr.bf16.gmra.mrb[0].mxu0 %v977
      %v1969 = vpop.f32.mrb[0].mxu0
      %v1970 = vadd.f32 %v1809, %v1969
      %v1971 = vpop.f32.mrb[0].mxu0
      %v1972 = vpop.f32.mrb[0].mxu0
      %v1973 = vadd.f32 %v1812, %v1972
      %v1974 = vpop.f32.mrb[0].mxu0
      %1975 = vmatprep.mubr.bf16.mxu0 %v986
      %1976 = vmatmul.mubr.bf16.gmra.mrb[0].mxu0 %v985
      %v1977 = vpop.f32.mrb[0].mxu0
      %v1978 = vadd.f32 %v1817, %v1977
      %v1979 = vpop.f32.mrb[0].mxu0
      %v1980 = vpop.f32.mrb[0].mxu0
      %v1981 = vadd.f32 %v1820, %v1980
      %v1982 = vpop.f32.mrb[0].mxu0
      %1983 = vmatprep.mubr.bf16.mxu0 %v994
      %1984 = vmatmul.mubr.bf16.gmra.mrb[0].mxu0 %v993
      %v1985 = vpop.f32.mrb[0].mxu0
      %v1986 = vadd.f32 %v1825, %v1985
      %v1987 = vpop.f32.mrb[0].mxu0
      %v1988 = vpop.f32.mrb[0].mxu0
      %v1989 = vadd.f32 %v1828, %v1988
      %v1990 = vpop.f32.mrb[0].mxu0
      %1991 = vdwg.mxu0
      %1992 = vmatprep.subr.bf16.mxu0 0
      %1993 = vmatpush1.bf16.msra.mxu0 %v1429
      %1994 = vmatprep.subr.bf16.mxu0 0
      %1995 = vmatpush1.bf16.msra.mxu0 %v1430
      %1996 = vmatprep.subr.bf16.mxu0 0
      %1997 = vmatpush1.bf16.msra.mxu0 %v1431
      %1998 = vmatprep.subr.bf16.mxu0 0
      %1999 = vmatpush1.bf16.msra.mxu0 %v1432
      %2000 = vmatprep.subr.bf16.mxu0 0
      %2001 = vmatpush1.bf16.msra.mxu0 %v1433
      %2002 = vmatprep.subr.bf16.mxu0 0
      %2003 = vmatpush1.bf16.msra.mxu0 %v1434
      %2004 = vmatprep.subr.bf16.mxu0 0
      %2005 = vmatpush1.bf16.msra.mxu0 %v1435
      %2006 = vmatprep.subr.bf16.mxu0 0
      %2007 = vmatpush1.bf16.msra.mxu0 %v1436
      %2008 = vmatprep.subr.bf16.mxu0 0
      %2009 = vmatpush1.bf16.msra.mxu0 %v1437
      %2010 = vmatprep.subr.bf16.mxu0 0
      %2011 = vmatpush1.bf16.msra.mxu0 %v1438
      %2012 = vmatprep.subr.bf16.mxu0 0
      %2013 = vmatpush1.bf16.msra.mxu0 %v1439
      %2014 = vmatprep.subr.bf16.mxu0 0
      %2015 = vmatpush1.bf16.msra.mxu0 %v1440
      %2016 = vmatprep.subr.bf16.mxu0 0
      %2017 = vmatpush1.bf16.msra.mxu0 %v1441
      %2018 = vmatprep.subr.bf16.mxu0 0
      %2019 = vmatpush1.bf16.msra.mxu0 %v1442
      %2020 = vmatprep.subr.bf16.mxu0 0
      %2021 = vmatpush1.bf16.msra.mxu0 %v1443
      %2022 = vmatprep.subr.bf16.mxu0 0
      %2023 = vmatpush1.bf16.msra.mxu0 %v1444
      %2024 = vmatprep.mubr.bf16.mxu0 %v876
      %2025 = vmatmul.mubr.bf16.gmra.mrb[0].mxu0 %v875
      %v2026 = vpop.f32.mrb[0].mxu0
      %v2027 = vadd.f32 %v1866, %v2026
      %v2028 = vpop.f32.mrb[0].mxu0
      %v2029 = vpop.f32.mrb[0].mxu0
      %v2030 = vadd.f32 %v1869, %v2029
      %v2031 = vpop.f32.mrb[0].mxu0
      %2032 = vmatprep.mubr.bf16.mxu0 %v884
      %2033 = vmatmul.mubr.bf16.gmra.mrb[0].mxu0 %v883
      %v2034 = vpop.f32.mrb[0].mxu0
      %v2035 = vadd.f32 %v1874, %v2034
      %v2036 = vpop.f32.mrb[0].mxu0
      %v2037 = vpop.f32.mrb[0].mxu0
      %v2038 = vadd.f32 %v1877, %v2037
      %v2039 = vpop.f32.mrb[0].mxu0
      %2040 = vmatprep.mubr.bf16.mxu0 %v892
      %2041 = vmatmul.mubr.bf16.gmra.mrb[0].mxu0 %v891
      %v2042 = vpop.f32.mrb[0].mxu0
      %v2043 = vadd.f32 %v1882, %v2042
      %v2044 = vpop.f32.mrb[0].mxu0
      %v2045 = vpop.f32.mrb[0].mxu0
      %v2046 = vadd.f32 %v1885, %v2045
      %v2047 = vpop.f32.mrb[0].mxu0
      %2048 = vmatprep.mubr.bf16.mxu0 %v900
      %2049 = vmatmul.mubr.bf16.gmra.mrb[0].mxu0 %v899
      %v2050 = vpop.f32.mrb[0].mxu0
      %v2051 = vadd.f32 %v1890, %v2050
      %v2052 = vpop.f32.mrb[0].mxu0
      %v2053 = vpop.f32.mrb[0].mxu0
      %v2054 = vadd.f32 %v1893, %v2053
      %v2055 = vpop.f32.mrb[0].mxu0
      %2056 = vmatprep.mubr.bf16.mxu0 %v908
      %2057 = vmatmul.mubr.bf16.gmra.mrb[0].mxu0 %v907
      %v2058 = vpop.f32.mrb[0].mxu0
      %v2059 = vadd.f32 %v1898, %v2058
      %v2060 = vpop.f32.mrb[0].mxu0
      %v2061 = vpop.f32.mrb[0].mxu0
      %v2062 = vadd.f32 %v1901, %v2061
      %v2063 = vpop.f32.mrb[0].mxu0
      %2064 = vmatprep.mubr.bf16.mxu0 %v916
      %2065 = vmatmul.mubr.bf16.gmra.mrb[0].mxu0 %v915
      %v2066 = vpop.f32.mrb[0].mxu0
      %v2067 = vadd.f32 %v1906, %v2066
      %v2068 = vpop.f32.mrb[0].mxu0
      %v2069 = vpop.f32.mrb[0].mxu0
      %v2070 = vadd.f32 %v1909, %v2069
      %v2071 = vpop.f32.mrb[0].mxu0
      %2072 = vmatprep.mubr.bf16.mxu0 %v924
      %2073 = vmatmul.mubr.bf16.gmra.mrb[0].mxu0 %v923
      %v2074 = vpop.f32.mrb[0].mxu0
      %v2075 = vadd.f32 %v1914, %v2074
      %v2076 = vpop.f32.mrb[0].mxu0
      %v2077 = vpop.f32.mrb[0].mxu0
      %v2078 = vadd.f32 %v1917, %v2077
      %v2079 = vpop.f32.mrb[0].mxu0
      %2080 = vmatprep.mubr.bf16.mxu0 %v932
      %2081 = vmatmul.mubr.bf16.gmra.mrb[0].mxu0 %v931
      %v2082 = vpop.f32.mrb[0].mxu0
      %v2083 = vadd.f32 %v1922, %v2082
      %v2084 = vpop.f32.mrb[0].mxu0
      %v2085 = vpop.f32.mrb[0].mxu0
      %v2086 = vadd.f32 %v1925, %v2085
      %v2087 = vpop.f32.mrb[0].mxu0
      %2088 = vmatprep.mubr.bf16.mxu0 %v940
      %2089 = vmatmul.mubr.bf16.gmra.mrb[0].mxu0 %v939
      %v2090 = vpop.f32.mrb[0].mxu0
      %v2091 = vadd.f32 %v1930, %v2090
      %v2092 = vpop.f32.mrb[0].mxu0
      %v2093 = vpop.f32.mrb[0].mxu0
      %v2094 = vadd.f32 %v1933, %v2093
      %v2095 = vpop.f32.mrb[0].mxu0
      %2096 = vmatprep.mubr.bf16.mxu0 %v948
      %2097 = vmatmul.mubr.bf16.gmra.mrb[0].mxu0 %v947
      %v2098 = vpop.f32.mrb[0].mxu0
      %v2099 = vadd.f32 %v1938, %v2098
      %v2100 = vpop.f32.mrb[0].mxu0
      %v2101 = vpop.f32.mrb[0].mxu0
      %v2102 = vadd.f32 %v1941, %v2101
      %v2103 = vpop.f32.mrb[0].mxu0
      %2104 = vmatprep.mubr.bf16.mxu0 %v956
      %2105 = vmatmul.mubr.bf16.gmra.mrb[0].mxu0 %v955
      %v2106 = vpop.f32.mrb[0].mxu0
      %v2107 = vadd.f32 %v1946, %v2106
      %v2108 = vpop.f32.mrb[0].mxu0
      %v2109 = vpop.f32.mrb[0].mxu0
      %v2110 = vadd.f32 %v1949, %v2109
      %v2111 = vpop.f32.mrb[0].mxu0
      %2112 = vmatprep.mubr.bf16.mxu0 %v964
      %2113 = vmatmul.mubr.bf16.gmra.mrb[0].mxu0 %v963
      %v2114 = vpop.f32.mrb[0].mxu0
      %v2115 = vadd.f32 %v1954, %v2114
      %v2116 = vpop.f32.mrb[0].mxu0
      %v2117 = vpop.f32.mrb[0].mxu0
      %v2118 = vadd.f32 %v1957, %v2117
      %v2119 = vpop.f32.mrb[0].mxu0
      %2120 = vmatprep.mubr.bf16.mxu0 %v972
      %2121 = vmatmul.mubr.bf16.gmra.mrb[0].mxu0 %v971
      %v2122 = vpop.f32.mrb[0].mxu0
      %v2123 = vadd.f32 %v1962, %v2122
      %v2124 = vpop.f32.mrb[0].mxu0
      %v2125 = vpop.f32.mrb[0].mxu0
      %v2126 = vadd.f32 %v1965, %v2125
      %v2127 = vpop.f32.mrb[0].mxu0
      %2128 = vmatprep.mubr.bf16.mxu0 %v980
      %2129 = vmatmul.mubr.bf16.gmra.mrb[0].mxu0 %v979
      %v2130 = vpop.f32.mrb[0].mxu0
      %v2131 = vadd.f32 %v1970, %v2130
      %v2132 = vpop.f32.mrb[0].mxu0
      %v2133 = vpop.f32.mrb[0].mxu0
      %v2134 = vadd.f32 %v1973, %v2133
      %v2135 = vpop.f32.mrb[0].mxu0
      %2136 = vmatprep.mubr.bf16.mxu0 %v988
      %2137 = vmatmul.mubr.bf16.gmra.mrb[0].mxu0 %v987
      %v2138 = vpop.f32.mrb[0].mxu0
      %v2139 = vadd.f32 %v1978, %v2138
      %v2140 = vpop.f32.mrb[0].mxu0
      %v2141 = vpop.f32.mrb[0].mxu0
      %v2142 = vadd.f32 %v1981, %v2141
      %v2143 = vpop.f32.mrb[0].mxu0
      %2144 = vmatprep.mubr.bf16.mxu0 %v996
      %2145 = vmatmul.mubr.bf16.gmra.mrb[0].mxu0 %v995
      %v2146 = vpop.f32.mrb[0].mxu0
      %v2147 = vadd.f32 %v1986, %v2146
      %v2148 = vpop.f32.mrb[0].mxu0
      %v2149 = vpop.f32.mrb[0].mxu0
      %v2150 = vadd.f32 %v1989, %v2149
      %v2151 = vpop.f32.mrb[0].mxu0
      %2152 = vdwg.mxu0
      %v2153 = vld [vmem:[#allocation3] sm:$0x1]
      %v2154 = vadd.f32 %v2027, %v2030
      %v2155 = vadd.f32 %v2154, %v2035
      %v2156 = vadd.f32 %v2155, %v2038
      %v2157 = vadd.f32 %v2156, %v2043
      %v2158 = vadd.f32 %v2157, %v2046
      %v2159 = vadd.f32 %v2158, %v2051
      %v2160 = vadd.f32 %v2159, %v2054
      %v2161 = vadd.f32 %v2160, %v2059
      %v2162 = vadd.f32 %v2161, %v2062
      %v2163 = vadd.f32 %v2162, %v2067
      %v2164 = vadd.f32 %v2163, %v2070
      %v2165 = vadd.f32 %v2164, %v2075
      %v2166 = vadd.f32 %v2165, %v2078
      %v2167 = vadd.f32 %v2166, %v2083
      %v2168 = vadd.f32 %v2167, %v2086
      %v2169 = vadd.f32 %v2168, %v2091
      %v2170 = vadd.f32 %v2169, %v2094
      %v2171 = vadd.f32 %v2170, %v2099
      %v2172 = vadd.f32 %v2171, %v2102
      %v2173 = vadd.f32 %v2172, %v2107
      %v2174 = vadd.f32 %v2173, %v2110
      %v2175 = vadd.f32 %v2174, %v2115
      %v2176 = vadd.f32 %v2175, %v2118
      %v2177 = vadd.f32 %v2176, %v2123
      %v2178 = vadd.f32 %v2177, %v2126
      %v2179 = vadd.f32 %v2178, %v2131
      %v2180 = vadd.f32 %v2179, %v2134
      %v2181 = vadd.f32 %v2180, %v2139
      %v2182 = vadd.f32 %v2181, %v2142
      %v2183 = vadd.f32 %v2182, %v2147
      %v2184 = vadd.f32 %v2183, %v2150
      %v2185 = vrot.slane %v2184, 4
      %v2186 = vadd.f32 %v2184, %v2185
      %v2187 = vrot.slane %v2186, 2
      %v2188 = vadd.f32 %v2186, %v2187
      %v2189 = vrot.slane %v2188, 1
      %v2190 = vadd.f32 %v2188, %v2189
      %v2191 = vadd.f32 %v2153, %v2190
      %2192 = vst [vmem:[#allocation3] sm:$0x1] %v2191
      %v2193 = vld [vmem:[#allocation4] sm:$0x1]
      %v2194 = vmul.f32 %v2027, %v2027
      %v2195 = vmul.f32 %v2030, %v2030
      %v2196 = vmul.f32 %v2035, %v2035
      %v2197 = vmul.f32 %v2038, %v2038
      %v2198 = vmul.f32 %v2043, %v2043
      %v2199 = vmul.f32 %v2046, %v2046
      %v2200 = vmul.f32 %v2051, %v2051
      %v2201 = vmul.f32 %v2054, %v2054
      %v2202 = vmul.f32 %v2059, %v2059
      %v2203 = vmul.f32 %v2062, %v2062
      %v2204 = vmul.f32 %v2067, %v2067
      %v2205 = vmul.f32 %v2070, %v2070
      %v2206 = vmul.f32 %v2075, %v2075
      %v2207 = vmul.f32 %v2078, %v2078
      %v2208 = vmul.f32 %v2083, %v2083
      %v2209 = vmul.f32 %v2086, %v2086
      %v2210 = vmul.f32 %v2091, %v2091
      %v2211 = vmul.f32 %v2094, %v2094
      %v2212 = vmul.f32 %v2099, %v2099
      %v2213 = vmul.f32 %v2102, %v2102
      %v2214 = vmul.f32 %v2107, %v2107
      %v2215 = vmul.f32 %v2110, %v2110
      %v2216 = vmul.f32 %v2115, %v2115
      %v2217 = vmul.f32 %v2118, %v2118
      %v2218 = vmul.f32 %v2123, %v2123
      %v2219 = vmul.f32 %v2126, %v2126
      %v2220 = vmul.f32 %v2131, %v2131
      %v2221 = vmul.f32 %v2134, %v2134
      %v2222 = vmul.f32 %v2139, %v2139
      %v2223 = vmul.f32 %v2142, %v2142
      %v2224 = vmul.f32 %v2147, %v2147
      %v2225 = vmul.f32 %v2150, %v2150
      %v2226 = vadd.f32 %v2194, %v2195
      %v2227 = vadd.f32 %v2226, %v2196
      %v2228 = vadd.f32 %v2227, %v2197
      %v2229 = vadd.f32 %v2228, %v2198
      %v2230 = vadd.f32 %v2229, %v2199
      %v2231 = vadd.f32 %v2230, %v2200
      %v2232 = vadd.f32 %v2231, %v2201
      %v2233 = vadd.f32 %v2232, %v2202
      %v2234 = vadd.f32 %v2233, %v2203
      %v2235 = vadd.f32 %v2234, %v2204
      %v2236 = vadd.f32 %v2235, %v2205
      %v2237 = vadd.f32 %v2236, %v2206
      %v2238 = vadd.f32 %v2237, %v2207
      %v2239 = vadd.f32 %v2238, %v2208
      %v2240 = vadd.f32 %v2239, %v2209
      %v2241 = vadd.f32 %v2240, %v2210
      %v2242 = vadd.f32 %v2241, %v2211
      %v2243 = vadd.f32 %v2242, %v2212
      %v2244 = vadd.f32 %v2243, %v2213
      %v2245 = vadd.f32 %v2244, %v2214
      %v2246 = vadd.f32 %v2245, %v2215
      %v2247 = vadd.f32 %v2246, %v2216
      %v2248 = vadd.f32 %v2247, %v2217
      %v2249 = vadd.f32 %v2248, %v2218
      %v2250 = vadd.f32 %v2249, %v2219
      %v2251 = vadd.f32 %v2250, %v2220
      %v2252 = vadd.f32 %v2251, %v2221
      %v2253 = vadd.f32 %v2252, %v2222
      %v2254 = vadd.f32 %v2253, %v2223
      %v2255 = vadd.f32 %v2254, %v2224
      %v2256 = vadd.f32 %v2255, %v2225
      %v2257 = vrot.slane %v2256, 4
      %v2258 = vadd.f32 %v2256, %v2257
      %v2259 = vrot.slane %v2258, 2
      %v2260 = vadd.f32 %v2258, %v2259
      %v2261 = vrot.slane %v2260, 1
      %v2262 = vadd.f32 %v2260, %v2261
      %v2263 = vadd.f32 %v2193, %v2262
      %2264 = vst [vmem:[#allocation4] sm:$0x1] %v2263
      %s2265 = smul.u32 %s16, 256
      %s2266 = scalar_lea.vmem [#allocation2], %s2265
      %2267 = vst [vmem:[%s2266] sm:$0xff] %v2027
      %2268 = vst [vmem:[%s2266 + $0x8] sm:$0xff] %v2030
      %2269 = vst [vmem:[%s2266 + $0x10] sm:$0xff] %v2035
      %2270 = vst [vmem:[%s2266 + $0x18] sm:$0xff] %v2038
      %2271 = vst [vmem:[%s2266 + $0x20] sm:$0xff] %v2043
      %2272 = vst [vmem:[%s2266 + $0x28] sm:$0xff] %v2046
      %2273 = vst [vmem:[%s2266 + $0x30] sm:$0xff] %v2051
      %2274 = vst [vmem:[%s2266 + $0x38] sm:$0xff] %v2054
      %2275 = vst [vmem:[%s2266 + $0x40] sm:$0xff] %v2059
      %2276 = vst [vmem:[%s2266 + $0x48] sm:$0xff] %v2062
      %2277 = vst [vmem:[%s2266 + $0x50] sm:$0xff] %v2067
      %2278 = vst [vmem:[%s2266 + $0x58] sm:$0xff] %v2070
      %2279 = vst [vmem:[%s2266 + $0x60] sm:$0xff] %v2075
      %2280 = vst [vmem:[%s2266 + $0x68] sm:$0xff] %v2078
      %2281 = vst [vmem:[%s2266 + $0x70] sm:$0xff] %v2083
      %2282 = vst [vmem:[%s2266 + $0x78] sm:$0xff] %v2086
      %2283 = vst [vmem:[%s2266 + $0x80] sm:$0xff] %v2091
      %2284 = vst [vmem:[%s2266 + $0x88] sm:$0xff] %v2094
      %2285 = vst [vmem:[%s2266 + $0x90] sm:$0xff] %v2099
      %2286 = vst [vmem:[%s2266 + $0x98] sm:$0xff] %v2102
      %2287 = vst [vmem:[%s2266 + $0xa0] sm:$0xff] %v2107
      %2288 = vst [vmem:[%s2266 + $0xa8] sm:$0xff] %v2110
      %2289 = vst [vmem:[%s2266 + $0xb0] sm:$0xff] %v2115
      %2290 = vst [vmem:[%s2266 + $0xb8] sm:$0xff] %v2118
      %2291 = vst [vmem:[%s2266 + $0xc0] sm:$0xff] %v2123
      %2292 = vst [vmem:[%s2266 + $0xc8] sm:$0xff] %v2126
      %2293 = vst [vmem:[%s2266 + $0xd0] sm:$0xff] %v2131
      %2294 = vst [vmem:[%s2266 + $0xd8] sm:$0xff] %v2134
      %2295 = vst [vmem:[%s2266 + $0xe0] sm:$0xff] %v2139
      %2296 = vst [vmem:[%s2266 + $0xe8] sm:$0xff] %v2142
      %2297 = vst [vmem:[%s2266 + $0xf0] sm:$0xff] %v2147
      %2298 = vst [vmem:[%s2266 + $0xf8] sm:$0xff] %v2150
      %p2299 = scmp.eq.s32.totalorder %s16, 3
      // Predicated region
      $region45: #{discriminator_x_forward.4} parent=39 // pred_check
        %p2300 = pneg %p2299
      $region46: #{discriminator_x_forward.4} parent=39 // pred_check_branch
        %2302 = sbr.rel (%p2300) target = $region48
      $region47: #{discriminator_x_forward.4} parent=39 // pred_region
        %v2303 = vld [vmem:[#allocation3] sm:$0x1]
        %v2304 = vld [vmem:[#allocation4] sm:$0x1]
        %2305 = vrot.lane.b32.xlu0 %v2303, 64
        %v2306 = vpop.permute.xlu0 %2305
        %v2307 = vadd.f32 %v2303, %v2306
        %2308 = vrot.lane.b32.xlu0 %v2304, 64
        %v2309 = vpop.permute.xlu0 %2308
        %v2310 = vadd.f32 %v2304, %v2309
        %v2311 = vrcp.pop 2048.0
        %v2312 = vmul.f32 %v2307, %v2311
        %v2313 = vmul.f32 %v2310, %v2311
        %v2314 = vmul.f32 %v2312, %v2312
        %v2315 = vsub.f32 %v2313, %v2314
        %v2316 = vld [vmem:[%s3] sm:$0x1]
        %v2317 = vadd.f32 %v2315, 1e-05
        %v2318 = vrsqrt.pop %v2317
        %v2319 = vmul.f32 %v2316, %v2318
        %v2320 = vld [vmem:[%s4] sm:$0x1]
        %v2321 = vmul.f32 %v2312, %v2319
        %v2322 = vsub.f32 %v2320, %v2321
        loop: start=0, step=1, limit=8
        $region49: #{discriminator_x_forward.4} parent=47 // loop_pre_header
          _
        $region50: #{discriminator_x_forward.4} parent=47 // loop_header
          %s2324 = sphi 0, %s2328
          %p2325 = scmp.ge.s32.totalorder %s2324, 8
        $region51: #{discriminator_x_forward.4} parent=47 // loop_header_branch
          %2327 = sbr.rel (%p2325) target = $region55
        $region52: #{discriminator_x_forward.4} parent=47 // loop_body
          %s2329 = smul.u32 %s2324, 128
          %s2330 = scalar_lea.vmem [#allocation2], %s2329
          %v2331 = vld [vmem:[%s2330] sm:$0xff]
          %v2332 = vld [vmem:[%s2330 + $0x8] sm:$0xff]
          %v2333 = vld [vmem:[%s2330 + $0x10] sm:$0xff]
          %v2334 = vld [vmem:[%s2330 + $0x18] sm:$0xff]
          %v2335 = vld [vmem:[%s2330 + $0x20] sm:$0xff]
          %v2336 = vld [vmem:[%s2330 + $0x28] sm:$0xff]
          %v2337 = vld [vmem:[%s2330 + $0x30] sm:$0xff]
          %v2338 = vld [vmem:[%s2330 + $0x38] sm:$0xff]
          %v2339 = vld [vmem:[%s2330 + $0x40] sm:$0xff]
          %v2340 = vld [vmem:[%s2330 + $0x48] sm:$0xff]
          %v2341 = vld [vmem:[%s2330 + $0x50] sm:$0xff]
          %v2342 = vld [vmem:[%s2330 + $0x58] sm:$0xff]
          %v2343 = vld [vmem:[%s2330 + $0x60] sm:$0xff]
          %v2344 = vld [vmem:[%s2330 + $0x68] sm:$0xff]
          %v2345 = vld [vmem:[%s2330 + $0x70] sm:$0xff]
          %v2346 = vld [vmem:[%s2330 + $0x78] sm:$0xff]
          %v2348 = vlaneseq
          %v2349 = vshrl.u32 %v2348, 7
          %v2350 = vsub.s32 0, %v2349
          %v2351 = vrot.slane %v2319, %v2350
          %v2353 = vmul.f32 %v2331, %v2351
          %v2354 = vmul.f32 %v2332, %v2351
          %v2355 = vmul.f32 %v2333, %v2351
          %v2356 = vmul.f32 %v2334, %v2351
          %v2357 = vmul.f32 %v2335, %v2351
          %v2358 = vmul.f32 %v2336, %v2351
          %v2359 = vmul.f32 %v2337, %v2351
          %v2360 = vmul.f32 %v2338, %v2351
          %v2361 = vmul.f32 %v2339, %v2351
          %v2362 = vmul.f32 %v2340, %v2351
          %v2363 = vmul.f32 %v2341, %v2351
          %v2364 = vmul.f32 %v2342, %v2351
          %v2365 = vmul.f32 %v2343, %v2351
          %v2366 = vmul.f32 %v2344, %v2351
          %v2367 = vmul.f32 %v2345, %v2351
          %v2368 = vmul.f32 %v2346, %v2351
          %v2370 = vlaneseq
          %v2371 = vshrl.u32 %v2370, 7
          %v2372 = vsub.s32 0, %v2371
          %v2373 = vrot.slane %v2322, %v2372
          %v2375 = vadd.f32 %v2353, %v2373
          %v2376 = vadd.f32 %v2354, %v2373
          %v2377 = vadd.f32 %v2355, %v2373
          %v2378 = vadd.f32 %v2356, %v2373
          %v2379 = vadd.f32 %v2357, %v2373
          %v2380 = vadd.f32 %v2358, %v2373
          %v2381 = vadd.f32 %v2359, %v2373
          %v2382 = vadd.f32 %v2360, %v2373
          %v2383 = vadd.f32 %v2361, %v2373
          %v2384 = vadd.f32 %v2362, %v2373
          %v2385 = vadd.f32 %v2363, %v2373
          %v2386 = vadd.f32 %v2364, %v2373
          %v2387 = vadd.f32 %v2365, %v2373
          %v2388 = vadd.f32 %v2366, %v2373
          %v2389 = vadd.f32 %v2367, %v2373
          %v2390 = vadd.f32 %v2368, %v2373
          %vm2391 = vcmp.ge.f32.partialorder %v2375, 0.0
          %vm2392 = vcmp.ge.f32.partialorder %v2376, 0.0
          %vm2393 = vcmp.ge.f32.partialorder %v2377, 0.0
          %vm2394 = vcmp.ge.f32.partialorder %v2378, 0.0
          %vm2395 = vcmp.ge.f32.partialorder %v2379, 0.0
          %vm2396 = vcmp.ge.f32.partialorder %v2380, 0.0
          %vm2397 = vcmp.ge.f32.partialorder %v2381, 0.0
          %vm2398 = vcmp.ge.f32.partialorder %v2382, 0.0
          %vm2399 = vcmp.ge.f32.partialorder %v2383, 0.0
          %vm2400 = vcmp.ge.f32.partialorder %v2384, 0.0
          %vm2401 = vcmp.ge.f32.partialorder %v2385, 0.0
          %vm2402 = vcmp.ge.f32.partialorder %v2386, 0.0
          %vm2403 = vcmp.ge.f32.partialorder %v2387, 0.0
          %vm2404 = vcmp.ge.f32.partialorder %v2388, 0.0
          %vm2405 = vcmp.ge.f32.partialorder %v2389, 0.0
          %vm2406 = vcmp.ge.f32.partialorder %v2390, 0.0
          %v2407 = vmul.f32 %v2375, 0.2
          %v2408 = vmul.f32 %v2376, 0.2
          %v2409 = vmul.f32 %v2377, 0.2
          %v2410 = vmul.f32 %v2378, 0.2
          %v2411 = vmul.f32 %v2379, 0.2
          %v2412 = vmul.f32 %v2380, 0.2
          %v2413 = vmul.f32 %v2381, 0.2
          %v2414 = vmul.f32 %v2382, 0.2
          %v2415 = vmul.f32 %v2383, 0.2
          %v2416 = vmul.f32 %v2384, 0.2
          %v2417 = vmul.f32 %v2385, 0.2
          %v2418 = vmul.f32 %v2386, 0.2
          %v2419 = vmul.f32 %v2387, 0.2
          %v2420 = vmul.f32 %v2388, 0.2
          %v2421 = vmul.f32 %v2389, 0.2
          %v2422 = vmul.f32 %v2390, 0.2
          %v2423 = vsel %vm2391, %v2375, %v2407
          %v2424 = vsel %vm2392, %v2376, %v2408
          %v2425 = vsel %vm2393, %v2377, %v2409
          %v2426 = vsel %vm2394, %v2378, %v2410
          %v2427 = vsel %vm2395, %v2379, %v2411
          %v2428 = vsel %vm2396, %v2380, %v2412
          %v2429 = vsel %vm2397, %v2381, %v2413
          %v2430 = vsel %vm2398, %v2382, %v2414
          %v2431 = vsel %vm2399, %v2383, %v2415
          %v2432 = vsel %vm2400, %v2384, %v2416
          %v2433 = vsel %vm2401, %v2385, %v2417
          %v2434 = vsel %vm2402, %v2386, %v2418
          %v2435 = vsel %vm2403, %v2387, %v2419
          %v2436 = vsel %vm2404, %v2388, %v2420
          %v2437 = vsel %vm2405, %v2389, %v2421
          %v2438 = vsel %vm2406, %v2390, %v2422
          %v2439 = vpack.c.bf16 %v2424, %v2423
          %v2440 = vpack.c.bf16 %v2426, %v2425
          %v2441 = vpack.c.bf16 %v2428, %v2427
          %v2442 = vpack.c.bf16 %v2430, %v2429
          %v2443 = vpack.c.bf16 %v2432, %v2431
          %v2444 = vpack.c.bf16 %v2434, %v2433
          %v2445 = vpack.c.bf16 %v2436, %v2435
          %v2446 = vpack.c.bf16 %v2438, %v2437
          %v2455 = vunpack.c.l.b16 %v2439
          %v2456 = vunpack.c.h.b16 %v2439
          %v2457 = vunpack.c.l.b16 %v2440
          %v2458 = vunpack.c.h.b16 %v2440
          %v2459 = vunpack.c.l.b16 %v2441
          %v2460 = vunpack.c.h.b16 %v2441
          %v2461 = vunpack.c.l.b16 %v2442
          %v2462 = vunpack.c.h.b16 %v2442
          %v2463 = vunpack.c.l.b16 %v2443
          %v2464 = vunpack.c.h.b16 %v2443
          %v2465 = vunpack.c.l.b16 %v2444
          %v2466 = vunpack.c.h.b16 %v2444
          %v2467 = vunpack.c.l.b16 %v2445
          %v2468 = vunpack.c.h.b16 %v2445
          %v2469 = vunpack.c.l.b16 %v2446
          %v2470 = vunpack.c.h.b16 %v2446
          %v2471 = vpack.c.b16 %v2455, %v2455
          %v2472 = vpack.c.b16 %v2456, %v2456
          %v2473 = vpack.c.b16 %v2457, %v2457
          %v2474 = vpack.c.b16 %v2458, %v2458
          %v2475 = vpack.c.b16 %v2459, %v2459
          %v2476 = vpack.c.b16 %v2460, %v2460
          %v2477 = vpack.c.b16 %v2461, %v2461
          %v2478 = vpack.c.b16 %v2462, %v2462
          %v2479 = vpack.c.b16 %v2463, %v2463
          %v2480 = vpack.c.b16 %v2464, %v2464
          %v2481 = vpack.c.b16 %v2465, %v2465
          %v2482 = vpack.c.b16 %v2466, %v2466
          %v2483 = vpack.c.b16 %v2467, %v2467
          %v2484 = vpack.c.b16 %v2468, %v2468
          %v2485 = vpack.c.b16 %v2469, %v2469
          %v2486 = vpack.c.b16 %v2470, %v2470
          %s2503 = sshra.s32 %s2329, 3
          %s2504 = sand.u32 %s2329, 7
          %s2505 = smul.addr %s2503, 4
          %s2506 = scalar_lea.vmem %s5, %s2505
          %2507 = vst [vmem:[%s2506] sm:$0xf] %v2471
          %2508 = vst [vmem:[%s2506 + $0x4] sm:$0xf] %v2472
          %2509 = vst [vmem:[%s2506 + $0x8] sm:$0xf] %v2473
          %2510 = vst [vmem:[%s2506 + $0xc] sm:$0xf] %v2474
          %2511 = vst [vmem:[%s2506 + $0x10] sm:$0xf] %v2475
          %2512 = vst [vmem:[%s2506 + $0x14] sm:$0xf] %v2476
          %2513 = vst [vmem:[%s2506 + $0x18] sm:$0xf] %v2477
          %2514 = vst [vmem:[%s2506 + $0x1c] sm:$0xf] %v2478
          %2515 = vst [vmem:[%s2506 + $0x20] sm:$0xf] %v2479
          %2516 = vst [vmem:[%s2506 + $0x24] sm:$0xf] %v2480
          %2517 = vst [vmem:[%s2506 + $0x28] sm:$0xf] %v2481
          %2518 = vst [vmem:[%s2506 + $0x2c] sm:$0xf] %v2482
          %2519 = vst [vmem:[%s2506 + $0x30] sm:$0xf] %v2483
          %2520 = vst [vmem:[%s2506 + $0x34] sm:$0xf] %v2484
          %2521 = vst [vmem:[%s2506 + $0x38] sm:$0xf] %v2485
          %2522 = vst [vmem:[%s2506 + $0x3c] sm:$0xf] %v2486
        $region53: #{discriminator_x_forward.4} parent=47 // loop_footer
          %s2328 = sadd.s32 1, %s2324
        $region54: #{discriminator_x_forward.4} parent=47 // loop_footer_branch
          %2323 = sbr.rel target = $region50
        $region55: #{discriminator_x_forward.4} parent=47 // loop_exit
          _
      $region48: #{discriminator_x_forward.4} parent=39 // pred_fallthru
        _
      // Predicated region
      $region56: #{discriminator_x_forward.4} parent=39 // pred_check
        %p2523 = pneg %p139
      $region57: #{discriminator_x_forward.4} parent=39 // pred_check_branch
        %2525 = sbr.rel (%p2523) target = $region59
      $region58: #{discriminator_x_forward.4} parent=39 // pred_region
        _
      $region59: #{discriminator_x_forward.4} parent=39 // pred_fallthru
        _
      // Predicated region
      $region60: #{discriminator_x_forward.4} parent=39 // pred_check
        %p2526 = pneg %p139
      $region61: #{discriminator_x_forward.4} parent=39 // pred_check_branch
        %2528 = sbr.rel (%p2526) target = $region63
      $region62: #{discriminator_x_forward.4} parent=39 // pred_region
        _
      $region63: #{discriminator_x_forward.4} parent=39 // pred_fallthru
        _
    $region40: #{discriminator_x_forward.4} parent=5 // pred_fallthru
      _
    %p2529 = scmp.le.s32.totalorder 2, %s11
    // Predicated region
    $region64: #{discriminator_x_forward.4} parent=5 // pred_check
      %p2530 = pneg %p2529
    $region65: #{discriminator_x_forward.4} parent=5 // pred_check_branch
      %2532 = sbr.rel (%p2530) target = $region67
    $region66: #{discriminator_x_forward.4} parent=5 // pred_region
      %s2533 = ssub.s32 %s11, 2
    $region67: #{discriminator_x_forward.4} parent=5 // pred_fallthru
      _
  $region6: #{discriminator_x_forward.4} parent=0 // loop_footer
    %s15 = sadd.s32 1, %s11
  $region7: #{discriminator_x_forward.4} parent=0 // loop_footer_branch
    %10 = sbr.rel target = $region3
  $region8: #{discriminator_x_forward.4} parent=0 // loop_exit
    _

// kernel: discriminator_x_forward.5
$region0: #{discriminator_x_forward.5}
  #allocation0 [shape = 'u32[]', space=smem, size = 0x4, offset = 0x4, fixed_abs, tag = 'smem constant byte address 0x4 - core index']
  #allocation1 [shape = 'u32[144,128]{1,0:T(1,128)}', space=vmem, size = 0x12000, scoped, tag = 'internal scratch']
  #allocation2 [shape = 'f32[512,128]{1,0:T(8,128)}', space=vmem, size = 0x40000, scoped, tag = 'scratch operand']
  #allocation3 [shape = 'f32[1,128]{1,0:T(1,128)}', space=vmem, size = 0x200, scoped, tag = 'scratch operand']
  #allocation4 [shape = 'f32[1,128]{1,0:T(1,128)}', space=vmem, size = 0x200, scoped, tag = 'scratch operand']
  #allocation5 [shape = 'f32[1,1]{1,0:T(1,128)S(1)}', space=vmem, size = 0x200, scoped, tag = 'scoped memory for discriminator_x_forward.5']
  %s0 = inlined_call_operand.vmem [shape: bf16[512,1024], index: 0, kind: input, shape index: {}]
  %s1 = inlined_call_operand.vmem [shape: bf16[1024,128], index: 1, kind: input, shape index: {}]
  %s2 = inlined_call_operand.vmem [shape: f32[1,128], index: 2, kind: input, shape index: {}]
  %s3 = inlined_call_operand.vmem [shape: f32[1,128], index: 3, kind: input, shape index: {}]
  %s4 = inlined_call_operand.vmem [shape: f32[1,128], index: 4, kind: input, shape index: {}]
  %s5 = inlined_call_operand.vmem [shape: f32[256,128], index: 5, kind: input, shape index: {}]
  %s6 = inlined_call_operand.<no memory space> [shape: f32[1,1], index: 6, kind: input, shape index: {}]
  %s7 = inlined_call_operand.vmem [shape: f32[2,1], index: 7, kind: output, shape index: {}]
  %s8 = sld [smem:[#allocation0]]
  $region69: #{discriminator_x_forward.5} parent=0
    _
  %s10 = ssub.s32 1, %s8
  %s11 = scalar_select 0, %s10, %s8
  %v12 = vstv %s6
  %13 = vst [vmem:[#allocation5] sm:$0x1] %v12
  loop: start=0, step=1, limit=4
  $region2: #{discriminator_x_forward.5} parent=0 // loop_pre_header
    _
  $region3: #{discriminator_x_forward.5} parent=0 // loop_header
    %s15 = sphi 0, %s19
    %p16 = scmp.ge.s32.totalorder %s15, 4
    %s25 = sphi 0, %s27
    %s28 = sphi 0, %s25
    %s29 = sphi 0, %s28
    %s45 = sphi 0, %s29
    %s49 = sphi 0, %s49
    %s51 = sphi 0, %s49
    %s52 = sphi 0, %s51
    %s66 = sphi 0, %s52
    %s70 = sphi 0, %s70
    %s72 = sphi 0, %s70
    %s73 = sphi 0, %s72
    %s87 = sphi 0, %s73
    %s91 = sphi 0, %s91
    %s93 = sphi 0, %s91
    %s94 = sphi 0, %s93
    %s108 = sphi 0, %s94
    %s112 = sphi 0, %s112
    %s114 = sphi 0, %s112
    %s115 = sphi 0, %s114
    %s129 = sphi 0, %s115
    %s133 = sphi 0, %s133
    %s135 = sphi 0, %s133
    %s136 = sphi 0, %s135
    %s150 = sphi 0, %s136
    %s154 = sphi 0, %s154
    %s156 = sphi 0, %s154
    %s157 = sphi 0, %s156
    %s171 = sphi 0, %s157
    %s175 = sphi 0, %s175
    %s177 = sphi 0, %s175
    %s178 = sphi 0, %s177
    %s192 = sphi 0, %s178
  $region4: #{discriminator_x_forward.5} parent=0 // loop_header_branch
    %18 = sbr.rel (%p16) target = $region8
  $region5: #{discriminator_x_forward.5} parent=0 // loop_body
    %s20 = ssub.s32 %s15, 1
    %s21 = ssub.s32 %s15, 2
    %s22 = sadd.s32 %s15, 1
    %s23 = ssub.s32 %s15, %s22
    %p24 = scmp.eq.s32.totalorder %s23, 0
    %s26 = sadd.s32 %s25, 1
    %s27 = scalar_select %p24, %s25, %s26
    %p30 = pneg %p24
    %p31 = scmp.eq.s32.totalorder %s15, 1
    %p32 = por %p30, %p31
    %p33 = scmp.ne.s32.totalorder %s25, %s28
    %p34 = scmp.eq.s32.totalorder %s15, 0
    %p35 = por %p33, %p34
    %p36 = scmp.ne.s32.totalorder %s25, %s28
    %p37 = scmp.eq.s32.totalorder %s20, 1
    %p38 = por %p36, %p37
    %p39 = scmp.ne.s32.totalorder %s28, %s29
    %p40 = scmp.eq.s32.totalorder %s20, 0
    %p41 = por %p39, %p40
    %p42 = scmp.ne.s32.totalorder %s28, %s29
    %p43 = scmp.eq.s32.totalorder %s21, 1
    %p44 = por %p42, %p43
    %p46 = scmp.ne.s32.totalorder %s29, %s45
    %p47 = scmp.eq.s32.totalorder %s21, 0
    %p48 = por %p46, %p47
    %s50 = sadd.s32 %s49, 1
    %p53 = scmp.eq.s32.totalorder %s15, 1
    %p54 = scmp.ne.s32.totalorder %s49, %s51
    %p55 = scmp.eq.s32.totalorder %s15, 0
    %p56 = por %p54, %p55
    %p57 = scmp.ne.s32.totalorder %s49, %s51
    %p58 = scmp.eq.s32.totalorder %s20, 1
    %p59 = por %p57, %p58
    %p60 = scmp.ne.s32.totalorder %s51, %s52
    %p61 = scmp.eq.s32.totalorder %s20, 0
    %p62 = por %p60, %p61
    %p63 = scmp.ne.s32.totalorder %s51, %s52
    %p64 = scmp.eq.s32.totalorder %s21, 1
    %p65 = por %p63, %p64
    %p67 = scmp.ne.s32.totalorder %s52, %s66
    %p68 = scmp.eq.s32.totalorder %s21, 0
    %p69 = por %p67, %p68
    %s71 = sadd.s32 %s70, 1
    %p74 = scmp.eq.s32.totalorder %s15, 1
    %p75 = scmp.ne.s32.totalorder %s70, %s72
    %p76 = scmp.eq.s32.totalorder %s15, 0
    %p77 = por %p75, %p76
    %p78 = scmp.ne.s32.totalorder %s70, %s72
    %p79 = scmp.eq.s32.totalorder %s20, 1
    %p80 = por %p78, %p79
    %p81 = scmp.ne.s32.totalorder %s72, %s73
    %p82 = scmp.eq.s32.totalorder %s20, 0
    %p83 = por %p81, %p82
    %p84 = scmp.ne.s32.totalorder %s72, %s73
    %p85 = scmp.eq.s32.totalorder %s21, 1
    %p86 = por %p84, %p85
    %p88 = scmp.ne.s32.totalorder %s73, %s87
    %p89 = scmp.eq.s32.totalorder %s21, 0
    %p90 = por %p88, %p89
    %s92 = sadd.s32 %s91, 1
    %p95 = scmp.eq.s32.totalorder %s15, 1
    %p96 = scmp.ne.s32.totalorder %s91, %s93
    %p97 = scmp.eq.s32.totalorder %s15, 0
    %p98 = por %p96, %p97
    %p99 = scmp.ne.s32.totalorder %s91, %s93
    %p100 = scmp.eq.s32.totalorder %s20, 1
    %p101 = por %p99, %p100
    %p102 = scmp.ne.s32.totalorder %s93, %s94
    %p103 = scmp.eq.s32.totalorder %s20, 0
    %p104 = por %p102, %p103
    %p105 = scmp.ne.s32.totalorder %s93, %s94
    %p106 = scmp.eq.s32.totalorder %s21, 1
    %p107 = por %p105, %p106
    %p109 = scmp.ne.s32.totalorder %s94, %s108
    %p110 = scmp.eq.s32.totalorder %s21, 0
    %p111 = por %p109, %p110
    %s113 = sadd.s32 %s112, 1
    %p116 = scmp.eq.s32.totalorder %s15, 1
    %p117 = scmp.ne.s32.totalorder %s112, %s114
    %p118 = scmp.eq.s32.totalorder %s15, 0
    %p119 = por %p117, %p118
    %p120 = scmp.ne.s32.totalorder %s112, %s114
    %p121 = scmp.eq.s32.totalorder %s20, 1
    %p122 = por %p120, %p121
    %p123 = scmp.ne.s32.totalorder %s114, %s115
    %p124 = scmp.eq.s32.totalorder %s20, 0
    %p125 = por %p123, %p124
    %p126 = scmp.ne.s32.totalorder %s114, %s115
    %p127 = scmp.eq.s32.totalorder %s21, 1
    %p128 = por %p126, %p127
    %p130 = scmp.ne.s32.totalorder %s115, %s129
    %p131 = scmp.eq.s32.totalorder %s21, 0
    %p132 = por %p130, %p131
    %s134 = sadd.s32 %s133, 1
    %p137 = scmp.eq.s32.totalorder %s15, 1
    %p138 = scmp.ne.s32.totalorder %s133, %s135
    %p139 = scmp.eq.s32.totalorder %s15, 0
    %p140 = por %p138, %p139
    %p141 = scmp.ne.s32.totalorder %s133, %s135
    %p142 = scmp.eq.s32.totalorder %s20, 1
    %p143 = por %p141, %p142
    %p144 = scmp.ne.s32.totalorder %s135, %s136
    %p145 = scmp.eq.s32.totalorder %s20, 0
    %p146 = por %p144, %p145
    %p147 = scmp.ne.s32.totalorder %s135, %s136
    %p148 = scmp.eq.s32.totalorder %s21, 1
    %p149 = por %p147, %p148
    %p151 = scmp.ne.s32.totalorder %s136, %s150
    %p152 = scmp.eq.s32.totalorder %s21, 0
    %p153 = por %p151, %p152
    %s155 = sadd.s32 %s154, 1
    %p158 = scmp.eq.s32.totalorder %s15, 1
    %p159 = scmp.ne.s32.totalorder %s154, %s156
    %p160 = scmp.eq.s32.totalorder %s15, 0
    %p161 = por %p159, %p160
    %p162 = scmp.ne.s32.totalorder %s154, %s156
    %p163 = scmp.eq.s32.totalorder %s20, 1
    %p164 = por %p162, %p163
    %p165 = scmp.ne.s32.totalorder %s156, %s157
    %p166 = scmp.eq.s32.totalorder %s20, 0
    %p167 = por %p165, %p166
    %p168 = scmp.ne.s32.totalorder %s156, %s157
    %p169 = scmp.eq.s32.totalorder %s21, 1
    %p170 = por %p168, %p169
    %p172 = scmp.ne.s32.totalorder %s157, %s171
    %p173 = scmp.eq.s32.totalorder %s21, 0
    %p174 = por %p172, %p173
    %s176 = sadd.s32 %s175, 1
    %p179 = scmp.eq.s32.totalorder %s15, 1
    %p180 = scmp.ne.s32.totalorder %s175, %s177
    %p181 = scmp.eq.s32.totalorder %s15, 0
    %p182 = por %p180, %p181
    %p183 = scmp.ne.s32.totalorder %s175, %s177
    %p184 = scmp.eq.s32.totalorder %s20, 1
    %p185 = por %p183, %p184
    %p186 = scmp.ne.s32.totalorder %s177, %s178
    %p187 = scmp.eq.s32.totalorder %s20, 0
    %p188 = por %p186, %p187
    %p189 = scmp.ne.s32.totalorder %s177, %s178
    %p190 = scmp.eq.s32.totalorder %s21, 1
    %p191 = por %p189, %p190
    %p193 = scmp.ne.s32.totalorder %s178, %s192
    %p194 = scmp.eq.s32.totalorder %s21, 0
    %p195 = por %p193, %p194
    %p196 = scmp.le.s32.totalorder 1, %s15
    %p197 = scmp.lt.s32.totalorder %s15, 3
    %p198 = pnand %p196, %p197
    %p199 = pneg %p198
    // Predicated region
    $region9: #{discriminator_x_forward.5} parent=5 // pred_check
      _
    $region10: #{discriminator_x_forward.5} parent=5 // pred_check_branch
      %201 = sbr.rel (%p198) target = $region12
    $region11: #{discriminator_x_forward.5} parent=5 // pred_region
      %s202 = ssub.s32 %s15, 1
      // Predicated region
      $region13: #{discriminator_x_forward.5} parent=11 // pred_check
        %p203 = pneg %p62
      $region14: #{discriminator_x_forward.5} parent=11 // pred_check_branch
        %205 = sbr.rel (%p203) target = $region16
      $region15: #{discriminator_x_forward.5} parent=11 // pred_region
        _
      $region16: #{discriminator_x_forward.5} parent=11 // pred_fallthru
        _
      // Predicated region
      $region17: #{discriminator_x_forward.5} parent=11 // pred_check
        %p206 = pneg %p83
      $region18: #{discriminator_x_forward.5} parent=11 // pred_check_branch
        %208 = sbr.rel (%p206) target = $region20
      $region19: #{discriminator_x_forward.5} parent=11 // pred_region
        _
      $region20: #{discriminator_x_forward.5} parent=11 // pred_fallthru
        _
      // Predicated region
      $region21: #{discriminator_x_forward.5} parent=11 // pred_check
        %p209 = pneg %p104
      $region22: #{discriminator_x_forward.5} parent=11 // pred_check_branch
        %211 = sbr.rel (%p209) target = $region24
      $region23: #{discriminator_x_forward.5} parent=11 // pred_region
        _
      $region24: #{discriminator_x_forward.5} parent=11 // pred_fallthru
        _
      // Predicated region
      $region25: #{discriminator_x_forward.5} parent=11 // pred_check
        %p212 = pneg %p125
      $region26: #{discriminator_x_forward.5} parent=11 // pred_check_branch
        %214 = sbr.rel (%p212) target = $region28
      $region27: #{discriminator_x_forward.5} parent=11 // pred_region
        _
      $region28: #{discriminator_x_forward.5} parent=11 // pred_fallthru
        _
      // Predicated region
      $region29: #{discriminator_x_forward.5} parent=11 // pred_check
        %p215 = pneg %p146
      $region30: #{discriminator_x_forward.5} parent=11 // pred_check_branch
        %217 = sbr.rel (%p215) target = $region32
      $region31: #{discriminator_x_forward.5} parent=11 // pred_region
        _
      $region32: #{discriminator_x_forward.5} parent=11 // pred_fallthru
        _
      // Predicated region
      $region33: #{discriminator_x_forward.5} parent=11 // pred_check
        %p218 = pneg %p167
      $region34: #{discriminator_x_forward.5} parent=11 // pred_check_branch
        %220 = sbr.rel (%p218) target = $region36
      $region35: #{discriminator_x_forward.5} parent=11 // pred_region
        _
      $region36: #{discriminator_x_forward.5} parent=11 // pred_fallthru
        _
    $region12: #{discriminator_x_forward.5} parent=5 // pred_fallthru
      _
    %p221 = scmp.lt.s32.totalorder %s15, 2
    // Predicated region
    $region37: #{discriminator_x_forward.5} parent=5 // pred_check
      %p222 = pneg %p221
    $region38: #{discriminator_x_forward.5} parent=5 // pred_check_branch
      %224 = sbr.rel (%p222) target = $region40
    $region39: #{discriminator_x_forward.5} parent=5 // pred_region
      // Predicated region
      $region41: #{discriminator_x_forward.5} parent=39 // pred_check
        %p225 = pneg %p35
      $region42: #{discriminator_x_forward.5} parent=39 // pred_check_branch
        %227 = sbr.rel (%p225) target = $region44
      $region43: #{discriminator_x_forward.5} parent=39 // pred_region
        %s228 = smul.u32 32, %s15
        %p229 = scmp.lt.s32.totalorder %s228, 63
        %s230 = scalar_select %p229, %s228, 63
        %s231 = smul.addr %s230, 8
        %s232 = smul.addr %s231, 4
        %s233 = scalar_lea.vmem %s0, %s232
        %s234 = smul.u32 32, %s15
      $region44: #{discriminator_x_forward.5} parent=39 // pred_fallthru
        _
    $region40: #{discriminator_x_forward.5} parent=5 // pred_fallthru
      _
    %p235 = scmp.le.s32.totalorder 1, %s15
    %p236 = scmp.lt.s32.totalorder %s15, 3
    %p237 = pnand %p235, %p236
    %p238 = pneg %p237
    // Predicated region
    $region45: #{discriminator_x_forward.5} parent=5 // pred_check
      _
    $region46: #{discriminator_x_forward.5} parent=5 // pred_check_branch
      %240 = sbr.rel (%p237) target = $region48
    $region47: #{discriminator_x_forward.5} parent=5 // pred_region
      %s241 = ssub.s32 %s15, 1
      %s242 = smul.u32 32, %s20
      %p243 = scmp.lt.s32.totalorder %s242, 63
      %s244 = scalar_select %p243, %s242, 63
      %s245 = smul.addr %s244, 8
      %s246 = smul.addr %s245, 4
      %s247 = scalar_lea.vmem %s0, %s246
      %p248 = pneg %p41
      %p249 = pneg %p38
      %p250 = pneg %p62
      %p251 = pneg %p59
      %p252 = pneg %p83
      %p253 = pneg %p80
      %p254 = pneg %p104
      %p255 = pneg %p101
      %p256 = pneg %p125
      %p257 = pneg %p122
      %p258 = pneg %p146
      %p259 = pneg %p143
      %p260 = pneg %p167
      %p261 = pneg %p164
      %p262 = pneg %p188
      %p263 = pneg %p185
      %s264 = smul.u32 32, %s20
      %p265 = scmp.lt.s32.totalorder %s264, 63
      %s266 = scalar_select %p265, %s264, 63
      %s267 = smul.addr %s266, 8
      %s268 = smul.addr %s267, 4
      %s269 = scalar_lea.vmem %s0, %s268
      %s270 = smul.u32 32, %s20
      %p272 = scmp.eq.s32.totalorder %s20, 0
      // Predicated region
      $region49: #{discriminator_x_forward.5} parent=47 // pred_check
        %p273 = pneg %p272
      $region50: #{discriminator_x_forward.5} parent=47 // pred_check_branch
        %275 = sbr.rel (%p273) target = $region52
      $region51: #{discriminator_x_forward.5} parent=47 // pred_region
        %276 = vst [vmem:[#allocation3] sm:$0x1] 0.0
        %277 = vst [vmem:[#allocation4] sm:$0x1] 0.0
      $region52: #{discriminator_x_forward.5} parent=47 // pred_fallthru
        _
      %v278 = vld [vmem:[%s269] sm:$0xff]
      %v279 = vld [vmem:[%s269 + $0x8] sm:$0xff]
      %v280 = vld [vmem:[%s269 + $0x10] sm:$0xff]
      %v281 = vld [vmem:[%s269 + $0x18] sm:$0xff]
      %v282 = vld [vmem:[%s269 + $0x20] sm:$0xff]
      %v283 = vld [vmem:[%s269 + $0x28] sm:$0xff]
      %v284 = vld [vmem:[%s269 + $0x30] sm:$0xff]
      %v285 = vld [vmem:[%s269 + $0x38] sm:$0xff]
      %v286 = vld [vmem:[%s269 + $0x40] sm:$0xff]
      %v287 = vld [vmem:[%s269 + $0x48] sm:$0xff]
      %v288 = vld [vmem:[%s269 + $0x50] sm:$0xff]
      %v289 = vld [vmem:[%s269 + $0x58] sm:$0xff]
      %v290 = vld [vmem:[%s269 + $0x60] sm:$0xff]
      %v291 = vld [vmem:[%s269 + $0x68] sm:$0xff]
      %v292 = vld [vmem:[%s269 + $0x70] sm:$0xff]
      %v293 = vld [vmem:[%s269 + $0x78] sm:$0xff]
      %v294 = vld [vmem:[%s269 + $0x80] sm:$0xff]
      %v295 = vld [vmem:[%s269 + $0x88] sm:$0xff]
      %v296 = vld [vmem:[%s269 + $0x90] sm:$0xff]
      %v297 = vld [vmem:[%s269 + $0x98] sm:$0xff]
      %v298 = vld [vmem:[%s269 + $0xa0] sm:$0xff]
      %v299 = vld [vmem:[%s269 + $0xa8] sm:$0xff]
      %v300 = vld [vmem:[%s269 + $0xb0] sm:$0xff]
      %v301 = vld [vmem:[%s269 + $0xb8] sm:$0xff]
      %v302 = vld [vmem:[%s269 + $0xc0] sm:$0xff]
      %v303 = vld [vmem:[%s269 + $0xc8] sm:$0xff]
      %v304 = vld [vmem:[%s269 + $0xd0] sm:$0xff]
      %v305 = vld [vmem:[%s269 + $0xd8] sm:$0xff]
      %v306 = vld [vmem:[%s269 + $0xe0] sm:$0xff]
      %v307 = vld [vmem:[%s269 + $0xe8] sm:$0xff]
      %v308 = vld [vmem:[%s269 + $0xf0] sm:$0xff]
      %v309 = vld [vmem:[%s269 + $0xf8] sm:$0xff]
      %v310 = vld [vmem:[%s269 + $0x100] sm:$0xff]
      %v311 = vld [vmem:[%s269 + $0x108] sm:$0xff]
      %v312 = vld [vmem:[%s269 + $0x110] sm:$0xff]
      %v313 = vld [vmem:[%s269 + $0x118] sm:$0xff]
      %v314 = vld [vmem:[%s269 + $0x120] sm:$0xff]
      %v315 = vld [vmem:[%s269 + $0x128] sm:$0xff]
      %v316 = vld [vmem:[%s269 + $0x130] sm:$0xff]
      %v317 = vld [vmem:[%s269 + $0x138] sm:$0xff]
      %v318 = vld [vmem:[%s269 + $0x140] sm:$0xff]
      %v319 = vld [vmem:[%s269 + $0x148] sm:$0xff]
      %v320 = vld [vmem:[%s269 + $0x150] sm:$0xff]
      %v321 = vld [vmem:[%s269 + $0x158] sm:$0xff]
      %v322 = vld [vmem:[%s269 + $0x160] sm:$0xff]
      %v323 = vld [vmem:[%s269 + $0x168] sm:$0xff]
      %v324 = vld [vmem:[%s269 + $0x170] sm:$0xff]
      %v325 = vld [vmem:[%s269 + $0x178] sm:$0xff]
      %v326 = vld [vmem:[%s269 + $0x180] sm:$0xff]
      %v327 = vld [vmem:[%s269 + $0x188] sm:$0xff]
      %v328 = vld [vmem:[%s269 + $0x190] sm:$0xff]
      %v329 = vld [vmem:[%s269 + $0x198] sm:$0xff]
      %v330 = vld [vmem:[%s269 + $0x1a0] sm:$0xff]
      %v331 = vld [vmem:[%s269 + $0x1a8] sm:$0xff]
      %v332 = vld [vmem:[%s269 + $0x1b0] sm:$0xff]
      %v333 = vld [vmem:[%s269 + $0x1b8] sm:$0xff]
      %v334 = vld [vmem:[%s269 + $0x1c0] sm:$0xff]
      %v335 = vld [vmem:[%s269 + $0x1c8] sm:$0xff]
      %v336 = vld [vmem:[%s269 + $0x1d0] sm:$0xff]
      %v337 = vld [vmem:[%s269 + $0x1d8] sm:$0xff]
      %v338 = vld [vmem:[%s269 + $0x1e0] sm:$0xff]
      %v339 = vld [vmem:[%s269 + $0x1e8] sm:$0xff]
      %v340 = vld [vmem:[%s269 + $0x1f0] sm:$0xff]
      %v341 = vld [vmem:[%s269 + $0x1f8] sm:$0xff]
      %v342 = vld [vmem:[%s269 + $0x200] sm:$0xff]
      %v343 = vld [vmem:[%s269 + $0x208] sm:$0xff]
      %v344 = vld [vmem:[%s269 + $0x210] sm:$0xff]
      %v345 = vld [vmem:[%s269 + $0x218] sm:$0xff]
      %v346 = vld [vmem:[%s269 + $0x220] sm:$0xff]
      %v347 = vld [vmem:[%s269 + $0x228] sm:$0xff]
      %v348 = vld [vmem:[%s269 + $0x230] sm:$0xff]
      %v349 = vld [vmem:[%s269 + $0x238] sm:$0xff]
      %v350 = vld [vmem:[%s269 + $0x240] sm:$0xff]
      %v351 = vld [vmem:[%s269 + $0x248] sm:$0xff]
      %v352 = vld [vmem:[%s269 + $0x250] sm:$0xff]
      %v353 = vld [vmem:[%s269 + $0x258] sm:$0xff]
      %v354 = vld [vmem:[%s269 + $0x260] sm:$0xff]
      %v355 = vld [vmem:[%s269 + $0x268] sm:$0xff]
      %v356 = vld [vmem:[%s269 + $0x270] sm:$0xff]
      %v357 = vld [vmem:[%s269 + $0x278] sm:$0xff]
      %v358 = vld [vmem:[%s269 + $0x280] sm:$0xff]
      %v359 = vld [vmem:[%s269 + $0x288] sm:$0xff]
      %v360 = vld [vmem:[%s269 + $0x290] sm:$0xff]
      %v361 = vld [vmem:[%s269 + $0x298] sm:$0xff]
      %v362 = vld [vmem:[%s269 + $0x2a0] sm:$0xff]
      %v363 = vld [vmem:[%s269 + $0x2a8] sm:$0xff]
      %v364 = vld [vmem:[%s269 + $0x2b0] sm:$0xff]
      %v365 = vld [vmem:[%s269 + $0x2b8] sm:$0xff]
      %v366 = vld [vmem:[%s269 + $0x2c0] sm:$0xff]
      %v367 = vld [vmem:[%s269 + $0x2c8] sm:$0xff]
      %v368 = vld [vmem:[%s269 + $0x2d0] sm:$0xff]
      %v369 = vld [vmem:[%s269 + $0x2d8] sm:$0xff]
      %v370 = vld [vmem:[%s269 + $0x2e0] sm:$0xff]
      %v371 = vld [vmem:[%s269 + $0x2e8] sm:$0xff]
      %v372 = vld [vmem:[%s269 + $0x2f0] sm:$0xff]
      %v373 = vld [vmem:[%s269 + $0x2f8] sm:$0xff]
      %v374 = vld [vmem:[%s269 + $0x300] sm:$0xff]
      %v375 = vld [vmem:[%s269 + $0x308] sm:$0xff]
      %v376 = vld [vmem:[%s269 + $0x310] sm:$0xff]
      %v377 = vld [vmem:[%s269 + $0x318] sm:$0xff]
      %v378 = vld [vmem:[%s269 + $0x320] sm:$0xff]
      %v379 = vld [vmem:[%s269 + $0x328] sm:$0xff]
      %v380 = vld [vmem:[%s269 + $0x330] sm:$0xff]
      %v381 = vld [vmem:[%s269 + $0x338] sm:$0xff]
      %v382 = vld [vmem:[%s269 + $0x340] sm:$0xff]
      %v383 = vld [vmem:[%s269 + $0x348] sm:$0xff]
      %v384 = vld [vmem:[%s269 + $0x350] sm:$0xff]
      %v385 = vld [vmem:[%s269 + $0x358] sm:$0xff]
      %v386 = vld [vmem:[%s269 + $0x360] sm:$0xff]
      %v387 = vld [vmem:[%s269 + $0x368] sm:$0xff]
      %v388 = vld [vmem:[%s269 + $0x370] sm:$0xff]
      %v389 = vld [vmem:[%s269 + $0x378] sm:$0xff]
      %v390 = vld [vmem:[%s269 + $0x380] sm:$0xff]
      %v391 = vld [vmem:[%s269 + $0x388] sm:$0xff]
      %v392 = vld [vmem:[%s269 + $0x390] sm:$0xff]
      %v393 = vld [vmem:[%s269 + $0x398] sm:$0xff]
      %v394 = vld [vmem:[%s269 + $0x3a0] sm:$0xff]
      %v395 = vld [vmem:[%s269 + $0x3a8] sm:$0xff]
      %v396 = vld [vmem:[%s269 + $0x3b0] sm:$0xff]
      %v397 = vld [vmem:[%s269 + $0x3b8] sm:$0xff]
      %v398 = vld [vmem:[%s269 + $0x3c0] sm:$0xff]
      %v399 = vld [vmem:[%s269 + $0x3c8] sm:$0xff]
      %v400 = vld [vmem:[%s269 + $0x3d0] sm:$0xff]
      %v401 = vld [vmem:[%s269 + $0x3d8] sm:$0xff]
      %v402 = vld [vmem:[%s269 + $0x3e0] sm:$0xff]
      %v403 = vld [vmem:[%s269 + $0x3e8] sm:$0xff]
      %v404 = vld [vmem:[%s269 + $0x3f0] sm:$0xff]
      %v405 = vld [vmem:[%s269 + $0x3f8] sm:$0xff]
      %v406 = vld [vmem:[%s1] sm:$0xf]
      %v407 = vld [vmem:[%s1 + $0x4] sm:$0xf]
      %v408 = vld [vmem:[%s1 + $0x8] sm:$0xf]
      %v409 = vld [vmem:[%s1 + $0xc] sm:$0xf]
      %v410 = vld [vmem:[%s1 + $0x10] sm:$0xf]
      %v411 = vld [vmem:[%s1 + $0x14] sm:$0xf]
      %v412 = vld [vmem:[%s1 + $0x18] sm:$0xf]
      %v413 = vld [vmem:[%s1 + $0x1c] sm:$0xf]
      %v414 = vld [vmem:[%s1 + $0x20] sm:$0xf]
      %v415 = vld [vmem:[%s1 + $0x24] sm:$0xf]
      %v416 = vld [vmem:[%s1 + $0x28] sm:$0xf]
      %v417 = vld [vmem:[%s1 + $0x2c] sm:$0xf]
      %v418 = vld [vmem:[%s1 + $0x30] sm:$0xf]
      %v419 = vld [vmem:[%s1 + $0x34] sm:$0xf]
      %v420 = vld [vmem:[%s1 + $0x38] sm:$0xf]
      %v421 = vld [vmem:[%s1 + $0x3c] sm:$0xf]
      %v422 = vld [vmem:[%s1 + $0x40] sm:$0xf]
      %v423 = vld [vmem:[%s1 + $0x44] sm:$0xf]
      %v424 = vld [vmem:[%s1 + $0x48] sm:$0xf]
      %v425 = vld [vmem:[%s1 + $0x4c] sm:$0xf]
      %v426 = vld [vmem:[%s1 + $0x50] sm:$0xf]
      %v427 = vld [vmem:[%s1 + $0x54] sm:$0xf]
      %v428 = vld [vmem:[%s1 + $0x58] sm:$0xf]
      %v429 = vld [vmem:[%s1 + $0x5c] sm:$0xf]
      %v430 = vld [vmem:[%s1 + $0x60] sm:$0xf]
      %v431 = vld [vmem:[%s1 + $0x64] sm:$0xf]
      %v432 = vld [vmem:[%s1 + $0x68] sm:$0xf]
      %v433 = vld [vmem:[%s1 + $0x6c] sm:$0xf]
      %v434 = vld [vmem:[%s1 + $0x70] sm:$0xf]
      %v435 = vld [vmem:[%s1 + $0x74] sm:$0xf]
      %v436 = vld [vmem:[%s1 + $0x78] sm:$0xf]
      %v437 = vld [vmem:[%s1 + $0x7c] sm:$0xf]
      %v438 = vld [vmem:[%s1 + $0x80] sm:$0xf]
      %v439 = vld [vmem:[%s1 + $0x84] sm:$0xf]
      %v440 = vld [vmem:[%s1 + $0x88] sm:$0xf]
      %v441 = vld [vmem:[%s1 + $0x8c] sm:$0xf]
      %v442 = vld [vmem:[%s1 + $0x90] sm:$0xf]
      %v443 = vld [vmem:[%s1 + $0x94] sm:$0xf]
      %v444 = vld [vmem:[%s1 + $0x98] sm:$0xf]
      %v445 = vld [vmem:[%s1 + $0x9c] sm:$0xf]
      %v446 = vld [vmem:[%s1 + $0xa0] sm:$0xf]
      %v447 = vld [vmem:[%s1 + $0xa4] sm:$0xf]
      %v448 = vld [vmem:[%s1 + $0xa8] sm:$0xf]
      %v449 = vld [vmem:[%s1 + $0xac] sm:$0xf]
      %v450 = vld [vmem:[%s1 + $0xb0] sm:$0xf]
      %v451 = vld [vmem:[%s1 + $0xb4] sm:$0xf]
      %v452 = vld [vmem:[%s1 + $0xb8] sm:$0xf]
      %v453 = vld [vmem:[%s1 + $0xbc] sm:$0xf]
      %v454 = vld [vmem:[%s1 + $0xc0] sm:$0xf]
      %v455 = vld [vmem:[%s1 + $0xc4] sm:$0xf]
      %v456 = vld [vmem:[%s1 + $0xc8] sm:$0xf]
      %v457 = vld [vmem:[%s1 + $0xcc] sm:$0xf]
      %v458 = vld [vmem:[%s1 + $0xd0] sm:$0xf]
      %v459 = vld [vmem:[%s1 + $0xd4] sm:$0xf]
      %v460 = vld [vmem:[%s1 + $0xd8] sm:$0xf]
      %v461 = vld [vmem:[%s1 + $0xdc] sm:$0xf]
      %v462 = vld [vmem:[%s1 + $0xe0] sm:$0xf]
      %v463 = vld [vmem:[%s1 + $0xe4] sm:$0xf]
      %v464 = vld [vmem:[%s1 + $0xe8] sm:$0xf]
      %v465 = vld [vmem:[%s1 + $0xec] sm:$0xf]
      %v466 = vld [vmem:[%s1 + $0xf0] sm:$0xf]
      %v467 = vld [vmem:[%s1 + $0xf4] sm:$0xf]
      %v468 = vld [vmem:[%s1 + $0xf8] sm:$0xf]
      %v469 = vld [vmem:[%s1 + $0xfc] sm:$0xf]
      %v470 = vld [vmem:[%s1 + $0x100] sm:$0xf]
      %v471 = vld [vmem:[%s1 + $0x104] sm:$0xf]
      %v472 = vld [vmem:[%s1 + $0x108] sm:$0xf]
      %v473 = vld [vmem:[%s1 + $0x10c] sm:$0xf]
      %v474 = vld [vmem:[%s1 + $0x110] sm:$0xf]
      %v475 = vld [vmem:[%s1 + $0x114] sm:$0xf]
      %v476 = vld [vmem:[%s1 + $0x118] sm:$0xf]
      %v477 = vld [vmem:[%s1 + $0x11c] sm:$0xf]
      %v478 = vld [vmem:[%s1 + $0x120] sm:$0xf]
      %v479 = vld [vmem:[%s1 + $0x124] sm:$0xf]
      %v480 = vld [vmem:[%s1 + $0x128] sm:$0xf]
      %v481 = vld [vmem:[%s1 + $0x12c] sm:$0xf]
      %v482 = vld [vmem:[%s1 + $0x130] sm:$0xf]
      %v483 = vld [vmem:[%s1 + $0x134] sm:$0xf]
      %v484 = vld [vmem:[%s1 + $0x138] sm:$0xf]
      %v485 = vld [vmem:[%s1 + $0x13c] sm:$0xf]
      %v486 = vld [vmem:[%s1 + $0x140] sm:$0xf]
      %v487 = vld [vmem:[%s1 + $0x144] sm:$0xf]
      %v488 = vld [vmem:[%s1 + $0x148] sm:$0xf]
      %v489 = vld [vmem:[%s1 + $0x14c] sm:$0xf]
      %v490 = vld [vmem:[%s1 + $0x150] sm:$0xf]
      %v491 = vld [vmem:[%s1 + $0x154] sm:$0xf]
      %v492 = vld [vmem:[%s1 + $0x158] sm:$0xf]
      %v493 = vld [vmem:[%s1 + $0x15c] sm:$0xf]
      %v494 = vld [vmem:[%s1 + $0x160] sm:$0xf]
      %v495 = vld [vmem:[%s1 + $0x164] sm:$0xf]
      %v496 = vld [vmem:[%s1 + $0x168] sm:$0xf]
      %v497 = vld [vmem:[%s1 + $0x16c] sm:$0xf]
      %v498 = vld [vmem:[%s1 + $0x170] sm:$0xf]
      %v499 = vld [vmem:[%s1 + $0x174] sm:$0xf]
      %v500 = vld [vmem:[%s1 + $0x178] sm:$0xf]
      %v501 = vld [vmem:[%s1 + $0x17c] sm:$0xf]
      %v502 = vld [vmem:[%s1 + $0x180] sm:$0xf]
      %v503 = vld [vmem:[%s1 + $0x184] sm:$0xf]
      %v504 = vld [vmem:[%s1 + $0x188] sm:$0xf]
      %v505 = vld [vmem:[%s1 + $0x18c] sm:$0xf]
      %v506 = vld [vmem:[%s1 + $0x190] sm:$0xf]
      %v507 = vld [vmem:[%s1 + $0x194] sm:$0xf]
      %v508 = vld [vmem:[%s1 + $0x198] sm:$0xf]
      %v509 = vld [vmem:[%s1 + $0x19c] sm:$0xf]
      %v510 = vld [vmem:[%s1 + $0x1a0] sm:$0xf]
      %v511 = vld [vmem:[%s1 + $0x1a4] sm:$0xf]
      %v512 = vld [vmem:[%s1 + $0x1a8] sm:$0xf]
      %v513 = vld [vmem:[%s1 + $0x1ac] sm:$0xf]
      %v514 = vld [vmem:[%s1 + $0x1b0] sm:$0xf]
      %v515 = vld [vmem:[%s1 + $0x1b4] sm:$0xf]
      %v516 = vld [vmem:[%s1 + $0x1b8] sm:$0xf]
      %v517 = vld [vmem:[%s1 + $0x1bc] sm:$0xf]
      %v518 = vld [vmem:[%s1 + $0x1c0] sm:$0xf]
      %v519 = vld [vmem:[%s1 + $0x1c4] sm:$0xf]
      %v520 = vld [vmem:[%s1 + $0x1c8] sm:$0xf]
      %v521 = vld [vmem:[%s1 + $0x1cc] sm:$0xf]
      %v522 = vld [vmem:[%s1 + $0x1d0] sm:$0xf]
      %v523 = vld [vmem:[%s1 + $0x1d4] sm:$0xf]
      %v524 = vld [vmem:[%s1 + $0x1d8] sm:$0xf]
      %v525 = vld [vmem:[%s1 + $0x1dc] sm:$0xf]
      %v526 = vld [vmem:[%s1 + $0x1e0] sm:$0xf]
      %v527 = vld [vmem:[%s1 + $0x1e4] sm:$0xf]
      %v528 = vld [vmem:[%s1 + $0x1e8] sm:$0xf]
      %v529 = vld [vmem:[%s1 + $0x1ec] sm:$0xf]
      %v530 = vld [vmem:[%s1 + $0x1f0] sm:$0xf]
      %v531 = vld [vmem:[%s1 + $0x1f4] sm:$0xf]
      %v532 = vld [vmem:[%s1 + $0x1f8] sm:$0xf]
      %v533 = vld [vmem:[%s1 + $0x1fc] sm:$0xf]
      %v534 = vld [vmem:[%s2] sm:$0x1]
      %v536 = vlaneseq
      %v537 = vshrl.u32 %v536, 7
      %v538 = vsub.s32 0, %v537
      %v539 = vrot.slane %v534, %v538
      %v669 = vunpack.c.l.b16 %v278
      %v670 = vunpack.c.h.b16 %v278
      %v671 = vunpack.c.l.b16 %v279
      %v672 = vunpack.c.h.b16 %v279
      %v673 = vunpack.c.l.b16 %v280
      %v674 = vunpack.c.h.b16 %v280
      %v675 = vunpack.c.l.b16 %v281
      %v676 = vunpack.c.h.b16 %v281
      %v677 = vunpack.c.l.b16 %v282
      %v678 = vunpack.c.h.b16 %v282
      %v679 = vunpack.c.l.b16 %v283
      %v680 = vunpack.c.h.b16 %v283
      %v681 = vunpack.c.l.b16 %v284
      %v682 = vunpack.c.h.b16 %v284
      %v683 = vunpack.c.l.b16 %v285
      %v684 = vunpack.c.h.b16 %v285
      %v685 = vunpack.c.l.b16 %v286
      %v686 = vunpack.c.h.b16 %v286
      %v687 = vunpack.c.l.b16 %v287
      %v688 = vunpack.c.h.b16 %v287
      %v689 = vunpack.c.l.b16 %v288
      %v690 = vunpack.c.h.b16 %v288
      %v691 = vunpack.c.l.b16 %v289
      %v692 = vunpack.c.h.b16 %v289
      %v693 = vunpack.c.l.b16 %v290
      %v694 = vunpack.c.h.b16 %v290
      %v695 = vunpack.c.l.b16 %v291
      %v696 = vunpack.c.h.b16 %v291
      %v697 = vunpack.c.l.b16 %v292
      %v698 = vunpack.c.h.b16 %v292
      %v699 = vunpack.c.l.b16 %v293
      %v700 = vunpack.c.h.b16 %v293
      %v701 = vunpack.c.l.b16 %v294
      %v702 = vunpack.c.h.b16 %v294
      %v703 = vunpack.c.l.b16 %v295
      %v704 = vunpack.c.h.b16 %v295
      %v705 = vunpack.c.l.b16 %v296
      %v706 = vunpack.c.h.b16 %v296
      %v707 = vunpack.c.l.b16 %v297
      %v708 = vunpack.c.h.b16 %v297
      %v709 = vunpack.c.l.b16 %v298
      %v710 = vunpack.c.h.b16 %v298
      %v711 = vunpack.c.l.b16 %v299
      %v712 = vunpack.c.h.b16 %v299
      %v713 = vunpack.c.l.b16 %v300
      %v714 = vunpack.c.h.b16 %v300
      %v715 = vunpack.c.l.b16 %v301
      %v716 = vunpack.c.h.b16 %v301
      %v717 = vunpack.c.l.b16 %v302
      %v718 = vunpack.c.h.b16 %v302
      %v719 = vunpack.c.l.b16 %v303
      %v720 = vunpack.c.h.b16 %v303
      %v721 = vunpack.c.l.b16 %v304
      %v722 = vunpack.c.h.b16 %v304
      %v723 = vunpack.c.l.b16 %v305
      %v724 = vunpack.c.h.b16 %v305
      %v725 = vunpack.c.l.b16 %v306
      %v726 = vunpack.c.h.b16 %v306
      %v727 = vunpack.c.l.b16 %v307
      %v728 = vunpack.c.h.b16 %v307
      %v729 = vunpack.c.l.b16 %v308
      %v730 = vunpack.c.h.b16 %v308
      %v731 = vunpack.c.l.b16 %v309
      %v732 = vunpack.c.h.b16 %v309
      %v733 = vunpack.c.l.b16 %v310
      %v734 = vunpack.c.h.b16 %v310
      %v735 = vunpack.c.l.b16 %v311
      %v736 = vunpack.c.h.b16 %v311
      %v737 = vunpack.c.l.b16 %v312
      %v738 = vunpack.c.h.b16 %v312
      %v739 = vunpack.c.l.b16 %v313
      %v740 = vunpack.c.h.b16 %v313
      %v741 = vunpack.c.l.b16 %v314
      %v742 = vunpack.c.h.b16 %v314
      %v743 = vunpack.c.l.b16 %v315
      %v744 = vunpack.c.h.b16 %v315
      %v745 = vunpack.c.l.b16 %v316
      %v746 = vunpack.c.h.b16 %v316
      %v747 = vunpack.c.l.b16 %v317
      %v748 = vunpack.c.h.b16 %v317
      %v749 = vunpack.c.l.b16 %v318
      %v750 = vunpack.c.h.b16 %v318
      %v751 = vunpack.c.l.b16 %v319
      %v752 = vunpack.c.h.b16 %v319
      %v753 = vunpack.c.l.b16 %v320
      %v754 = vunpack.c.h.b16 %v320
      %v755 = vunpack.c.l.b16 %v321
      %v756 = vunpack.c.h.b16 %v321
      %v757 = vunpack.c.l.b16 %v322
      %v758 = vunpack.c.h.b16 %v322
      %v759 = vunpack.c.l.b16 %v323
      %v760 = vunpack.c.h.b16 %v323
      %v761 = vunpack.c.l.b16 %v324
      %v762 = vunpack.c.h.b16 %v324
      %v763 = vunpack.c.l.b16 %v325
      %v764 = vunpack.c.h.b16 %v325
      %v765 = vunpack.c.l.b16 %v326
      %v766 = vunpack.c.h.b16 %v326
      %v767 = vunpack.c.l.b16 %v327
      %v768 = vunpack.c.h.b16 %v327
      %v769 = vunpack.c.l.b16 %v328
      %v770 = vunpack.c.h.b16 %v328
      %v771 = vunpack.c.l.b16 %v329
      %v772 = vunpack.c.h.b16 %v329
      %v773 = vunpack.c.l.b16 %v330
      %v774 = vunpack.c.h.b16 %v330
      %v775 = vunpack.c.l.b16 %v331
      %v776 = vunpack.c.h.b16 %v331
      %v777 = vunpack.c.l.b16 %v332
      %v778 = vunpack.c.h.b16 %v332
      %v779 = vunpack.c.l.b16 %v333
      %v780 = vunpack.c.h.b16 %v333
      %v781 = vunpack.c.l.b16 %v334
      %v782 = vunpack.c.h.b16 %v334
      %v783 = vunpack.c.l.b16 %v335
      %v784 = vunpack.c.h.b16 %v335
      %v785 = vunpack.c.l.b16 %v336
      %v786 = vunpack.c.h.b16 %v336
      %v787 = vunpack.c.l.b16 %v337
      %v788 = vunpack.c.h.b16 %v337
      %v789 = vunpack.c.l.b16 %v338
      %v790 = vunpack.c.h.b16 %v338
      %v791 = vunpack.c.l.b16 %v339
      %v792 = vunpack.c.h.b16 %v339
      %v793 = vunpack.c.l.b16 %v340
      %v794 = vunpack.c.h.b16 %v340
      %v795 = vunpack.c.l.b16 %v341
      %v796 = vunpack.c.h.b16 %v341
      %v797 = vunpack.c.l.b16 %v342
      %v798 = vunpack.c.h.b16 %v342
      %v799 = vunpack.c.l.b16 %v343
      %v800 = vunpack.c.h.b16 %v343
      %v801 = vunpack.c.l.b16 %v344
      %v802 = vunpack.c.h.b16 %v344
      %v803 = vunpack.c.l.b16 %v345
      %v804 = vunpack.c.h.b16 %v345
      %v805 = vunpack.c.l.b16 %v346
      %v806 = vunpack.c.h.b16 %v346
      %v807 = vunpack.c.l.b16 %v347
      %v808 = vunpack.c.h.b16 %v347
      %v809 = vunpack.c.l.b16 %v348
      %v810 = vunpack.c.h.b16 %v348
      %v811 = vunpack.c.l.b16 %v349
      %v812 = vunpack.c.h.b16 %v349
      %v813 = vunpack.c.l.b16 %v350
      %v814 = vunpack.c.h.b16 %v350
      %v815 = vunpack.c.l.b16 %v351
      %v816 = vunpack.c.h.b16 %v351
      %v817 = vunpack.c.l.b16 %v352
      %v818 = vunpack.c.h.b16 %v352
      %v819 = vunpack.c.l.b16 %v353
      %v820 = vunpack.c.h.b16 %v353
      %v821 = vunpack.c.l.b16 %v354
      %v822 = vunpack.c.h.b16 %v354
      %v823 = vunpack.c.l.b16 %v355
      %v824 = vunpack.c.h.b16 %v355
      %v825 = vunpack.c.l.b16 %v356
      %v826 = vunpack.c.h.b16 %v356
      %v827 = vunpack.c.l.b16 %v357
      %v828 = vunpack.c.h.b16 %v357
      %v829 = vunpack.c.l.b16 %v358
      %v830 = vunpack.c.h.b16 %v358
      %v831 = vunpack.c.l.b16 %v359
      %v832 = vunpack.c.h.b16 %v359
      %v833 = vunpack.c.l.b16 %v360
      %v834 = vunpack.c.h.b16 %v360
      %v835 = vunpack.c.l.b16 %v361
      %v836 = vunpack.c.h.b16 %v361
      %v837 = vunpack.c.l.b16 %v362
      %v838 = vunpack.c.h.b16 %v362
      %v839 = vunpack.c.l.b16 %v363
      %v840 = vunpack.c.h.b16 %v363
      %v841 = vunpack.c.l.b16 %v364
      %v842 = vunpack.c.h.b16 %v364
      %v843 = vunpack.c.l.b16 %v365
      %v844 = vunpack.c.h.b16 %v365
      %v845 = vunpack.c.l.b16 %v366
      %v846 = vunpack.c.h.b16 %v366
      %v847 = vunpack.c.l.b16 %v367
      %v848 = vunpack.c.h.b16 %v367
      %v849 = vunpack.c.l.b16 %v368
      %v850 = vunpack.c.h.b16 %v368
      %v851 = vunpack.c.l.b16 %v369
      %v852 = vunpack.c.h.b16 %v369
      %v853 = vunpack.c.l.b16 %v370
      %v854 = vunpack.c.h.b16 %v370
      %v855 = vunpack.c.l.b16 %v371
      %v856 = vunpack.c.h.b16 %v371
      %v857 = vunpack.c.l.b16 %v372
      %v858 = vunpack.c.h.b16 %v372
      %v859 = vunpack.c.l.b16 %v373
      %v860 = vunpack.c.h.b16 %v373
      %v861 = vunpack.c.l.b16 %v374
      %v862 = vunpack.c.h.b16 %v374
      %v863 = vunpack.c.l.b16 %v375
      %v864 = vunpack.c.h.b16 %v375
      %v865 = vunpack.c.l.b16 %v376
      %v866 = vunpack.c.h.b16 %v376
      %v867 = vunpack.c.l.b16 %v377
      %v868 = vunpack.c.h.b16 %v377
      %v869 = vunpack.c.l.b16 %v378
      %v870 = vunpack.c.h.b16 %v378
      %v871 = vunpack.c.l.b16 %v379
      %v872 = vunpack.c.h.b16 %v379
      %v873 = vunpack.c.l.b16 %v380
      %v874 = vunpack.c.h.b16 %v380
      %v875 = vunpack.c.l.b16 %v381
      %v876 = vunpack.c.h.b16 %v381
      %v877 = vunpack.c.l.b16 %v382
      %v878 = vunpack.c.h.b16 %v382
      %v879 = vunpack.c.l.b16 %v383
      %v880 = vunpack.c.h.b16 %v383
      %v881 = vunpack.c.l.b16 %v384
      %v882 = vunpack.c.h.b16 %v384
      %v883 = vunpack.c.l.b16 %v385
      %v884 = vunpack.c.h.b16 %v385
      %v885 = vunpack.c.l.b16 %v386
      %v886 = vunpack.c.h.b16 %v386
      %v887 = vunpack.c.l.b16 %v387
      %v888 = vunpack.c.h.b16 %v387
      %v889 = vunpack.c.l.b16 %v388
      %v890 = vunpack.c.h.b16 %v388
      %v891 = vunpack.c.l.b16 %v389
      %v892 = vunpack.c.h.b16 %v389
      %v893 = vunpack.c.l.b16 %v390
      %v894 = vunpack.c.h.b16 %v390
      %v895 = vunpack.c.l.b16 %v391
      %v896 = vunpack.c.h.b16 %v391
      %v897 = vunpack.c.l.b16 %v392
      %v898 = vunpack.c.h.b16 %v392
      %v899 = vunpack.c.l.b16 %v393
      %v900 = vunpack.c.h.b16 %v393
      %v901 = vunpack.c.l.b16 %v394
      %v902 = vunpack.c.h.b16 %v394
      %v903 = vunpack.c.l.b16 %v395
      %v904 = vunpack.c.h.b16 %v395
      %v905 = vunpack.c.l.b16 %v396
      %v906 = vunpack.c.h.b16 %v396
      %v907 = vunpack.c.l.b16 %v397
      %v908 = vunpack.c.h.b16 %v397
      %v909 = vunpack.c.l.b16 %v398
      %v910 = vunpack.c.h.b16 %v398
      %v911 = vunpack.c.l.b16 %v399
      %v912 = vunpack.c.h.b16 %v399
      %v913 = vunpack.c.l.b16 %v400
      %v914 = vunpack.c.h.b16 %v400
      %v915 = vunpack.c.l.b16 %v401
      %v916 = vunpack.c.h.b16 %v401
      %v917 = vunpack.c.l.b16 %v402
      %v918 = vunpack.c.h.b16 %v402
      %v919 = vunpack.c.l.b16 %v403
      %v920 = vunpack.c.h.b16 %v403
      %v921 = vunpack.c.l.b16 %v404
      %v922 = vunpack.c.h.b16 %v404
      %v923 = vunpack.c.l.b16 %v405
      %v924 = vunpack.c.h.b16 %v405
      %v925 = vpack.c.b16 %v677, %v669
      %v926 = vpack.c.b16 %v678, %v670
      %v927 = vpack.c.b16 %v679, %v671
      %v928 = vpack.c.b16 %v680, %v672
      %v929 = vpack.c.b16 %v681, %v673
      %v930 = vpack.c.b16 %v682, %v674
      %v931 = vpack.c.b16 %v683, %v675
      %v932 = vpack.c.b16 %v684, %v676
      %v933 = vpack.c.b16 %v693, %v685
      %v934 = vpack.c.b16 %v694, %v686
      %v935 = vpack.c.b16 %v695, %v687
      %v936 = vpack.c.b16 %v696, %v688
      %v937 = vpack.c.b16 %v697, %v689
      %v938 = vpack.c.b16 %v698, %v690
      %v939 = vpack.c.b16 %v699, %v691
      %v940 = vpack.c.b16 %v700, %v692
      %v941 = vpack.c.b16 %v709, %v701
      %v942 = vpack.c.b16 %v710, %v702
      %v943 = vpack.c.b16 %v711, %v703
      %v944 = vpack.c.b16 %v712, %v704
      %v945 = vpack.c.b16 %v713, %v705
      %v946 = vpack.c.b16 %v714, %v706
      %v947 = vpack.c.b16 %v715, %v707
      %v948 = vpack.c.b16 %v716, %v708
      %v949 = vpack.c.b16 %v725, %v717
      %v950 = vpack.c.b16 %v726, %v718
      %v951 = vpack.c.b16 %v727, %v719
      %v952 = vpack.c.b16 %v728, %v720
      %v953 = vpack.c.b16 %v729, %v721
      %v954 = vpack.c.b16 %v730, %v722
      %v955 = vpack.c.b16 %v731, %v723
      %v956 = vpack.c.b16 %v732, %v724
      %v957 = vpack.c.b16 %v741, %v733
      %v958 = vpack.c.b16 %v742, %v734
      %v959 = vpack.c.b16 %v743, %v735
      %v960 = vpack.c.b16 %v744, %v736
      %v961 = vpack.c.b16 %v745, %v737
      %v962 = vpack.c.b16 %v746, %v738
      %v963 = vpack.c.b16 %v747, %v739
      %v964 = vpack.c.b16 %v748, %v740
      %v965 = vpack.c.b16 %v757, %v749
      %v966 = vpack.c.b16 %v758, %v750
      %v967 = vpack.c.b16 %v759, %v751
      %v968 = vpack.c.b16 %v760, %v752
      %v969 = vpack.c.b16 %v761, %v753
      %v970 = vpack.c.b16 %v762, %v754
      %v971 = vpack.c.b16 %v763, %v755
      %v972 = vpack.c.b16 %v764, %v756
      %v973 = vpack.c.b16 %v773, %v765
      %v974 = vpack.c.b16 %v774, %v766
      %v975 = vpack.c.b16 %v775, %v767
      %v976 = vpack.c.b16 %v776, %v768
      %v977 = vpack.c.b16 %v777, %v769
      %v978 = vpack.c.b16 %v778, %v770
      %v979 = vpack.c.b16 %v779, %v771
      %v980 = vpack.c.b16 %v780, %v772
      %v981 = vpack.c.b16 %v789, %v781
      %v982 = vpack.c.b16 %v790, %v782
      %v983 = vpack.c.b16 %v791, %v783
      %v984 = vpack.c.b16 %v792, %v784
      %v985 = vpack.c.b16 %v793, %v785
      %v986 = vpack.c.b16 %v794, %v786
      %v987 = vpack.c.b16 %v795, %v787
      %v988 = vpack.c.b16 %v796, %v788
      %v989 = vpack.c.b16 %v805, %v797
      %v990 = vpack.c.b16 %v806, %v798
      %v991 = vpack.c.b16 %v807, %v799
      %v992 = vpack.c.b16 %v808, %v800
      %v993 = vpack.c.b16 %v809, %v801
      %v994 = vpack.c.b16 %v810, %v802
      %v995 = vpack.c.b16 %v811, %v803
      %v996 = vpack.c.b16 %v812, %v804
      %v997 = vpack.c.b16 %v821, %v813
      %v998 = vpack.c.b16 %v822, %v814
      %v999 = vpack.c.b16 %v823, %v815
      %v1000 = vpack.c.b16 %v824, %v816
      %v1001 = vpack.c.b16 %v825, %v817
      %v1002 = vpack.c.b16 %v826, %v818
      %v1003 = vpack.c.b16 %v827, %v819
      %v1004 = vpack.c.b16 %v828, %v820
      %v1005 = vpack.c.b16 %v837, %v829
      %v1006 = vpack.c.b16 %v838, %v830
      %v1007 = vpack.c.b16 %v839, %v831
      %v1008 = vpack.c.b16 %v840, %v832
      %v1009 = vpack.c.b16 %v841, %v833
      %v1010 = vpack.c.b16 %v842, %v834
      %v1011 = vpack.c.b16 %v843, %v835
      %v1012 = vpack.c.b16 %v844, %v836
      %v1013 = vpack.c.b16 %v853, %v845
      %v1014 = vpack.c.b16 %v854, %v846
      %v1015 = vpack.c.b16 %v855, %v847
      %v1016 = vpack.c.b16 %v856, %v848
      %v1017 = vpack.c.b16 %v857, %v849
      %v1018 = vpack.c.b16 %v858, %v850
      %v1019 = vpack.c.b16 %v859, %v851
      %v1020 = vpack.c.b16 %v860, %v852
      %v1021 = vpack.c.b16 %v869, %v861
      %v1022 = vpack.c.b16 %v870, %v862
      %v1023 = vpack.c.b16 %v871, %v863
      %v1024 = vpack.c.b16 %v872, %v864
      %v1025 = vpack.c.b16 %v873, %v865
      %v1026 = vpack.c.b16 %v874, %v866
      %v1027 = vpack.c.b16 %v875, %v867
      %v1028 = vpack.c.b16 %v876, %v868
      %v1029 = vpack.c.b16 %v885, %v877
      %v1030 = vpack.c.b16 %v886, %v878
      %v1031 = vpack.c.b16 %v887, %v879
      %v1032 = vpack.c.b16 %v888, %v880
      %v1033 = vpack.c.b16 %v889, %v881
      %v1034 = vpack.c.b16 %v890, %v882
      %v1035 = vpack.c.b16 %v891, %v883
      %v1036 = vpack.c.b16 %v892, %v884
      %v1037 = vpack.c.b16 %v901, %v893
      %v1038 = vpack.c.b16 %v902, %v894
      %v1039 = vpack.c.b16 %v903, %v895
      %v1040 = vpack.c.b16 %v904, %v896
      %v1041 = vpack.c.b16 %v905, %v897
      %v1042 = vpack.c.b16 %v906, %v898
      %v1043 = vpack.c.b16 %v907, %v899
      %v1044 = vpack.c.b16 %v908, %v900
      %v1045 = vpack.c.b16 %v917, %v909
      %v1046 = vpack.c.b16 %v918, %v910
      %v1047 = vpack.c.b16 %v919, %v911
      %v1048 = vpack.c.b16 %v920, %v912
      %v1049 = vpack.c.b16 %v921, %v913
      %v1050 = vpack.c.b16 %v922, %v914
      %v1051 = vpack.c.b16 %v923, %v915
      %v1052 = vpack.c.b16 %v924, %v916
      %v1309 = vunpack.c.l.b16 %v406
      %v1310 = vunpack.c.l.b16 %v407
      %v1311 = vunpack.c.l.b16 %v408
      %v1312 = vunpack.c.l.b16 %v409
      %v1313 = vunpack.c.l.b16 %v410
      %v1314 = vunpack.c.l.b16 %v411
      %v1315 = vunpack.c.l.b16 %v412
      %v1316 = vunpack.c.l.b16 %v413
      %v1317 = vunpack.c.l.b16 %v414
      %v1318 = vunpack.c.l.b16 %v415
      %v1319 = vunpack.c.l.b16 %v416
      %v1320 = vunpack.c.l.b16 %v417
      %v1321 = vunpack.c.l.b16 %v418
      %v1322 = vunpack.c.l.b16 %v419
      %v1323 = vunpack.c.l.b16 %v420
      %v1324 = vunpack.c.l.b16 %v421
      %v1325 = vunpack.c.l.b16 %v422
      %v1326 = vunpack.c.l.b16 %v423
      %v1327 = vunpack.c.l.b16 %v424
      %v1328 = vunpack.c.l.b16 %v425
      %v1329 = vunpack.c.l.b16 %v426
      %v1330 = vunpack.c.l.b16 %v427
      %v1331 = vunpack.c.l.b16 %v428
      %v1332 = vunpack.c.l.b16 %v429
      %v1333 = vunpack.c.l.b16 %v430
      %v1334 = vunpack.c.l.b16 %v431
      %v1335 = vunpack.c.l.b16 %v432
      %v1336 = vunpack.c.l.b16 %v433
      %v1337 = vunpack.c.l.b16 %v434
      %v1338 = vunpack.c.l.b16 %v435
      %v1339 = vunpack.c.l.b16 %v436
      %v1340 = vunpack.c.l.b16 %v437
      %v1341 = vunpack.c.l.b16 %v438
      %v1342 = vunpack.c.l.b16 %v439
      %v1343 = vunpack.c.l.b16 %v440
      %v1344 = vunpack.c.l.b16 %v441
      %v1345 = vunpack.c.l.b16 %v442
      %v1346 = vunpack.c.l.b16 %v443
      %v1347 = vunpack.c.l.b16 %v444
      %v1348 = vunpack.c.l.b16 %v445
      %v1349 = vunpack.c.l.b16 %v446
      %v1350 = vunpack.c.l.b16 %v447
      %v1351 = vunpack.c.l.b16 %v448
      %v1352 = vunpack.c.l.b16 %v449
      %v1353 = vunpack.c.l.b16 %v450
      %v1354 = vunpack.c.l.b16 %v451
      %v1355 = vunpack.c.l.b16 %v452
      %v1356 = vunpack.c.l.b16 %v453
      %v1357 = vunpack.c.l.b16 %v454
      %v1358 = vunpack.c.l.b16 %v455
      %v1359 = vunpack.c.l.b16 %v456
      %v1360 = vunpack.c.l.b16 %v457
      %v1361 = vunpack.c.l.b16 %v458
      %v1362 = vunpack.c.l.b16 %v459
      %v1363 = vunpack.c.l.b16 %v460
      %v1364 = vunpack.c.l.b16 %v461
      %v1365 = vunpack.c.l.b16 %v462
      %v1366 = vunpack.c.l.b16 %v463
      %v1367 = vunpack.c.l.b16 %v464
      %v1368 = vunpack.c.l.b16 %v465
      %v1369 = vunpack.c.l.b16 %v466
      %v1370 = vunpack.c.l.b16 %v467
      %v1371 = vunpack.c.l.b16 %v468
      %v1372 = vunpack.c.l.b16 %v469
      %v1373 = vunpack.c.l.b16 %v470
      %v1374 = vunpack.c.l.b16 %v471
      %v1375 = vunpack.c.l.b16 %v472
      %v1376 = vunpack.c.l.b16 %v473
      %v1377 = vunpack.c.l.b16 %v474
      %v1378 = vunpack.c.l.b16 %v475
      %v1379 = vunpack.c.l.b16 %v476
      %v1380 = vunpack.c.l.b16 %v477
      %v1381 = vunpack.c.l.b16 %v478
      %v1382 = vunpack.c.l.b16 %v479
      %v1383 = vunpack.c.l.b16 %v480
      %v1384 = vunpack.c.l.b16 %v481
      %v1385 = vunpack.c.l.b16 %v482
      %v1386 = vunpack.c.l.b16 %v483
      %v1387 = vunpack.c.l.b16 %v484
      %v1388 = vunpack.c.l.b16 %v485
      %v1389 = vunpack.c.l.b16 %v486
      %v1390 = vunpack.c.l.b16 %v487
      %v1391 = vunpack.c.l.b16 %v488
      %v1392 = vunpack.c.l.b16 %v489
      %v1393 = vunpack.c.l.b16 %v490
      %v1394 = vunpack.c.l.b16 %v491
      %v1395 = vunpack.c.l.b16 %v492
      %v1396 = vunpack.c.l.b16 %v493
      %v1397 = vunpack.c.l.b16 %v494
      %v1398 = vunpack.c.l.b16 %v495
      %v1399 = vunpack.c.l.b16 %v496
      %v1400 = vunpack.c.l.b16 %v497
      %v1401 = vunpack.c.l.b16 %v498
      %v1402 = vunpack.c.l.b16 %v499
      %v1403 = vunpack.c.l.b16 %v500
      %v1404 = vunpack.c.l.b16 %v501
      %v1405 = vunpack.c.l.b16 %v502
      %v1406 = vunpack.c.l.b16 %v503
      %v1407 = vunpack.c.l.b16 %v504
      %v1408 = vunpack.c.l.b16 %v505
      %v1409 = vunpack.c.l.b16 %v506
      %v1410 = vunpack.c.l.b16 %v507
      %v1411 = vunpack.c.l.b16 %v508
      %v1412 = vunpack.c.l.b16 %v509
      %v1413 = vunpack.c.l.b16 %v510
      %v1414 = vunpack.c.l.b16 %v511
      %v1415 = vunpack.c.l.b16 %v512
      %v1416 = vunpack.c.l.b16 %v513
      %v1417 = vunpack.c.l.b16 %v514
      %v1418 = vunpack.c.l.b16 %v515
      %v1419 = vunpack.c.l.b16 %v516
      %v1420 = vunpack.c.l.b16 %v517
      %v1421 = vunpack.c.l.b16 %v518
      %v1422 = vunpack.c.l.b16 %v519
      %v1423 = vunpack.c.l.b16 %v520
      %v1424 = vunpack.c.l.b16 %v521
      %v1425 = vunpack.c.l.b16 %v522
      %v1426 = vunpack.c.l.b16 %v523
      %v1427 = vunpack.c.l.b16 %v524
      %v1428 = vunpack.c.l.b16 %v525
      %v1429 = vunpack.c.l.b16 %v526
      %v1430 = vunpack.c.l.b16 %v527
      %v1431 = vunpack.c.l.b16 %v528
      %v1432 = vunpack.c.l.b16 %v529
      %v1433 = vunpack.c.l.b16 %v530
      %v1434 = vunpack.c.l.b16 %v531
      %v1435 = vunpack.c.l.b16 %v532
      %v1436 = vunpack.c.l.b16 %v533
      %v1437 = vpack.c.b16 %v1310, %v1309
      %v1438 = vpack.c.b16 %v1312, %v1311
      %v1439 = vpack.c.b16 %v1314, %v1313
      %v1440 = vpack.c.b16 %v1316, %v1315
      %v1441 = vpack.c.b16 %v1318, %v1317
      %v1442 = vpack.c.b16 %v1320, %v1319
      %v1443 = vpack.c.b16 %v1322, %v1321
      %v1444 = vpack.c.b16 %v1324, %v1323
      %v1445 = vpack.c.b16 %v1326, %v1325
      %v1446 = vpack.c.b16 %v1328, %v1327
      %v1447 = vpack.c.b16 %v1330, %v1329
      %v1448 = vpack.c.b16 %v1332, %v1331
      %v1449 = vpack.c.b16 %v1334, %v1333
      %v1450 = vpack.c.b16 %v1336, %v1335
      %v1451 = vpack.c.b16 %v1338, %v1337
      %v1452 = vpack.c.b16 %v1340, %v1339
      %v1453 = vpack.c.b16 %v1342, %v1341
      %v1454 = vpack.c.b16 %v1344, %v1343
      %v1455 = vpack.c.b16 %v1346, %v1345
      %v1456 = vpack.c.b16 %v1348, %v1347
      %v1457 = vpack.c.b16 %v1350, %v1349
      %v1458 = vpack.c.b16 %v1352, %v1351
      %v1459 = vpack.c.b16 %v1354, %v1353
      %v1460 = vpack.c.b16 %v1356, %v1355
      %v1461 = vpack.c.b16 %v1358, %v1357
      %v1462 = vpack.c.b16 %v1360, %v1359
      %v1463 = vpack.c.b16 %v1362, %v1361
      %v1464 = vpack.c.b16 %v1364, %v1363
      %v1465 = vpack.c.b16 %v1366, %v1365
      %v1466 = vpack.c.b16 %v1368, %v1367
      %v1467 = vpack.c.b16 %v1370, %v1369
      %v1468 = vpack.c.b16 %v1372, %v1371
      %v1469 = vpack.c.b16 %v1374, %v1373
      %v1470 = vpack.c.b16 %v1376, %v1375
      %v1471 = vpack.c.b16 %v1378, %v1377
      %v1472 = vpack.c.b16 %v1380, %v1379
      %v1473 = vpack.c.b16 %v1382, %v1381
      %v1474 = vpack.c.b16 %v1384, %v1383
      %v1475 = vpack.c.b16 %v1386, %v1385
      %v1476 = vpack.c.b16 %v1388, %v1387
      %v1477 = vpack.c.b16 %v1390, %v1389
      %v1478 = vpack.c.b16 %v1392, %v1391
      %v1479 = vpack.c.b16 %v1394, %v1393
      %v1480 = vpack.c.b16 %v1396, %v1395
      %v1481 = vpack.c.b16 %v1398, %v1397
      %v1482 = vpack.c.b16 %v1400, %v1399
      %v1483 = vpack.c.b16 %v1402, %v1401
      %v1484 = vpack.c.b16 %v1404, %v1403
      %v1485 = vpack.c.b16 %v1406, %v1405
      %v1486 = vpack.c.b16 %v1408, %v1407
      %v1487 = vpack.c.b16 %v1410, %v1409
      %v1488 = vpack.c.b16 %v1412, %v1411
      %v1489 = vpack.c.b16 %v1414, %v1413
      %v1490 = vpack.c.b16 %v1416, %v1415
      %v1491 = vpack.c.b16 %v1418, %v1417
      %v1492 = vpack.c.b16 %v1420, %v1419
      %v1493 = vpack.c.b16 %v1422, %v1421
      %v1494 = vpack.c.b16 %v1424, %v1423
      %v1495 = vpack.c.b16 %v1426, %v1425
      %v1496 = vpack.c.b16 %v1428, %v1427
      %v1497 = vpack.c.b16 %v1430, %v1429
      %v1498 = vpack.c.b16 %v1432, %v1431
      %v1499 = vpack.c.b16 %v1434, %v1433
      %v1500 = vpack.c.b16 %v1436, %v1435
      %1565 = vmatprep.subr.bf16.mxu0 0
      %1566 = vmatpush1.bf16.msra.mxu0 %v1437
      %1567 = vmatprep.subr.bf16.mxu0 0
      %1568 = vmatpush1.bf16.msra.mxu0 %v1438
      %1569 = vmatprep.subr.bf16.mxu0 0
      %1570 = vmatpush1.bf16.msra.mxu0 %v1439
      %1571 = vmatprep.subr.bf16.mxu0 0
      %1572 = vmatpush1.bf16.msra.mxu0 %v1440
      %1573 = vmatprep.subr.bf16.mxu0 0
      %1574 = vmatpush1.bf16.msra.mxu0 %v1441
      %1575 = vmatprep.subr.bf16.mxu0 0
      %1576 = vmatpush1.bf16.msra.mxu0 %v1442
      %1577 = vmatprep.subr.bf16.mxu0 0
      %1578 = vmatpush1.bf16.msra.mxu0 %v1443
      %1579 = vmatprep.subr.bf16.mxu0 0
      %1580 = vmatpush1.bf16.msra.mxu0 %v1444
      %1581 = vmatprep.subr.bf16.mxu0 0
      %1582 = vmatpush1.bf16.msra.mxu0 %v1445
      %1583 = vmatprep.subr.bf16.mxu0 0
      %1584 = vmatpush1.bf16.msra.mxu0 %v1446
      %1585 = vmatprep.subr.bf16.mxu0 0
      %1586 = vmatpush1.bf16.msra.mxu0 %v1447
      %1587 = vmatprep.subr.bf16.mxu0 0
      %1588 = vmatpush1.bf16.msra.mxu0 %v1448
      %1589 = vmatprep.subr.bf16.mxu0 0
      %1590 = vmatpush1.bf16.msra.mxu0 %v1449
      %1591 = vmatprep.subr.bf16.mxu0 0
      %1592 = vmatpush1.bf16.msra.mxu0 %v1450
      %1593 = vmatprep.subr.bf16.mxu0 0
      %1594 = vmatpush1.bf16.msra.mxu0 %v1451
      %1595 = vmatprep.subr.bf16.mxu0 0
      %1596 = vmatpush1.bf16.msra.mxu0 %v1452
      %1597 = vmatprep.mubr.bf16.mxu0 %v926
      %1598 = vmatmul.mubr.bf16.gmra.mrb[0].mxu0 %v925
      %v1599 = vpop.f32.mrb[0].mxu0
      %v1600 = vadd.f32 %v539, %v1599
      %v1601 = vpop.f32.mrb[0].mxu0
      %v1602 = vpop.f32.mrb[0].mxu0
      %v1603 = vadd.f32 %v539, %v1602
      %v1604 = vpop.f32.mrb[0].mxu0
      %1605 = vmatprep.mubr.bf16.mxu0 %v934
      %1606 = vmatmul.mubr.bf16.gmra.mrb[0].mxu0 %v933
      %v1607 = vpop.f32.mrb[0].mxu0
      %v1608 = vadd.f32 %v539, %v1607
      %v1609 = vpop.f32.mrb[0].mxu0
      %v1610 = vpop.f32.mrb[0].mxu0
      %v1611 = vadd.f32 %v539, %v1610
      %v1612 = vpop.f32.mrb[0].mxu0
      %1613 = vmatprep.mubr.bf16.mxu0 %v942
      %1614 = vmatmul.mubr.bf16.gmra.mrb[0].mxu0 %v941
      %v1615 = vpop.f32.mrb[0].mxu0
      %v1616 = vadd.f32 %v539, %v1615
      %v1617 = vpop.f32.mrb[0].mxu0
      %v1618 = vpop.f32.mrb[0].mxu0
      %v1619 = vadd.f32 %v539, %v1618
      %v1620 = vpop.f32.mrb[0].mxu0
      %1621 = vmatprep.mubr.bf16.mxu0 %v950
      %1622 = vmatmul.mubr.bf16.gmra.mrb[0].mxu0 %v949
      %v1623 = vpop.f32.mrb[0].mxu0
      %v1624 = vadd.f32 %v539, %v1623
      %v1625 = vpop.f32.mrb[0].mxu0
      %v1626 = vpop.f32.mrb[0].mxu0
      %v1627 = vadd.f32 %v539, %v1626
      %v1628 = vpop.f32.mrb[0].mxu0
      %1629 = vmatprep.mubr.bf16.mxu0 %v958
      %1630 = vmatmul.mubr.bf16.gmra.mrb[0].mxu0 %v957
      %v1631 = vpop.f32.mrb[0].mxu0
      %v1632 = vadd.f32 %v539, %v1631
      %v1633 = vpop.f32.mrb[0].mxu0
      %v1634 = vpop.f32.mrb[0].mxu0
      %v1635 = vadd.f32 %v539, %v1634
      %v1636 = vpop.f32.mrb[0].mxu0
      %1637 = vmatprep.mubr.bf16.mxu0 %v966
      %1638 = vmatmul.mubr.bf16.gmra.mrb[0].mxu0 %v965
      %v1639 = vpop.f32.mrb[0].mxu0
      %v1640 = vadd.f32 %v539, %v1639
      %v1641 = vpop.f32.mrb[0].mxu0
      %v1642 = vpop.f32.mrb[0].mxu0
      %v1643 = vadd.f32 %v539, %v1642
      %v1644 = vpop.f32.mrb[0].mxu0
      %1645 = vmatprep.mubr.bf16.mxu0 %v974
      %1646 = vmatmul.mubr.bf16.gmra.mrb[0].mxu0 %v973
      %v1647 = vpop.f32.mrb[0].mxu0
      %v1648 = vadd.f32 %v539, %v1647
      %v1649 = vpop.f32.mrb[0].mxu0
      %v1650 = vpop.f32.mrb[0].mxu0
      %v1651 = vadd.f32 %v539, %v1650
      %v1652 = vpop.f32.mrb[0].mxu0
      %1653 = vmatprep.mubr.bf16.mxu0 %v982
      %1654 = vmatmul.mubr.bf16.gmra.mrb[0].mxu0 %v981
      %v1655 = vpop.f32.mrb[0].mxu0
      %v1656 = vadd.f32 %v539, %v1655
      %v1657 = vpop.f32.mrb[0].mxu0
      %v1658 = vpop.f32.mrb[0].mxu0
      %v1659 = vadd.f32 %v539, %v1658
      %v1660 = vpop.f32.mrb[0].mxu0
      %1661 = vmatprep.mubr.bf16.mxu0 %v990
      %1662 = vmatmul.mubr.bf16.gmra.mrb[0].mxu0 %v989
      %v1663 = vpop.f32.mrb[0].mxu0
      %v1664 = vadd.f32 %v539, %v1663
      %v1665 = vpop.f32.mrb[0].mxu0
      %v1666 = vpop.f32.mrb[0].mxu0
      %v1667 = vadd.f32 %v539, %v1666
      %v1668 = vpop.f32.mrb[0].mxu0
      %1669 = vmatprep.mubr.bf16.mxu0 %v998
      %1670 = vmatmul.mubr.bf16.gmra.mrb[0].mxu0 %v997
      %v1671 = vpop.f32.mrb[0].mxu0
      %v1672 = vadd.f32 %v539, %v1671
      %v1673 = vpop.f32.mrb[0].mxu0
      %v1674 = vpop.f32.mrb[0].mxu0
      %v1675 = vadd.f32 %v539, %v1674
      %v1676 = vpop.f32.mrb[0].mxu0
      %1677 = vmatprep.mubr.bf16.mxu0 %v1006
      %1678 = vmatmul.mubr.bf16.gmra.mrb[0].mxu0 %v1005
      %v1679 = vpop.f32.mrb[0].mxu0
      %v1680 = vadd.f32 %v539, %v1679
      %v1681 = vpop.f32.mrb[0].mxu0
      %v1682 = vpop.f32.mrb[0].mxu0
      %v1683 = vadd.f32 %v539, %v1682
      %v1684 = vpop.f32.mrb[0].mxu0
      %1685 = vmatprep.mubr.bf16.mxu0 %v1014
      %1686 = vmatmul.mubr.bf16.gmra.mrb[0].mxu0 %v1013
      %v1687 = vpop.f32.mrb[0].mxu0
      %v1688 = vadd.f32 %v539, %v1687
      %v1689 = vpop.f32.mrb[0].mxu0
      %v1690 = vpop.f32.mrb[0].mxu0
      %v1691 = vadd.f32 %v539, %v1690
      %v1692 = vpop.f32.mrb[0].mxu0
      %1693 = vmatprep.mubr.bf16.mxu0 %v1022
      %1694 = vmatmul.mubr.bf16.gmra.mrb[0].mxu0 %v1021
      %v1695 = vpop.f32.mrb[0].mxu0
      %v1696 = vadd.f32 %v539, %v1695
      %v1697 = vpop.f32.mrb[0].mxu0
      %v1698 = vpop.f32.mrb[0].mxu0
      %v1699 = vadd.f32 %v539, %v1698
      %v1700 = vpop.f32.mrb[0].mxu0
      %1701 = vmatprep.mubr.bf16.mxu0 %v1030
      %1702 = vmatmul.mubr.bf16.gmra.mrb[0].mxu0 %v1029
      %v1703 = vpop.f32.mrb[0].mxu0
      %v1704 = vadd.f32 %v539, %v1703
      %v1705 = vpop.f32.mrb[0].mxu0
      %v1706 = vpop.f32.mrb[0].mxu0
      %v1707 = vadd.f32 %v539, %v1706
      %v1708 = vpop.f32.mrb[0].mxu0
      %1709 = vmatprep.mubr.bf16.mxu0 %v1038
      %1710 = vmatmul.mubr.bf16.gmra.mrb[0].mxu0 %v1037
      %v1711 = vpop.f32.mrb[0].mxu0
      %v1712 = vadd.f32 %v539, %v1711
      %v1713 = vpop.f32.mrb[0].mxu0
      %v1714 = vpop.f32.mrb[0].mxu0
      %v1715 = vadd.f32 %v539, %v1714
      %v1716 = vpop.f32.mrb[0].mxu0
      %1717 = vmatprep.mubr.bf16.mxu0 %v1046
      %1718 = vmatmul.mubr.bf16.gmra.mrb[0].mxu0 %v1045
      %v1719 = vpop.f32.mrb[0].mxu0
      %v1720 = vadd.f32 %v539, %v1719
      %v1721 = vpop.f32.mrb[0].mxu0
      %v1722 = vpop.f32.mrb[0].mxu0
      %v1723 = vadd.f32 %v539, %v1722
      %v1724 = vpop.f32.mrb[0].mxu0
      %1725 = vdwg.mxu0
      %1726 = vmatprep.subr.bf16.mxu0 0
      %1727 = vmatpush1.bf16.msra.mxu0 %v1453
      %1728 = vmatprep.subr.bf16.mxu0 0
      %1729 = vmatpush1.bf16.msra.mxu0 %v1454
      %1730 = vmatprep.subr.bf16.mxu0 0
      %1731 = vmatpush1.bf16.msra.mxu0 %v1455
      %1732 = vmatprep.subr.bf16.mxu0 0
      %1733 = vmatpush1.bf16.msra.mxu0 %v1456
      %1734 = vmatprep.subr.bf16.mxu0 0
      %1735 = vmatpush1.bf16.msra.mxu0 %v1457
      %1736 = vmatprep.subr.bf16.mxu0 0
      %1737 = vmatpush1.bf16.msra.mxu0 %v1458
      %1738 = vmatprep.subr.bf16.mxu0 0
      %1739 = vmatpush1.bf16.msra.mxu0 %v1459
      %1740 = vmatprep.subr.bf16.mxu0 0
      %1741 = vmatpush1.bf16.msra.mxu0 %v1460
      %1742 = vmatprep.subr.bf16.mxu0 0
      %1743 = vmatpush1.bf16.msra.mxu0 %v1461
      %1744 = vmatprep.subr.bf16.mxu0 0
      %1745 = vmatpush1.bf16.msra.mxu0 %v1462
      %1746 = vmatprep.subr.bf16.mxu0 0
      %1747 = vmatpush1.bf16.msra.mxu0 %v1463
      %1748 = vmatprep.subr.bf16.mxu0 0
      %1749 = vmatpush1.bf16.msra.mxu0 %v1464
      %1750 = vmatprep.subr.bf16.mxu0 0
      %1751 = vmatpush1.bf16.msra.mxu0 %v1465
      %1752 = vmatprep.subr.bf16.mxu0 0
      %1753 = vmatpush1.bf16.msra.mxu0 %v1466
      %1754 = vmatprep.subr.bf16.mxu0 0
      %1755 = vmatpush1.bf16.msra.mxu0 %v1467
      %1756 = vmatprep.subr.bf16.mxu0 0
      %1757 = vmatpush1.bf16.msra.mxu0 %v1468
      %1758 = vmatprep.mubr.bf16.mxu0 %v928
      %1759 = vmatmul.mubr.bf16.gmra.mrb[0].mxu0 %v927
      %v1760 = vpop.f32.mrb[0].mxu0
      %v1761 = vadd.f32 %v1600, %v1760
      %v1762 = vpop.f32.mrb[0].mxu0
      %v1763 = vpop.f32.mrb[0].mxu0
      %v1764 = vadd.f32 %v1603, %v1763
      %v1765 = vpop.f32.mrb[0].mxu0
      %1766 = vmatprep.mubr.bf16.mxu0 %v936
      %1767 = vmatmul.mubr.bf16.gmra.mrb[0].mxu0 %v935
      %v1768 = vpop.f32.mrb[0].mxu0
      %v1769 = vadd.f32 %v1608, %v1768
      %v1770 = vpop.f32.mrb[0].mxu0
      %v1771 = vpop.f32.mrb[0].mxu0
      %v1772 = vadd.f32 %v1611, %v1771
      %v1773 = vpop.f32.mrb[0].mxu0
      %1774 = vmatprep.mubr.bf16.mxu0 %v944
      %1775 = vmatmul.mubr.bf16.gmra.mrb[0].mxu0 %v943
      %v1776 = vpop.f32.mrb[0].mxu0
      %v1777 = vadd.f32 %v1616, %v1776
      %v1778 = vpop.f32.mrb[0].mxu0
      %v1779 = vpop.f32.mrb[0].mxu0
      %v1780 = vadd.f32 %v1619, %v1779
      %v1781 = vpop.f32.mrb[0].mxu0
      %1782 = vmatprep.mubr.bf16.mxu0 %v952
      %1783 = vmatmul.mubr.bf16.gmra.mrb[0].mxu0 %v951
      %v1784 = vpop.f32.mrb[0].mxu0
      %v1785 = vadd.f32 %v1624, %v1784
      %v1786 = vpop.f32.mrb[0].mxu0
      %v1787 = vpop.f32.mrb[0].mxu0
      %v1788 = vadd.f32 %v1627, %v1787
      %v1789 = vpop.f32.mrb[0].mxu0
      %1790 = vmatprep.mubr.bf16.mxu0 %v960
      %1791 = vmatmul.mubr.bf16.gmra.mrb[0].mxu0 %v959
      %v1792 = vpop.f32.mrb[0].mxu0
      %v1793 = vadd.f32 %v1632, %v1792
      %v1794 = vpop.f32.mrb[0].mxu0
      %v1795 = vpop.f32.mrb[0].mxu0
      %v1796 = vadd.f32 %v1635, %v1795
      %v1797 = vpop.f32.mrb[0].mxu0
      %1798 = vmatprep.mubr.bf16.mxu0 %v968
      %1799 = vmatmul.mubr.bf16.gmra.mrb[0].mxu0 %v967
      %v1800 = vpop.f32.mrb[0].mxu0
      %v1801 = vadd.f32 %v1640, %v1800
      %v1802 = vpop.f32.mrb[0].mxu0
      %v1803 = vpop.f32.mrb[0].mxu0
      %v1804 = vadd.f32 %v1643, %v1803
      %v1805 = vpop.f32.mrb[0].mxu0
      %1806 = vmatprep.mubr.bf16.mxu0 %v976
      %1807 = vmatmul.mubr.bf16.gmra.mrb[0].mxu0 %v975
      %v1808 = vpop.f32.mrb[0].mxu0
      %v1809 = vadd.f32 %v1648, %v1808
      %v1810 = vpop.f32.mrb[0].mxu0
      %v1811 = vpop.f32.mrb[0].mxu0
      %v1812 = vadd.f32 %v1651, %v1811
      %v1813 = vpop.f32.mrb[0].mxu0
      %1814 = vmatprep.mubr.bf16.mxu0 %v984
      %1815 = vmatmul.mubr.bf16.gmra.mrb[0].mxu0 %v983
      %v1816 = vpop.f32.mrb[0].mxu0
      %v1817 = vadd.f32 %v1656, %v1816
      %v1818 = vpop.f32.mrb[0].mxu0
      %v1819 = vpop.f32.mrb[0].mxu0
      %v1820 = vadd.f32 %v1659, %v1819
      %v1821 = vpop.f32.mrb[0].mxu0
      %1822 = vmatprep.mubr.bf16.mxu0 %v992
      %1823 = vmatmul.mubr.bf16.gmra.mrb[0].mxu0 %v991
      %v1824 = vpop.f32.mrb[0].mxu0
      %v1825 = vadd.f32 %v1664, %v1824
      %v1826 = vpop.f32.mrb[0].mxu0
      %v1827 = vpop.f32.mrb[0].mxu0
      %v1828 = vadd.f32 %v1667, %v1827
      %v1829 = vpop.f32.mrb[0].mxu0
      %1830 = vmatprep.mubr.bf16.mxu0 %v1000
      %1831 = vmatmul.mubr.bf16.gmra.mrb[0].mxu0 %v999
      %v1832 = vpop.f32.mrb[0].mxu0
      %v1833 = vadd.f32 %v1672, %v1832
      %v1834 = vpop.f32.mrb[0].mxu0
      %v1835 = vpop.f32.mrb[0].mxu0
      %v1836 = vadd.f32 %v1675, %v1835
      %v1837 = vpop.f32.mrb[0].mxu0
      %1838 = vmatprep.mubr.bf16.mxu0 %v1008
      %1839 = vmatmul.mubr.bf16.gmra.mrb[0].mxu0 %v1007
      %v1840 = vpop.f32.mrb[0].mxu0
      %v1841 = vadd.f32 %v1680, %v1840
      %v1842 = vpop.f32.mrb[0].mxu0
      %v1843 = vpop.f32.mrb[0].mxu0
      %v1844 = vadd.f32 %v1683, %v1843
      %v1845 = vpop.f32.mrb[0].mxu0
      %1846 = vmatprep.mubr.bf16.mxu0 %v1016
      %1847 = vmatmul.mubr.bf16.gmra.mrb[0].mxu0 %v1015
      %v1848 = vpop.f32.mrb[0].mxu0
      %v1849 = vadd.f32 %v1688, %v1848
      %v1850 = vpop.f32.mrb[0].mxu0
      %v1851 = vpop.f32.mrb[0].mxu0
      %v1852 = vadd.f32 %v1691, %v1851
      %v1853 = vpop.f32.mrb[0].mxu0
      %1854 = vmatprep.mubr.bf16.mxu0 %v1024
      %1855 = vmatmul.mubr.bf16.gmra.mrb[0].mxu0 %v1023
      %v1856 = vpop.f32.mrb[0].mxu0
      %v1857 = vadd.f32 %v1696, %v1856
      %v1858 = vpop.f32.mrb[0].mxu0
      %v1859 = vpop.f32.mrb[0].mxu0
      %v1860 = vadd.f32 %v1699, %v1859
      %v1861 = vpop.f32.mrb[0].mxu0
      %1862 = vmatprep.mubr.bf16.mxu0 %v1032
      %1863 = vmatmul.mubr.bf16.gmra.mrb[0].mxu0 %v1031
      %v1864 = vpop.f32.mrb[0].mxu0
      %v1865 = vadd.f32 %v1704, %v1864
      %v1866 = vpop.f32.mrb[0].mxu0
      %v1867 = vpop.f32.mrb[0].mxu0
      %v1868 = vadd.f32 %v1707, %v1867
      %v1869 = vpop.f32.mrb[0].mxu0
      %1870 = vmatprep.mubr.bf16.mxu0 %v1040
      %1871 = vmatmul.mubr.bf16.gmra.mrb[0].mxu0 %v1039
      %v1872 = vpop.f32.mrb[0].mxu0
      %v1873 = vadd.f32 %v1712, %v1872
      %v1874 = vpop.f32.mrb[0].mxu0
      %v1875 = vpop.f32.mrb[0].mxu0
      %v1876 = vadd.f32 %v1715, %v1875
      %v1877 = vpop.f32.mrb[0].mxu0
      %1878 = vmatprep.mubr.bf16.mxu0 %v1048
      %1879 = vmatmul.mubr.bf16.gmra.mrb[0].mxu0 %v1047
      %v1880 = vpop.f32.mrb[0].mxu0
      %v1881 = vadd.f32 %v1720, %v1880
      %v1882 = vpop.f32.mrb[0].mxu0
      %v1883 = vpop.f32.mrb[0].mxu0
      %v1884 = vadd.f32 %v1723, %v1883
      %v1885 = vpop.f32.mrb[0].mxu0
      %1886 = vdwg.mxu0
      %1887 = vmatprep.subr.bf16.mxu0 0
      %1888 = vmatpush1.bf16.msra.mxu0 %v1469
      %1889 = vmatprep.subr.bf16.mxu0 0
      %1890 = vmatpush1.bf16.msra.mxu0 %v1470
      %1891 = vmatprep.subr.bf16.mxu0 0
      %1892 = vmatpush1.bf16.msra.mxu0 %v1471
      %1893 = vmatprep.subr.bf16.mxu0 0
      %1894 = vmatpush1.bf16.msra.mxu0 %v1472
      %1895 = vmatprep.subr.bf16.mxu0 0
      %1896 = vmatpush1.bf16.msra.mxu0 %v1473
      %1897 = vmatprep.subr.bf16.mxu0 0
      %1898 = vmatpush1.bf16.msra.mxu0 %v1474
      %1899 = vmatprep.subr.bf16.mxu0 0
      %1900 = vmatpush1.bf16.msra.mxu0 %v1475
      %1901 = vmatprep.subr.bf16.mxu0 0
      %1902 = vmatpush1.bf16.msra.mxu0 %v1476
      %1903 = vmatprep.subr.bf16.mxu0 0
      %1904 = vmatpush1.bf16.msra.mxu0 %v1477
      %1905 = vmatprep.subr.bf16.mxu0 0
      %1906 = vmatpush1.bf16.msra.mxu0 %v1478
      %1907 = vmatprep.subr.bf16.mxu0 0
      %1908 = vmatpush1.bf16.msra.mxu0 %v1479
      %1909 = vmatprep.subr.bf16.mxu0 0
      %1910 = vmatpush1.bf16.msra.mxu0 %v1480
      %1911 = vmatprep.subr.bf16.mxu0 0
      %1912 = vmatpush1.bf16.msra.mxu0 %v1481
      %1913 = vmatprep.subr.bf16.mxu0 0
      %1914 = vmatpush1.bf16.msra.mxu0 %v1482
      %1915 = vmatprep.subr.bf16.mxu0 0
      %1916 = vmatpush1.bf16.msra.mxu0 %v1483
      %1917 = vmatprep.subr.bf16.mxu0 0
      %1918 = vmatpush1.bf16.msra.mxu0 %v1484
      %1919 = vmatprep.mubr.bf16.mxu0 %v930
      %1920 = vmatmul.mubr.bf16.gmra.mrb[0].mxu0 %v929
      %v1921 = vpop.f32.mrb[0].mxu0
      %v1922 = vadd.f32 %v1761, %v1921
      %v1923 = vpop.f32.mrb[0].mxu0
      %v1924 = vpop.f32.mrb[0].mxu0
      %v1925 = vadd.f32 %v1764, %v1924
      %v1926 = vpop.f32.mrb[0].mxu0
      %1927 = vmatprep.mubr.bf16.mxu0 %v938
      %1928 = vmatmul.mubr.bf16.gmra.mrb[0].mxu0 %v937
      %v1929 = vpop.f32.mrb[0].mxu0
      %v1930 = vadd.f32 %v1769, %v1929
      %v1931 = vpop.f32.mrb[0].mxu0
      %v1932 = vpop.f32.mrb[0].mxu0
      %v1933 = vadd.f32 %v1772, %v1932
      %v1934 = vpop.f32.mrb[0].mxu0
      %1935 = vmatprep.mubr.bf16.mxu0 %v946
      %1936 = vmatmul.mubr.bf16.gmra.mrb[0].mxu0 %v945
      %v1937 = vpop.f32.mrb[0].mxu0
      %v1938 = vadd.f32 %v1777, %v1937
      %v1939 = vpop.f32.mrb[0].mxu0
      %v1940 = vpop.f32.mrb[0].mxu0
      %v1941 = vadd.f32 %v1780, %v1940
      %v1942 = vpop.f32.mrb[0].mxu0
      %1943 = vmatprep.mubr.bf16.mxu0 %v954
      %1944 = vmatmul.mubr.bf16.gmra.mrb[0].mxu0 %v953
      %v1945 = vpop.f32.mrb[0].mxu0
      %v1946 = vadd.f32 %v1785, %v1945
      %v1947 = vpop.f32.mrb[0].mxu0
      %v1948 = vpop.f32.mrb[0].mxu0
      %v1949 = vadd.f32 %v1788, %v1948
      %v1950 = vpop.f32.mrb[0].mxu0
      %1951 = vmatprep.mubr.bf16.mxu0 %v962
      %1952 = vmatmul.mubr.bf16.gmra.mrb[0].mxu0 %v961
      %v1953 = vpop.f32.mrb[0].mxu0
      %v1954 = vadd.f32 %v1793, %v1953
      %v1955 = vpop.f32.mrb[0].mxu0
      %v1956 = vpop.f32.mrb[0].mxu0
      %v1957 = vadd.f32 %v1796, %v1956
      %v1958 = vpop.f32.mrb[0].mxu0
      %1959 = vmatprep.mubr.bf16.mxu0 %v970
      %1960 = vmatmul.mubr.bf16.gmra.mrb[0].mxu0 %v969
      %v1961 = vpop.f32.mrb[0].mxu0
      %v1962 = vadd.f32 %v1801, %v1961
      %v1963 = vpop.f32.mrb[0].mxu0
      %v1964 = vpop.f32.mrb[0].mxu0
      %v1965 = vadd.f32 %v1804, %v1964
      %v1966 = vpop.f32.mrb[0].mxu0
      %1967 = vmatprep.mubr.bf16.mxu0 %v978
      %1968 = vmatmul.mubr.bf16.gmra.mrb[0].mxu0 %v977
      %v1969 = vpop.f32.mrb[0].mxu0
      %v1970 = vadd.f32 %v1809, %v1969
      %v1971 = vpop.f32.mrb[0].mxu0
      %v1972 = vpop.f32.mrb[0].mxu0
      %v1973 = vadd.f32 %v1812, %v1972
      %v1974 = vpop.f32.mrb[0].mxu0
      %1975 = vmatprep.mubr.bf16.mxu0 %v986
      %1976 = vmatmul.mubr.bf16.gmra.mrb[0].mxu0 %v985
      %v1977 = vpop.f32.mrb[0].mxu0
      %v1978 = vadd.f32 %v1817, %v1977
      %v1979 = vpop.f32.mrb[0].mxu0
      %v1980 = vpop.f32.mrb[0].mxu0
      %v1981 = vadd.f32 %v1820, %v1980
      %v1982 = vpop.f32.mrb[0].mxu0
      %1983 = vmatprep.mubr.bf16.mxu0 %v994
      %1984 = vmatmul.mubr.bf16.gmra.mrb[0].mxu0 %v993
      %v1985 = vpop.f32.mrb[0].mxu0
      %v1986 = vadd.f32 %v1825, %v1985
      %v1987 = vpop.f32.mrb[0].mxu0
      %v1988 = vpop.f32.mrb[0].mxu0
      %v1989 = vadd.f32 %v1828, %v1988
      %v1990 = vpop.f32.mrb[0].mxu0
      %1991 = vmatprep.mubr.bf16.mxu0 %v1002
      %1992 = vmatmul.mubr.bf16.gmra.mrb[0].mxu0 %v1001
      %v1993 = vpop.f32.mrb[0].mxu0
      %v1994 = vadd.f32 %v1833, %v1993
      %v1995 = vpop.f32.mrb[0].mxu0
      %v1996 = vpop.f32.mrb[0].mxu0
      %v1997 = vadd.f32 %v1836, %v1996
      %v1998 = vpop.f32.mrb[0].mxu0
      %1999 = vmatprep.mubr.bf16.mxu0 %v1010
      %2000 = vmatmul.mubr.bf16.gmra.mrb[0].mxu0 %v1009
      %v2001 = vpop.f32.mrb[0].mxu0
      %v2002 = vadd.f32 %v1841, %v2001
      %v2003 = vpop.f32.mrb[0].mxu0
      %v2004 = vpop.f32.mrb[0].mxu0
      %v2005 = vadd.f32 %v1844, %v2004
      %v2006 = vpop.f32.mrb[0].mxu0
      %2007 = vmatprep.mubr.bf16.mxu0 %v1018
      %2008 = vmatmul.mubr.bf16.gmra.mrb[0].mxu0 %v1017
      %v2009 = vpop.f32.mrb[0].mxu0
      %v2010 = vadd.f32 %v1849, %v2009
      %v2011 = vpop.f32.mrb[0].mxu0
      %v2012 = vpop.f32.mrb[0].mxu0
      %v2013 = vadd.f32 %v1852, %v2012
      %v2014 = vpop.f32.mrb[0].mxu0
      %2015 = vmatprep.mubr.bf16.mxu0 %v1026
      %2016 = vmatmul.mubr.bf16.gmra.mrb[0].mxu0 %v1025
      %v2017 = vpop.f32.mrb[0].mxu0
      %v2018 = vadd.f32 %v1857, %v2017
      %v2019 = vpop.f32.mrb[0].mxu0
      %v2020 = vpop.f32.mrb[0].mxu0
      %v2021 = vadd.f32 %v1860, %v2020
      %v2022 = vpop.f32.mrb[0].mxu0
      %2023 = vmatprep.mubr.bf16.mxu0 %v1034
      %2024 = vmatmul.mubr.bf16.gmra.mrb[0].mxu0 %v1033
      %v2025 = vpop.f32.mrb[0].mxu0
      %v2026 = vadd.f32 %v1865, %v2025
      %v2027 = vpop.f32.mrb[0].mxu0
      %v2028 = vpop.f32.mrb[0].mxu0
      %v2029 = vadd.f32 %v1868, %v2028
      %v2030 = vpop.f32.mrb[0].mxu0
      %2031 = vmatprep.mubr.bf16.mxu0 %v1042
      %2032 = vmatmul.mubr.bf16.gmra.mrb[0].mxu0 %v1041
      %v2033 = vpop.f32.mrb[0].mxu0
      %v2034 = vadd.f32 %v1873, %v2033
      %v2035 = vpop.f32.mrb[0].mxu0
      %v2036 = vpop.f32.mrb[0].mxu0
      %v2037 = vadd.f32 %v1876, %v2036
      %v2038 = vpop.f32.mrb[0].mxu0
      %2039 = vmatprep.mubr.bf16.mxu0 %v1050
      %2040 = vmatmul.mubr.bf16.gmra.mrb[0].mxu0 %v1049
      %v2041 = vpop.f32.mrb[0].mxu0
      %v2042 = vadd.f32 %v1881, %v2041
      %v2043 = vpop.f32.mrb[0].mxu0
      %v2044 = vpop.f32.mrb[0].mxu0
      %v2045 = vadd.f32 %v1884, %v2044
      %v2046 = vpop.f32.mrb[0].mxu0
      %2047 = vdwg.mxu0
      %2048 = vmatprep.subr.bf16.mxu0 0
      %2049 = vmatpush1.bf16.msra.mxu0 %v1485
      %2050 = vmatprep.subr.bf16.mxu0 0
      %2051 = vmatpush1.bf16.msra.mxu0 %v1486
      %2052 = vmatprep.subr.bf16.mxu0 0
      %2053 = vmatpush1.bf16.msra.mxu0 %v1487
      %2054 = vmatprep.subr.bf16.mxu0 0
      %2055 = vmatpush1.bf16.msra.mxu0 %v1488
      %2056 = vmatprep.subr.bf16.mxu0 0
      %2057 = vmatpush1.bf16.msra.mxu0 %v1489
      %2058 = vmatprep.subr.bf16.mxu0 0
      %2059 = vmatpush1.bf16.msra.mxu0 %v1490
      %2060 = vmatprep.subr.bf16.mxu0 0
      %2061 = vmatpush1.bf16.msra.mxu0 %v1491
      %2062 = vmatprep.subr.bf16.mxu0 0
      %2063 = vmatpush1.bf16.msra.mxu0 %v1492
      %2064 = vmatprep.subr.bf16.mxu0 0
      %2065 = vmatpush1.bf16.msra.mxu0 %v1493
      %2066 = vmatprep.subr.bf16.mxu0 0
      %2067 = vmatpush1.bf16.msra.mxu0 %v1494
      %2068 = vmatprep.subr.bf16.mxu0 0
      %2069 = vmatpush1.bf16.msra.mxu0 %v1495
      %2070 = vmatprep.subr.bf16.mxu0 0
      %2071 = vmatpush1.bf16.msra.mxu0 %v1496
      %2072 = vmatprep.subr.bf16.mxu0 0
      %2073 = vmatpush1.bf16.msra.mxu0 %v1497
      %2074 = vmatprep.subr.bf16.mxu0 0
      %2075 = vmatpush1.bf16.msra.mxu0 %v1498
      %2076 = vmatprep.subr.bf16.mxu0 0
      %2077 = vmatpush1.bf16.msra.mxu0 %v1499
      %2078 = vmatprep.subr.bf16.mxu0 0
      %2079 = vmatpush1.bf16.msra.mxu0 %v1500
      %2080 = vmatprep.mubr.bf16.mxu0 %v932
      %2081 = vmatmul.mubr.bf16.gmra.mrb[0].mxu0 %v931
      %v2082 = vpop.f32.mrb[0].mxu0
      %v2083 = vadd.f32 %v1922, %v2082
      %v2084 = vpop.f32.mrb[0].mxu0
      %v2085 = vpop.f32.mrb[0].mxu0
      %v2086 = vadd.f32 %v1925, %v2085
      %v2087 = vpop.f32.mrb[0].mxu0
      %2088 = vmatprep.mubr.bf16.mxu0 %v940
      %2089 = vmatmul.mubr.bf16.gmra.mrb[0].mxu0 %v939
      %v2090 = vpop.f32.mrb[0].mxu0
      %v2091 = vadd.f32 %v1930, %v2090
      %v2092 = vpop.f32.mrb[0].mxu0
      %v2093 = vpop.f32.mrb[0].mxu0
      %v2094 = vadd.f32 %v1933, %v2093
      %v2095 = vpop.f32.mrb[0].mxu0
      %2096 = vmatprep.mubr.bf16.mxu0 %v948
      %2097 = vmatmul.mubr.bf16.gmra.mrb[0].mxu0 %v947
      %v2098 = vpop.f32.mrb[0].mxu0
      %v2099 = vadd.f32 %v1938, %v2098
      %v2100 = vpop.f32.mrb[0].mxu0
      %v2101 = vpop.f32.mrb[0].mxu0
      %v2102 = vadd.f32 %v1941, %v2101
      %v2103 = vpop.f32.mrb[0].mxu0
      %2104 = vmatprep.mubr.bf16.mxu0 %v956
      %2105 = vmatmul.mubr.bf16.gmra.mrb[0].mxu0 %v955
      %v2106 = vpop.f32.mrb[0].mxu0
      %v2107 = vadd.f32 %v1946, %v2106
      %v2108 = vpop.f32.mrb[0].mxu0
      %v2109 = vpop.f32.mrb[0].mxu0
      %v2110 = vadd.f32 %v1949, %v2109
      %v2111 = vpop.f32.mrb[0].mxu0
      %2112 = vmatprep.mubr.bf16.mxu0 %v964
      %2113 = vmatmul.mubr.bf16.gmra.mrb[0].mxu0 %v963
      %v2114 = vpop.f32.mrb[0].mxu0
      %v2115 = vadd.f32 %v1954, %v2114
      %v2116 = vpop.f32.mrb[0].mxu0
      %v2117 = vpop.f32.mrb[0].mxu0
      %v2118 = vadd.f32 %v1957, %v2117
      %v2119 = vpop.f32.mrb[0].mxu0
      %2120 = vmatprep.mubr.bf16.mxu0 %v972
      %2121 = vmatmul.mubr.bf16.gmra.mrb[0].mxu0 %v971
      %v2122 = vpop.f32.mrb[0].mxu0
      %v2123 = vadd.f32 %v1962, %v2122
      %v2124 = vpop.f32.mrb[0].mxu0
      %v2125 = vpop.f32.mrb[0].mxu0
      %v2126 = vadd.f32 %v1965, %v2125
      %v2127 = vpop.f32.mrb[0].mxu0
      %2128 = vmatprep.mubr.bf16.mxu0 %v980
      %2129 = vmatmul.mubr.bf16.gmra.mrb[0].mxu0 %v979
      %v2130 = vpop.f32.mrb[0].mxu0
      %v2131 = vadd.f32 %v1970, %v2130
      %v2132 = vpop.f32.mrb[0].mxu0
      %v2133 = vpop.f32.mrb[0].mxu0
      %v2134 = vadd.f32 %v1973, %v2133
      %v2135 = vpop.f32.mrb[0].mxu0
      %2136 = vmatprep.mubr.bf16.mxu0 %v988
      %2137 = vmatmul.mubr.bf16.gmra.mrb[0].mxu0 %v987
      %v2138 = vpop.f32.mrb[0].mxu0
      %v2139 = vadd.f32 %v1978, %v2138
      %v2140 = vpop.f32.mrb[0].mxu0
      %v2141 = vpop.f32.mrb[0].mxu0
      %v2142 = vadd.f32 %v1981, %v2141
      %v2143 = vpop.f32.mrb[0].mxu0
      %2144 = vmatprep.mubr.bf16.mxu0 %v996
      %2145 = vmatmul.mubr.bf16.gmra.mrb[0].mxu0 %v995
      %v2146 = vpop.f32.mrb[0].mxu0
      %v2147 = vadd.f32 %v1986, %v2146
      %v2148 = vpop.f32.mrb[0].mxu0
      %v2149 = vpop.f32.mrb[0].mxu0
      %v2150 = vadd.f32 %v1989, %v2149
      %v2151 = vpop.f32.mrb[0].mxu0
      %2152 = vmatprep.mubr.bf16.mxu0 %v1004
      %2153 = vmatmul.mubr.bf16.gmra.mrb[0].mxu0 %v1003
      %v2154 = vpop.f32.mrb[0].mxu0
      %v2155 = vadd.f32 %v1994, %v2154
      %v2156 = vpop.f32.mrb[0].mxu0
      %v2157 = vpop.f32.mrb[0].mxu0
      %v2158 = vadd.f32 %v1997, %v2157
      %v2159 = vpop.f32.mrb[0].mxu0
      %2160 = vmatprep.mubr.bf16.mxu0 %v1012
      %2161 = vmatmul.mubr.bf16.gmra.mrb[0].mxu0 %v1011
      %v2162 = vpop.f32.mrb[0].mxu0
      %v2163 = vadd.f32 %v2002, %v2162
      %v2164 = vpop.f32.mrb[0].mxu0
      %v2165 = vpop.f32.mrb[0].mxu0
      %v2166 = vadd.f32 %v2005, %v2165
      %v2167 = vpop.f32.mrb[0].mxu0
      %2168 = vmatprep.mubr.bf16.mxu0 %v1020
      %2169 = vmatmul.mubr.bf16.gmra.mrb[0].mxu0 %v1019
      %v2170 = vpop.f32.mrb[0].mxu0
      %v2171 = vadd.f32 %v2010, %v2170
      %v2172 = vpop.f32.mrb[0].mxu0
      %v2173 = vpop.f32.mrb[0].mxu0
      %v2174 = vadd.f32 %v2013, %v2173
      %v2175 = vpop.f32.mrb[0].mxu0
      %2176 = vmatprep.mubr.bf16.mxu0 %v1028
      %2177 = vmatmul.mubr.bf16.gmra.mrb[0].mxu0 %v1027
      %v2178 = vpop.f32.mrb[0].mxu0
      %v2179 = vadd.f32 %v2018, %v2178
      %v2180 = vpop.f32.mrb[0].mxu0
      %v2181 = vpop.f32.mrb[0].mxu0
      %v2182 = vadd.f32 %v2021, %v2181
      %v2183 = vpop.f32.mrb[0].mxu0
      %2184 = vmatprep.mubr.bf16.mxu0 %v1036
      %2185 = vmatmul.mubr.bf16.gmra.mrb[0].mxu0 %v1035
      %v2186 = vpop.f32.mrb[0].mxu0
      %v2187 = vadd.f32 %v2026, %v2186
      %v2188 = vpop.f32.mrb[0].mxu0
      %v2189 = vpop.f32.mrb[0].mxu0
      %v2190 = vadd.f32 %v2029, %v2189
      %v2191 = vpop.f32.mrb[0].mxu0
      %2192 = vmatprep.mubr.bf16.mxu0 %v1044
      %2193 = vmatmul.mubr.bf16.gmra.mrb[0].mxu0 %v1043
      %v2194 = vpop.f32.mrb[0].mxu0
      %v2195 = vadd.f32 %v2034, %v2194
      %v2196 = vpop.f32.mrb[0].mxu0
      %v2197 = vpop.f32.mrb[0].mxu0
      %v2198 = vadd.f32 %v2037, %v2197
      %v2199 = vpop.f32.mrb[0].mxu0
      %2200 = vmatprep.mubr.bf16.mxu0 %v1052
      %2201 = vmatmul.mubr.bf16.gmra.mrb[0].mxu0 %v1051
      %v2202 = vpop.f32.mrb[0].mxu0
      %v2203 = vadd.f32 %v2042, %v2202
      %v2204 = vpop.f32.mrb[0].mxu0
      %v2205 = vpop.f32.mrb[0].mxu0
      %v2206 = vadd.f32 %v2045, %v2205
      %v2207 = vpop.f32.mrb[0].mxu0
      %2208 = vdwg.mxu0
      %v2209 = vld [vmem:[#allocation3] sm:$0x1]
      %v2210 = vadd.f32 %v2083, %v2086
      %v2211 = vadd.f32 %v2210, %v2091
      %v2212 = vadd.f32 %v2211, %v2094
      %v2213 = vadd.f32 %v2212, %v2099
      %v2214 = vadd.f32 %v2213, %v2102
      %v2215 = vadd.f32 %v2214, %v2107
      %v2216 = vadd.f32 %v2215, %v2110
      %v2217 = vadd.f32 %v2216, %v2115
      %v2218 = vadd.f32 %v2217, %v2118
      %v2219 = vadd.f32 %v2218, %v2123
      %v2220 = vadd.f32 %v2219, %v2126
      %v2221 = vadd.f32 %v2220, %v2131
      %v2222 = vadd.f32 %v2221, %v2134
      %v2223 = vadd.f32 %v2222, %v2139
      %v2224 = vadd.f32 %v2223, %v2142
      %v2225 = vadd.f32 %v2224, %v2147
      %v2226 = vadd.f32 %v2225, %v2150
      %v2227 = vadd.f32 %v2226, %v2155
      %v2228 = vadd.f32 %v2227, %v2158
      %v2229 = vadd.f32 %v2228, %v2163
      %v2230 = vadd.f32 %v2229, %v2166
      %v2231 = vadd.f32 %v2230, %v2171
      %v2232 = vadd.f32 %v2231, %v2174
      %v2233 = vadd.f32 %v2232, %v2179
      %v2234 = vadd.f32 %v2233, %v2182
      %v2235 = vadd.f32 %v2234, %v2187
      %v2236 = vadd.f32 %v2235, %v2190
      %v2237 = vadd.f32 %v2236, %v2195
      %v2238 = vadd.f32 %v2237, %v2198
      %v2239 = vadd.f32 %v2238, %v2203
      %v2240 = vadd.f32 %v2239, %v2206
      %v2241 = vrot.slane %v2240, 4
      %v2242 = vadd.f32 %v2240, %v2241
      %v2243 = vrot.slane %v2242, 2
      %v2244 = vadd.f32 %v2242, %v2243
      %v2245 = vrot.slane %v2244, 1
      %v2246 = vadd.f32 %v2244, %v2245
      %v2247 = vadd.f32 %v2209, %v2246
      %2248 = vst [vmem:[#allocation3] sm:$0x1] %v2247
      %v2249 = vld [vmem:[#allocation4] sm:$0x1]
      %v2250 = vmul.f32 %v2083, %v2083
      %v2251 = vmul.f32 %v2086, %v2086
      %v2252 = vmul.f32 %v2091, %v2091
      %v2253 = vmul.f32 %v2094, %v2094
      %v2254 = vmul.f32 %v2099, %v2099
      %v2255 = vmul.f32 %v2102, %v2102
      %v2256 = vmul.f32 %v2107, %v2107
      %v2257 = vmul.f32 %v2110, %v2110
      %v2258 = vmul.f32 %v2115, %v2115
      %v2259 = vmul.f32 %v2118, %v2118
      %v2260 = vmul.f32 %v2123, %v2123
      %v2261 = vmul.f32 %v2126, %v2126
      %v2262 = vmul.f32 %v2131, %v2131
      %v2263 = vmul.f32 %v2134, %v2134
      %v2264 = vmul.f32 %v2139, %v2139
      %v2265 = vmul.f32 %v2142, %v2142
      %v2266 = vmul.f32 %v2147, %v2147
      %v2267 = vmul.f32 %v2150, %v2150
      %v2268 = vmul.f32 %v2155, %v2155
      %v2269 = vmul.f32 %v2158, %v2158
      %v2270 = vmul.f32 %v2163, %v2163
      %v2271 = vmul.f32 %v2166, %v2166
      %v2272 = vmul.f32 %v2171, %v2171
      %v2273 = vmul.f32 %v2174, %v2174
      %v2274 = vmul.f32 %v2179, %v2179
      %v2275 = vmul.f32 %v2182, %v2182
      %v2276 = vmul.f32 %v2187, %v2187
      %v2277 = vmul.f32 %v2190, %v2190
      %v2278 = vmul.f32 %v2195, %v2195
      %v2279 = vmul.f32 %v2198, %v2198
      %v2280 = vmul.f32 %v2203, %v2203
      %v2281 = vmul.f32 %v2206, %v2206
      %v2282 = vadd.f32 %v2250, %v2251
      %v2283 = vadd.f32 %v2282, %v2252
      %v2284 = vadd.f32 %v2283, %v2253
      %v2285 = vadd.f32 %v2284, %v2254
      %v2286 = vadd.f32 %v2285, %v2255
      %v2287 = vadd.f32 %v2286, %v2256
      %v2288 = vadd.f32 %v2287, %v2257
      %v2289 = vadd.f32 %v2288, %v2258
      %v2290 = vadd.f32 %v2289, %v2259
      %v2291 = vadd.f32 %v2290, %v2260
      %v2292 = vadd.f32 %v2291, %v2261
      %v2293 = vadd.f32 %v2292, %v2262
      %v2294 = vadd.f32 %v2293, %v2263
      %v2295 = vadd.f32 %v2294, %v2264
      %v2296 = vadd.f32 %v2295, %v2265
      %v2297 = vadd.f32 %v2296, %v2266
      %v2298 = vadd.f32 %v2297, %v2267
      %v2299 = vadd.f32 %v2298, %v2268
      %v2300 = vadd.f32 %v2299, %v2269
      %v2301 = vadd.f32 %v2300, %v2270
      %v2302 = vadd.f32 %v2301, %v2271
      %v2303 = vadd.f32 %v2302, %v2272
      %v2304 = vadd.f32 %v2303, %v2273
      %v2305 = vadd.f32 %v2304, %v2274
      %v2306 = vadd.f32 %v2305, %v2275
      %v2307 = vadd.f32 %v2306, %v2276
      %v2308 = vadd.f32 %v2307, %v2277
      %v2309 = vadd.f32 %v2308, %v2278
      %v2310 = vadd.f32 %v2309, %v2279
      %v2311 = vadd.f32 %v2310, %v2280
      %v2312 = vadd.f32 %v2311, %v2281
      %v2313 = vrot.slane %v2312, 4
      %v2314 = vadd.f32 %v2312, %v2313
      %v2315 = vrot.slane %v2314, 2
      %v2316 = vadd.f32 %v2314, %v2315
      %v2317 = vrot.slane %v2316, 1
      %v2318 = vadd.f32 %v2316, %v2317
      %v2319 = vadd.f32 %v2249, %v2318
      %2320 = vst [vmem:[#allocation4] sm:$0x1] %v2319
      %s2321 = smul.u32 %s20, 256
      %s2322 = scalar_lea.vmem [#allocation2], %s2321
      %2323 = vst [vmem:[%s2322] sm:$0xff] %v2083
      %2324 = vst [vmem:[%s2322 + $0x8] sm:$0xff] %v2086
      %2325 = vst [vmem:[%s2322 + $0x10] sm:$0xff] %v2091
      %2326 = vst [vmem:[%s2322 + $0x18] sm:$0xff] %v2094
      %2327 = vst [vmem:[%s2322 + $0x20] sm:$0xff] %v2099
      %2328 = vst [vmem:[%s2322 + $0x28] sm:$0xff] %v2102
      %2329 = vst [vmem:[%s2322 + $0x30] sm:$0xff] %v2107
      %2330 = vst [vmem:[%s2322 + $0x38] sm:$0xff] %v2110
      %2331 = vst [vmem:[%s2322 + $0x40] sm:$0xff] %v2115
      %2332 = vst [vmem:[%s2322 + $0x48] sm:$0xff] %v2118
      %2333 = vst [vmem:[%s2322 + $0x50] sm:$0xff] %v2123
      %2334 = vst [vmem:[%s2322 + $0x58] sm:$0xff] %v2126
      %2335 = vst [vmem:[%s2322 + $0x60] sm:$0xff] %v2131
      %2336 = vst [vmem:[%s2322 + $0x68] sm:$0xff] %v2134
      %2337 = vst [vmem:[%s2322 + $0x70] sm:$0xff] %v2139
      %2338 = vst [vmem:[%s2322 + $0x78] sm:$0xff] %v2142
      %2339 = vst [vmem:[%s2322 + $0x80] sm:$0xff] %v2147
      %2340 = vst [vmem:[%s2322 + $0x88] sm:$0xff] %v2150
      %2341 = vst [vmem:[%s2322 + $0x90] sm:$0xff] %v2155
      %2342 = vst [vmem:[%s2322 + $0x98] sm:$0xff] %v2158
      %2343 = vst [vmem:[%s2322 + $0xa0] sm:$0xff] %v2163
      %2344 = vst [vmem:[%s2322 + $0xa8] sm:$0xff] %v2166
      %2345 = vst [vmem:[%s2322 + $0xb0] sm:$0xff] %v2171
      %2346 = vst [vmem:[%s2322 + $0xb8] sm:$0xff] %v2174
      %2347 = vst [vmem:[%s2322 + $0xc0] sm:$0xff] %v2179
      %2348 = vst [vmem:[%s2322 + $0xc8] sm:$0xff] %v2182
      %2349 = vst [vmem:[%s2322 + $0xd0] sm:$0xff] %v2187
      %2350 = vst [vmem:[%s2322 + $0xd8] sm:$0xff] %v2190
      %2351 = vst [vmem:[%s2322 + $0xe0] sm:$0xff] %v2195
      %2352 = vst [vmem:[%s2322 + $0xe8] sm:$0xff] %v2198
      %2353 = vst [vmem:[%s2322 + $0xf0] sm:$0xff] %v2203
      %2354 = vst [vmem:[%s2322 + $0xf8] sm:$0xff] %v2206
      %p2355 = scmp.eq.s32.totalorder %s20, 1
      // Predicated region
      $region53: #{discriminator_x_forward.5} parent=47 // pred_check
        %p2356 = pneg %p2355
      $region54: #{discriminator_x_forward.5} parent=47 // pred_check_branch
        %2358 = sbr.rel (%p2356) target = $region56
      $region55: #{discriminator_x_forward.5} parent=47 // pred_region
        %v2359 = vld [vmem:[#allocation3] sm:$0x1]
        %v2360 = vrcp.pop 512.0
        %v2361 = vmul.f32 %v2359, %v2360
        %v2362 = vld [vmem:[#allocation4] sm:$0x1]
        %v2363 = vmul.f32 %v2362, %v2360
        %v2364 = vmul.f32 %v2361, %v2361
        %v2365 = vsub.f32 %v2363, %v2364
        %v2366 = vld [vmem:[%s3] sm:$0x1]
        %v2367 = vadd.f32 %v2365, 1e-05
        %v2368 = vrsqrt.pop %v2367
        %v2369 = vmul.f32 %v2366, %v2368
        %v2370 = vld [vmem:[%s4] sm:$0x1]
        %v2371 = vmul.f32 %v2361, %v2369
        %v2372 = vsub.f32 %v2370, %v2371
        %v2373 = vld [vmem:[#allocation2] sm:$0xff]
        %v2374 = vld [vmem:[#allocation2 + $0x8] sm:$0xff]
        %v2375 = vld [vmem:[#allocation2 + $0x10] sm:$0xff]
        %v2376 = vld [vmem:[#allocation2 + $0x18] sm:$0xff]
        %v2377 = vld [vmem:[#allocation2 + $0x20] sm:$0xff]
        %v2378 = vld [vmem:[#allocation2 + $0x28] sm:$0xff]
        %v2379 = vld [vmem:[#allocation2 + $0x30] sm:$0xff]
        %v2380 = vld [vmem:[#allocation2 + $0x38] sm:$0xff]
        %v2381 = vld [vmem:[#allocation2 + $0x40] sm:$0xff]
        %v2382 = vld [vmem:[#allocation2 + $0x48] sm:$0xff]
        %v2383 = vld [vmem:[#allocation2 + $0x50] sm:$0xff]
        %v2384 = vld [vmem:[#allocation2 + $0x58] sm:$0xff]
        %v2385 = vld [vmem:[#allocation2 + $0x60] sm:$0xff]
        %v2386 = vld [vmem:[#allocation2 + $0x68] sm:$0xff]
        %v2387 = vld [vmem:[#allocation2 + $0x70] sm:$0xff]
        %v2388 = vld [vmem:[#allocation2 + $0x78] sm:$0xff]
        %v2390 = vlaneseq
        %v2391 = vshrl.u32 %v2390, 7
        %v2392 = vsub.s32 0, %v2391
        %v2393 = vrot.slane %v2369, %v2392
        %v2395 = vmul.f32 %v2373, %v2393
        %v2396 = vmul.f32 %v2374, %v2393
        %v2397 = vmul.f32 %v2375, %v2393
        %v2398 = vmul.f32 %v2376, %v2393
        %v2399 = vmul.f32 %v2377, %v2393
        %v2400 = vmul.f32 %v2378, %v2393
        %v2401 = vmul.f32 %v2379, %v2393
        %v2402 = vmul.f32 %v2380, %v2393
        %v2403 = vmul.f32 %v2381, %v2393
        %v2404 = vmul.f32 %v2382, %v2393
        %v2405 = vmul.f32 %v2383, %v2393
        %v2406 = vmul.f32 %v2384, %v2393
        %v2407 = vmul.f32 %v2385, %v2393
        %v2408 = vmul.f32 %v2386, %v2393
        %v2409 = vmul.f32 %v2387, %v2393
        %v2410 = vmul.f32 %v2388, %v2393
        %v2412 = vlaneseq
        %v2413 = vshrl.u32 %v2412, 7
        %v2414 = vsub.s32 0, %v2413
        %v2415 = vrot.slane %v2372, %v2414
        %v2417 = vadd.f32 %v2395, %v2415
        %v2418 = vadd.f32 %v2396, %v2415
        %v2419 = vadd.f32 %v2397, %v2415
        %v2420 = vadd.f32 %v2398, %v2415
        %v2421 = vadd.f32 %v2399, %v2415
        %v2422 = vadd.f32 %v2400, %v2415
        %v2423 = vadd.f32 %v2401, %v2415
        %v2424 = vadd.f32 %v2402, %v2415
        %v2425 = vadd.f32 %v2403, %v2415
        %v2426 = vadd.f32 %v2404, %v2415
        %v2427 = vadd.f32 %v2405, %v2415
        %v2428 = vadd.f32 %v2406, %v2415
        %v2429 = vadd.f32 %v2407, %v2415
        %v2430 = vadd.f32 %v2408, %v2415
        %v2431 = vadd.f32 %v2409, %v2415
        %v2432 = vadd.f32 %v2410, %v2415
        %vm2433 = vcmp.ge.f32.partialorder %v2417, 0.0
        %vm2434 = vcmp.ge.f32.partialorder %v2418, 0.0
        %vm2435 = vcmp.ge.f32.partialorder %v2419, 0.0
        %vm2436 = vcmp.ge.f32.partialorder %v2420, 0.0
        %vm2437 = vcmp.ge.f32.partialorder %v2421, 0.0
        %vm2438 = vcmp.ge.f32.partialorder %v2422, 0.0
        %vm2439 = vcmp.ge.f32.partialorder %v2423, 0.0
        %vm2440 = vcmp.ge.f32.partialorder %v2424, 0.0
        %vm2441 = vcmp.ge.f32.partialorder %v2425, 0.0
        %vm2442 = vcmp.ge.f32.partialorder %v2426, 0.0
        %vm2443 = vcmp.ge.f32.partialorder %v2427, 0.0
        %vm2444 = vcmp.ge.f32.partialorder %v2428, 0.0
        %vm2445 = vcmp.ge.f32.partialorder %v2429, 0.0
        %vm2446 = vcmp.ge.f32.partialorder %v2430, 0.0
        %vm2447 = vcmp.ge.f32.partialorder %v2431, 0.0
        %vm2448 = vcmp.ge.f32.partialorder %v2432, 0.0
        %v2449 = vmul.f32 %v2417, 0.2
        %v2450 = vmul.f32 %v2418, 0.2
        %v2451 = vmul.f32 %v2419, 0.2
        %v2452 = vmul.f32 %v2420, 0.2
        %v2453 = vmul.f32 %v2421, 0.2
        %v2454 = vmul.f32 %v2422, 0.2
        %v2455 = vmul.f32 %v2423, 0.2
        %v2456 = vmul.f32 %v2424, 0.2
        %v2457 = vmul.f32 %v2425, 0.2
        %v2458 = vmul.f32 %v2426, 0.2
        %v2459 = vmul.f32 %v2427, 0.2
        %v2460 = vmul.f32 %v2428, 0.2
        %v2461 = vmul.f32 %v2429, 0.2
        %v2462 = vmul.f32 %v2430, 0.2
        %v2463 = vmul.f32 %v2431, 0.2
        %v2464 = vmul.f32 %v2432, 0.2
        %v2465 = vsel %vm2433, %v2417, %v2449
        %v2466 = vsel %vm2434, %v2418, %v2450
        %v2467 = vsel %vm2435, %v2419, %v2451
        %v2468 = vsel %vm2436, %v2420, %v2452
        %v2469 = vsel %vm2437, %v2421, %v2453
        %v2470 = vsel %vm2438, %v2422, %v2454
        %v2471 = vsel %vm2439, %v2423, %v2455
        %v2472 = vsel %vm2440, %v2424, %v2456
        %v2473 = vsel %vm2441, %v2425, %v2457
        %v2474 = vsel %vm2442, %v2426, %v2458
        %v2475 = vsel %vm2443, %v2427, %v2459
        %v2476 = vsel %vm2444, %v2428, %v2460
        %v2477 = vsel %vm2445, %v2429, %v2461
        %v2478 = vsel %vm2446, %v2430, %v2462
        %v2479 = vsel %vm2447, %v2431, %v2463
        %v2480 = vsel %vm2448, %v2432, %v2464
        %v2481 = vld [vmem:[%s5] sm:$0xff]
        %v2482 = vld [vmem:[%s5 + $0x8] sm:$0xff]
        %v2483 = vld [vmem:[%s5 + $0x10] sm:$0xff]
        %v2484 = vld [vmem:[%s5 + $0x18] sm:$0xff]
        %v2485 = vld [vmem:[%s5 + $0x20] sm:$0xff]
        %v2486 = vld [vmem:[%s5 + $0x28] sm:$0xff]
        %v2487 = vld [vmem:[%s5 + $0x30] sm:$0xff]
        %v2488 = vld [vmem:[%s5 + $0x38] sm:$0xff]
        %v2489 = vld [vmem:[%s5 + $0x40] sm:$0xff]
        %v2490 = vld [vmem:[%s5 + $0x48] sm:$0xff]
        %v2491 = vld [vmem:[%s5 + $0x50] sm:$0xff]
        %v2492 = vld [vmem:[%s5 + $0x58] sm:$0xff]
        %v2493 = vld [vmem:[%s5 + $0x60] sm:$0xff]
        %v2494 = vld [vmem:[%s5 + $0x68] sm:$0xff]
        %v2495 = vld [vmem:[%s5 + $0x70] sm:$0xff]
        %v2496 = vld [vmem:[%s5 + $0x78] sm:$0xff]
        %v2497 = vmul.f32 %v2465, %v2481
        %v2498 = vmul.f32 %v2466, %v2482
        %v2499 = vmul.f32 %v2467, %v2483
        %v2500 = vmul.f32 %v2468, %v2484
        %v2501 = vmul.f32 %v2469, %v2485
        %v2502 = vmul.f32 %v2470, %v2486
        %v2503 = vmul.f32 %v2471, %v2487
        %v2504 = vmul.f32 %v2472, %v2488
        %v2505 = vmul.f32 %v2473, %v2489
        %v2506 = vmul.f32 %v2474, %v2490
        %v2507 = vmul.f32 %v2475, %v2491
        %v2508 = vmul.f32 %v2476, %v2492
        %v2509 = vmul.f32 %v2477, %v2493
        %v2510 = vmul.f32 %v2478, %v2494
        %v2511 = vmul.f32 %v2479, %v2495
        %v2512 = vmul.f32 %v2480, %v2496
        %v2513 = vadd.f32 %v2497, %v2498
        %v2514 = vadd.f32 %v2513, %v2499
        %v2515 = vadd.f32 %v2514, %v2500
        %v2516 = vadd.f32 %v2515, %v2501
        %v2517 = vadd.f32 %v2516, %v2502
        %v2518 = vadd.f32 %v2517, %v2503
        %v2519 = vadd.f32 %v2518, %v2504
        %v2520 = vadd.f32 %v2519, %v2505
        %v2521 = vadd.f32 %v2520, %v2506
        %v2522 = vadd.f32 %v2521, %v2507
        %v2523 = vadd.f32 %v2522, %v2508
        %v2524 = vadd.f32 %v2523, %v2509
        %v2525 = vadd.f32 %v2524, %v2510
        %v2526 = vadd.f32 %v2525, %v2511
        %v2527 = vadd.f32 %v2526, %v2512
        %v2528 = vrot.slane %v2527, 4
        %v2529 = vadd.f32 %v2527, %v2528
        %v2530 = vrot.slane %v2529, 2
        %v2531 = vadd.f32 %v2529, %v2530
        %v2532 = vrot.slane %v2531, 1
        %v2533 = vadd.f32 %v2531, %v2532
        %v2534 = vadd.f32 %v2533, 0.0
        %v2535 = vld [vmem:[#allocation2 + $0x80] sm:$0xff]
        %v2536 = vld [vmem:[#allocation2 + $0x88] sm:$0xff]
        %v2537 = vld [vmem:[#allocation2 + $0x90] sm:$0xff]
        %v2538 = vld [vmem:[#allocation2 + $0x98] sm:$0xff]
        %v2539 = vld [vmem:[#allocation2 + $0xa0] sm:$0xff]
        %v2540 = vld [vmem:[#allocation2 + $0xa8] sm:$0xff]
        %v2541 = vld [vmem:[#allocation2 + $0xb0] sm:$0xff]
        %v2542 = vld [vmem:[#allocation2 + $0xb8] sm:$0xff]
        %v2543 = vld [vmem:[#allocation2 + $0xc0] sm:$0xff]
        %v2544 = vld [vmem:[#allocation2 + $0xc8] sm:$0xff]
        %v2545 = vld [vmem:[#allocation2 + $0xd0] sm:$0xff]
        %v2546 = vld [vmem:[#allocation2 + $0xd8] sm:$0xff]
        %v2547 = vld [vmem:[#allocation2 + $0xe0] sm:$0xff]
        %v2548 = vld [vmem:[#allocation2 + $0xe8] sm:$0xff]
        %v2549 = vld [vmem:[#allocation2 + $0xf0] sm:$0xff]
        %v2550 = vld [vmem:[#allocation2 + $0xf8] sm:$0xff]
        %v2551 = vmul.f32 %v2535, %v2393
        %v2552 = vmul.f32 %v2536, %v2393
        %v2553 = vmul.f32 %v2537, %v2393
        %v2554 = vmul.f32 %v2538, %v2393
        %v2555 = vmul.f32 %v2539, %v2393
        %v2556 = vmul.f32 %v2540, %v2393
        %v2557 = vmul.f32 %v2541, %v2393
        %v2558 = vmul.f32 %v2542, %v2393
        %v2559 = vmul.f32 %v2543, %v2393
        %v2560 = vmul.f32 %v2544, %v2393
        %v2561 = vmul.f32 %v2545, %v2393
        %v2562 = vmul.f32 %v2546, %v2393
        %v2563 = vmul.f32 %v2547, %v2393
        %v2564 = vmul.f32 %v2548, %v2393
        %v2565 = vmul.f32 %v2549, %v2393
        %v2566 = vmul.f32 %v2550, %v2393
        %v2567 = vadd.f32 %v2551, %v2415
        %v2568 = vadd.f32 %v2552, %v2415
        %v2569 = vadd.f32 %v2553, %v2415
        %v2570 = vadd.f32 %v2554, %v2415
        %v2571 = vadd.f32 %v2555, %v2415
        %v2572 = vadd.f32 %v2556, %v2415
        %v2573 = vadd.f32 %v2557, %v2415
        %v2574 = vadd.f32 %v2558, %v2415
        %v2575 = vadd.f32 %v2559, %v2415
        %v2576 = vadd.f32 %v2560, %v2415
        %v2577 = vadd.f32 %v2561, %v2415
        %v2578 = vadd.f32 %v2562, %v2415
        %v2579 = vadd.f32 %v2563, %v2415
        %v2580 = vadd.f32 %v2564, %v2415
        %v2581 = vadd.f32 %v2565, %v2415
        %v2582 = vadd.f32 %v2566, %v2415
        %vm2583 = vcmp.ge.f32.partialorder %v2567, 0.0
        %vm2584 = vcmp.ge.f32.partialorder %v2568, 0.0
        %vm2585 = vcmp.ge.f32.partialorder %v2569, 0.0
        %vm2586 = vcmp.ge.f32.partialorder %v2570, 0.0
        %vm2587 = vcmp.ge.f32.partialorder %v2571, 0.0
        %vm2588 = vcmp.ge.f32.partialorder %v2572, 0.0
        %vm2589 = vcmp.ge.f32.partialorder %v2573, 0.0
        %vm2590 = vcmp.ge.f32.partialorder %v2574, 0.0
        %vm2591 = vcmp.ge.f32.partialorder %v2575, 0.0
        %vm2592 = vcmp.ge.f32.partialorder %v2576, 0.0
        %vm2593 = vcmp.ge.f32.partialorder %v2577, 0.0
        %vm2594 = vcmp.ge.f32.partialorder %v2578, 0.0
        %vm2595 = vcmp.ge.f32.partialorder %v2579, 0.0
        %vm2596 = vcmp.ge.f32.partialorder %v2580, 0.0
        %vm2597 = vcmp.ge.f32.partialorder %v2581, 0.0
        %vm2598 = vcmp.ge.f32.partialorder %v2582, 0.0
        %v2599 = vmul.f32 %v2567, 0.2
        %v2600 = vmul.f32 %v2568, 0.2
        %v2601 = vmul.f32 %v2569, 0.2
        %v2602 = vmul.f32 %v2570, 0.2
        %v2603 = vmul.f32 %v2571, 0.2
        %v2604 = vmul.f32 %v2572, 0.2
        %v2605 = vmul.f32 %v2573, 0.2
        %v2606 = vmul.f32 %v2574, 0.2
        %v2607 = vmul.f32 %v2575, 0.2
        %v2608 = vmul.f32 %v2576, 0.2
        %v2609 = vmul.f32 %v2577, 0.2
        %v2610 = vmul.f32 %v2578, 0.2
        %v2611 = vmul.f32 %v2579, 0.2
        %v2612 = vmul.f32 %v2580, 0.2
        %v2613 = vmul.f32 %v2581, 0.2
        %v2614 = vmul.f32 %v2582, 0.2
        %v2615 = vsel %vm2583, %v2567, %v2599
        %v2616 = vsel %vm2584, %v2568, %v2600
        %v2617 = vsel %vm2585, %v2569, %v2601
        %v2618 = vsel %vm2586, %v2570, %v2602
        %v2619 = vsel %vm2587, %v2571, %v2603
        %v2620 = vsel %vm2588, %v2572, %v2604
        %v2621 = vsel %vm2589, %v2573, %v2605
        %v2622 = vsel %vm2590, %v2574, %v2606
        %v2623 = vsel %vm2591, %v2575, %v2607
        %v2624 = vsel %vm2592, %v2576, %v2608
        %v2625 = vsel %vm2593, %v2577, %v2609
        %v2626 = vsel %vm2594, %v2578, %v2610
        %v2627 = vsel %vm2595, %v2579, %v2611
        %v2628 = vsel %vm2596, %v2580, %v2612
        %v2629 = vsel %vm2597, %v2581, %v2613
        %v2630 = vsel %vm2598, %v2582, %v2614
        %v2631 = vld [vmem:[%s5 + $0x80] sm:$0xff]
        %v2632 = vld [vmem:[%s5 + $0x88] sm:$0xff]
        %v2633 = vld [vmem:[%s5 + $0x90] sm:$0xff]
        %v2634 = vld [vmem:[%s5 + $0x98] sm:$0xff]
        %v2635 = vld [vmem:[%s5 + $0xa0] sm:$0xff]
        %v2636 = vld [vmem:[%s5 + $0xa8] sm:$0xff]
        %v2637 = vld [vmem:[%s5 + $0xb0] sm:$0xff]
        %v2638 = vld [vmem:[%s5 + $0xb8] sm:$0xff]
        %v2639 = vld [vmem:[%s5 + $0xc0] sm:$0xff]
        %v2640 = vld [vmem:[%s5 + $0xc8] sm:$0xff]
        %v2641 = vld [vmem:[%s5 + $0xd0] sm:$0xff]
        %v2642 = vld [vmem:[%s5 + $0xd8] sm:$0xff]
        %v2643 = vld [vmem:[%s5 + $0xe0] sm:$0xff]
        %v2644 = vld [vmem:[%s5 + $0xe8] sm:$0xff]
        %v2645 = vld [vmem:[%s5 + $0xf0] sm:$0xff]
        %v2646 = vld [vmem:[%s5 + $0xf8] sm:$0xff]
        %v2647 = vmul.f32 %v2615, %v2631
        %v2648 = vmul.f32 %v2616, %v2632
        %v2649 = vmul.f32 %v2617, %v2633
        %v2650 = vmul.f32 %v2618, %v2634
        %v2651 = vmul.f32 %v2619, %v2635
        %v2652 = vmul.f32 %v2620, %v2636
        %v2653 = vmul.f32 %v2621, %v2637
        %v2654 = vmul.f32 %v2622, %v2638
        %v2655 = vmul.f32 %v2623, %v2639
        %v2656 = vmul.f32 %v2624, %v2640
        %v2657 = vmul.f32 %v2625, %v2641
        %v2658 = vmul.f32 %v2626, %v2642
        %v2659 = vmul.f32 %v2627, %v2643
        %v2660 = vmul.f32 %v2628, %v2644
        %v2661 = vmul.f32 %v2629, %v2645
        %v2662 = vmul.f32 %v2630, %v2646
        %v2663 = vadd.f32 %v2647, %v2648
        %v2664 = vadd.f32 %v2663, %v2649
        %v2665 = vadd.f32 %v2664, %v2650
        %v2666 = vadd.f32 %v2665, %v2651
        %v2667 = vadd.f32 %v2666, %v2652
        %v2668 = vadd.f32 %v2667, %v2653
        %v2669 = vadd.f32 %v2668, %v2654
        %v2670 = vadd.f32 %v2669, %v2655
        %v2671 = vadd.f32 %v2670, %v2656
        %v2672 = vadd.f32 %v2671, %v2657
        %v2673 = vadd.f32 %v2672, %v2658
        %v2674 = vadd.f32 %v2673, %v2659
        %v2675 = vadd.f32 %v2674, %v2660
        %v2676 = vadd.f32 %v2675, %v2661
        %v2677 = vadd.f32 %v2676, %v2662
        %v2678 = vrot.slane %v2677, 4
        %v2679 = vadd.f32 %v2677, %v2678
        %v2680 = vrot.slane %v2679, 2
        %v2681 = vadd.f32 %v2679, %v2680
        %v2682 = vrot.slane %v2681, 1
        %v2683 = vadd.f32 %v2681, %v2682
        %v2684 = vadd.f32 %v2534, %v2683
        %2685 = vadd.xlane.f32.xlu0 %v2684
        %v2686 = vpop.xlane.xlu0 %2685
        %v2687 = vld [vmem:[#allocation5] sm:$0x1]
        %v2688 = vadd.f32 %v2686, %v2687
        %v2689 = vsub.f32 0.0, %v2688
        %v2690 = vmul.f32 %v2689, 1.442695
        %v2691 = vpow.pop %v2690
        %v2692 = vadd.f32 %v2691, 1.0
        %v2693 = vrcp.pop %v2692
        %vm2694 = vcmask 0
        %2695 = vst.msk [vmem:[%s7] sm:$0x1] %vm2694, %v2693
        %v2696 = vld [vmem:[#allocation2 + $0x100] sm:$0xff]
        %v2697 = vld [vmem:[#allocation2 + $0x108] sm:$0xff]
        %v2698 = vld [vmem:[#allocation2 + $0x110] sm:$0xff]
        %v2699 = vld [vmem:[#allocation2 + $0x118] sm:$0xff]
        %v2700 = vld [vmem:[#allocation2 + $0x120] sm:$0xff]
        %v2701 = vld [vmem:[#allocation2 + $0x128] sm:$0xff]
        %v2702 = vld [vmem:[#allocation2 + $0x130] sm:$0xff]
        %v2703 = vld [vmem:[#allocation2 + $0x138] sm:$0xff]
        %v2704 = vld [vmem:[#allocation2 + $0x140] sm:$0xff]
        %v2705 = vld [vmem:[#allocation2 + $0x148] sm:$0xff]
        %v2706 = vld [vmem:[#allocation2 + $0x150] sm:$0xff]
        %v2707 = vld [vmem:[#allocation2 + $0x158] sm:$0xff]
        %v2708 = vld [vmem:[#allocation2 + $0x160] sm:$0xff]
        %v2709 = vld [vmem:[#allocation2 + $0x168] sm:$0xff]
        %v2710 = vld [vmem:[#allocation2 + $0x170] sm:$0xff]
        %v2711 = vld [vmem:[#allocation2 + $0x178] sm:$0xff]
        %v2712 = vmul.f32 %v2696, %v2393
        %v2713 = vmul.f32 %v2697, %v2393
        %v2714 = vmul.f32 %v2698, %v2393
        %v2715 = vmul.f32 %v2699, %v2393
        %v2716 = vmul.f32 %v2700, %v2393
        %v2717 = vmul.f32 %v2701, %v2393
        %v2718 = vmul.f32 %v2702, %v2393
        %v2719 = vmul.f32 %v2703, %v2393
        %v2720 = vmul.f32 %v2704, %v2393
        %v2721 = vmul.f32 %v2705, %v2393
        %v2722 = vmul.f32 %v2706, %v2393
        %v2723 = vmul.f32 %v2707, %v2393
        %v2724 = vmul.f32 %v2708, %v2393
        %v2725 = vmul.f32 %v2709, %v2393
        %v2726 = vmul.f32 %v2710, %v2393
        %v2727 = vmul.f32 %v2711, %v2393
        %v2728 = vadd.f32 %v2712, %v2415
        %v2729 = vadd.f32 %v2713, %v2415
        %v2730 = vadd.f32 %v2714, %v2415
        %v2731 = vadd.f32 %v2715, %v2415
        %v2732 = vadd.f32 %v2716, %v2415
        %v2733 = vadd.f32 %v2717, %v2415
        %v2734 = vadd.f32 %v2718, %v2415
        %v2735 = vadd.f32 %v2719, %v2415
        %v2736 = vadd.f32 %v2720, %v2415
        %v2737 = vadd.f32 %v2721, %v2415
        %v2738 = vadd.f32 %v2722, %v2415
        %v2739 = vadd.f32 %v2723, %v2415
        %v2740 = vadd.f32 %v2724, %v2415
        %v2741 = vadd.f32 %v2725, %v2415
        %v2742 = vadd.f32 %v2726, %v2415
        %v2743 = vadd.f32 %v2727, %v2415
        %vm2744 = vcmp.ge.f32.partialorder %v2728, 0.0
        %vm2745 = vcmp.ge.f32.partialorder %v2729, 0.0
        %vm2746 = vcmp.ge.f32.partialorder %v2730, 0.0
        %vm2747 = vcmp.ge.f32.partialorder %v2731, 0.0
        %vm2748 = vcmp.ge.f32.partialorder %v2732, 0.0
        %vm2749 = vcmp.ge.f32.partialorder %v2733, 0.0
        %vm2750 = vcmp.ge.f32.partialorder %v2734, 0.0
        %vm2751 = vcmp.ge.f32.partialorder %v2735, 0.0
        %vm2752 = vcmp.ge.f32.partialorder %v2736, 0.0
        %vm2753 = vcmp.ge.f32.partialorder %v2737, 0.0
        %vm2754 = vcmp.ge.f32.partialorder %v2738, 0.0
        %vm2755 = vcmp.ge.f32.partialorder %v2739, 0.0
        %vm2756 = vcmp.ge.f32.partialorder %v2740, 0.0
        %vm2757 = vcmp.ge.f32.partialorder %v2741, 0.0
        %vm2758 = vcmp.ge.f32.partialorder %v2742, 0.0
        %vm2759 = vcmp.ge.f32.partialorder %v2743, 0.0
        %v2760 = vmul.f32 %v2728, 0.2
        %v2761 = vmul.f32 %v2729, 0.2
        %v2762 = vmul.f32 %v2730, 0.2
        %v2763 = vmul.f32 %v2731, 0.2
        %v2764 = vmul.f32 %v2732, 0.2
        %v2765 = vmul.f32 %v2733, 0.2
        %v2766 = vmul.f32 %v2734, 0.2
        %v2767 = vmul.f32 %v2735, 0.2
        %v2768 = vmul.f32 %v2736, 0.2
        %v2769 = vmul.f32 %v2737, 0.2
        %v2770 = vmul.f32 %v2738, 0.2
        %v2771 = vmul.f32 %v2739, 0.2
        %v2772 = vmul.f32 %v2740, 0.2
        %v2773 = vmul.f32 %v2741, 0.2
        %v2774 = vmul.f32 %v2742, 0.2
        %v2775 = vmul.f32 %v2743, 0.2
        %v2776 = vsel %vm2744, %v2728, %v2760
        %v2777 = vsel %vm2745, %v2729, %v2761
        %v2778 = vsel %vm2746, %v2730, %v2762
        %v2779 = vsel %vm2747, %v2731, %v2763
        %v2780 = vsel %vm2748, %v2732, %v2764
        %v2781 = vsel %vm2749, %v2733, %v2765
        %v2782 = vsel %vm2750, %v2734, %v2766
        %v2783 = vsel %vm2751, %v2735, %v2767
        %v2784 = vsel %vm2752, %v2736, %v2768
        %v2785 = vsel %vm2753, %v2737, %v2769
        %v2786 = vsel %vm2754, %v2738, %v2770
        %v2787 = vsel %vm2755, %v2739, %v2771
        %v2788 = vsel %vm2756, %v2740, %v2772
        %v2789 = vsel %vm2757, %v2741, %v2773
        %v2790 = vsel %vm2758, %v2742, %v2774
        %v2791 = vsel %vm2759, %v2743, %v2775
        %v2792 = vld [vmem:[%s5] sm:$0xff]
        %v2793 = vld [vmem:[%s5 + $0x8] sm:$0xff]
        %v2794 = vld [vmem:[%s5 + $0x10] sm:$0xff]
        %v2795 = vld [vmem:[%s5 + $0x18] sm:$0xff]
        %v2796 = vld [vmem:[%s5 + $0x20] sm:$0xff]
        %v2797 = vld [vmem:[%s5 + $0x28] sm:$0xff]
        %v2798 = vld [vmem:[%s5 + $0x30] sm:$0xff]
        %v2799 = vld [vmem:[%s5 + $0x38] sm:$0xff]
        %v2800 = vld [vmem:[%s5 + $0x40] sm:$0xff]
        %v2801 = vld [vmem:[%s5 + $0x48] sm:$0xff]
        %v2802 = vld [vmem:[%s5 + $0x50] sm:$0xff]
        %v2803 = vld [vmem:[%s5 + $0x58] sm:$0xff]
        %v2804 = vld [vmem:[%s5 + $0x60] sm:$0xff]
        %v2805 = vld [vmem:[%s5 + $0x68] sm:$0xff]
        %v2806 = vld [vmem:[%s5 + $0x70] sm:$0xff]
        %v2807 = vld [vmem:[%s5 + $0x78] sm:$0xff]
        %v2808 = vmul.f32 %v2776, %v2792
        %v2809 = vmul.f32 %v2777, %v2793
        %v2810 = vmul.f32 %v2778, %v2794
        %v2811 = vmul.f32 %v2779, %v2795
        %v2812 = vmul.f32 %v2780, %v2796
        %v2813 = vmul.f32 %v2781, %v2797
        %v2814 = vmul.f32 %v2782, %v2798
        %v2815 = vmul.f32 %v2783, %v2799
        %v2816 = vmul.f32 %v2784, %v2800
        %v2817 = vmul.f32 %v2785, %v2801
        %v2818 = vmul.f32 %v2786, %v2802
        %v2819 = vmul.f32 %v2787, %v2803
        %v2820 = vmul.f32 %v2788, %v2804
        %v2821 = vmul.f32 %v2789, %v2805
        %v2822 = vmul.f32 %v2790, %v2806
        %v2823 = vmul.f32 %v2791, %v2807
        %v2824 = vadd.f32 %v2808, %v2809
        %v2825 = vadd.f32 %v2824, %v2810
        %v2826 = vadd.f32 %v2825, %v2811
        %v2827 = vadd.f32 %v2826, %v2812
        %v2828 = vadd.f32 %v2827, %v2813
        %v2829 = vadd.f32 %v2828, %v2814
        %v2830 = vadd.f32 %v2829, %v2815
        %v2831 = vadd.f32 %v2830, %v2816
        %v2832 = vadd.f32 %v2831, %v2817
        %v2833 = vadd.f32 %v2832, %v2818
        %v2834 = vadd.f32 %v2833, %v2819
        %v2835 = vadd.f32 %v2834, %v2820
        %v2836 = vadd.f32 %v2835, %v2821
        %v2837 = vadd.f32 %v2836, %v2822
        %v2838 = vadd.f32 %v2837, %v2823
        %v2839 = vrot.slane %v2838, 4
        %v2840 = vadd.f32 %v2838, %v2839
        %v2841 = vrot.slane %v2840, 2
        %v2842 = vadd.f32 %v2840, %v2841
        %v2843 = vrot.slane %v2842, 1
        %v2844 = vadd.f32 %v2842, %v2843
        %v2845 = vadd.f32 %v2844, 0.0
        %v2846 = vld [vmem:[#allocation2 + $0x180] sm:$0xff]
        %v2847 = vld [vmem:[#allocation2 + $0x188] sm:$0xff]
        %v2848 = vld [vmem:[#allocation2 + $0x190] sm:$0xff]
        %v2849 = vld [vmem:[#allocation2 + $0x198] sm:$0xff]
        %v2850 = vld [vmem:[#allocation2 + $0x1a0] sm:$0xff]
        %v2851 = vld [vmem:[#allocation2 + $0x1a8] sm:$0xff]
        %v2852 = vld [vmem:[#allocation2 + $0x1b0] sm:$0xff]
        %v2853 = vld [vmem:[#allocation2 + $0x1b8] sm:$0xff]
        %v2854 = vld [vmem:[#allocation2 + $0x1c0] sm:$0xff]
        %v2855 = vld [vmem:[#allocation2 + $0x1c8] sm:$0xff]
        %v2856 = vld [vmem:[#allocation2 + $0x1d0] sm:$0xff]
        %v2857 = vld [vmem:[#allocation2 + $0x1d8] sm:$0xff]
        %v2858 = vld [vmem:[#allocation2 + $0x1e0] sm:$0xff]
        %v2859 = vld [vmem:[#allocation2 + $0x1e8] sm:$0xff]
        %v2860 = vld [vmem:[#allocation2 + $0x1f0] sm:$0xff]
        %v2861 = vld [vmem:[#allocation2 + $0x1f8] sm:$0xff]
        %v2862 = vmul.f32 %v2846, %v2393
        %v2863 = vmul.f32 %v2847, %v2393
        %v2864 = vmul.f32 %v2848, %v2393
        %v2865 = vmul.f32 %v2849, %v2393
        %v2866 = vmul.f32 %v2850, %v2393
        %v2867 = vmul.f32 %v2851, %v2393
        %v2868 = vmul.f32 %v2852, %v2393
        %v2869 = vmul.f32 %v2853, %v2393
        %v2870 = vmul.f32 %v2854, %v2393
        %v2871 = vmul.f32 %v2855, %v2393
        %v2872 = vmul.f32 %v2856, %v2393
        %v2873 = vmul.f32 %v2857, %v2393
        %v2874 = vmul.f32 %v2858, %v2393
        %v2875 = vmul.f32 %v2859, %v2393
        %v2876 = vmul.f32 %v2860, %v2393
        %v2877 = vmul.f32 %v2861, %v2393
        %v2878 = vadd.f32 %v2862, %v2415
        %v2879 = vadd.f32 %v2863, %v2415
        %v2880 = vadd.f32 %v2864, %v2415
        %v2881 = vadd.f32 %v2865, %v2415
        %v2882 = vadd.f32 %v2866, %v2415
        %v2883 = vadd.f32 %v2867, %v2415
        %v2884 = vadd.f32 %v2868, %v2415
        %v2885 = vadd.f32 %v2869, %v2415
        %v2886 = vadd.f32 %v2870, %v2415
        %v2887 = vadd.f32 %v2871, %v2415
        %v2888 = vadd.f32 %v2872, %v2415
        %v2889 = vadd.f32 %v2873, %v2415
        %v2890 = vadd.f32 %v2874, %v2415
        %v2891 = vadd.f32 %v2875, %v2415
        %v2892 = vadd.f32 %v2876, %v2415
        %v2893 = vadd.f32 %v2877, %v2415
        %vm2894 = vcmp.ge.f32.partialorder %v2878, 0.0
        %vm2895 = vcmp.ge.f32.partialorder %v2879, 0.0
        %vm2896 = vcmp.ge.f32.partialorder %v2880, 0.0
        %vm2897 = vcmp.ge.f32.partialorder %v2881, 0.0
        %vm2898 = vcmp.ge.f32.partialorder %v2882, 0.0
        %vm2899 = vcmp.ge.f32.partialorder %v2883, 0.0
        %vm2900 = vcmp.ge.f32.partialorder %v2884, 0.0
        %vm2901 = vcmp.ge.f32.partialorder %v2885, 0.0
        %vm2902 = vcmp.ge.f32.partialorder %v2886, 0.0
        %vm2903 = vcmp.ge.f32.partialorder %v2887, 0.0
        %vm2904 = vcmp.ge.f32.partialorder %v2888, 0.0
        %vm2905 = vcmp.ge.f32.partialorder %v2889, 0.0
        %vm2906 = vcmp.ge.f32.partialorder %v2890, 0.0
        %vm2907 = vcmp.ge.f32.partialorder %v2891, 0.0
        %vm2908 = vcmp.ge.f32.partialorder %v2892, 0.0
        %vm2909 = vcmp.ge.f32.partialorder %v2893, 0.0
        %v2910 = vmul.f32 %v2878, 0.2
        %v2911 = vmul.f32 %v2879, 0.2
        %v2912 = vmul.f32 %v2880, 0.2
        %v2913 = vmul.f32 %v2881, 0.2
        %v2914 = vmul.f32 %v2882, 0.2
        %v2915 = vmul.f32 %v2883, 0.2
        %v2916 = vmul.f32 %v2884, 0.2
        %v2917 = vmul.f32 %v2885, 0.2
        %v2918 = vmul.f32 %v2886, 0.2
        %v2919 = vmul.f32 %v2887, 0.2
        %v2920 = vmul.f32 %v2888, 0.2
        %v2921 = vmul.f32 %v2889, 0.2
        %v2922 = vmul.f32 %v2890, 0.2
        %v2923 = vmul.f32 %v2891, 0.2
        %v2924 = vmul.f32 %v2892, 0.2
        %v2925 = vmul.f32 %v2893, 0.2
        %v2926 = vsel %vm2894, %v2878, %v2910
        %v2927 = vsel %vm2895, %v2879, %v2911
        %v2928 = vsel %vm2896, %v2880, %v2912
        %v2929 = vsel %vm2897, %v2881, %v2913
        %v2930 = vsel %vm2898, %v2882, %v2914
        %v2931 = vsel %vm2899, %v2883, %v2915
        %v2932 = vsel %vm2900, %v2884, %v2916
        %v2933 = vsel %vm2901, %v2885, %v2917
        %v2934 = vsel %vm2902, %v2886, %v2918
        %v2935 = vsel %vm2903, %v2887, %v2919
        %v2936 = vsel %vm2904, %v2888, %v2920
        %v2937 = vsel %vm2905, %v2889, %v2921
        %v2938 = vsel %vm2906, %v2890, %v2922
        %v2939 = vsel %vm2907, %v2891, %v2923
        %v2940 = vsel %vm2908, %v2892, %v2924
        %v2941 = vsel %vm2909, %v2893, %v2925
        %v2942 = vld [vmem:[%s5 + $0x80] sm:$0xff]
        %v2943 = vld [vmem:[%s5 + $0x88] sm:$0xff]
        %v2944 = vld [vmem:[%s5 + $0x90] sm:$0xff]
        %v2945 = vld [vmem:[%s5 + $0x98] sm:$0xff]
        %v2946 = vld [vmem:[%s5 + $0xa0] sm:$0xff]
        %v2947 = vld [vmem:[%s5 + $0xa8] sm:$0xff]
        %v2948 = vld [vmem:[%s5 + $0xb0] sm:$0xff]
        %v2949 = vld [vmem:[%s5 + $0xb8] sm:$0xff]
        %v2950 = vld [vmem:[%s5 + $0xc0] sm:$0xff]
        %v2951 = vld [vmem:[%s5 + $0xc8] sm:$0xff]
        %v2952 = vld [vmem:[%s5 + $0xd0] sm:$0xff]
        %v2953 = vld [vmem:[%s5 + $0xd8] sm:$0xff]
        %v2954 = vld [vmem:[%s5 + $0xe0] sm:$0xff]
        %v2955 = vld [vmem:[%s5 + $0xe8] sm:$0xff]
        %v2956 = vld [vmem:[%s5 + $0xf0] sm:$0xff]
        %v2957 = vld [vmem:[%s5 + $0xf8] sm:$0xff]
        %v2958 = vmul.f32 %v2926, %v2942
        %v2959 = vmul.f32 %v2927, %v2943
        %v2960 = vmul.f32 %v2928, %v2944
        %v2961 = vmul.f32 %v2929, %v2945
        %v2962 = vmul.f32 %v2930, %v2946
        %v2963 = vmul.f32 %v2931, %v2947
        %v2964 = vmul.f32 %v2932, %v2948
        %v2965 = vmul.f32 %v2933, %v2949
        %v2966 = vmul.f32 %v2934, %v2950
        %v2967 = vmul.f32 %v2935, %v2951
        %v2968 = vmul.f32 %v2936, %v2952
        %v2969 = vmul.f32 %v2937, %v2953
        %v2970 = vmul.f32 %v2938, %v2954
        %v2971 = vmul.f32 %v2939, %v2955
        %v2972 = vmul.f32 %v2940, %v2956
        %v2973 = vmul.f32 %v2941, %v2957
        %v2974 = vadd.f32 %v2958, %v2959
        %v2975 = vadd.f32 %v2974, %v2960
        %v2976 = vadd.f32 %v2975, %v2961
        %v2977 = vadd.f32 %v2976, %v2962
        %v2978 = vadd.f32 %v2977, %v2963
        %v2979 = vadd.f32 %v2978, %v2964
        %v2980 = vadd.f32 %v2979, %v2965
        %v2981 = vadd.f32 %v2980, %v2966
        %v2982 = vadd.f32 %v2981, %v2967
        %v2983 = vadd.f32 %v2982, %v2968
        %v2984 = vadd.f32 %v2983, %v2969
        %v2985 = vadd.f32 %v2984, %v2970
        %v2986 = vadd.f32 %v2985, %v2971
        %v2987 = vadd.f32 %v2986, %v2972
        %v2988 = vadd.f32 %v2987, %v2973
        %v2989 = vrot.slane %v2988, 4
        %v2990 = vadd.f32 %v2988, %v2989
        %v2991 = vrot.slane %v2990, 2
        %v2992 = vadd.f32 %v2990, %v2991
        %v2993 = vrot.slane %v2992, 1
        %v2994 = vadd.f32 %v2992, %v2993
        %v2995 = vadd.f32 %v2845, %v2994
        %2996 = vadd.xlane.f32.xlu0 %v2995
        %v2997 = vpop.xlane.xlu0 %2996
        %v2998 = vld [vmem:[#allocation5] sm:$0x1]
        %v2999 = vadd.f32 %v2997, %v2998
        %v3000 = vsub.f32 0.0, %v2999
        %v3001 = vmul.f32 %v3000, 1.442695
        %v3002 = vpow.pop %v3001
        %v3003 = vadd.f32 %v3002, 1.0
        %v3004 = vrcp.pop %v3003
        %3005 = vst.msk [vmem:[%s7 + $0x1] sm:$0x1] %vm2694, %v3004
      $region56: #{discriminator_x_forward.5} parent=47 // pred_fallthru
        _
      // Predicated region
      $region57: #{discriminator_x_forward.5} parent=47 // pred_check
        %p3006 = pneg %p185
      $region58: #{discriminator_x_forward.5} parent=47 // pred_check_branch
        %3008 = sbr.rel (%p3006) target = $region60
      $region59: #{discriminator_x_forward.5} parent=47 // pred_region
        _
      $region60: #{discriminator_x_forward.5} parent=47 // pred_fallthru
        _
      // Predicated region
      $region61: #{discriminator_x_forward.5} parent=47 // pred_check
        %p3009 = pneg %p185
      $region62: #{discriminator_x_forward.5} parent=47 // pred_check_branch
        %3011 = sbr.rel (%p3009) target = $region64
      $region63: #{discriminator_x_forward.5} parent=47 // pred_region
        _
      $region64: #{discriminator_x_forward.5} parent=47 // pred_fallthru
        _
    $region48: #{discriminator_x_forward.5} parent=5 // pred_fallthru
      _
    %p3012 = scmp.le.s32.totalorder 2, %s15
    // Predicated region
    $region65: #{discriminator_x_forward.5} parent=5 // pred_check
      %p3013 = pneg %p3012
    $region66: #{discriminator_x_forward.5} parent=5 // pred_check_branch
      %3015 = sbr.rel (%p3013) target = $region68
    $region67: #{discriminator_x_forward.5} parent=5 // pred_region
      %s3016 = ssub.s32 %s15, 2
    $region68: #{discriminator_x_forward.5} parent=5 // pred_fallthru
      _
  $region6: #{discriminator_x_forward.5} parent=0 // loop_footer
    %s19 = sadd.s32 1, %s15
  $region7: #{discriminator_x_forward.5} parent=0 // loop_footer_branch
    %14 = sbr.rel target = $region3
  $region8: #{discriminator_x_forward.5} parent=0 // loop_exit
    _

</llo_original>
